<compile_context>
chip_gen: v6e
topology: v6e:2x2x1
jax: 0.10.0
libtpu: 0.0.40
codegen_flags: <defaults>
</compile_context>

<pallas_src>
import functools

import jax
import jax.numpy as jnp
import numpy as np
from jax.experimental import pallas as pl
from jax.experimental.pallas import tpu as pltpu


def _round_up(x, m):
    return (x + m - 1) // m * m


def _pick_batch_tile(batch):
    """~256-row batch tiles; keep >=2 grid steps (v7x megacore) when possible."""
    bp = _round_up(max(batch, 1), 8)
    if bp <= 128:
        return bp
    steps = max(2, pl.cdiv(bp, 256))
    return _round_up(pl.cdiv(bp, steps), 8)


# ----------------------------------------------------------------------------
# The fused network kernel (one batch tile per grid step)
# ----------------------------------------------------------------------------
def _network_kernel(mani_ref, topo_ref, slab_ref, *rest,
                    mat_order, vec_rows, num_layers):
    n_mats = len(mat_order)
    mats = dict(zip(mat_order, rest[:n_mats]))
    out_ref = rest[n_mats]

    # ---- fused primitive helpers (all stay in VMEM / vregs) ----
    def vec(name):                           # (1, width) row of the packed slab
        row, width = vec_rows[name]
        return slab_ref[row:row + 1, :width]

    def mat(name):
        return mats[name][...]

    def linear(x, wname, bname):
        return jnp.dot(x, mat(wname), preferred_element_type=jnp.float32) + vec(bname)

    def layer_norm(x, gname, bname, eps=1e-5):
        mu = jnp.mean(x, axis=-1, keepdims=True)
        xc = x - mu
        var = jnp.mean(xc * xc, axis=-1, keepdims=True)
        return xc * jax.lax.rsqrt(var + eps) * vec(gname) + vec(bname)

    def relu(t):
        return jnp.maximum(t, 0.0)

    def sigmoid(t):
        return 1.0 / (1.0 + jnp.exp(-t))

    def gelu(t):
        # TODO(synk): tanh approximation of the erf-based F.gelu default.
        c = 0.7978845608028654  # sqrt(2/pi)
        return 0.5 * t * (1.0 + jnp.tanh(c * (t + 0.044715 * t * t * t)))

    def projector(x, p):
        h = relu(layer_norm(linear(x, p + ".w1", p + ".b1"),
                            p + ".ln1_g", p + ".ln1_b"))
        h = layer_norm(linear(h, p + ".w2", p + ".b2"),
                       p + ".ln2_g", p + ".ln2_b")
        if (p + ".aw") in mats:              # in_dim != out_dim -> adapter
            return h + linear(x, p + ".aw", p + ".ab")
        return h + x                         # identity residual

    # ---- inputs for this batch tile ----
    m_in = mani_ref[...]                     # (TB, manifold_dim)
    t_in = topo_ref[...]                     # (TB, topo_dim)

    m_tok = projector(m_in, "mp")            # (TB, F/2)
    t_tok = projector(t_in, "tp")            # (TB, F/2)

    # combined token = [m_tok | t_tok] + [emb_m | emb_t]; built with placement
    # matmuls (no in-kernel lane concat); type embeddings folded into the bias.
    tok = (jnp.dot(m_tok, mat("place_l"), preferred_element_type=jnp.float32)
           + jnp.dot(t_tok, mat("place_r"), preferred_element_type=jnp.float32)
           + vec("emb"))                     # (TB, F)

    # feature_sequence = [tok, tok]: the two tokens are identical and every
    # eval-mode op keeps them identical, so the attention softmax over the two
    # equal scores is exactly [0.5, 0.5] (=> context == value) and the
    # attention pooling is the identity.  Whole network collapses to one token.
    x = relu(layer_norm(linear(tok, "mixer.w", "mixer.b"),
                        "mixer.ln_g", "mixer.ln_b")) + tok

    for li in range(num_layers):
        p = f"L{li}"
        # --- gated self-attention (identical tokens => context == value) ---
        resid = x
        n = layer_norm(x, p + ".attn.ln_g", p + ".attn.ln_b")
        v = linear(n, p + ".attn.v_w", p + ".attn.v_b")            # (TB, adj)
        o = linear(v, p + ".attn.o_w", p + ".attn.o_b")            # (TB, F)
        g = sigmoid(linear(o, p + ".attn.g_w", p + ".attn.g_b"))   # (TB, 1)
        attn_out = g * o + (1.0 - g) * resid
        x = x + vec(p + ".attn_scale") * attn_out

        # --- feed-forward ---
        h = layer_norm(x, p + ".ff.ln_g", p + ".ff.ln_b")
        h = gelu(linear(h, p + ".ff.w1", p + ".ff.b1"))
        h = gelu(linear(h, p + ".ff.w2", p + ".ff.b2"))
        h = linear(h, p + ".ff.w3", p + ".ff.b3")
        x = h + vec(p + ".ff.res_scale") * x

    pooled = x                               # attention pooling == identity here

    # ---- classifier ----
    h = relu(layer_norm(linear(pooled, "cls.w1", "cls.b1"),
                        "cls.ln1_g", "cls.ln1_b"))
    h = relu(layer_norm(linear(h, "cls.w2", "cls.b2"),
                        "cls.ln2_g", "cls.ln2_b"))
    logits = linear(h, "cls.w3", "cls.b3")                          # (TB, 2)

    # ---- evidential uncertainty head (BatchNorm folded, eval mode) ----
    e = relu(linear(pooled, "unc.ev_w1", "unc.ev_b1"))
    e = relu(linear(e, "unc.ev_w2", "unc.ev_b2"))
    evidence = jnp.exp(linear(e, "unc.ev_w3", "unc.ev_b3"))         # (TB, 4)
    alpha = evidence + 1.0
    s_sum = jnp.sum(alpha, axis=-1, keepdims=True)
    probs = alpha / s_sum
    uncertainty = 2.0 / s_sum                                       # K = 2

    c = relu(linear(pooled, "unc.cf_w1", "unc.cf_b1"))
    confidence = sigmoid(linear(c, "unc.cf_w2", "unc.cf_b2"))       # (TB, 1)
    adj_unc = uncertainty * (1.0 - confidence)

    # single lane-contiguous write: [logits(2) | probs(4) | unc(1) | pad(1)]
    out_ref[:, 0:2] = logits
    out_ref[:, 2:6] = probs
    out_ref[:, 6:7] = adj_unc
    out_ref[:, 7:8] = jnp.zeros_like(adj_unc)


# ----------------------------------------------------------------------------
# Wrapper: one pallas_call, grid over batch tiles, weights resident in VMEM
# ----------------------------------------------------------------------------
def classification_network(manifold, topo, params, *, batch_tile=None):
    manifold = jnp.asarray(manifold, jnp.float32)
    topo = jnp.asarray(topo, jnp.float32)
    B = manifold.shape[0]

    tb = _pick_batch_tile(B) if batch_tile is None else batch_tile
    Bp = _round_up(max(B, 1), tb)
    if Bp != B:
        manifold = jnp.pad(manifold, ((0, Bp - B), (0, 0)))
        topo = jnp.pad(topo, ((0, Bp - B), (0, 0)))

    slab = params["slab"]
    mat_order = params["mat_order"]
    mats = [params["mats"][name] for name in mat_order]

    def _const_spec(a):          # resident weight: index never changes
        return pl.BlockSpec(a.shape, lambda i: (0, 0))

    grid = (Bp // tb,)
    in_specs = ([pl.BlockSpec((tb, manifold.shape[1]), lambda i: (i, 0)),
                 pl.BlockSpec((tb, topo.shape[1]), lambda i: (i, 0)),
                 _const_spec(slab)]
                + [_const_spec(a) for a in mats])
    out_specs = pl.BlockSpec((tb, 8), lambda i: (i, 0))
    out_shape = jax.ShapeDtypeStruct((Bp, 8), jnp.float32)

    matmul_elems = sum(int(np.prod(a.shape)) for a in mats)
    cost = pl.CostEstimate(
        flops=int(2 * Bp * matmul_elems),
        transcendentals=int(Bp * 2400),
        bytes_accessed=int(4 * (matmul_elems + slab.size
                                + Bp * (manifold.shape[1] + topo.shape[1] + 8))))

    kernel = functools.partial(_network_kernel,
                               mat_order=mat_order,
                               vec_rows=params["vec_rows"],
                               num_layers=params["num_layers"])
    packed = pl.pallas_call(
        kernel,
        grid_spec=pltpu.PrefetchScalarGridSpec(
            num_scalar_prefetch=0,
            grid=grid,
            in_specs=in_specs,
            out_specs=out_specs),
        out_shape=out_shape,
        compiler_params=pltpu.CompilerParams(
            dimension_semantics=("parallel",),
            vmem_limit_bytes=48 * 1024 * 1024),
        cost_estimate=cost,
    )(manifold, topo, slab, *mats)

    return packed[:B, 0:2], packed[:B, 2:6], packed[:B, 6]


# ----------------------------------------------------------------------------
# Deterministic parameter construction (eval-mode, BN folded, slab-packed)
# ----------------------------------------------------------------------------
def init_params(key, manifold_dim=64, topo_dim=32, feature_dim=128,
                hidden_dim=256, num_layers=4, num_heads=6):
    half = feature_dim // 2
    if feature_dim % num_heads != 0:
        adj = (feature_dim // num_heads + 1) * num_heads
    else:
        adj = feature_dim

    keys = iter(jax.random.split(key, 512))
    nk = lambda: next(keys)

    mats, vecs = {}, {}

    def add_dense(wname, bname, fan_in, fan_out):
        s = float(1.0 / np.sqrt(fan_in))
        mats[wname] = s * jax.random.normal(nk(), (fan_in, fan_out), jnp.float32)
        vecs[bname] = 0.02 * jax.random.normal(nk(), (fan_out,), jnp.float32)

    def add_ln(gname, bname, dim):
        vecs[gname] = jnp.ones((dim,), jnp.float32)
        vecs[bname] = jnp.zeros((dim,), jnp.float32)

    def add_projector(prefix, in_dim, out_dim):
        mid = in_dim + out_dim
        add_dense(prefix + ".w1", prefix + ".b1", in_dim, mid)
        add_ln(prefix + ".ln1_g", prefix + ".ln1_b", mid)
        add_dense(prefix + ".w2", prefix + ".b2", mid, out_dim)
        add_ln(prefix + ".ln2_g", prefix + ".ln2_b", out_dim)
        if in_dim != out_dim:
            add_dense(prefix + ".aw", prefix + ".ab", in_dim, out_dim)

    add_projector("mp", manifold_dim, half)
    add_projector("tp", topo_dim, half)

    # type embeddings, folded into the placement bias: [emb_m | emb_t]
    vecs["emb"] = jnp.concatenate(
        [jax.random.normal(nk(), (half,), jnp.float32),
         jax.random.normal(nk(), (half,), jnp.float32)])

    # constant placement matrices (avoid in-kernel lane concat of the halves)
    eye = np.eye(half, dtype=np.float32)
    zeros = np.zeros((half, half), np.float32)
    mats["place_l"] = jnp.asarray(np.concatenate([eye, zeros], axis=1))
    mats["place_r"] = jnp.asarray(np.concatenate([zeros, eye], axis=1))

    add_dense("mixer.w", "mixer.b", feature_dim, feature_dim)
    add_ln("mixer.ln_g", "mixer.ln_b", feature_dim)

    # NOTE: query/key/query_pre/key_pre weights and the attention-pooling MLP
    # are not materialised: with two identical tokens both softmaxes are
    # exactly [0.5, 0.5], so those parameters have no effect on the eval-mode
    # forward pass (validated against the full two-token reference).
    for li in range(num_layers):
        p = f"L{li}"
        add_ln(p + ".attn.ln_g", p + ".attn.ln_b", feature_dim)
        add_dense(p + ".attn.v_w", p + ".attn.v_b", feature_dim, adj)
        add_dense(p + ".attn.o_w", p + ".attn.o_b", adj, feature_dim)
        add_dense(p + ".attn.g_w", p + ".attn.g_b", feature_dim, 1)
        vecs[p + ".attn_scale"] = jnp.full((1,), 0.5, jnp.float32)
        add_ln(p + ".ff.ln_g", p + ".ff.ln_b", feature_dim)
        add_dense(p + ".ff.w1", p + ".ff.b1", feature_dim, hidden_dim)
        add_dense(p + ".ff.w2", p + ".ff.b2", hidden_dim, hidden_dim)
        add_dense(p + ".ff.w3", p + ".ff.b3", hidden_dim, feature_dim)
        vecs[p + ".ff.res_scale"] = jnp.full((1,), 0.5, jnp.float32)

    add_dense("cls.w1", "cls.b1", feature_dim, hidden_dim)
    add_ln("cls.ln1_g", "cls.ln1_b", hidden_dim)
    add_dense("cls.w2", "cls.b2", hidden_dim, hidden_dim // 2)
    add_ln("cls.ln2_g", "cls.ln2_b", hidden_dim // 2)
    add_dense("cls.w3", "cls.b3", hidden_dim // 2, 2)

    # Uncertainty estimator (hidden = hidden_dim // 2); BatchNorm1d eval-mode
    # with default running stats (mean=0, var=1, gamma=1, beta=0) folded in.
    uhid = hidden_dim // 2
    bn_scale = float(1.0 / np.sqrt(1.0 + 1e-5))
    add_dense("unc.ev_w1", "unc.ev_b1", feature_dim, uhid)
    add_dense("unc.ev_w2", "unc.ev_b2", uhid, uhid // 2)
    add_dense("unc.ev_w3", "unc.ev_b3", uhid // 2, 4)
    mats["unc.ev_w1"] = mats["unc.ev_w1"] * bn_scale
    vecs["unc.ev_b1"] = vecs["unc.ev_b1"] * bn_scale
    mats["unc.ev_w2"] = mats["unc.ev_w2"] * bn_scale
    vecs["unc.ev_b2"] = vecs["unc.ev_b2"] * bn_scale
    add_dense("unc.cf_w1", "unc.cf_b1", feature_dim, uhid // 4)
    add_dense("unc.cf_w2", "unc.cf_b2", uhid // 4, 1)

    # --- pack every (N,) vector into one (rows, slab_width) slab ---
    slab_width = _round_up(max(int(v.shape[0]) for v in vecs.values()), 128)
    names = tuple(sorted(vecs))
    slab = np.zeros((len(names), slab_width), np.float32)
    vec_rows = {}
    for row, name in enumerate(names):
        v = np.asarray(vecs[name]).reshape(-1)
        slab[row, :v.size] = v
        vec_rows[name] = (row, int(v.size))

    return dict(slab=jnp.asarray(slab),
                mats=mats,
                vecs=vecs,
                mat_order=tuple(sorted(mats)),
                vec_rows=vec_rows,
                num_layers=num_layers,
                num_heads=num_heads)


# ----------------------------------------------------------------------------
# Pure-JAX eval-mode reference: runs the FULL two-token pipeline, including the
# q/k score path and the attention-pooling MLP with freshly drawn weights.
# With two identical tokens those softmaxes are exactly [0.5, 0.5], so the
# outputs do not depend on those parameters -> must match the collapsed kernel.
# ----------------------------------------------------------------------------
def _reference_forward(manifold, topo, params, key):
    mats, vecs = params["mats"], params["vecs"]
    num_layers, num_heads = params["num_layers"], params["num_heads"]
    hi = jax.lax.Precision.HIGHEST

    def lin(x, wn, bn):
        return jnp.dot(x, mats[wn], precision=hi) + vecs[bn]

    def lnorm(x, gn, bn, eps=1e-5):
        mu = jnp.mean(x, -1, keepdims=True)
        var = jnp.mean((x - mu) ** 2, -1, keepdims=True)
        return (x - mu) * jax.lax.rsqrt(var + eps) * vecs[gn] + vecs[bn]

    relu = lambda t: jnp.maximum(t, 0.0)
    sig = lambda t: 1.0 / (1.0 + jnp.exp(-t))
    gelu = lambda t: 0.5 * t * (1.0 + jnp.tanh(0.7978845608028654
                                               * (t + 0.044715 * t ** 3)))

    def projector(x, p):
        h = relu(lnorm(lin(x, p + ".w1", p + ".b1"), p + ".ln1_g", p + ".ln1_b"))
        h = lnorm(lin(h, p + ".w2", p + ".b2"), p + ".ln2_g", p + ".ln2_b")
        return h + (lin(x, p + ".aw", p + ".ab") if (p + ".aw") in mats else x)

    B = manifold.shape[0]
    half = vecs["emb"].shape[0] // 2
    F = 2 * half
    m = projector(manifold, "mp") + vecs["emb"][:half]
    t = projector(topo, "tp") + vecs["emb"][half:]
    combined = jnp.concatenate([m, t], axis=-1)                    # (B, F)
    x = jnp.stack([combined, combined], axis=1)                    # (B, 2, F)

    x = relu(lnorm(lin(x, "mixer.w", "mixer.b"), "mixer.ln_g", "mixer.ln_b")) + x

    adj = mats["L0.attn.v_w"].shape[1]
    hd = adj // num_heads
    rng = iter(jax.random.split(key, 4 * num_layers + 2))

    def rand_w(kin, kout):
        return jax.random.normal(next(rng), (kin, kout), jnp.float32) / np.sqrt(kin)

    for li in range(num_layers):
        p = f"L{li}"
        resid = x
        n = lnorm(x, p + ".attn.ln_g", p + ".attn.ln_b")
        q = jnp.dot(jnp.dot(n, rand_w(F, F), precision=hi), rand_w(F, adj),
                    precision=hi).reshape(B, 2, num_heads, hd).transpose(0, 2, 1, 3)
        k = jnp.dot(jnp.dot(n, rand_w(F, F), precision=hi), rand_w(F, adj),
                    precision=hi).reshape(B, 2, num_heads, hd).transpose(0, 2, 1, 3)
        v = lin(n, p + ".attn.v_w", p + ".attn.v_b").reshape(
            B, 2, num_heads, hd).transpose(0, 2, 1, 3)
        scores = jnp.einsum("bhqd,bhkd->bhqk", q, k, precision=hi) / np.sqrt(hd)
        attn = jax.nn.softmax(scores, axis=-1)
        ctx = jnp.einsum("bhqk,bhkd->bhqd", attn, v, precision=hi)
        ctx = ctx.transpose(0, 2, 1, 3).reshape(B, 2, adj)
        o = lin(ctx, p + ".attn.o_w", p + ".attn.o_b")
        g = sig(lin(o, p + ".attn.g_w", p + ".attn.g_b"))
        out = g * o + (1.0 - g) * resid
        x = x + vecs[p + ".attn_scale"] * out
        h = lnorm(x, p + ".ff.ln_g", p + ".ff.ln_b")
        h = gelu(lin(h, p + ".ff.w1", p + ".ff.b1"))
        h = gelu(lin(h, p + ".ff.w2", p + ".ff.b2"))
        h = lin(h, p + ".ff.w3", p + ".ff.b3")
        x = h + vecs[p + ".ff.res_scale"] * x

    # attention pooling with a random score MLP (LayerNorm default affine)
    s = jnp.dot(x, rand_w(F, half), precision=hi)
    mu = jnp.mean(s, -1, keepdims=True)
    var = jnp.mean((s - mu) ** 2, -1, keepdims=True)
    s = relu((s - mu) * jax.lax.rsqrt(var + 1e-5))
    s = jnp.dot(s, rand_w(half, 1), precision=hi)                  # (B, 2, 1)
    aw = jax.nn.softmax(s, axis=1)
    pooled = jnp.sum(x * aw, axis=1)                               # (B, F)

    h = relu(lnorm(lin(pooled, "cls.w1", "cls.b1"), "cls.ln1_g", "cls.ln1_b"))
    h = relu(lnorm(lin(h, "cls.w2", "cls.b2"), "cls.ln2_g", "cls.ln2_b"))
    logits = lin(h, "cls.w3", "cls.b3")

    e = relu(lin(pooled, "unc.ev_w1", "unc.ev_b1"))
    e = relu(lin(e, "unc.ev_w2", "unc.ev_b2"))
    evidence = jnp.exp(lin(e, "unc.ev_w3", "unc.ev_b3"))
    alpha = evidence + 1.0
    S = jnp.sum(alpha, axis=-1, keepdims=True)
    probs = alpha / S
    uncertainty = 2.0 / S[:, 0]
    c = relu(lin(pooled, "unc.cf_w1", "unc.cf_b1"))
    confidence = sig(lin(c, "unc.cf_w2", "unc.cf_b2"))[:, 0]
    return logits, probs, uncertainty * (1.0 - confidence)


if __name__ == "__main__":
    key = jax.random.PRNGKey(0)
    k_m, k_t, k_p, k_ref = jax.random.split(key, 4)
    B = 4
    manifold_features = jax.random.normal(k_m, (B, 64), jnp.float32)
    topo_features = jax.random.normal(k_t, (B, 32), jnp.float32)
    params = init_params(k_p)

    fwd = jax.jit(lambda m, t: classification_network(m, t, params))
    logits, probs, unc = jax.block_until_ready(
        fwd(manifold_features, topo_features))

    assert logits.shape == (B, 2), logits.shape
    assert probs.shape == (B, 4), probs.shape
    assert unc.shape == (B,), unc.shape
    assert bool(jnp.all(jnp.isfinite(logits)))
    assert bool(jnp.all(jnp.isfinite(probs)))
    assert bool(jnp.all(jnp.isfinite(unc)))
    assert bool(jnp.allclose(jnp.sum(probs, axis=-1), 1.0, atol=1e-5))

    # Cross-check the collapsed kernel against the full two-token reference.
    r_logits, r_probs, r_unc = _reference_forward(
        manifold_features, topo_features, params, k_ref)
    np.testing.assert_allclose(np.asarray(logits), np.asarray(r_logits),
                               rtol=2e-2, atol=2e-2)
    np.testing.assert_allclose(np.asarray(probs), np.asarray(r_probs),
                               rtol=2e-2, atol=2e-2)
    np.testing.assert_allclose(np.asarray(unc), np.asarray(r_unc),
                               rtol=2e-2, atol=2e-2)
    print("KERNEL_OK")
</pallas_src>

<mosaic_0001>
module attributes {stable_mosaic.version = 11 : i64} {
  func.func @_network_kernel(%arg0: i32, %arg1: memref<8x64xf32, #tpu.memory_space<vmem>>, %arg2: memref<8x32xf32, #tpu.memory_space<vmem>>, %arg3: memref<77x256xf32, #tpu.memory_space<vmem>>, %arg4: memref<128x1xf32, #tpu.memory_space<vmem>>, %arg5: memref<132x128xf32, #tpu.memory_space<vmem>>, %arg6: memref<128x132xf32, #tpu.memory_space<vmem>>, %arg7: memref<128x256xf32, #tpu.memory_space<vmem>>, %arg8: memref<256x256xf32, #tpu.memory_space<vmem>>, %arg9: memref<256x128xf32, #tpu.memory_space<vmem>>, %arg10: memref<128x1xf32, #tpu.memory_space<vmem>>, %arg11: memref<132x128xf32, #tpu.memory_space<vmem>>, %arg12: memref<128x132xf32, #tpu.memory_space<vmem>>, %arg13: memref<128x256xf32, #tpu.memory_space<vmem>>, %arg14: memref<256x256xf32, #tpu.memory_space<vmem>>, %arg15: memref<256x128xf32, #tpu.memory_space<vmem>>, %arg16: memref<128x1xf32, #tpu.memory_space<vmem>>, %arg17: memref<132x128xf32, #tpu.memory_space<vmem>>, %arg18: memref<128x132xf32, #tpu.memory_space<vmem>>, %arg19: memref<128x256xf32, #tpu.memory_space<vmem>>, %arg20: memref<256x256xf32, #tpu.memory_space<vmem>>, %arg21: memref<256x128xf32, #tpu.memory_space<vmem>>, %arg22: memref<128x1xf32, #tpu.memory_space<vmem>>, %arg23: memref<132x128xf32, #tpu.memory_space<vmem>>, %arg24: memref<128x132xf32, #tpu.memory_space<vmem>>, %arg25: memref<128x256xf32, #tpu.memory_space<vmem>>, %arg26: memref<256x256xf32, #tpu.memory_space<vmem>>, %arg27: memref<256x128xf32, #tpu.memory_space<vmem>>, %arg28: memref<128x256xf32, #tpu.memory_space<vmem>>, %arg29: memref<256x128xf32, #tpu.memory_space<vmem>>, %arg30: memref<128x2xf32, #tpu.memory_space<vmem>>, %arg31: memref<128x128xf32, #tpu.memory_space<vmem>>, %arg32: memref<64x128xf32, #tpu.memory_space<vmem>>, %arg33: memref<128x64xf32, #tpu.memory_space<vmem>>, %arg34: memref<64x128xf32, #tpu.memory_space<vmem>>, %arg35: memref<64x128xf32, #tpu.memory_space<vmem>>, %arg36: memref<32x64xf32, #tpu.memory_space<vmem>>, %arg37: memref<32x96xf32, #tpu.memory_space<vmem>>, %arg38: memref<96x64xf32, #tpu.memory_space<vmem>>, %arg39: memref<128x32xf32, #tpu.memory_space<vmem>>, %arg40: memref<32x1xf32, #tpu.memory_space<vmem>>, %arg41: memref<128x128xf32, #tpu.memory_space<vmem>>, %arg42: memref<128x64xf32, #tpu.memory_space<vmem>>, %arg43: memref<64x4xf32, #tpu.memory_space<vmem>>, %arg44: memref<8x8xf32, #tpu.memory_space<vmem>>) attributes {dimension_semantics = [#tpu.dimension_semantics<parallel>], iteration_bounds = array<i64: 1>, scalar_prefetch = 0 : i64, scratch_operands = 0 : i64, tpu.core_type = #tpu.core_type<tc>, window_params = [{transform_indices = @transform_0, window_bounds = array<i64: 8, 64>}, {transform_indices = @transform_1, window_bounds = array<i64: 8, 32>}, {pipeline_mode = #tpu.pipeline_mode<synchronous>, transform_indices = @transform_2, window_bounds = array<i64: 77, 256>}, {pipeline_mode = #tpu.pipeline_mode<synchronous>, transform_indices = @transform_3, window_bounds = array<i64: 128, 1>}, {pipeline_mode = #tpu.pipeline_mode<synchronous>, transform_indices = @transform_4, window_bounds = array<i64: 132, 128>}, {pipeline_mode = #tpu.pipeline_mode<synchronous>, transform_indices = @transform_5, window_bounds = array<i64: 128, 132>}, {pipeline_mode = #tpu.pipeline_mode<synchronous>, transform_indices = @transform_6, window_bounds = array<i64: 128, 256>}, {pipeline_mode = #tpu.pipeline_mode<synchronous>, transform_indices = @transform_7, window_bounds = array<i64: 256, 256>}, {pipeline_mode = #tpu.pipeline_mode<synchronous>, transform_indices = @transform_8, window_bounds = array<i64: 256, 128>}, {pipeline_mode = #tpu.pipeline_mode<synchronous>, transform_indices = @transform_9, window_bounds = array<i64: 128, 1>}, {pipeline_mode = #tpu.pipeline_mode<synchronous>, transform_indices = @transform_10, window_bounds = array<i64: 132, 128>}, {pipeline_mode = #tpu.pipeline_mode<synchronous>, transform_indices = @transform_11, window_bounds = array<i64: 128, 132>}, {pipeline_mode = #tpu.pipeline_mode<synchronous>, transform_indices = @transform_12, window_bounds = array<i64: 128, 256>}, {pipeline_mode = #tpu.pipeline_mode<synchronous>, transform_indices = @transform_13, window_bounds = array<i64: 256, 256>}, {pipeline_mode = #tpu.pipeline_mode<synchronous>, transform_indices = @transform_14, window_bounds = array<i64: 256, 128>}, {pipeline_mode = #tpu.pipeline_mode<synchronous>, transform_indices = @transform_15, window_bounds = array<i64: 128, 1>}, {pipeline_mode = #tpu.pipeline_mode<synchronous>, transform_indices = @transform_16, window_bounds = array<i64: 132, 128>}, {pipeline_mode = #tpu.pipeline_mode<synchronous>, transform_indices = @transform_17, window_bounds = array<i64: 128, 132>}, {pipeline_mode = #tpu.pipeline_mode<synchronous>, transform_indices = @transform_18, window_bounds = array<i64: 128, 256>}, {pipeline_mode = #tpu.pipeline_mode<synchronous>, transform_indices = @transform_19, window_bounds = array<i64: 256, 256>}, {pipeline_mode = #tpu.pipeline_mode<synchronous>, transform_indices = @transform_20, window_bounds = array<i64: 256, 128>}, {pipeline_mode = #tpu.pipeline_mode<synchronous>, transform_indices = @transform_21, window_bounds = array<i64: 128, 1>}, {pipeline_mode = #tpu.pipeline_mode<synchronous>, transform_indices = @transform_22, window_bounds = array<i64: 132, 128>}, {pipeline_mode = #tpu.pipeline_mode<synchronous>, transform_indices = @transform_23, window_bounds = array<i64: 128, 132>}, {pipeline_mode = #tpu.pipeline_mode<synchronous>, transform_indices = @transform_24, window_bounds = array<i64: 128, 256>}, {pipeline_mode = #tpu.pipeline_mode<synchronous>, transform_indices = @transform_25, window_bounds = array<i64: 256, 256>}, {pipeline_mode = #tpu.pipeline_mode<synchronous>, transform_indices = @transform_26, window_bounds = array<i64: 256, 128>}, {pipeline_mode = #tpu.pipeline_mode<synchronous>, transform_indices = @transform_27, window_bounds = array<i64: 128, 256>}, {pipeline_mode = #tpu.pipeline_mode<synchronous>, transform_indices = @transform_28, window_bounds = array<i64: 256, 128>}, {pipeline_mode = #tpu.pipeline_mode<synchronous>, transform_indices = @transform_29, window_bounds = array<i64: 128, 2>}, {pipeline_mode = #tpu.pipeline_mode<synchronous>, transform_indices = @transform_30, window_bounds = array<i64: 128, 128>}, {pipeline_mode = #tpu.pipeline_mode<synchronous>, transform_indices = @transform_31, window_bounds = array<i64: 64, 128>}, {pipeline_mode = #tpu.pipeline_mode<synchronous>, transform_indices = @transform_32, window_bounds = array<i64: 128, 64>}, {pipeline_mode = #tpu.pipeline_mode<synchronous>, transform_indices = @transform_33, window_bounds = array<i64: 64, 128>}, {pipeline_mode = #tpu.pipeline_mode<synchronous>, transform_indices = @transform_34, window_bounds = array<i64: 64, 128>}, {pipeline_mode = #tpu.pipeline_mode<synchronous>, transform_indices = @transform_35, window_bounds = array<i64: 32, 64>}, {pipeline_mode = #tpu.pipeline_mode<synchronous>, transform_indices = @transform_36, window_bounds = array<i64: 32, 96>}, {pipeline_mode = #tpu.pipeline_mode<synchronous>, transform_indices = @transform_37, window_bounds = array<i64: 96, 64>}, {pipeline_mode = #tpu.pipeline_mode<synchronous>, transform_indices = @transform_38, window_bounds = array<i64: 128, 32>}, {pipeline_mode = #tpu.pipeline_mode<synchronous>, transform_indices = @transform_39, window_bounds = array<i64: 32, 1>}, {pipeline_mode = #tpu.pipeline_mode<synchronous>, transform_indices = @transform_40, window_bounds = array<i64: 128, 128>}, {pipeline_mode = #tpu.pipeline_mode<synchronous>, transform_indices = @transform_41, window_bounds = array<i64: 128, 64>}, {pipeline_mode = #tpu.pipeline_mode<synchronous>, transform_indices = @transform_42, window_bounds = array<i64: 64, 4>}, {transform_indices = @transform_43, window_bounds = array<i64: 8, 8>}]} {
    %c0 = arith.constant 0 : index
    %c0_0 = arith.constant 0 : index
    %0 = vector.load %arg1[%c0, %c0_0] : memref<8x64xf32, #tpu.memory_space<vmem>>, vector<8x64xf32>
    %c0_1 = arith.constant 0 : index
    %c0_2 = arith.constant 0 : index
    %1 = vector.load %arg2[%c0_1, %c0_2] : memref<8x32xf32, #tpu.memory_space<vmem>>, vector<8x32xf32>
    %c0_3 = arith.constant 0 : index
    %c0_4 = arith.constant 0 : index
    %2 = vector.load %arg32[%c0_3, %c0_4] : memref<64x128xf32, #tpu.memory_space<vmem>>, vector<64x128xf32>
    %cst = arith.constant dense<0.000000e+00> : vector<8x128xf32>
    %3 = tpu.matmul %0, %2, %cst {dimension_numbers = #tpu.dot_dimension_numbers<[1], [0], [0], [1], [0, 0, 1, 1], [], []>} : vector<8x64xf32>, vector<64x128xf32>, vector<8x128xf32> -> vector<8x128xf32>
    %c59 = arith.constant 59 : index
    %c0_5 = arith.constant 0 : index
    %4 = vector.load %arg3[%c59, %c0_5] : memref<77x256xf32, #tpu.memory_space<vmem>>, vector<1x128xf32>
    %5 = vector.broadcast %4 : vector<1x128xf32> to vector<8x128xf32>
    %6 = arith.addf %3, %5 : vector<8x128xf32>
    %cst_6 = arith.constant dense<0.000000e+00> : vector<8xf32>
    %7 = vector.multi_reduction <add>, %6, %cst_6 [1] : vector<8x128xf32> to vector<8xf32>
    %8 = vector.shape_cast %7 : vector<8xf32> to vector<8x1xf32>
    %cst_7 = arith.constant 1.280000e+02 : f32
    %9 = vector.broadcast %cst_7 : f32 to vector<8x1xf32>
    %10 = arith.divf %8, %9 : vector<8x1xf32>
    %11 = vector.broadcast %10 : vector<8x1xf32> to vector<8x128xf32>
    %12 = arith.subf %6, %11 : vector<8x128xf32>
    %13 = arith.mulf %12, %12 : vector<8x128xf32>
    %cst_8 = arith.constant dense<0.000000e+00> : vector<8xf32>
    %14 = vector.multi_reduction <add>, %13, %cst_8 [1] : vector<8x128xf32> to vector<8xf32>
    %15 = vector.shape_cast %14 : vector<8xf32> to vector<8x1xf32>
    %cst_9 = arith.constant 1.280000e+02 : f32
    %16 = vector.broadcast %cst_9 : f32 to vector<8x1xf32>
    %17 = arith.divf %15, %16 : vector<8x1xf32>
    %cst_10 = arith.constant 9.99999974E-6 : f32
    %18 = vector.broadcast %cst_10 : f32 to vector<8x1xf32>
    %19 = arith.addf %17, %18 : vector<8x1xf32>
    %20 = math.rsqrt %19 : vector<8x1xf32>
    %21 = vector.broadcast %20 : vector<8x1xf32> to vector<8x128xf32>
    %22 = arith.mulf %12, %21 : vector<8x128xf32>
    %c62 = arith.constant 62 : index
    %c0_11 = arith.constant 0 : index
    %23 = vector.load %arg3[%c62, %c0_11] : memref<77x256xf32, #tpu.memory_space<vmem>>, vector<1x128xf32>
    %24 = vector.broadcast %23 : vector<1x128xf32> to vector<8x128xf32>
    %25 = arith.mulf %22, %24 : vector<8x128xf32>
    %c61 = arith.constant 61 : index
    %c0_12 = arith.constant 0 : index
    %26 = vector.load %arg3[%c61, %c0_12] : memref<77x256xf32, #tpu.memory_space<vmem>>, vector<1x128xf32>
    %27 = vector.broadcast %26 : vector<1x128xf32> to vector<8x128xf32>
    %28 = arith.addf %25, %27 : vector<8x128xf32>
    %cst_13 = arith.constant 0.000000e+00 : f32
    %29 = vector.broadcast %cst_13 : f32 to vector<8x128xf32>
    %30 = arith.maximumf %28, %29 : vector<8x128xf32>
    %c0_14 = arith.constant 0 : index
    %c0_15 = arith.constant 0 : index
    %31 = vector.load %arg33[%c0_14, %c0_15] : memref<128x64xf32, #tpu.memory_space<vmem>>, vector<128x64xf32>
    %cst_16 = arith.constant dense<0.000000e+00> : vector<8x64xf32>
    %32 = tpu.matmul %30, %31, %cst_16 {dimension_numbers = #tpu.dot_dimension_numbers<[1], [0], [0], [1], [0, 0, 1, 1], [], []>} : vector<8x128xf32>, vector<128x64xf32>, vector<8x64xf32> -> vector<8x64xf32>
    %c60 = arith.constant 60 : index
    %c0_17 = arith.constant 0 : index
    %33 = vector.load %arg3[%c60, %c0_17] : memref<77x256xf32, #tpu.memory_space<vmem>>, vector<1x64xf32>
    %34 = vector.broadcast %33 : vector<1x64xf32> to vector<8x64xf32>
    %35 = arith.addf %32, %34 : vector<8x64xf32>
    %cst_18 = arith.constant dense<0.000000e+00> : vector<8xf32>
    %36 = vector.multi_reduction <add>, %35, %cst_18 [1] : vector<8x64xf32> to vector<8xf32>
    %37 = vector.shape_cast %36 : vector<8xf32> to vector<8x1xf32>
    %cst_19 = arith.constant 6.400000e+01 : f32
    %38 = vector.broadcast %cst_19 : f32 to vector<8x1xf32>
    %39 = arith.divf %37, %38 : vector<8x1xf32>
    %40 = vector.broadcast %39 : vector<8x1xf32> to vector<8x64xf32>
    %41 = arith.subf %35, %40 : vector<8x64xf32>
    %42 = arith.mulf %41, %41 : vector<8x64xf32>
    %cst_20 = arith.constant dense<0.000000e+00> : vector<8xf32>
    %43 = vector.multi_reduction <add>, %42, %cst_20 [1] : vector<8x64xf32> to vector<8xf32>
    %44 = vector.shape_cast %43 : vector<8xf32> to vector<8x1xf32>
    %cst_21 = arith.constant 6.400000e+01 : f32
    %45 = vector.broadcast %cst_21 : f32 to vector<8x1xf32>
    %46 = arith.divf %44, %45 : vector<8x1xf32>
    %cst_22 = arith.constant 9.99999974E-6 : f32
    %47 = vector.broadcast %cst_22 : f32 to vector<8x1xf32>
    %48 = arith.addf %46, %47 : vector<8x1xf32>
    %49 = math.rsqrt %48 : vector<8x1xf32>
    %50 = vector.broadcast %49 : vector<8x1xf32> to vector<8x64xf32>
    %51 = arith.mulf %41, %50 : vector<8x64xf32>
    %c64 = arith.constant 64 : index
    %c0_23 = arith.constant 0 : index
    %52 = vector.load %arg3[%c64, %c0_23] : memref<77x256xf32, #tpu.memory_space<vmem>>, vector<1x64xf32>
    %53 = vector.broadcast %52 : vector<1x64xf32> to vector<8x64xf32>
    %54 = arith.mulf %51, %53 : vector<8x64xf32>
    %c63 = arith.constant 63 : index
    %c0_24 = arith.constant 0 : index
    %55 = vector.load %arg3[%c63, %c0_24] : memref<77x256xf32, #tpu.memory_space<vmem>>, vector<1x64xf32>
    %56 = vector.broadcast %55 : vector<1x64xf32> to vector<8x64xf32>
    %57 = arith.addf %54, %56 : vector<8x64xf32>
    %58 = arith.addf %57, %0 : vector<8x64xf32>
    %c0_25 = arith.constant 0 : index
    %c0_26 = arith.constant 0 : index
    %59 = vector.load %arg37[%c0_25, %c0_26] : memref<32x96xf32, #tpu.memory_space<vmem>>, vector<32x96xf32>
    %cst_27 = arith.constant dense<0.000000e+00> : vector<8x96xf32>
    %60 = tpu.matmul %1, %59, %cst_27 {dimension_numbers = #tpu.dot_dimension_numbers<[1], [0], [0], [1], [0, 0, 1, 1], [], []>} : vector<8x32xf32>, vector<32x96xf32>, vector<8x96xf32> -> vector<8x96xf32>
    %c66 = arith.constant 66 : index
    %c0_28 = arith.constant 0 : index
    %61 = vector.load %arg3[%c66, %c0_28] : memref<77x256xf32, #tpu.memory_space<vmem>>, vector<1x96xf32>
    %62 = vector.broadcast %61 : vector<1x96xf32> to vector<8x96xf32>
    %63 = arith.addf %60, %62 : vector<8x96xf32>
    %cst_29 = arith.constant dense<0.000000e+00> : vector<8xf32>
    %64 = vector.multi_reduction <add>, %63, %cst_29 [1] : vector<8x96xf32> to vector<8xf32>
    %65 = vector.shape_cast %64 : vector<8xf32> to vector<8x1xf32>
    %cst_30 = arith.constant 9.600000e+01 : f32
    %66 = vector.broadcast %cst_30 : f32 to vector<8x1xf32>
    %67 = arith.divf %65, %66 : vector<8x1xf32>
    %68 = vector.broadcast %67 : vector<8x1xf32> to vector<8x96xf32>
    %69 = arith.subf %63, %68 : vector<8x96xf32>
    %70 = arith.mulf %69, %69 : vector<8x96xf32>
    %cst_31 = arith.constant dense<0.000000e+00> : vector<8xf32>
    %71 = vector.multi_reduction <add>, %70, %cst_31 [1] : vector<8x96xf32> to vector<8xf32>
    %72 = vector.shape_cast %71 : vector<8xf32> to vector<8x1xf32>
    %cst_32 = arith.constant 9.600000e+01 : f32
    %73 = vector.broadcast %cst_32 : f32 to vector<8x1xf32>
    %74 = arith.divf %72, %73 : vector<8x1xf32>
    %cst_33 = arith.constant 9.99999974E-6 : f32
    %75 = vector.broadcast %cst_33 : f32 to vector<8x1xf32>
    %76 = arith.addf %74, %75 : vector<8x1xf32>
    %77 = math.rsqrt %76 : vector<8x1xf32>
    %78 = vector.broadcast %77 : vector<8x1xf32> to vector<8x96xf32>
    %79 = arith.mulf %69, %78 : vector<8x96xf32>
    %c69 = arith.constant 69 : index
    %c0_34 = arith.constant 0 : index
    %80 = vector.load %arg3[%c69, %c0_34] : memref<77x256xf32, #tpu.memory_space<vmem>>, vector<1x96xf32>
    %81 = vector.broadcast %80 : vector<1x96xf32> to vector<8x96xf32>
    %82 = arith.mulf %79, %81 : vector<8x96xf32>
    %c68 = arith.constant 68 : index
    %c0_35 = arith.constant 0 : index
    %83 = vector.load %arg3[%c68, %c0_35] : memref<77x256xf32, #tpu.memory_space<vmem>>, vector<1x96xf32>
    %84 = vector.broadcast %83 : vector<1x96xf32> to vector<8x96xf32>
    %85 = arith.addf %82, %84 : vector<8x96xf32>
    %cst_36 = arith.constant 0.000000e+00 : f32
    %86 = vector.broadcast %cst_36 : f32 to vector<8x96xf32>
    %87 = arith.maximumf %85, %86 : vector<8x96xf32>
    %c0_37 = arith.constant 0 : index
    %c0_38 = arith.constant 0 : index
    %88 = vector.load %arg38[%c0_37, %c0_38] : memref<96x64xf32, #tpu.memory_space<vmem>>, vector<96x64xf32>
    %cst_39 = arith.constant dense<0.000000e+00> : vector<8x64xf32>
    %89 = tpu.matmul %87, %88, %cst_39 {dimension_numbers = #tpu.dot_dimension_numbers<[1], [0], [0], [1], [0, 0, 1, 1], [], []>} : vector<8x96xf32>, vector<96x64xf32>, vector<8x64xf32> -> vector<8x64xf32>
    %c67 = arith.constant 67 : index
    %c0_40 = arith.constant 0 : index
    %90 = vector.load %arg3[%c67, %c0_40] : memref<77x256xf32, #tpu.memory_space<vmem>>, vector<1x64xf32>
    %91 = vector.broadcast %90 : vector<1x64xf32> to vector<8x64xf32>
    %92 = arith.addf %89, %91 : vector<8x64xf32>
    %cst_41 = arith.constant dense<0.000000e+00> : vector<8xf32>
    %93 = vector.multi_reduction <add>, %92, %cst_41 [1] : vector<8x64xf32> to vector<8xf32>
    %94 = vector.shape_cast %93 : vector<8xf32> to vector<8x1xf32>
    %cst_42 = arith.constant 6.400000e+01 : f32
    %95 = vector.broadcast %cst_42 : f32 to vector<8x1xf32>
    %96 = arith.divf %94, %95 : vector<8x1xf32>
    %97 = vector.broadcast %96 : vector<8x1xf32> to vector<8x64xf32>
    %98 = arith.subf %92, %97 : vector<8x64xf32>
    %99 = arith.mulf %98, %98 : vector<8x64xf32>
    %cst_43 = arith.constant dense<0.000000e+00> : vector<8xf32>
    %100 = vector.multi_reduction <add>, %99, %cst_43 [1] : vector<8x64xf32> to vector<8xf32>
    %101 = vector.shape_cast %100 : vector<8xf32> to vector<8x1xf32>
    %cst_44 = arith.constant 6.400000e+01 : f32
    %102 = vector.broadcast %cst_44 : f32 to vector<8x1xf32>
    %103 = arith.divf %101, %102 : vector<8x1xf32>
    %cst_45 = arith.constant 9.99999974E-6 : f32
    %104 = vector.broadcast %cst_45 : f32 to vector<8x1xf32>
    %105 = arith.addf %103, %104 : vector<8x1xf32>
    %106 = math.rsqrt %105 : vector<8x1xf32>
    %107 = vector.broadcast %106 : vector<8x1xf32> to vector<8x64xf32>
    %108 = arith.mulf %98, %107 : vector<8x64xf32>
    %c71 = arith.constant 71 : index
    %c0_46 = arith.constant 0 : index
    %109 = vector.load %arg3[%c71, %c0_46] : memref<77x256xf32, #tpu.memory_space<vmem>>, vector<1x64xf32>
    %110 = vector.broadcast %109 : vector<1x64xf32> to vector<8x64xf32>
    %111 = arith.mulf %108, %110 : vector<8x64xf32>
    %c70 = arith.constant 70 : index
    %c0_47 = arith.constant 0 : index
    %112 = vector.load %arg3[%c70, %c0_47] : memref<77x256xf32, #tpu.memory_space<vmem>>, vector<1x64xf32>
    %113 = vector.broadcast %112 : vector<1x64xf32> to vector<8x64xf32>
    %114 = arith.addf %111, %113 : vector<8x64xf32>
    %c0_48 = arith.constant 0 : index
    %c0_49 = arith.constant 0 : index
    %115 = vector.load %arg36[%c0_48, %c0_49] : memref<32x64xf32, #tpu.memory_space<vmem>>, vector<32x64xf32>
    %cst_50 = arith.constant dense<0.000000e+00> : vector<8x64xf32>
    %116 = tpu.matmul %1, %115, %cst_50 {dimension_numbers = #tpu.dot_dimension_numbers<[1], [0], [0], [1], [0, 0, 1, 1], [], []>} : vector<8x32xf32>, vector<32x64xf32>, vector<8x64xf32> -> vector<8x64xf32>
    %c65 = arith.constant 65 : index
    %c0_51 = arith.constant 0 : index
    %117 = vector.load %arg3[%c65, %c0_51] : memref<77x256xf32, #tpu.memory_space<vmem>>, vector<1x64xf32>
    %118 = vector.broadcast %117 : vector<1x64xf32> to vector<8x64xf32>
    %119 = arith.addf %116, %118 : vector<8x64xf32>
    %120 = arith.addf %114, %119 : vector<8x64xf32>
    %c0_52 = arith.constant 0 : index
    %c0_53 = arith.constant 0 : index
    %121 = vector.load %arg34[%c0_52, %c0_53] : memref<64x128xf32, #tpu.memory_space<vmem>>, vector<64x128xf32>
    %cst_54 = arith.constant dense<0.000000e+00> : vector<8x128xf32>
    %122 = tpu.matmul %58, %121, %cst_54 {dimension_numbers = #tpu.dot_dimension_numbers<[1], [0], [0], [1], [0, 0, 1, 1], [], []>} : vector<8x64xf32>, vector<64x128xf32>, vector<8x128xf32> -> vector<8x128xf32>
    %c0_55 = arith.constant 0 : index
    %c0_56 = arith.constant 0 : index
    %123 = vector.load %arg35[%c0_55, %c0_56] : memref<64x128xf32, #tpu.memory_space<vmem>>, vector<64x128xf32>
    %cst_57 = arith.constant dense<0.000000e+00> : vector<8x128xf32>
    %124 = tpu.matmul %120, %123, %cst_57 {dimension_numbers = #tpu.dot_dimension_numbers<[1], [0], [0], [1], [0, 0, 1, 1], [], []>} : vector<8x64xf32>, vector<64x128xf32>, vector<8x128xf32> -> vector<8x128xf32>
    %125 = arith.addf %122, %124 : vector<8x128xf32>
    %c55 = arith.constant 55 : index
    %c0_58 = arith.constant 0 : index
    %126 = vector.load %arg3[%c55, %c0_58] : memref<77x256xf32, #tpu.memory_space<vmem>>, vector<1x128xf32>
    %127 = vector.broadcast %126 : vector<1x128xf32> to vector<8x128xf32>
    %128 = arith.addf %125, %127 : vector<8x128xf32>
    %c0_59 = arith.constant 0 : index
    %c0_60 = arith.constant 0 : index
    %129 = vector.load %arg31[%c0_59, %c0_60] : memref<128x128xf32, #tpu.memory_space<vmem>>, vector<128x128xf32>
    %cst_61 = arith.constant dense<0.000000e+00> : vector<8x128xf32>
    %130 = tpu.matmul %128, %129, %cst_61 {dimension_numbers = #tpu.dot_dimension_numbers<[1], [0], [0], [1], [0, 0, 1, 1], [], []>} : vector<8x128xf32>, vector<128x128xf32>, vector<8x128xf32> -> vector<8x128xf32>
    %c56 = arith.constant 56 : index
    %c0_62 = arith.constant 0 : index
    %131 = vector.load %arg3[%c56, %c0_62] : memref<77x256xf32, #tpu.memory_space<vmem>>, vector<1x128xf32>
    %132 = vector.broadcast %131 : vector<1x128xf32> to vector<8x128xf32>
    %133 = arith.addf %130, %132 : vector<8x128xf32>
    %cst_63 = arith.constant dense<0.000000e+00> : vector<8xf32>
    %134 = vector.multi_reduction <add>, %133, %cst_63 [1] : vector<8x128xf32> to vector<8xf32>
    %135 = vector.shape_cast %134 : vector<8xf32> to vector<8x1xf32>
    %cst_64 = arith.constant 1.280000e+02 : f32
    %136 = vector.broadcast %cst_64 : f32 to vector<8x1xf32>
    %137 = arith.divf %135, %136 : vector<8x1xf32>
    %138 = vector.broadcast %137 : vector<8x1xf32> to vector<8x128xf32>
    %139 = arith.subf %133, %138 : vector<8x128xf32>
    %140 = arith.mulf %139, %139 : vector<8x128xf32>
    %cst_65 = arith.constant dense<0.000000e+00> : vector<8xf32>
    %141 = vector.multi_reduction <add>, %140, %cst_65 [1] : vector<8x128xf32> to vector<8xf32>
    %142 = vector.shape_cast %141 : vector<8xf32> to vector<8x1xf32>
    %cst_66 = arith.constant 1.280000e+02 : f32
    %143 = vector.broadcast %cst_66 : f32 to vector<8x1xf32>
    %144 = arith.divf %142, %143 : vector<8x1xf32>
    %cst_67 = arith.constant 9.99999974E-6 : f32
    %145 = vector.broadcast %cst_67 : f32 to vector<8x1xf32>
    %146 = arith.addf %144, %145 : vector<8x1xf32>
    %147 = math.rsqrt %146 : vector<8x1xf32>
    %148 = vector.broadcast %147 : vector<8x1xf32> to vector<8x128xf32>
    %149 = arith.mulf %139, %148 : vector<8x128xf32>
    %c58 = arith.constant 58 : index
    %c0_68 = arith.constant 0 : index
    %150 = vector.load %arg3[%c58, %c0_68] : memref<77x256xf32, #tpu.memory_space<vmem>>, vector<1x128xf32>
    %151 = vector.broadcast %150 : vector<1x128xf32> to vector<8x128xf32>
    %152 = arith.mulf %149, %151 : vector<8x128xf32>
    %c57 = arith.constant 57 : index
    %c0_69 = arith.constant 0 : index
    %153 = vector.load %arg3[%c57, %c0_69] : memref<77x256xf32, #tpu.memory_space<vmem>>, vector<1x128xf32>
    %154 = vector.broadcast %153 : vector<1x128xf32> to vector<8x128xf32>
    %155 = arith.addf %152, %154 : vector<8x128xf32>
    %cst_70 = arith.constant 0.000000e+00 : f32
    %156 = vector.broadcast %cst_70 : f32 to vector<8x128xf32>
    %157 = arith.maximumf %155, %156 : vector<8x128xf32>
    %158 = arith.addf %157, %128 : vector<8x128xf32>
    %cst_71 = arith.constant dense<0.000000e+00> : vector<8xf32>
    %159 = vector.multi_reduction <add>, %158, %cst_71 [1] : vector<8x128xf32> to vector<8xf32>
    %160 = vector.shape_cast %159 : vector<8xf32> to vector<8x1xf32>
    %cst_72 = arith.constant 1.280000e+02 : f32
    %161 = vector.broadcast %cst_72 : f32 to vector<8x1xf32>
    %162 = arith.divf %160, %161 : vector<8x1xf32>
    %163 = vector.broadcast %162 : vector<8x1xf32> to vector<8x128xf32>
    %164 = arith.subf %158, %163 : vector<8x128xf32>
    %165 = arith.mulf %164, %164 : vector<8x128xf32>
    %cst_73 = arith.constant dense<0.000000e+00> : vector<8xf32>
    %166 = vector.multi_reduction <add>, %165, %cst_73 [1] : vector<8x128xf32> to vector<8xf32>
    %167 = vector.shape_cast %166 : vector<8xf32> to vector<8x1xf32>
    %cst_74 = arith.constant 1.280000e+02 : f32
    %168 = vector.broadcast %cst_74 : f32 to vector<8x1xf32>
    %169 = arith.divf %167, %168 : vector<8x1xf32>
    %cst_75 = arith.constant 9.99999974E-6 : f32
    %170 = vector.broadcast %cst_75 : f32 to vector<8x1xf32>
    %171 = arith.addf %169, %170 : vector<8x1xf32>
    %172 = math.rsqrt %171 : vector<8x1xf32>
    %173 = vector.broadcast %172 : vector<8x1xf32> to vector<8x128xf32>
    %174 = arith.mulf %164, %173 : vector<8x128xf32>
    %c2 = arith.constant 2 : index
    %c0_76 = arith.constant 0 : index
    %175 = vector.load %arg3[%c2, %c0_76] : memref<77x256xf32, #tpu.memory_space<vmem>>, vector<1x128xf32>
    %176 = vector.broadcast %175 : vector<1x128xf32> to vector<8x128xf32>
    %177 = arith.mulf %174, %176 : vector<8x128xf32>
    %c1 = arith.constant 1 : index
    %c0_77 = arith.constant 0 : index
    %178 = vector.load %arg3[%c1, %c0_77] : memref<77x256xf32, #tpu.memory_space<vmem>>, vector<1x128xf32>
    %179 = vector.broadcast %178 : vector<1x128xf32> to vector<8x128xf32>
    %180 = arith.addf %177, %179 : vector<8x128xf32>
    %c0_78 = arith.constant 0 : index
    %c0_79 = arith.constant 0 : index
    %181 = vector.load %arg6[%c0_78, %c0_79] : memref<128x132xf32, #tpu.memory_space<vmem>>, vector<128x132xf32>
    %cst_80 = arith.constant dense<0.000000e+00> : vector<8x132xf32>
    %182 = tpu.matmul %180, %181, %cst_80 {dimension_numbers = #tpu.dot_dimension_numbers<[1], [0], [0], [1], [0, 0, 1, 1], [], []>} : vector<8x128xf32>, vector<128x132xf32>, vector<8x132xf32> -> vector<8x132xf32>
    %c4 = arith.constant 4 : index
    %c0_81 = arith.constant 0 : index
    %183 = vector.load %arg3[%c4, %c0_81] : memref<77x256xf32, #tpu.memory_space<vmem>>, vector<1x132xf32>
    %184 = vector.broadcast %183 : vector<1x132xf32> to vector<8x132xf32>
    %185 = arith.addf %182, %184 : vector<8x132xf32>
    %c0_82 = arith.constant 0 : index
    %c0_83 = arith.constant 0 : index
    %186 = vector.load %arg5[%c0_82, %c0_83] : memref<132x128xf32, #tpu.memory_space<vmem>>, vector<132x128xf32>
    %cst_84 = arith.constant dense<0.000000e+00> : vector<8x128xf32>
    %187 = tpu.matmul %185, %186, %cst_84 {dimension_numbers = #tpu.dot_dimension_numbers<[1], [0], [0], [1], [0, 0, 1, 1], [], []>} : vector<8x132xf32>, vector<132x128xf32>, vector<8x128xf32> -> vector<8x128xf32>
    %c3 = arith.constant 3 : index
    %c0_85 = arith.constant 0 : index
    %188 = vector.load %arg3[%c3, %c0_85] : memref<77x256xf32, #tpu.memory_space<vmem>>, vector<1x128xf32>
    %189 = vector.broadcast %188 : vector<1x128xf32> to vector<8x128xf32>
    %190 = arith.addf %187, %189 : vector<8x128xf32>
    %c0_86 = arith.constant 0 : index
    %c0_87 = arith.constant 0 : index
    %191 = vector.load %arg4[%c0_86, %c0_87] : memref<128x1xf32, #tpu.memory_space<vmem>>, vector<128x1xf32>
    %cst_88 = arith.constant dense<0.000000e+00> : vector<8x1xf32>
    %192 = tpu.matmul %190, %191, %cst_88 {dimension_numbers = #tpu.dot_dimension_numbers<[1], [0], [0], [1], [0, 0, 1, 1], [], []>} : vector<8x128xf32>, vector<128x1xf32>, vector<8x1xf32> -> vector<8x1xf32>
    %c0_89 = arith.constant 0 : index
    %c0_90 = arith.constant 0 : index
    %193 = vector.load %arg3[%c0_89, %c0_90] : memref<77x256xf32, #tpu.memory_space<vmem>>, vector<1x1xf32>
    %194 = vector.broadcast %193 : vector<1x1xf32> to vector<8x1xf32>
    %195 = arith.addf %192, %194 : vector<8x1xf32>
    %cst_91 = arith.constant 0.000000e+00 : f32
    %196 = vector.broadcast %cst_91 : f32 to vector<8x1xf32>
    %197 = arith.subf %196, %195 : vector<8x1xf32>
    %198 = math.exp %197 : vector<8x1xf32>
    %cst_92 = arith.constant 1.000000e+00 : f32
    %199 = vector.broadcast %cst_92 : f32 to vector<8x1xf32>
    %200 = arith.addf %199, %198 : vector<8x1xf32>
    %cst_93 = arith.constant 1.000000e+00 : f32
    %201 = vector.broadcast %cst_93 : f32 to vector<8x1xf32>
    %202 = arith.divf %201, %200 : vector<8x1xf32>
    %203 = vector.broadcast %202 : vector<8x1xf32> to vector<8x128xf32>
    %204 = arith.mulf %203, %190 : vector<8x128xf32>
    %cst_94 = arith.constant 1.000000e+00 : f32
    %205 = vector.broadcast %cst_94 : f32 to vector<8x1xf32>
    %206 = arith.subf %205, %202 : vector<8x1xf32>
    %207 = vector.broadcast %206 : vector<8x1xf32> to vector<8x128xf32>
    %208 = arith.mulf %207, %158 : vector<8x128xf32>
    %209 = arith.addf %204, %208 : vector<8x128xf32>
    %c5 = arith.constant 5 : index
    %c0_95 = arith.constant 0 : index
    %210 = vector.load %arg3[%c5, %c0_95] : memref<77x256xf32, #tpu.memory_space<vmem>>, vector<1x1xf32>
    %211 = vector.broadcast %210 : vector<1x1xf32> to vector<8x128xf32>
    %212 = arith.mulf %211, %209 : vector<8x128xf32>
    %213 = arith.addf %158, %212 : vector<8x128xf32>
    %cst_96 = arith.constant dense<0.000000e+00> : vector<8xf32>
    %214 = vector.multi_reduction <add>, %213, %cst_96 [1] : vector<8x128xf32> to vector<8xf32>
    %215 = vector.shape_cast %214 : vector<8xf32> to vector<8x1xf32>
    %cst_97 = arith.constant 1.280000e+02 : f32
    %216 = vector.broadcast %cst_97 : f32 to vector<8x1xf32>
    %217 = arith.divf %215, %216 : vector<8x1xf32>
    %218 = vector.broadcast %217 : vector<8x1xf32> to vector<8x128xf32>
    %219 = arith.subf %213, %218 : vector<8x128xf32>
    %220 = arith.mulf %219, %219 : vector<8x128xf32>
    %cst_98 = arith.constant dense<0.000000e+00> : vector<8xf32>
    %221 = vector.multi_reduction <add>, %220, %cst_98 [1] : vector<8x128xf32> to vector<8xf32>
    %222 = vector.shape_cast %221 : vector<8xf32> to vector<8x1xf32>
    %cst_99 = arith.constant 1.280000e+02 : f32
    %223 = vector.broadcast %cst_99 : f32 to vector<8x1xf32>
    %224 = arith.divf %222, %223 : vector<8x1xf32>
    %cst_100 = arith.constant 9.99999974E-6 : f32
    %225 = vector.broadcast %cst_100 : f32 to vector<8x1xf32>
    %226 = arith.addf %224, %225 : vector<8x1xf32>
    %227 = math.rsqrt %226 : vector<8x1xf32>
    %228 = vector.broadcast %227 : vector<8x1xf32> to vector<8x128xf32>
    %229 = arith.mulf %219, %228 : vector<8x128xf32>
    %c10 = arith.constant 10 : index
    %c0_101 = arith.constant 0 : index
    %230 = vector.load %arg3[%c10, %c0_101] : memref<77x256xf32, #tpu.memory_space<vmem>>, vector<1x128xf32>
    %231 = vector.broadcast %230 : vector<1x128xf32> to vector<8x128xf32>
    %232 = arith.mulf %229, %231 : vector<8x128xf32>
    %c9 = arith.constant 9 : index
    %c0_102 = arith.constant 0 : index
    %233 = vector.load %arg3[%c9, %c0_102] : memref<77x256xf32, #tpu.memory_space<vmem>>, vector<1x128xf32>
    %234 = vector.broadcast %233 : vector<1x128xf32> to vector<8x128xf32>
    %235 = arith.addf %232, %234 : vector<8x128xf32>
    %c0_103 = arith.constant 0 : index
    %c0_104 = arith.constant 0 : index
    %236 = vector.load %arg7[%c0_103, %c0_104] : memref<128x256xf32, #tpu.memory_space<vmem>>, vector<128x256xf32>
    %cst_105 = arith.constant dense<0.000000e+00> : vector<8x256xf32>
    %237 = tpu.matmul %235, %236, %cst_105 {dimension_numbers = #tpu.dot_dimension_numbers<[1], [0], [0], [1], [0, 0, 1, 1], [], []>} : vector<8x128xf32>, vector<128x256xf32>, vector<8x256xf32> -> vector<8x256xf32>
    %c6 = arith.constant 6 : index
    %c0_106 = arith.constant 0 : index
    %238 = vector.load %arg3[%c6, %c0_106] : memref<77x256xf32, #tpu.memory_space<vmem>>, vector<1x256xf32>
    %239 = vector.broadcast %238 : vector<1x256xf32> to vector<8x256xf32>
    %240 = arith.addf %237, %239 : vector<8x256xf32>
    %cst_107 = arith.constant 5.000000e-01 : f32
    %241 = vector.broadcast %cst_107 : f32 to vector<8x256xf32>
    %242 = arith.mulf %241, %240 : vector<8x256xf32>
    %cst_108 = arith.constant 4.471500e-02 : f32
    %243 = vector.broadcast %cst_108 : f32 to vector<8x256xf32>
    %244 = arith.mulf %243, %240 : vector<8x256xf32>
    %245 = arith.mulf %244, %240 : vector<8x256xf32>
    %246 = arith.mulf %245, %240 : vector<8x256xf32>
    %247 = arith.addf %240, %246 : vector<8x256xf32>
    %cst_109 = arith.constant 0.797884583 : f32
    %248 = vector.broadcast %cst_109 : f32 to vector<8x256xf32>
    %249 = arith.mulf %248, %247 : vector<8x256xf32>
    %250 = math.tanh %249 : vector<8x256xf32>
    %cst_110 = arith.constant 1.000000e+00 : f32
    %251 = vector.broadcast %cst_110 : f32 to vector<8x256xf32>
    %252 = arith.addf %251, %250 : vector<8x256xf32>
    %253 = arith.mulf %242, %252 : vector<8x256xf32>
    %c0_111 = arith.constant 0 : index
    %c0_112 = arith.constant 0 : index
    %254 = vector.load %arg8[%c0_111, %c0_112] : memref<256x256xf32, #tpu.memory_space<vmem>>, vector<256x256xf32>
    %cst_113 = arith.constant dense<0.000000e+00> : vector<8x256xf32>
    %255 = tpu.matmul %253, %254, %cst_113 {dimension_numbers = #tpu.dot_dimension_numbers<[1], [0], [0], [1], [0, 0, 1, 1], [], []>} : vector<8x256xf32>, vector<256x256xf32>, vector<8x256xf32> -> vector<8x256xf32>
    %c7 = arith.constant 7 : index
    %c0_114 = arith.constant 0 : index
    %256 = vector.load %arg3[%c7, %c0_114] : memref<77x256xf32, #tpu.memory_space<vmem>>, vector<1x256xf32>
    %257 = vector.broadcast %256 : vector<1x256xf32> to vector<8x256xf32>
    %258 = arith.addf %255, %257 : vector<8x256xf32>
    %cst_115 = arith.constant 5.000000e-01 : f32
    %259 = vector.broadcast %cst_115 : f32 to vector<8x256xf32>
    %260 = arith.mulf %259, %258 : vector<8x256xf32>
    %cst_116 = arith.constant 4.471500e-02 : f32
    %261 = vector.broadcast %cst_116 : f32 to vector<8x256xf32>
    %262 = arith.mulf %261, %258 : vector<8x256xf32>
    %263 = arith.mulf %262, %258 : vector<8x256xf32>
    %264 = arith.mulf %263, %258 : vector<8x256xf32>
    %265 = arith.addf %258, %264 : vector<8x256xf32>
    %cst_117 = arith.constant 0.797884583 : f32
    %266 = vector.broadcast %cst_117 : f32 to vector<8x256xf32>
    %267 = arith.mulf %266, %265 : vector<8x256xf32>
    %268 = math.tanh %267 : vector<8x256xf32>
    %cst_118 = arith.constant 1.000000e+00 : f32
    %269 = vector.broadcast %cst_118 : f32 to vector<8x256xf32>
    %270 = arith.addf %269, %268 : vector<8x256xf32>
    %271 = arith.mulf %260, %270 : vector<8x256xf32>
    %c0_119 = arith.constant 0 : index
    %c0_120 = arith.constant 0 : index
    %272 = vector.load %arg9[%c0_119, %c0_120] : memref<256x128xf32, #tpu.memory_space<vmem>>, vector<256x128xf32>
    %cst_121 = arith.constant dense<0.000000e+00> : vector<8x128xf32>
    %273 = tpu.matmul %271, %272, %cst_121 {dimension_numbers = #tpu.dot_dimension_numbers<[1], [0], [0], [1], [0, 0, 1, 1], [], []>} : vector<8x256xf32>, vector<256x128xf32>, vector<8x128xf32> -> vector<8x128xf32>
    %c8 = arith.constant 8 : index
    %c0_122 = arith.constant 0 : index
    %274 = vector.load %arg3[%c8, %c0_122] : memref<77x256xf32, #tpu.memory_space<vmem>>, vector<1x128xf32>
    %275 = vector.broadcast %274 : vector<1x128xf32> to vector<8x128xf32>
    %276 = arith.addf %273, %275 : vector<8x128xf32>
    %c11 = arith.constant 11 : index
    %c0_123 = arith.constant 0 : index
    %277 = vector.load %arg3[%c11, %c0_123] : memref<77x256xf32, #tpu.memory_space<vmem>>, vector<1x1xf32>
    %278 = vector.broadcast %277 : vector<1x1xf32> to vector<8x128xf32>
    %279 = arith.mulf %278, %213 : vector<8x128xf32>
    %280 = arith.addf %276, %279 : vector<8x128xf32>
    %cst_124 = arith.constant dense<0.000000e+00> : vector<8xf32>
    %281 = vector.multi_reduction <add>, %280, %cst_124 [1] : vector<8x128xf32> to vector<8xf32>
    %282 = vector.shape_cast %281 : vector<8xf32> to vector<8x1xf32>
    %cst_125 = arith.constant 1.280000e+02 : f32
    %283 = vector.broadcast %cst_125 : f32 to vector<8x1xf32>
    %284 = arith.divf %282, %283 : vector<8x1xf32>
    %285 = vector.broadcast %284 : vector<8x1xf32> to vector<8x128xf32>
    %286 = arith.subf %280, %285 : vector<8x128xf32>
    %287 = arith.mulf %286, %286 : vector<8x128xf32>
    %cst_126 = arith.constant dense<0.000000e+00> : vector<8xf32>
    %288 = vector.multi_reduction <add>, %287, %cst_126 [1] : vector<8x128xf32> to vector<8xf32>
    %289 = vector.shape_cast %288 : vector<8xf32> to vector<8x1xf32>
    %cst_127 = arith.constant 1.280000e+02 : f32
    %290 = vector.broadcast %cst_127 : f32 to vector<8x1xf32>
    %291 = arith.divf %289, %290 : vector<8x1xf32>
    %cst_128 = arith.constant 9.99999974E-6 : f32
    %292 = vector.broadcast %cst_128 : f32 to vector<8x1xf32>
    %293 = arith.addf %291, %292 : vector<8x1xf32>
    %294 = math.rsqrt %293 : vector<8x1xf32>
    %295 = vector.broadcast %294 : vector<8x1xf32> to vector<8x128xf32>
    %296 = arith.mulf %286, %295 : vector<8x128xf32>
    %c14 = arith.constant 14 : index
    %c0_129 = arith.constant 0 : index
    %297 = vector.load %arg3[%c14, %c0_129] : memref<77x256xf32, #tpu.memory_space<vmem>>, vector<1x128xf32>
    %298 = vector.broadcast %297 : vector<1x128xf32> to vector<8x128xf32>
    %299 = arith.mulf %296, %298 : vector<8x128xf32>
    %c13 = arith.constant 13 : index
    %c0_130 = arith.constant 0 : index
    %300 = vector.load %arg3[%c13, %c0_130] : memref<77x256xf32, #tpu.memory_space<vmem>>, vector<1x128xf32>
    %301 = vector.broadcast %300 : vector<1x128xf32> to vector<8x128xf32>
    %302 = arith.addf %299, %301 : vector<8x128xf32>
    %c0_131 = arith.constant 0 : index
    %c0_132 = arith.constant 0 : index
    %303 = vector.load %arg12[%c0_131, %c0_132] : memref<128x132xf32, #tpu.memory_space<vmem>>, vector<128x132xf32>
    %cst_133 = arith.constant dense<0.000000e+00> : vector<8x132xf32>
    %304 = tpu.matmul %302, %303, %cst_133 {dimension_numbers = #tpu.dot_dimension_numbers<[1], [0], [0], [1], [0, 0, 1, 1], [], []>} : vector<8x128xf32>, vector<128x132xf32>, vector<8x132xf32> -> vector<8x132xf32>
    %c16 = arith.constant 16 : index
    %c0_134 = arith.constant 0 : index
    %305 = vector.load %arg3[%c16, %c0_134] : memref<77x256xf32, #tpu.memory_space<vmem>>, vector<1x132xf32>
    %306 = vector.broadcast %305 : vector<1x132xf32> to vector<8x132xf32>
    %307 = arith.addf %304, %306 : vector<8x132xf32>
    %c0_135 = arith.constant 0 : index
    %c0_136 = arith.constant 0 : index
    %308 = vector.load %arg11[%c0_135, %c0_136] : memref<132x128xf32, #tpu.memory_space<vmem>>, vector<132x128xf32>
    %cst_137 = arith.constant dense<0.000000e+00> : vector<8x128xf32>
    %309 = tpu.matmul %307, %308, %cst_137 {dimension_numbers = #tpu.dot_dimension_numbers<[1], [0], [0], [1], [0, 0, 1, 1], [], []>} : vector<8x132xf32>, vector<132x128xf32>, vector<8x128xf32> -> vector<8x128xf32>
    %c15 = arith.constant 15 : index
    %c0_138 = arith.constant 0 : index
    %310 = vector.load %arg3[%c15, %c0_138] : memref<77x256xf32, #tpu.memory_space<vmem>>, vector<1x128xf32>
    %311 = vector.broadcast %310 : vector<1x128xf32> to vector<8x128xf32>
    %312 = arith.addf %309, %311 : vector<8x128xf32>
    %c0_139 = arith.constant 0 : index
    %c0_140 = arith.constant 0 : index
    %313 = vector.load %arg10[%c0_139, %c0_140] : memref<128x1xf32, #tpu.memory_space<vmem>>, vector<128x1xf32>
    %cst_141 = arith.constant dense<0.000000e+00> : vector<8x1xf32>
    %314 = tpu.matmul %312, %313, %cst_141 {dimension_numbers = #tpu.dot_dimension_numbers<[1], [0], [0], [1], [0, 0, 1, 1], [], []>} : vector<8x128xf32>, vector<128x1xf32>, vector<8x1xf32> -> vector<8x1xf32>
    %c12 = arith.constant 12 : index
    %c0_142 = arith.constant 0 : index
    %315 = vector.load %arg3[%c12, %c0_142] : memref<77x256xf32, #tpu.memory_space<vmem>>, vector<1x1xf32>
    %316 = vector.broadcast %315 : vector<1x1xf32> to vector<8x1xf32>
    %317 = arith.addf %314, %316 : vector<8x1xf32>
    %cst_143 = arith.constant 0.000000e+00 : f32
    %318 = vector.broadcast %cst_143 : f32 to vector<8x1xf32>
    %319 = arith.subf %318, %317 : vector<8x1xf32>
    %320 = math.exp %319 : vector<8x1xf32>
    %cst_144 = arith.constant 1.000000e+00 : f32
    %321 = vector.broadcast %cst_144 : f32 to vector<8x1xf32>
    %322 = arith.addf %321, %320 : vector<8x1xf32>
    %cst_145 = arith.constant 1.000000e+00 : f32
    %323 = vector.broadcast %cst_145 : f32 to vector<8x1xf32>
    %324 = arith.divf %323, %322 : vector<8x1xf32>
    %325 = vector.broadcast %324 : vector<8x1xf32> to vector<8x128xf32>
    %326 = arith.mulf %325, %312 : vector<8x128xf32>
    %cst_146 = arith.constant 1.000000e+00 : f32
    %327 = vector.broadcast %cst_146 : f32 to vector<8x1xf32>
    %328 = arith.subf %327, %324 : vector<8x1xf32>
    %329 = vector.broadcast %328 : vector<8x1xf32> to vector<8x128xf32>
    %330 = arith.mulf %329, %280 : vector<8x128xf32>
    %331 = arith.addf %326, %330 : vector<8x128xf32>
    %c17 = arith.constant 17 : index
    %c0_147 = arith.constant 0 : index
    %332 = vector.load %arg3[%c17, %c0_147] : memref<77x256xf32, #tpu.memory_space<vmem>>, vector<1x1xf32>
    %333 = vector.broadcast %332 : vector<1x1xf32> to vector<8x128xf32>
    %334 = arith.mulf %333, %331 : vector<8x128xf32>
    %335 = arith.addf %280, %334 : vector<8x128xf32>
    %cst_148 = arith.constant dense<0.000000e+00> : vector<8xf32>
    %336 = vector.multi_reduction <add>, %335, %cst_148 [1] : vector<8x128xf32> to vector<8xf32>
    %337 = vector.shape_cast %336 : vector<8xf32> to vector<8x1xf32>
    %cst_149 = arith.constant 1.280000e+02 : f32
    %338 = vector.broadcast %cst_149 : f32 to vector<8x1xf32>
    %339 = arith.divf %337, %338 : vector<8x1xf32>
    %340 = vector.broadcast %339 : vector<8x1xf32> to vector<8x128xf32>
    %341 = arith.subf %335, %340 : vector<8x128xf32>
    %342 = arith.mulf %341, %341 : vector<8x128xf32>
    %cst_150 = arith.constant dense<0.000000e+00> : vector<8xf32>
    %343 = vector.multi_reduction <add>, %342, %cst_150 [1] : vector<8x128xf32> to vector<8xf32>
    %344 = vector.shape_cast %343 : vector<8xf32> to vector<8x1xf32>
    %cst_151 = arith.constant 1.280000e+02 : f32
    %345 = vector.broadcast %cst_151 : f32 to vector<8x1xf32>
    %346 = arith.divf %344, %345 : vector<8x1xf32>
    %cst_152 = arith.constant 9.99999974E-6 : f32
    %347 = vector.broadcast %cst_152 : f32 to vector<8x1xf32>
    %348 = arith.addf %346, %347 : vector<8x1xf32>
    %349 = math.rsqrt %348 : vector<8x1xf32>
    %350 = vector.broadcast %349 : vector<8x1xf32> to vector<8x128xf32>
    %351 = arith.mulf %341, %350 : vector<8x128xf32>
    %c22 = arith.constant 22 : index
    %c0_153 = arith.constant 0 : index
    %352 = vector.load %arg3[%c22, %c0_153] : memref<77x256xf32, #tpu.memory_space<vmem>>, vector<1x128xf32>
    %353 = vector.broadcast %352 : vector<1x128xf32> to vector<8x128xf32>
    %354 = arith.mulf %351, %353 : vector<8x128xf32>
    %c21 = arith.constant 21 : index
    %c0_154 = arith.constant 0 : index
    %355 = vector.load %arg3[%c21, %c0_154] : memref<77x256xf32, #tpu.memory_space<vmem>>, vector<1x128xf32>
    %356 = vector.broadcast %355 : vector<1x128xf32> to vector<8x128xf32>
    %357 = arith.addf %354, %356 : vector<8x128xf32>
    %c0_155 = arith.constant 0 : index
    %c0_156 = arith.constant 0 : index
    %358 = vector.load %arg13[%c0_155, %c0_156] : memref<128x256xf32, #tpu.memory_space<vmem>>, vector<128x256xf32>
    %cst_157 = arith.constant dense<0.000000e+00> : vector<8x256xf32>
    %359 = tpu.matmul %357, %358, %cst_157 {dimension_numbers = #tpu.dot_dimension_numbers<[1], [0], [0], [1], [0, 0, 1, 1], [], []>} : vector<8x128xf32>, vector<128x256xf32>, vector<8x256xf32> -> vector<8x256xf32>
    %c18 = arith.constant 18 : index
    %c0_158 = arith.constant 0 : index
    %360 = vector.load %arg3[%c18, %c0_158] : memref<77x256xf32, #tpu.memory_space<vmem>>, vector<1x256xf32>
    %361 = vector.broadcast %360 : vector<1x256xf32> to vector<8x256xf32>
    %362 = arith.addf %359, %361 : vector<8x256xf32>
    %cst_159 = arith.constant 5.000000e-01 : f32
    %363 = vector.broadcast %cst_159 : f32 to vector<8x256xf32>
    %364 = arith.mulf %363, %362 : vector<8x256xf32>
    %cst_160 = arith.constant 4.471500e-02 : f32
    %365 = vector.broadcast %cst_160 : f32 to vector<8x256xf32>
    %366 = arith.mulf %365, %362 : vector<8x256xf32>
    %367 = arith.mulf %366, %362 : vector<8x256xf32>
    %368 = arith.mulf %367, %362 : vector<8x256xf32>
    %369 = arith.addf %362, %368 : vector<8x256xf32>
    %cst_161 = arith.constant 0.797884583 : f32
    %370 = vector.broadcast %cst_161 : f32 to vector<8x256xf32>
    %371 = arith.mulf %370, %369 : vector<8x256xf32>
    %372 = math.tanh %371 : vector<8x256xf32>
    %cst_162 = arith.constant 1.000000e+00 : f32
    %373 = vector.broadcast %cst_162 : f32 to vector<8x256xf32>
    %374 = arith.addf %373, %372 : vector<8x256xf32>
    %375 = arith.mulf %364, %374 : vector<8x256xf32>
    %c0_163 = arith.constant 0 : index
    %c0_164 = arith.constant 0 : index
    %376 = vector.load %arg14[%c0_163, %c0_164] : memref<256x256xf32, #tpu.memory_space<vmem>>, vector<256x256xf32>
    %cst_165 = arith.constant dense<0.000000e+00> : vector<8x256xf32>
    %377 = tpu.matmul %375, %376, %cst_165 {dimension_numbers = #tpu.dot_dimension_numbers<[1], [0], [0], [1], [0, 0, 1, 1], [], []>} : vector<8x256xf32>, vector<256x256xf32>, vector<8x256xf32> -> vector<8x256xf32>
    %c19 = arith.constant 19 : index
    %c0_166 = arith.constant 0 : index
    %378 = vector.load %arg3[%c19, %c0_166] : memref<77x256xf32, #tpu.memory_space<vmem>>, vector<1x256xf32>
    %379 = vector.broadcast %378 : vector<1x256xf32> to vector<8x256xf32>
    %380 = arith.addf %377, %379 : vector<8x256xf32>
    %cst_167 = arith.constant 5.000000e-01 : f32
    %381 = vector.broadcast %cst_167 : f32 to vector<8x256xf32>
    %382 = arith.mulf %381, %380 : vector<8x256xf32>
    %cst_168 = arith.constant 4.471500e-02 : f32
    %383 = vector.broadcast %cst_168 : f32 to vector<8x256xf32>
    %384 = arith.mulf %383, %380 : vector<8x256xf32>
    %385 = arith.mulf %384, %380 : vector<8x256xf32>
    %386 = arith.mulf %385, %380 : vector<8x256xf32>
    %387 = arith.addf %380, %386 : vector<8x256xf32>
    %cst_169 = arith.constant 0.797884583 : f32
    %388 = vector.broadcast %cst_169 : f32 to vector<8x256xf32>
    %389 = arith.mulf %388, %387 : vector<8x256xf32>
    %390 = math.tanh %389 : vector<8x256xf32>
    %cst_170 = arith.constant 1.000000e+00 : f32
    %391 = vector.broadcast %cst_170 : f32 to vector<8x256xf32>
    %392 = arith.addf %391, %390 : vector<8x256xf32>
    %393 = arith.mulf %382, %392 : vector<8x256xf32>
    %c0_171 = arith.constant 0 : index
    %c0_172 = arith.constant 0 : index
    %394 = vector.load %arg15[%c0_171, %c0_172] : memref<256x128xf32, #tpu.memory_space<vmem>>, vector<256x128xf32>
    %cst_173 = arith.constant dense<0.000000e+00> : vector<8x128xf32>
    %395 = tpu.matmul %393, %394, %cst_173 {dimension_numbers = #tpu.dot_dimension_numbers<[1], [0], [0], [1], [0, 0, 1, 1], [], []>} : vector<8x256xf32>, vector<256x128xf32>, vector<8x128xf32> -> vector<8x128xf32>
    %c20 = arith.constant 20 : index
    %c0_174 = arith.constant 0 : index
    %396 = vector.load %arg3[%c20, %c0_174] : memref<77x256xf32, #tpu.memory_space<vmem>>, vector<1x128xf32>
    %397 = vector.broadcast %396 : vector<1x128xf32> to vector<8x128xf32>
    %398 = arith.addf %395, %397 : vector<8x128xf32>
    %c23 = arith.constant 23 : index
    %c0_175 = arith.constant 0 : index
    %399 = vector.load %arg3[%c23, %c0_175] : memref<77x256xf32, #tpu.memory_space<vmem>>, vector<1x1xf32>
    %400 = vector.broadcast %399 : vector<1x1xf32> to vector<8x128xf32>
    %401 = arith.mulf %400, %335 : vector<8x128xf32>
    %402 = arith.addf %398, %401 : vector<8x128xf32>
    %cst_176 = arith.constant dense<0.000000e+00> : vector<8xf32>
    %403 = vector.multi_reduction <add>, %402, %cst_176 [1] : vector<8x128xf32> to vector<8xf32>
    %404 = vector.shape_cast %403 : vector<8xf32> to vector<8x1xf32>
    %cst_177 = arith.constant 1.280000e+02 : f32
    %405 = vector.broadcast %cst_177 : f32 to vector<8x1xf32>
    %406 = arith.divf %404, %405 : vector<8x1xf32>
    %407 = vector.broadcast %406 : vector<8x1xf32> to vector<8x128xf32>
    %408 = arith.subf %402, %407 : vector<8x128xf32>
    %409 = arith.mulf %408, %408 : vector<8x128xf32>
    %cst_178 = arith.constant dense<0.000000e+00> : vector<8xf32>
    %410 = vector.multi_reduction <add>, %409, %cst_178 [1] : vector<8x128xf32> to vector<8xf32>
    %411 = vector.shape_cast %410 : vector<8xf32> to vector<8x1xf32>
    %cst_179 = arith.constant 1.280000e+02 : f32
    %412 = vector.broadcast %cst_179 : f32 to vector<8x1xf32>
    %413 = arith.divf %411, %412 : vector<8x1xf32>
    %cst_180 = arith.constant 9.99999974E-6 : f32
    %414 = vector.broadcast %cst_180 : f32 to vector<8x1xf32>
    %415 = arith.addf %413, %414 : vector<8x1xf32>
    %416 = math.rsqrt %415 : vector<8x1xf32>
    %417 = vector.broadcast %416 : vector<8x1xf32> to vector<8x128xf32>
    %418 = arith.mulf %408, %417 : vector<8x128xf32>
    %c26 = arith.constant 26 : index
    %c0_181 = arith.constant 0 : index
    %419 = vector.load %arg3[%c26, %c0_181] : memref<77x256xf32, #tpu.memory_space<vmem>>, vector<1x128xf32>
    %420 = vector.broadcast %419 : vector<1x128xf32> to vector<8x128xf32>
    %421 = arith.mulf %418, %420 : vector<8x128xf32>
    %c25 = arith.constant 25 : index
    %c0_182 = arith.constant 0 : index
    %422 = vector.load %arg3[%c25, %c0_182] : memref<77x256xf32, #tpu.memory_space<vmem>>, vector<1x128xf32>
    %423 = vector.broadcast %422 : vector<1x128xf32> to vector<8x128xf32>
    %424 = arith.addf %421, %423 : vector<8x128xf32>
    %c0_183 = arith.constant 0 : index
    %c0_184 = arith.constant 0 : index
    %425 = vector.load %arg18[%c0_183, %c0_184] : memref<128x132xf32, #tpu.memory_space<vmem>>, vector<128x132xf32>
    %cst_185 = arith.constant dense<0.000000e+00> : vector<8x132xf32>
    %426 = tpu.matmul %424, %425, %cst_185 {dimension_numbers = #tpu.dot_dimension_numbers<[1], [0], [0], [1], [0, 0, 1, 1], [], []>} : vector<8x128xf32>, vector<128x132xf32>, vector<8x132xf32> -> vector<8x132xf32>
    %c28 = arith.constant 28 : index
    %c0_186 = arith.constant 0 : index
    %427 = vector.load %arg3[%c28, %c0_186] : memref<77x256xf32, #tpu.memory_space<vmem>>, vector<1x132xf32>
    %428 = vector.broadcast %427 : vector<1x132xf32> to vector<8x132xf32>
    %429 = arith.addf %426, %428 : vector<8x132xf32>
    %c0_187 = arith.constant 0 : index
    %c0_188 = arith.constant 0 : index
    %430 = vector.load %arg17[%c0_187, %c0_188] : memref<132x128xf32, #tpu.memory_space<vmem>>, vector<132x128xf32>
    %cst_189 = arith.constant dense<0.000000e+00> : vector<8x128xf32>
    %431 = tpu.matmul %429, %430, %cst_189 {dimension_numbers = #tpu.dot_dimension_numbers<[1], [0], [0], [1], [0, 0, 1, 1], [], []>} : vector<8x132xf32>, vector<132x128xf32>, vector<8x128xf32> -> vector<8x128xf32>
    %c27 = arith.constant 27 : index
    %c0_190 = arith.constant 0 : index
    %432 = vector.load %arg3[%c27, %c0_190] : memref<77x256xf32, #tpu.memory_space<vmem>>, vector<1x128xf32>
    %433 = vector.broadcast %432 : vector<1x128xf32> to vector<8x128xf32>
    %434 = arith.addf %431, %433 : vector<8x128xf32>
    %c0_191 = arith.constant 0 : index
    %c0_192 = arith.constant 0 : index
    %435 = vector.load %arg16[%c0_191, %c0_192] : memref<128x1xf32, #tpu.memory_space<vmem>>, vector<128x1xf32>
    %cst_193 = arith.constant dense<0.000000e+00> : vector<8x1xf32>
    %436 = tpu.matmul %434, %435, %cst_193 {dimension_numbers = #tpu.dot_dimension_numbers<[1], [0], [0], [1], [0, 0, 1, 1], [], []>} : vector<8x128xf32>, vector<128x1xf32>, vector<8x1xf32> -> vector<8x1xf32>
    %c24 = arith.constant 24 : index
    %c0_194 = arith.constant 0 : index
    %437 = vector.load %arg3[%c24, %c0_194] : memref<77x256xf32, #tpu.memory_space<vmem>>, vector<1x1xf32>
    %438 = vector.broadcast %437 : vector<1x1xf32> to vector<8x1xf32>
    %439 = arith.addf %436, %438 : vector<8x1xf32>
    %cst_195 = arith.constant 0.000000e+00 : f32
    %440 = vector.broadcast %cst_195 : f32 to vector<8x1xf32>
    %441 = arith.subf %440, %439 : vector<8x1xf32>
    %442 = math.exp %441 : vector<8x1xf32>
    %cst_196 = arith.constant 1.000000e+00 : f32
    %443 = vector.broadcast %cst_196 : f32 to vector<8x1xf32>
    %444 = arith.addf %443, %442 : vector<8x1xf32>
    %cst_197 = arith.constant 1.000000e+00 : f32
    %445 = vector.broadcast %cst_197 : f32 to vector<8x1xf32>
    %446 = arith.divf %445, %444 : vector<8x1xf32>
    %447 = vector.broadcast %446 : vector<8x1xf32> to vector<8x128xf32>
    %448 = arith.mulf %447, %434 : vector<8x128xf32>
    %cst_198 = arith.constant 1.000000e+00 : f32
    %449 = vector.broadcast %cst_198 : f32 to vector<8x1xf32>
    %450 = arith.subf %449, %446 : vector<8x1xf32>
    %451 = vector.broadcast %450 : vector<8x1xf32> to vector<8x128xf32>
    %452 = arith.mulf %451, %402 : vector<8x128xf32>
    %453 = arith.addf %448, %452 : vector<8x128xf32>
    %c29 = arith.constant 29 : index
    %c0_199 = arith.constant 0 : index
    %454 = vector.load %arg3[%c29, %c0_199] : memref<77x256xf32, #tpu.memory_space<vmem>>, vector<1x1xf32>
    %455 = vector.broadcast %454 : vector<1x1xf32> to vector<8x128xf32>
    %456 = arith.mulf %455, %453 : vector<8x128xf32>
    %457 = arith.addf %402, %456 : vector<8x128xf32>
    %cst_200 = arith.constant dense<0.000000e+00> : vector<8xf32>
    %458 = vector.multi_reduction <add>, %457, %cst_200 [1] : vector<8x128xf32> to vector<8xf32>
    %459 = vector.shape_cast %458 : vector<8xf32> to vector<8x1xf32>
    %cst_201 = arith.constant 1.280000e+02 : f32
    %460 = vector.broadcast %cst_201 : f32 to vector<8x1xf32>
    %461 = arith.divf %459, %460 : vector<8x1xf32>
    %462 = vector.broadcast %461 : vector<8x1xf32> to vector<8x128xf32>
    %463 = arith.subf %457, %462 : vector<8x128xf32>
    %464 = arith.mulf %463, %463 : vector<8x128xf32>
    %cst_202 = arith.constant dense<0.000000e+00> : vector<8xf32>
    %465 = vector.multi_reduction <add>, %464, %cst_202 [1] : vector<8x128xf32> to vector<8xf32>
    %466 = vector.shape_cast %465 : vector<8xf32> to vector<8x1xf32>
    %cst_203 = arith.constant 1.280000e+02 : f32
    %467 = vector.broadcast %cst_203 : f32 to vector<8x1xf32>
    %468 = arith.divf %466, %467 : vector<8x1xf32>
    %cst_204 = arith.constant 9.99999974E-6 : f32
    %469 = vector.broadcast %cst_204 : f32 to vector<8x1xf32>
    %470 = arith.addf %468, %469 : vector<8x1xf32>
    %471 = math.rsqrt %470 : vector<8x1xf32>
    %472 = vector.broadcast %471 : vector<8x1xf32> to vector<8x128xf32>
    %473 = arith.mulf %463, %472 : vector<8x128xf32>
    %c34 = arith.constant 34 : index
    %c0_205 = arith.constant 0 : index
    %474 = vector.load %arg3[%c34, %c0_205] : memref<77x256xf32, #tpu.memory_space<vmem>>, vector<1x128xf32>
    %475 = vector.broadcast %474 : vector<1x128xf32> to vector<8x128xf32>
    %476 = arith.mulf %473, %475 : vector<8x128xf32>
    %c33 = arith.constant 33 : index
    %c0_206 = arith.constant 0 : index
    %477 = vector.load %arg3[%c33, %c0_206] : memref<77x256xf32, #tpu.memory_space<vmem>>, vector<1x128xf32>
    %478 = vector.broadcast %477 : vector<1x128xf32> to vector<8x128xf32>
    %479 = arith.addf %476, %478 : vector<8x128xf32>
    %c0_207 = arith.constant 0 : index
    %c0_208 = arith.constant 0 : index
    %480 = vector.load %arg19[%c0_207, %c0_208] : memref<128x256xf32, #tpu.memory_space<vmem>>, vector<128x256xf32>
    %cst_209 = arith.constant dense<0.000000e+00> : vector<8x256xf32>
    %481 = tpu.matmul %479, %480, %cst_209 {dimension_numbers = #tpu.dot_dimension_numbers<[1], [0], [0], [1], [0, 0, 1, 1], [], []>} : vector<8x128xf32>, vector<128x256xf32>, vector<8x256xf32> -> vector<8x256xf32>
    %c30 = arith.constant 30 : index
    %c0_210 = arith.constant 0 : index
    %482 = vector.load %arg3[%c30, %c0_210] : memref<77x256xf32, #tpu.memory_space<vmem>>, vector<1x256xf32>
    %483 = vector.broadcast %482 : vector<1x256xf32> to vector<8x256xf32>
    %484 = arith.addf %481, %483 : vector<8x256xf32>
    %cst_211 = arith.constant 5.000000e-01 : f32
    %485 = vector.broadcast %cst_211 : f32 to vector<8x256xf32>
    %486 = arith.mulf %485, %484 : vector<8x256xf32>
    %cst_212 = arith.constant 4.471500e-02 : f32
    %487 = vector.broadcast %cst_212 : f32 to vector<8x256xf32>
    %488 = arith.mulf %487, %484 : vector<8x256xf32>
    %489 = arith.mulf %488, %484 : vector<8x256xf32>
    %490 = arith.mulf %489, %484 : vector<8x256xf32>
    %491 = arith.addf %484, %490 : vector<8x256xf32>
    %cst_213 = arith.constant 0.797884583 : f32
    %492 = vector.broadcast %cst_213 : f32 to vector<8x256xf32>
    %493 = arith.mulf %492, %491 : vector<8x256xf32>
    %494 = math.tanh %493 : vector<8x256xf32>
    %cst_214 = arith.constant 1.000000e+00 : f32
    %495 = vector.broadcast %cst_214 : f32 to vector<8x256xf32>
    %496 = arith.addf %495, %494 : vector<8x256xf32>
    %497 = arith.mulf %486, %496 : vector<8x256xf32>
    %c0_215 = arith.constant 0 : index
    %c0_216 = arith.constant 0 : index
    %498 = vector.load %arg20[%c0_215, %c0_216] : memref<256x256xf32, #tpu.memory_space<vmem>>, vector<256x256xf32>
    %cst_217 = arith.constant dense<0.000000e+00> : vector<8x256xf32>
    %499 = tpu.matmul %497, %498, %cst_217 {dimension_numbers = #tpu.dot_dimension_numbers<[1], [0], [0], [1], [0, 0, 1, 1], [], []>} : vector<8x256xf32>, vector<256x256xf32>, vector<8x256xf32> -> vector<8x256xf32>
    %c31 = arith.constant 31 : index
    %c0_218 = arith.constant 0 : index
    %500 = vector.load %arg3[%c31, %c0_218] : memref<77x256xf32, #tpu.memory_space<vmem>>, vector<1x256xf32>
    %501 = vector.broadcast %500 : vector<1x256xf32> to vector<8x256xf32>
    %502 = arith.addf %499, %501 : vector<8x256xf32>
    %cst_219 = arith.constant 5.000000e-01 : f32
    %503 = vector.broadcast %cst_219 : f32 to vector<8x256xf32>
    %504 = arith.mulf %503, %502 : vector<8x256xf32>
    %cst_220 = arith.constant 4.471500e-02 : f32
    %505 = vector.broadcast %cst_220 : f32 to vector<8x256xf32>
    %506 = arith.mulf %505, %502 : vector<8x256xf32>
    %507 = arith.mulf %506, %502 : vector<8x256xf32>
    %508 = arith.mulf %507, %502 : vector<8x256xf32>
    %509 = arith.addf %502, %508 : vector<8x256xf32>
    %cst_221 = arith.constant 0.797884583 : f32
    %510 = vector.broadcast %cst_221 : f32 to vector<8x256xf32>
    %511 = arith.mulf %510, %509 : vector<8x256xf32>
    %512 = math.tanh %511 : vector<8x256xf32>
    %cst_222 = arith.constant 1.000000e+00 : f32
    %513 = vector.broadcast %cst_222 : f32 to vector<8x256xf32>
    %514 = arith.addf %513, %512 : vector<8x256xf32>
    %515 = arith.mulf %504, %514 : vector<8x256xf32>
    %c0_223 = arith.constant 0 : index
    %c0_224 = arith.constant 0 : index
    %516 = vector.load %arg21[%c0_223, %c0_224] : memref<256x128xf32, #tpu.memory_space<vmem>>, vector<256x128xf32>
    %cst_225 = arith.constant dense<0.000000e+00> : vector<8x128xf32>
    %517 = tpu.matmul %515, %516, %cst_225 {dimension_numbers = #tpu.dot_dimension_numbers<[1], [0], [0], [1], [0, 0, 1, 1], [], []>} : vector<8x256xf32>, vector<256x128xf32>, vector<8x128xf32> -> vector<8x128xf32>
    %c32 = arith.constant 32 : index
    %c0_226 = arith.constant 0 : index
    %518 = vector.load %arg3[%c32, %c0_226] : memref<77x256xf32, #tpu.memory_space<vmem>>, vector<1x128xf32>
    %519 = vector.broadcast %518 : vector<1x128xf32> to vector<8x128xf32>
    %520 = arith.addf %517, %519 : vector<8x128xf32>
    %c35 = arith.constant 35 : index
    %c0_227 = arith.constant 0 : index
    %521 = vector.load %arg3[%c35, %c0_227] : memref<77x256xf32, #tpu.memory_space<vmem>>, vector<1x1xf32>
    %522 = vector.broadcast %521 : vector<1x1xf32> to vector<8x128xf32>
    %523 = arith.mulf %522, %457 : vector<8x128xf32>
    %524 = arith.addf %520, %523 : vector<8x128xf32>
    %cst_228 = arith.constant dense<0.000000e+00> : vector<8xf32>
    %525 = vector.multi_reduction <add>, %524, %cst_228 [1] : vector<8x128xf32> to vector<8xf32>
    %526 = vector.shape_cast %525 : vector<8xf32> to vector<8x1xf32>
    %cst_229 = arith.constant 1.280000e+02 : f32
    %527 = vector.broadcast %cst_229 : f32 to vector<8x1xf32>
    %528 = arith.divf %526, %527 : vector<8x1xf32>
    %529 = vector.broadcast %528 : vector<8x1xf32> to vector<8x128xf32>
    %530 = arith.subf %524, %529 : vector<8x128xf32>
    %531 = arith.mulf %530, %530 : vector<8x128xf32>
    %cst_230 = arith.constant dense<0.000000e+00> : vector<8xf32>
    %532 = vector.multi_reduction <add>, %531, %cst_230 [1] : vector<8x128xf32> to vector<8xf32>
    %533 = vector.shape_cast %532 : vector<8xf32> to vector<8x1xf32>
    %cst_231 = arith.constant 1.280000e+02 : f32
    %534 = vector.broadcast %cst_231 : f32 to vector<8x1xf32>
    %535 = arith.divf %533, %534 : vector<8x1xf32>
    %cst_232 = arith.constant 9.99999974E-6 : f32
    %536 = vector.broadcast %cst_232 : f32 to vector<8x1xf32>
    %537 = arith.addf %535, %536 : vector<8x1xf32>
    %538 = math.rsqrt %537 : vector<8x1xf32>
    %539 = vector.broadcast %538 : vector<8x1xf32> to vector<8x128xf32>
    %540 = arith.mulf %530, %539 : vector<8x128xf32>
    %c38 = arith.constant 38 : index
    %c0_233 = arith.constant 0 : index
    %541 = vector.load %arg3[%c38, %c0_233] : memref<77x256xf32, #tpu.memory_space<vmem>>, vector<1x128xf32>
    %542 = vector.broadcast %541 : vector<1x128xf32> to vector<8x128xf32>
    %543 = arith.mulf %540, %542 : vector<8x128xf32>
    %c37 = arith.constant 37 : index
    %c0_234 = arith.constant 0 : index
    %544 = vector.load %arg3[%c37, %c0_234] : memref<77x256xf32, #tpu.memory_space<vmem>>, vector<1x128xf32>
    %545 = vector.broadcast %544 : vector<1x128xf32> to vector<8x128xf32>
    %546 = arith.addf %543, %545 : vector<8x128xf32>
    %c0_235 = arith.constant 0 : index
    %c0_236 = arith.constant 0 : index
    %547 = vector.load %arg24[%c0_235, %c0_236] : memref<128x132xf32, #tpu.memory_space<vmem>>, vector<128x132xf32>
    %cst_237 = arith.constant dense<0.000000e+00> : vector<8x132xf32>
    %548 = tpu.matmul %546, %547, %cst_237 {dimension_numbers = #tpu.dot_dimension_numbers<[1], [0], [0], [1], [0, 0, 1, 1], [], []>} : vector<8x128xf32>, vector<128x132xf32>, vector<8x132xf32> -> vector<8x132xf32>
    %c40 = arith.constant 40 : index
    %c0_238 = arith.constant 0 : index
    %549 = vector.load %arg3[%c40, %c0_238] : memref<77x256xf32, #tpu.memory_space<vmem>>, vector<1x132xf32>
    %550 = vector.broadcast %549 : vector<1x132xf32> to vector<8x132xf32>
    %551 = arith.addf %548, %550 : vector<8x132xf32>
    %c0_239 = arith.constant 0 : index
    %c0_240 = arith.constant 0 : index
    %552 = vector.load %arg23[%c0_239, %c0_240] : memref<132x128xf32, #tpu.memory_space<vmem>>, vector<132x128xf32>
    %cst_241 = arith.constant dense<0.000000e+00> : vector<8x128xf32>
    %553 = tpu.matmul %551, %552, %cst_241 {dimension_numbers = #tpu.dot_dimension_numbers<[1], [0], [0], [1], [0, 0, 1, 1], [], []>} : vector<8x132xf32>, vector<132x128xf32>, vector<8x128xf32> -> vector<8x128xf32>
    %c39 = arith.constant 39 : index
    %c0_242 = arith.constant 0 : index
    %554 = vector.load %arg3[%c39, %c0_242] : memref<77x256xf32, #tpu.memory_space<vmem>>, vector<1x128xf32>
    %555 = vector.broadcast %554 : vector<1x128xf32> to vector<8x128xf32>
    %556 = arith.addf %553, %555 : vector<8x128xf32>
    %c0_243 = arith.constant 0 : index
    %c0_244 = arith.constant 0 : index
    %557 = vector.load %arg22[%c0_243, %c0_244] : memref<128x1xf32, #tpu.memory_space<vmem>>, vector<128x1xf32>
    %cst_245 = arith.constant dense<0.000000e+00> : vector<8x1xf32>
    %558 = tpu.matmul %556, %557, %cst_245 {dimension_numbers = #tpu.dot_dimension_numbers<[1], [0], [0], [1], [0, 0, 1, 1], [], []>} : vector<8x128xf32>, vector<128x1xf32>, vector<8x1xf32> -> vector<8x1xf32>
    %c36 = arith.constant 36 : index
    %c0_246 = arith.constant 0 : index
    %559 = vector.load %arg3[%c36, %c0_246] : memref<77x256xf32, #tpu.memory_space<vmem>>, vector<1x1xf32>
    %560 = vector.broadcast %559 : vector<1x1xf32> to vector<8x1xf32>
    %561 = arith.addf %558, %560 : vector<8x1xf32>
    %cst_247 = arith.constant 0.000000e+00 : f32
    %562 = vector.broadcast %cst_247 : f32 to vector<8x1xf32>
    %563 = arith.subf %562, %561 : vector<8x1xf32>
    %564 = math.exp %563 : vector<8x1xf32>
    %cst_248 = arith.constant 1.000000e+00 : f32
    %565 = vector.broadcast %cst_248 : f32 to vector<8x1xf32>
    %566 = arith.addf %565, %564 : vector<8x1xf32>
    %cst_249 = arith.constant 1.000000e+00 : f32
    %567 = vector.broadcast %cst_249 : f32 to vector<8x1xf32>
    %568 = arith.divf %567, %566 : vector<8x1xf32>
    %569 = vector.broadcast %568 : vector<8x1xf32> to vector<8x128xf32>
    %570 = arith.mulf %569, %556 : vector<8x128xf32>
    %cst_250 = arith.constant 1.000000e+00 : f32
    %571 = vector.broadcast %cst_250 : f32 to vector<8x1xf32>
    %572 = arith.subf %571, %568 : vector<8x1xf32>
    %573 = vector.broadcast %572 : vector<8x1xf32> to vector<8x128xf32>
    %574 = arith.mulf %573, %524 : vector<8x128xf32>
    %575 = arith.addf %570, %574 : vector<8x128xf32>
    %c41 = arith.constant 41 : index
    %c0_251 = arith.constant 0 : index
    %576 = vector.load %arg3[%c41, %c0_251] : memref<77x256xf32, #tpu.memory_space<vmem>>, vector<1x1xf32>
    %577 = vector.broadcast %576 : vector<1x1xf32> to vector<8x128xf32>
    %578 = arith.mulf %577, %575 : vector<8x128xf32>
    %579 = arith.addf %524, %578 : vector<8x128xf32>
    %cst_252 = arith.constant dense<0.000000e+00> : vector<8xf32>
    %580 = vector.multi_reduction <add>, %579, %cst_252 [1] : vector<8x128xf32> to vector<8xf32>
    %581 = vector.shape_cast %580 : vector<8xf32> to vector<8x1xf32>
    %cst_253 = arith.constant 1.280000e+02 : f32
    %582 = vector.broadcast %cst_253 : f32 to vector<8x1xf32>
    %583 = arith.divf %581, %582 : vector<8x1xf32>
    %584 = vector.broadcast %583 : vector<8x1xf32> to vector<8x128xf32>
    %585 = arith.subf %579, %584 : vector<8x128xf32>
    %586 = arith.mulf %585, %585 : vector<8x128xf32>
    %cst_254 = arith.constant dense<0.000000e+00> : vector<8xf32>
    %587 = vector.multi_reduction <add>, %586, %cst_254 [1] : vector<8x128xf32> to vector<8xf32>
    %588 = vector.shape_cast %587 : vector<8xf32> to vector<8x1xf32>
    %cst_255 = arith.constant 1.280000e+02 : f32
    %589 = vector.broadcast %cst_255 : f32 to vector<8x1xf32>
    %590 = arith.divf %588, %589 : vector<8x1xf32>
    %cst_256 = arith.constant 9.99999974E-6 : f32
    %591 = vector.broadcast %cst_256 : f32 to vector<8x1xf32>
    %592 = arith.addf %590, %591 : vector<8x1xf32>
    %593 = math.rsqrt %592 : vector<8x1xf32>
    %594 = vector.broadcast %593 : vector<8x1xf32> to vector<8x128xf32>
    %595 = arith.mulf %585, %594 : vector<8x128xf32>
    %c46 = arith.constant 46 : index
    %c0_257 = arith.constant 0 : index
    %596 = vector.load %arg3[%c46, %c0_257] : memref<77x256xf32, #tpu.memory_space<vmem>>, vector<1x128xf32>
    %597 = vector.broadcast %596 : vector<1x128xf32> to vector<8x128xf32>
    %598 = arith.mulf %595, %597 : vector<8x128xf32>
    %c45 = arith.constant 45 : index
    %c0_258 = arith.constant 0 : index
    %599 = vector.load %arg3[%c45, %c0_258] : memref<77x256xf32, #tpu.memory_space<vmem>>, vector<1x128xf32>
    %600 = vector.broadcast %599 : vector<1x128xf32> to vector<8x128xf32>
    %601 = arith.addf %598, %600 : vector<8x128xf32>
    %c0_259 = arith.constant 0 : index
    %c0_260 = arith.constant 0 : index
    %602 = vector.load %arg25[%c0_259, %c0_260] : memref<128x256xf32, #tpu.memory_space<vmem>>, vector<128x256xf32>
    %cst_261 = arith.constant dense<0.000000e+00> : vector<8x256xf32>
    %603 = tpu.matmul %601, %602, %cst_261 {dimension_numbers = #tpu.dot_dimension_numbers<[1], [0], [0], [1], [0, 0, 1, 1], [], []>} : vector<8x128xf32>, vector<128x256xf32>, vector<8x256xf32> -> vector<8x256xf32>
    %c42 = arith.constant 42 : index
    %c0_262 = arith.constant 0 : index
    %604 = vector.load %arg3[%c42, %c0_262] : memref<77x256xf32, #tpu.memory_space<vmem>>, vector<1x256xf32>
    %605 = vector.broadcast %604 : vector<1x256xf32> to vector<8x256xf32>
    %606 = arith.addf %603, %605 : vector<8x256xf32>
    %cst_263 = arith.constant 5.000000e-01 : f32
    %607 = vector.broadcast %cst_263 : f32 to vector<8x256xf32>
    %608 = arith.mulf %607, %606 : vector<8x256xf32>
    %cst_264 = arith.constant 4.471500e-02 : f32
    %609 = vector.broadcast %cst_264 : f32 to vector<8x256xf32>
    %610 = arith.mulf %609, %606 : vector<8x256xf32>
    %611 = arith.mulf %610, %606 : vector<8x256xf32>
    %612 = arith.mulf %611, %606 : vector<8x256xf32>
    %613 = arith.addf %606, %612 : vector<8x256xf32>
    %cst_265 = arith.constant 0.797884583 : f32
    %614 = vector.broadcast %cst_265 : f32 to vector<8x256xf32>
    %615 = arith.mulf %614, %613 : vector<8x256xf32>
    %616 = math.tanh %615 : vector<8x256xf32>
    %cst_266 = arith.constant 1.000000e+00 : f32
    %617 = vector.broadcast %cst_266 : f32 to vector<8x256xf32>
    %618 = arith.addf %617, %616 : vector<8x256xf32>
    %619 = arith.mulf %608, %618 : vector<8x256xf32>
    %c0_267 = arith.constant 0 : index
    %c0_268 = arith.constant 0 : index
    %620 = vector.load %arg26[%c0_267, %c0_268] : memref<256x256xf32, #tpu.memory_space<vmem>>, vector<256x256xf32>
    %cst_269 = arith.constant dense<0.000000e+00> : vector<8x256xf32>
    %621 = tpu.matmul %619, %620, %cst_269 {dimension_numbers = #tpu.dot_dimension_numbers<[1], [0], [0], [1], [0, 0, 1, 1], [], []>} : vector<8x256xf32>, vector<256x256xf32>, vector<8x256xf32> -> vector<8x256xf32>
    %c43 = arith.constant 43 : index
    %c0_270 = arith.constant 0 : index
    %622 = vector.load %arg3[%c43, %c0_270] : memref<77x256xf32, #tpu.memory_space<vmem>>, vector<1x256xf32>
    %623 = vector.broadcast %622 : vector<1x256xf32> to vector<8x256xf32>
    %624 = arith.addf %621, %623 : vector<8x256xf32>
    %cst_271 = arith.constant 5.000000e-01 : f32
    %625 = vector.broadcast %cst_271 : f32 to vector<8x256xf32>
    %626 = arith.mulf %625, %624 : vector<8x256xf32>
    %cst_272 = arith.constant 4.471500e-02 : f32
    %627 = vector.broadcast %cst_272 : f32 to vector<8x256xf32>
    %628 = arith.mulf %627, %624 : vector<8x256xf32>
    %629 = arith.mulf %628, %624 : vector<8x256xf32>
    %630 = arith.mulf %629, %624 : vector<8x256xf32>
    %631 = arith.addf %624, %630 : vector<8x256xf32>
    %cst_273 = arith.constant 0.797884583 : f32
    %632 = vector.broadcast %cst_273 : f32 to vector<8x256xf32>
    %633 = arith.mulf %632, %631 : vector<8x256xf32>
    %634 = math.tanh %633 : vector<8x256xf32>
    %cst_274 = arith.constant 1.000000e+00 : f32
    %635 = vector.broadcast %cst_274 : f32 to vector<8x256xf32>
    %636 = arith.addf %635, %634 : vector<8x256xf32>
    %637 = arith.mulf %626, %636 : vector<8x256xf32>
    %c0_275 = arith.constant 0 : index
    %c0_276 = arith.constant 0 : index
    %638 = vector.load %arg27[%c0_275, %c0_276] : memref<256x128xf32, #tpu.memory_space<vmem>>, vector<256x128xf32>
    %cst_277 = arith.constant dense<0.000000e+00> : vector<8x128xf32>
    %639 = tpu.matmul %637, %638, %cst_277 {dimension_numbers = #tpu.dot_dimension_numbers<[1], [0], [0], [1], [0, 0, 1, 1], [], []>} : vector<8x256xf32>, vector<256x128xf32>, vector<8x128xf32> -> vector<8x128xf32>
    %c44 = arith.constant 44 : index
    %c0_278 = arith.constant 0 : index
    %640 = vector.load %arg3[%c44, %c0_278] : memref<77x256xf32, #tpu.memory_space<vmem>>, vector<1x128xf32>
    %641 = vector.broadcast %640 : vector<1x128xf32> to vector<8x128xf32>
    %642 = arith.addf %639, %641 : vector<8x128xf32>
    %c47 = arith.constant 47 : index
    %c0_279 = arith.constant 0 : index
    %643 = vector.load %arg3[%c47, %c0_279] : memref<77x256xf32, #tpu.memory_space<vmem>>, vector<1x1xf32>
    %644 = vector.broadcast %643 : vector<1x1xf32> to vector<8x128xf32>
    %645 = arith.mulf %644, %579 : vector<8x128xf32>
    %646 = arith.addf %642, %645 : vector<8x128xf32>
    %c0_280 = arith.constant 0 : index
    %c0_281 = arith.constant 0 : index
    %647 = vector.load %arg28[%c0_280, %c0_281] : memref<128x256xf32, #tpu.memory_space<vmem>>, vector<128x256xf32>
    %cst_282 = arith.constant dense<0.000000e+00> : vector<8x256xf32>
    %648 = tpu.matmul %646, %647, %cst_282 {dimension_numbers = #tpu.dot_dimension_numbers<[1], [0], [0], [1], [0, 0, 1, 1], [], []>} : vector<8x128xf32>, vector<128x256xf32>, vector<8x256xf32> -> vector<8x256xf32>
    %c48 = arith.constant 48 : index
    %c0_283 = arith.constant 0 : index
    %649 = vector.load %arg3[%c48, %c0_283] : memref<77x256xf32, #tpu.memory_space<vmem>>, vector<1x256xf32>
    %650 = vector.broadcast %649 : vector<1x256xf32> to vector<8x256xf32>
    %651 = arith.addf %648, %650 : vector<8x256xf32>
    %cst_284 = arith.constant dense<0.000000e+00> : vector<8xf32>
    %652 = vector.multi_reduction <add>, %651, %cst_284 [1] : vector<8x256xf32> to vector<8xf32>
    %653 = vector.shape_cast %652 : vector<8xf32> to vector<8x1xf32>
    %cst_285 = arith.constant 2.560000e+02 : f32
    %654 = vector.broadcast %cst_285 : f32 to vector<8x1xf32>
    %655 = arith.divf %653, %654 : vector<8x1xf32>
    %656 = vector.broadcast %655 : vector<8x1xf32> to vector<8x256xf32>
    %657 = arith.subf %651, %656 : vector<8x256xf32>
    %658 = arith.mulf %657, %657 : vector<8x256xf32>
    %cst_286 = arith.constant dense<0.000000e+00> : vector<8xf32>
    %659 = vector.multi_reduction <add>, %658, %cst_286 [1] : vector<8x256xf32> to vector<8xf32>
    %660 = vector.shape_cast %659 : vector<8xf32> to vector<8x1xf32>
    %cst_287 = arith.constant 2.560000e+02 : f32
    %661 = vector.broadcast %cst_287 : f32 to vector<8x1xf32>
    %662 = arith.divf %660, %661 : vector<8x1xf32>
    %cst_288 = arith.constant 9.99999974E-6 : f32
    %663 = vector.broadcast %cst_288 : f32 to vector<8x1xf32>
    %664 = arith.addf %662, %663 : vector<8x1xf32>
    %665 = math.rsqrt %664 : vector<8x1xf32>
    %666 = vector.broadcast %665 : vector<8x1xf32> to vector<8x256xf32>
    %667 = arith.mulf %657, %666 : vector<8x256xf32>
    %c52 = arith.constant 52 : index
    %c0_289 = arith.constant 0 : index
    %668 = vector.load %arg3[%c52, %c0_289] : memref<77x256xf32, #tpu.memory_space<vmem>>, vector<1x256xf32>
    %669 = vector.broadcast %668 : vector<1x256xf32> to vector<8x256xf32>
    %670 = arith.mulf %667, %669 : vector<8x256xf32>
    %c51 = arith.constant 51 : index
    %c0_290 = arith.constant 0 : index
    %671 = vector.load %arg3[%c51, %c0_290] : memref<77x256xf32, #tpu.memory_space<vmem>>, vector<1x256xf32>
    %672 = vector.broadcast %671 : vector<1x256xf32> to vector<8x256xf32>
    %673 = arith.addf %670, %672 : vector<8x256xf32>
    %cst_291 = arith.constant 0.000000e+00 : f32
    %674 = vector.broadcast %cst_291 : f32 to vector<8x256xf32>
    %675 = arith.maximumf %673, %674 : vector<8x256xf32>
    %c0_292 = arith.constant 0 : index
    %c0_293 = arith.constant 0 : index
    %676 = vector.load %arg29[%c0_292, %c0_293] : memref<256x128xf32, #tpu.memory_space<vmem>>, vector<256x128xf32>
    %cst_294 = arith.constant dense<0.000000e+00> : vector<8x128xf32>
    %677 = tpu.matmul %675, %676, %cst_294 {dimension_numbers = #tpu.dot_dimension_numbers<[1], [0], [0], [1], [0, 0, 1, 1], [], []>} : vector<8x256xf32>, vector<256x128xf32>, vector<8x128xf32> -> vector<8x128xf32>
    %c49 = arith.constant 49 : index
    %c0_295 = arith.constant 0 : index
    %678 = vector.load %arg3[%c49, %c0_295] : memref<77x256xf32, #tpu.memory_space<vmem>>, vector<1x128xf32>
    %679 = vector.broadcast %678 : vector<1x128xf32> to vector<8x128xf32>
    %680 = arith.addf %677, %679 : vector<8x128xf32>
    %cst_296 = arith.constant dense<0.000000e+00> : vector<8xf32>
    %681 = vector.multi_reduction <add>, %680, %cst_296 [1] : vector<8x128xf32> to vector<8xf32>
    %682 = vector.shape_cast %681 : vector<8xf32> to vector<8x1xf32>
    %cst_297 = arith.constant 1.280000e+02 : f32
    %683 = vector.broadcast %cst_297 : f32 to vector<8x1xf32>
    %684 = arith.divf %682, %683 : vector<8x1xf32>
    %685 = vector.broadcast %684 : vector<8x1xf32> to vector<8x128xf32>
    %686 = arith.subf %680, %685 : vector<8x128xf32>
    %687 = arith.mulf %686, %686 : vector<8x128xf32>
    %cst_298 = arith.constant dense<0.000000e+00> : vector<8xf32>
    %688 = vector.multi_reduction <add>, %687, %cst_298 [1] : vector<8x128xf32> to vector<8xf32>
    %689 = vector.shape_cast %688 : vector<8xf32> to vector<8x1xf32>
    %cst_299 = arith.constant 1.280000e+02 : f32
    %690 = vector.broadcast %cst_299 : f32 to vector<8x1xf32>
    %691 = arith.divf %689, %690 : vector<8x1xf32>
    %cst_300 = arith.constant 9.99999974E-6 : f32
    %692 = vector.broadcast %cst_300 : f32 to vector<8x1xf32>
    %693 = arith.addf %691, %692 : vector<8x1xf32>
    %694 = math.rsqrt %693 : vector<8x1xf32>
    %695 = vector.broadcast %694 : vector<8x1xf32> to vector<8x128xf32>
    %696 = arith.mulf %686, %695 : vector<8x128xf32>
    %c54 = arith.constant 54 : index
    %c0_301 = arith.constant 0 : index
    %697 = vector.load %arg3[%c54, %c0_301] : memref<77x256xf32, #tpu.memory_space<vmem>>, vector<1x128xf32>
    %698 = vector.broadcast %697 : vector<1x128xf32> to vector<8x128xf32>
    %699 = arith.mulf %696, %698 : vector<8x128xf32>
    %c53 = arith.constant 53 : index
    %c0_302 = arith.constant 0 : index
    %700 = vector.load %arg3[%c53, %c0_302] : memref<77x256xf32, #tpu.memory_space<vmem>>, vector<1x128xf32>
    %701 = vector.broadcast %700 : vector<1x128xf32> to vector<8x128xf32>
    %702 = arith.addf %699, %701 : vector<8x128xf32>
    %cst_303 = arith.constant 0.000000e+00 : f32
    %703 = vector.broadcast %cst_303 : f32 to vector<8x128xf32>
    %704 = arith.maximumf %702, %703 : vector<8x128xf32>
    %c0_304 = arith.constant 0 : index
    %c0_305 = arith.constant 0 : index
    %705 = vector.load %arg30[%c0_304, %c0_305] : memref<128x2xf32, #tpu.memory_space<vmem>>, vector<128x2xf32>
    %cst_306 = arith.constant dense<0.000000e+00> : vector<8x2xf32>
    %706 = tpu.matmul %704, %705, %cst_306 {dimension_numbers = #tpu.dot_dimension_numbers<[1], [0], [0], [1], [0, 0, 1, 1], [], []>} : vector<8x128xf32>, vector<128x2xf32>, vector<8x2xf32> -> vector<8x2xf32>
    %c50 = arith.constant 50 : index
    %c0_307 = arith.constant 0 : index
    %707 = vector.load %arg3[%c50, %c0_307] : memref<77x256xf32, #tpu.memory_space<vmem>>, vector<1x2xf32>
    %708 = vector.broadcast %707 : vector<1x2xf32> to vector<8x2xf32>
    %709 = arith.addf %706, %708 : vector<8x2xf32>
    %c0_308 = arith.constant 0 : index
    %c0_309 = arith.constant 0 : index
    %710 = vector.load %arg41[%c0_308, %c0_309] : memref<128x128xf32, #tpu.memory_space<vmem>>, vector<128x128xf32>
    %cst_310 = arith.constant dense<0.000000e+00> : vector<8x128xf32>
    %711 = tpu.matmul %646, %710, %cst_310 {dimension_numbers = #tpu.dot_dimension_numbers<[1], [0], [0], [1], [0, 0, 1, 1], [], []>} : vector<8x128xf32>, vector<128x128xf32>, vector<8x128xf32> -> vector<8x128xf32>
    %c74 = arith.constant 74 : index
    %c0_311 = arith.constant 0 : index
    %712 = vector.load %arg3[%c74, %c0_311] : memref<77x256xf32, #tpu.memory_space<vmem>>, vector<1x128xf32>
    %713 = vector.broadcast %712 : vector<1x128xf32> to vector<8x128xf32>
    %714 = arith.addf %711, %713 : vector<8x128xf32>
    %cst_312 = arith.constant 0.000000e+00 : f32
    %715 = vector.broadcast %cst_312 : f32 to vector<8x128xf32>
    %716 = arith.maximumf %714, %715 : vector<8x128xf32>
    %c0_313 = arith.constant 0 : index
    %c0_314 = arith.constant 0 : index
    %717 = vector.load %arg42[%c0_313, %c0_314] : memref<128x64xf32, #tpu.memory_space<vmem>>, vector<128x64xf32>
    %cst_315 = arith.constant dense<0.000000e+00> : vector<8x64xf32>
    %718 = tpu.matmul %716, %717, %cst_315 {dimension_numbers = #tpu.dot_dimension_numbers<[1], [0], [0], [1], [0, 0, 1, 1], [], []>} : vector<8x128xf32>, vector<128x64xf32>, vector<8x64xf32> -> vector<8x64xf32>
    %c75 = arith.constant 75 : index
    %c0_316 = arith.constant 0 : index
    %719 = vector.load %arg3[%c75, %c0_316] : memref<77x256xf32, #tpu.memory_space<vmem>>, vector<1x64xf32>
    %720 = vector.broadcast %719 : vector<1x64xf32> to vector<8x64xf32>
    %721 = arith.addf %718, %720 : vector<8x64xf32>
    %cst_317 = arith.constant 0.000000e+00 : f32
    %722 = vector.broadcast %cst_317 : f32 to vector<8x64xf32>
    %723 = arith.maximumf %721, %722 : vector<8x64xf32>
    %c0_318 = arith.constant 0 : index
    %c0_319 = arith.constant 0 : index
    %724 = vector.load %arg43[%c0_318, %c0_319] : memref<64x4xf32, #tpu.memory_space<vmem>>, vector<64x4xf32>
    %cst_320 = arith.constant dense<0.000000e+00> : vector<8x4xf32>
    %725 = tpu.matmul %723, %724, %cst_320 {dimension_numbers = #tpu.dot_dimension_numbers<[1], [0], [0], [1], [0, 0, 1, 1], [], []>} : vector<8x64xf32>, vector<64x4xf32>, vector<8x4xf32> -> vector<8x4xf32>
    %c76 = arith.constant 76 : index
    %c0_321 = arith.constant 0 : index
    %726 = vector.load %arg3[%c76, %c0_321] : memref<77x256xf32, #tpu.memory_space<vmem>>, vector<1x4xf32>
    %727 = vector.broadcast %726 : vector<1x4xf32> to vector<8x4xf32>
    %728 = arith.addf %725, %727 : vector<8x4xf32>
    %729 = math.exp %728 : vector<8x4xf32>
    %cst_322 = arith.constant 1.000000e+00 : f32
    %730 = vector.broadcast %cst_322 : f32 to vector<8x4xf32>
    %731 = arith.addf %729, %730 : vector<8x4xf32>
    %cst_323 = arith.constant dense<0.000000e+00> : vector<8xf32>
    %732 = vector.multi_reduction <add>, %731, %cst_323 [1] : vector<8x4xf32> to vector<8xf32>
    %733 = vector.shape_cast %732 : vector<8xf32> to vector<8x1xf32>
    %734 = vector.broadcast %733 : vector<8x1xf32> to vector<8x4xf32>
    %735 = arith.divf %731, %734 : vector<8x4xf32>
    %cst_324 = arith.constant 2.000000e+00 : f32
    %736 = vector.broadcast %cst_324 : f32 to vector<8x1xf32>
    %737 = arith.divf %736, %733 : vector<8x1xf32>
    %c0_325 = arith.constant 0 : index
    %c0_326 = arith.constant 0 : index
    %738 = vector.load %arg39[%c0_325, %c0_326] : memref<128x32xf32, #tpu.memory_space<vmem>>, vector<128x32xf32>
    %cst_327 = arith.constant dense<0.000000e+00> : vector<8x32xf32>
    %739 = tpu.matmul %646, %738, %cst_327 {dimension_numbers = #tpu.dot_dimension_numbers<[1], [0], [0], [1], [0, 0, 1, 1], [], []>} : vector<8x128xf32>, vector<128x32xf32>, vector<8x32xf32> -> vector<8x32xf32>
    %c72 = arith.constant 72 : index
    %c0_328 = arith.constant 0 : index
    %740 = vector.load %arg3[%c72, %c0_328] : memref<77x256xf32, #tpu.memory_space<vmem>>, vector<1x32xf32>
    %741 = vector.broadcast %740 : vector<1x32xf32> to vector<8x32xf32>
    %742 = arith.addf %739, %741 : vector<8x32xf32>
    %cst_329 = arith.constant 0.000000e+00 : f32
    %743 = vector.broadcast %cst_329 : f32 to vector<8x32xf32>
    %744 = arith.maximumf %742, %743 : vector<8x32xf32>
    %c0_330 = arith.constant 0 : index
    %c0_331 = arith.constant 0 : index
    %745 = vector.load %arg40[%c0_330, %c0_331] : memref<32x1xf32, #tpu.memory_space<vmem>>, vector<32x1xf32>
    %cst_332 = arith.constant dense<0.000000e+00> : vector<8x1xf32>
    %746 = tpu.matmul %744, %745, %cst_332 {dimension_numbers = #tpu.dot_dimension_numbers<[1], [0], [0], [1], [0, 0, 1, 1], [], []>} : vector<8x32xf32>, vector<32x1xf32>, vector<8x1xf32> -> vector<8x1xf32>
    %c73 = arith.constant 73 : index
    %c0_333 = arith.constant 0 : index
    %747 = vector.load %arg3[%c73, %c0_333] : memref<77x256xf32, #tpu.memory_space<vmem>>, vector<1x1xf32>
    %748 = vector.broadcast %747 : vector<1x1xf32> to vector<8x1xf32>
    %749 = arith.addf %746, %748 : vector<8x1xf32>
    %cst_334 = arith.constant 0.000000e+00 : f32
    %750 = vector.broadcast %cst_334 : f32 to vector<8x1xf32>
    %751 = arith.subf %750, %749 : vector<8x1xf32>
    %752 = math.exp %751 : vector<8x1xf32>
    %cst_335 = arith.constant 1.000000e+00 : f32
    %753 = vector.broadcast %cst_335 : f32 to vector<8x1xf32>
    %754 = arith.addf %753, %752 : vector<8x1xf32>
    %cst_336 = arith.constant 1.000000e+00 : f32
    %755 = vector.broadcast %cst_336 : f32 to vector<8x1xf32>
    %756 = arith.divf %755, %754 : vector<8x1xf32>
    %cst_337 = arith.constant 1.000000e+00 : f32
    %757 = vector.broadcast %cst_337 : f32 to vector<8x1xf32>
    %758 = arith.subf %757, %756 : vector<8x1xf32>
    %759 = arith.mulf %737, %758 : vector<8x1xf32>
    %c0_338 = arith.constant 0 : index
    %c0_339 = arith.constant 0 : index
    %760 = vector.load %arg44[%c0_338, %c0_339] : memref<8x8xf32, #tpu.memory_space<vmem>>, vector<8x2xf32>
    tpu.vector_store %arg44[%c0_338, %c0_339], %709 {strides = array<i32>} : memref<8x8xf32, #tpu.memory_space<vmem>>, vector<8x2xf32>,
    %c0_340 = arith.constant 0 : index
    %c2_341 = arith.constant 2 : index
    %761 = vector.load %arg44[%c0_340, %c2_341] : memref<8x8xf32, #tpu.memory_space<vmem>>, vector<8x4xf32>
    tpu.vector_store %arg44[%c0_340, %c2_341], %735 {strides = array<i32>} : memref<8x8xf32, #tpu.memory_space<vmem>>, vector<8x4xf32>,
    %c0_342 = arith.constant 0 : index
    %c6_343 = arith.constant 6 : index
    %762 = vector.load %arg44[%c0_342, %c6_343] : memref<8x8xf32, #tpu.memory_space<vmem>>, vector<8x1xf32>
    tpu.vector_store %arg44[%c0_342, %c6_343], %759 {strides = array<i32>} : memref<8x8xf32, #tpu.memory_space<vmem>>, vector<8x1xf32>,
    %cst_344 = arith.constant 0.000000e+00 : f32
    %763 = vector.broadcast %cst_344 : f32 to vector<8x1xf32>
    %c0_345 = arith.constant 0 : index
    %c7_346 = arith.constant 7 : index
    %764 = vector.load %arg44[%c0_345, %c7_346] : memref<8x8xf32, #tpu.memory_space<vmem>>, vector<8x1xf32>
    tpu.vector_store %arg44[%c0_345, %c7_346], %763 {strides = array<i32>} : memref<8x8xf32, #tpu.memory_space<vmem>>, vector<8x1xf32>,
    return
  }
  func.func @transform_0(%arg0: i32) -> (i32, i32) {
    %c0_i32 = arith.constant 0 : i32
    %c0_i32_0 = arith.constant 0 : i32
    return %arg0, %c0_i32 : i32, i32
  }
  func.func @transform_1(%arg0: i32) -> (i32, i32) {
    %c0_i32 = arith.constant 0 : i32
    %c0_i32_0 = arith.constant 0 : i32
    return %arg0, %c0_i32 : i32, i32
  }
  func.func @transform_2(%arg0: i32) -> (i32, i32) {
    %c0_i32 = arith.constant 0 : i32
    %c0_i32_0 = arith.constant 0 : i32
    %c0_i32_1 = arith.constant 0 : i32
    return %c0_i32, %c0_i32_0 : i32, i32
  }
  func.func @transform_3(%arg0: i32) -> (i32, i32) {
    %c0_i32 = arith.constant 0 : i32
    %c0_i32_0 = arith.constant 0 : i32
    %c0_i32_1 = arith.constant 0 : i32
    return %c0_i32, %c0_i32_0 : i32, i32
  }
  func.func @transform_4(%arg0: i32) -> (i32, i32) {
    %c0_i32 = arith.constant 0 : i32
    %c0_i32_0 = arith.constant 0 : i32
    %c0_i32_1 = arith.constant 0 : i32
    return %c0_i32, %c0_i32_0 : i32, i32
  }
  func.func @transform_5(%arg0: i32) -> (i32, i32) {
    %c0_i32 = arith.constant 0 : i32
    %c0_i32_0 = arith.constant 0 : i32
    %c0_i32_1 = arith.constant 0 : i32
    return %c0_i32, %c0_i32_0 : i32, i32
  }
  func.func @transform_6(%arg0: i32) -> (i32, i32) {
    %c0_i32 = arith.constant 0 : i32
    %c0_i32_0 = arith.constant 0 : i32
    %c0_i32_1 = arith.constant 0 : i32
    return %c0_i32, %c0_i32_0 : i32, i32
  }
  func.func @transform_7(%arg0: i32) -> (i32, i32) {
    %c0_i32 = arith.constant 0 : i32
    %c0_i32_0 = arith.constant 0 : i32
    %c0_i32_1 = arith.constant 0 : i32
    return %c0_i32, %c0_i32_0 : i32, i32
  }
  func.func @transform_8(%arg0: i32) -> (i32, i32) {
    %c0_i32 = arith.constant 0 : i32
    %c0_i32_0 = arith.constant 0 : i32
    %c0_i32_1 = arith.constant 0 : i32
    return %c0_i32, %c0_i32_0 : i32, i32
  }
  func.func @transform_9(%arg0: i32) -> (i32, i32) {
    %c0_i32 = arith.constant 0 : i32
    %c0_i32_0 = arith.constant 0 : i32
    %c0_i32_1 = arith.constant 0 : i32
    return %c0_i32, %c0_i32_0 : i32, i32
  }
  func.func @transform_10(%arg0: i32) -> (i32, i32) {
    %c0_i32 = arith.constant 0 : i32
    %c0_i32_0 = arith.constant 0 : i32
    %c0_i32_1 = arith.constant 0 : i32
    return %c0_i32, %c0_i32_0 : i32, i32
  }
  func.func @transform_11(%arg0: i32) -> (i32, i32) {
    %c0_i32 = arith.constant 0 : i32
    %c0_i32_0 = arith.constant 0 : i32
    %c0_i32_1 = arith.constant 0 : i32
    return %c0_i32, %c0_i32_0 : i32, i32
  }
  func.func @transform_12(%arg0: i32) -> (i32, i32) {
    %c0_i32 = arith.constant 0 : i32
    %c0_i32_0 = arith.constant 0 : i32
    %c0_i32_1 = arith.constant 0 : i32
    return %c0_i32, %c0_i32_0 : i32, i32
  }
  func.func @transform_13(%arg0: i32) -> (i32, i32) {
    %c0_i32 = arith.constant 0 : i32
    %c0_i32_0 = arith.constant 0 : i32
    %c0_i32_1 = arith.constant 0 : i32
    return %c0_i32, %c0_i32_0 : i32, i32
  }
  func.func @transform_14(%arg0: i32) -> (i32, i32) {
    %c0_i32 = arith.constant 0 : i32
    %c0_i32_0 = arith.constant 0 : i32
    %c0_i32_1 = arith.constant 0 : i32
    return %c0_i32, %c0_i32_0 : i32, i32
  }
  func.func @transform_15(%arg0: i32) -> (i32, i32) {
    %c0_i32 = arith.constant 0 : i32
    %c0_i32_0 = arith.constant 0 : i32
    %c0_i32_1 = arith.constant 0 : i32
    return %c0_i32, %c0_i32_0 : i32, i32
  }
  func.func @transform_16(%arg0: i32) -> (i32, i32) {
    %c0_i32 = arith.constant 0 : i32
    %c0_i32_0 = arith.constant 0 : i32
    %c0_i32_1 = arith.constant 0 : i32
    return %c0_i32, %c0_i32_0 : i32, i32
  }
  func.func @transform_17(%arg0: i32) -> (i32, i32) {
    %c0_i32 = arith.constant 0 : i32
    %c0_i32_0 = arith.constant 0 : i32
    %c0_i32_1 = arith.constant 0 : i32
    return %c0_i32, %c0_i32_0 : i32, i32
  }
  func.func @transform_18(%arg0: i32) -> (i32, i32) {
    %c0_i32 = arith.constant 0 : i32
    %c0_i32_0 = arith.constant 0 : i32
    %c0_i32_1 = arith.constant 0 : i32
    return %c0_i32, %c0_i32_0 : i32, i32
  }
  func.func @transform_19(%arg0: i32) -> (i32, i32) {
    %c0_i32 = arith.constant 0 : i32
    %c0_i32_0 = arith.constant 0 : i32
    %c0_i32_1 = arith.constant 0 : i32
    return %c0_i32, %c0_i32_0 : i32, i32
  }
  func.func @transform_20(%arg0: i32) -> (i32, i32) {
    %c0_i32 = arith.constant 0 : i32
    %c0_i32_0 = arith.constant 0 : i32
    %c0_i32_1 = arith.constant 0 : i32
    return %c0_i32, %c0_i32_0 : i32, i32
  }
  func.func @transform_21(%arg0: i32) -> (i32, i32) {
    %c0_i32 = arith.constant 0 : i32
    %c0_i32_0 = arith.constant 0 : i32
    %c0_i32_1 = arith.constant 0 : i32
    return %c0_i32, %c0_i32_0 : i32, i32
  }
  func.func @transform_22(%arg0: i32) -> (i32, i32) {
    %c0_i32 = arith.constant 0 : i32
    %c0_i32_0 = arith.constant 0 : i32
    %c0_i32_1 = arith.constant 0 : i32
    return %c0_i32, %c0_i32_0 : i32, i32
  }
  func.func @transform_23(%arg0: i32) -> (i32, i32) {
    %c0_i32 = arith.constant 0 : i32
    %c0_i32_0 = arith.constant 0 : i32
    %c0_i32_1 = arith.constant 0 : i32
    return %c0_i32, %c0_i32_0 : i32, i32
  }
  func.func @transform_24(%arg0: i32) -> (i32, i32) {
    %c0_i32 = arith.constant 0 : i32
    %c0_i32_0 = arith.constant 0 : i32
    %c0_i32_1 = arith.constant 0 : i32
    return %c0_i32, %c0_i32_0 : i32, i32
  }
  func.func @transform_25(%arg0: i32) -> (i32, i32) {
    %c0_i32 = arith.constant 0 : i32
    %c0_i32_0 = arith.constant 0 : i32
    %c0_i32_1 = arith.constant 0 : i32
    return %c0_i32, %c0_i32_0 : i32, i32
  }
  func.func @transform_26(%arg0: i32) -> (i32, i32) {
    %c0_i32 = arith.constant 0 : i32
    %c0_i32_0 = arith.constant 0 : i32
    %c0_i32_1 = arith.constant 0 : i32
    return %c0_i32, %c0_i32_0 : i32, i32
  }
  func.func @transform_27(%arg0: i32) -> (i32, i32) {
    %c0_i32 = arith.constant 0 : i32
    %c0_i32_0 = arith.constant 0 : i32
    %c0_i32_1 = arith.constant 0 : i32
    return %c0_i32, %c0_i32_0 : i32, i32
  }
  func.func @transform_28(%arg0: i32) -> (i32, i32) {
    %c0_i32 = arith.constant 0 : i32
    %c0_i32_0 = arith.constant 0 : i32
    %c0_i32_1 = arith.constant 0 : i32
    return %c0_i32, %c0_i32_0 : i32, i32
  }
  func.func @transform_29(%arg0: i32) -> (i32, i32) {
    %c0_i32 = arith.constant 0 : i32
    %c0_i32_0 = arith.constant 0 : i32
    %c0_i32_1 = arith.constant 0 : i32
    return %c0_i32, %c0_i32_0 : i32, i32
  }
  func.func @transform_30(%arg0: i32) -> (i32, i32) {
    %c0_i32 = arith.constant 0 : i32
    %c0_i32_0 = arith.constant 0 : i32
    %c0_i32_1 = arith.constant 0 : i32
    return %c0_i32, %c0_i32_0 : i32, i32
  }
  func.func @transform_31(%arg0: i32) -> (i32, i32) {
    %c0_i32 = arith.constant 0 : i32
    %c0_i32_0 = arith.constant 0 : i32
    %c0_i32_1 = arith.constant 0 : i32
    return %c0_i32, %c0_i32_0 : i32, i32
  }
  func.func @transform_32(%arg0: i32) -> (i32, i32) {
    %c0_i32 = arith.constant 0 : i32
    %c0_i32_0 = arith.constant 0 : i32
    %c0_i32_1 = arith.constant 0 : i32
    return %c0_i32, %c0_i32_0 : i32, i32
  }
  func.func @transform_33(%arg0: i32) -> (i32, i32) {
    %c0_i32 = arith.constant 0 : i32
    %c0_i32_0 = arith.constant 0 : i32
    %c0_i32_1 = arith.constant 0 : i32
    return %c0_i32, %c0_i32_0 : i32, i32
  }
  func.func @transform_34(%arg0: i32) -> (i32, i32) {
    %c0_i32 = arith.constant 0 : i32
    %c0_i32_0 = arith.constant 0 : i32
    %c0_i32_1 = arith.constant 0 : i32
    return %c0_i32, %c0_i32_0 : i32, i32
  }
  func.func @transform_35(%arg0: i32) -> (i32, i32) {
    %c0_i32 = arith.constant 0 : i32
    %c0_i32_0 = arith.constant 0 : i32
    %c0_i32_1 = arith.constant 0 : i32
    return %c0_i32, %c0_i32_0 : i32, i32
  }
  func.func @transform_36(%arg0: i32) -> (i32, i32) {
    %c0_i32 = arith.constant 0 : i32
    %c0_i32_0 = arith.constant 0 : i32
    %c0_i32_1 = arith.constant 0 : i32
    return %c0_i32, %c0_i32_0 : i32, i32
  }
  func.func @transform_37(%arg0: i32) -> (i32, i32) {
    %c0_i32 = arith.constant 0 : i32
    %c0_i32_0 = arith.constant 0 : i32
    %c0_i32_1 = arith.constant 0 : i32
    return %c0_i32, %c0_i32_0 : i32, i32
  }
  func.func @transform_38(%arg0: i32) -> (i32, i32) {
    %c0_i32 = arith.constant 0 : i32
    %c0_i32_0 = arith.constant 0 : i32
    %c0_i32_1 = arith.constant 0 : i32
    return %c0_i32, %c0_i32_0 : i32, i32
  }
  func.func @transform_39(%arg0: i32) -> (i32, i32) {
    %c0_i32 = arith.constant 0 : i32
    %c0_i32_0 = arith.constant 0 : i32
    %c0_i32_1 = arith.constant 0 : i32
    return %c0_i32, %c0_i32_0 : i32, i32
  }
  func.func @transform_40(%arg0: i32) -> (i32, i32) {
    %c0_i32 = arith.constant 0 : i32
    %c0_i32_0 = arith.constant 0 : i32
    %c0_i32_1 = arith.constant 0 : i32
    return %c0_i32, %c0_i32_0 : i32, i32
  }
  func.func @transform_41(%arg0: i32) -> (i32, i32) {
    %c0_i32 = arith.constant 0 : i32
    %c0_i32_0 = arith.constant 0 : i32
    %c0_i32_1 = arith.constant 0 : i32
    return %c0_i32, %c0_i32_0 : i32, i32
  }
  func.func @transform_42(%arg0: i32) -> (i32, i32) {
    %c0_i32 = arith.constant 0 : i32
    %c0_i32_0 = arith.constant 0 : i32
    %c0_i32_1 = arith.constant 0 : i32
    return %c0_i32, %c0_i32_0 : i32, i32
  }
  func.func @transform_43(%arg0: i32) -> (i32, i32) {
    %c0_i32 = arith.constant 0 : i32
    %c0_i32_0 = arith.constant 0 : i32
    return %arg0, %c0_i32 : i32, i32
  }
}

</mosaic_0001>

<llo_original>
// kernel: _lambda_.1
$region0: #{_lambda_.1}
  #allocation0 [shape = 'u32[]', space=smem, size = 0x4, offset = 0x4, fixed_abs, tag = 'smem constant byte address 0x4 - core index']
  #allocation1 [shape = 'u32[144,128]{1,0:T(1,128)}', space=vmem, size = 0x12000, scoped, tag = 'internal scratch']
  %s0 = inlined_call_operand.smem [shape: u32[44], index: -1, kind: input, shape index: {}]
  %s1 = sld [smem:[%s0]]
  %s2 = scalar_lea.smem %s0, 1
  %s3 = sld [smem:[%s2]]
  %s4 = scalar_lea.smem %s0, 2
  %s5 = sld [smem:[%s4]]
  %s6 = scalar_lea.smem %s0, 3
  %s7 = sld [smem:[%s6]]
  %s8 = scalar_lea.smem %s0, 4
  %s9 = sld [smem:[%s8]]
  %s10 = scalar_lea.smem %s0, 5
  %s11 = sld [smem:[%s10]]
  %s12 = scalar_lea.smem %s0, 6
  %s13 = sld [smem:[%s12]]
  %s14 = scalar_lea.smem %s0, 7
  %s15 = sld [smem:[%s14]]
  %s16 = scalar_lea.smem %s0, 8
  %s17 = sld [smem:[%s16]]
  %s18 = scalar_lea.smem %s0, 9
  %s19 = sld [smem:[%s18]]
  %s20 = scalar_lea.smem %s0, 10
  %s21 = sld [smem:[%s20]]
  %s22 = scalar_lea.smem %s0, 11
  %s23 = sld [smem:[%s22]]
  %s24 = scalar_lea.smem %s0, 12
  %s25 = sld [smem:[%s24]]
  %s26 = scalar_lea.smem %s0, 13
  %s27 = sld [smem:[%s26]]
  %s28 = scalar_lea.smem %s0, 14
  %s29 = sld [smem:[%s28]]
  %s30 = scalar_lea.smem %s0, 15
  %s31 = sld [smem:[%s30]]
  %s32 = scalar_lea.smem %s0, 16
  %s33 = sld [smem:[%s32]]
  %s34 = scalar_lea.smem %s0, 17
  %s35 = sld [smem:[%s34]]
  %s36 = scalar_lea.smem %s0, 18
  %s37 = sld [smem:[%s36]]
  %s38 = scalar_lea.smem %s0, 19
  %s39 = sld [smem:[%s38]]
  %s40 = scalar_lea.smem %s0, 20
  %s41 = sld [smem:[%s40]]
  %s42 = scalar_lea.smem %s0, 21
  %s43 = sld [smem:[%s42]]
  %s44 = scalar_lea.smem %s0, 22
  %s45 = sld [smem:[%s44]]
  %s46 = scalar_lea.smem %s0, 23
  %s47 = sld [smem:[%s46]]
  %s48 = scalar_lea.smem %s0, 24
  %s49 = sld [smem:[%s48]]
  %s50 = scalar_lea.smem %s0, 25
  %s51 = sld [smem:[%s50]]
  %s52 = scalar_lea.smem %s0, 26
  %s53 = sld [smem:[%s52]]
  %s54 = scalar_lea.smem %s0, 27
  %s55 = sld [smem:[%s54]]
  %s56 = scalar_lea.smem %s0, 28
  %s57 = sld [smem:[%s56]]
  %s58 = scalar_lea.smem %s0, 29
  %s59 = sld [smem:[%s58]]
  %s60 = scalar_lea.smem %s0, 30
  %s61 = sld [smem:[%s60]]
  %s62 = scalar_lea.smem %s0, 31
  %s63 = sld [smem:[%s62]]
  %s64 = scalar_lea.smem %s0, 32
  %s65 = sld [smem:[%s64]]
  %s66 = scalar_lea.smem %s0, 33
  %s67 = sld [smem:[%s66]]
  %s68 = scalar_lea.smem %s0, 34
  %s69 = sld [smem:[%s68]]
  %s70 = scalar_lea.smem %s0, 35
  %s71 = sld [smem:[%s70]]
  %s72 = scalar_lea.smem %s0, 36
  %s73 = sld [smem:[%s72]]
  %s74 = scalar_lea.smem %s0, 37
  %s75 = sld [smem:[%s74]]
  %s76 = scalar_lea.smem %s0, 38
  %s77 = sld [smem:[%s76]]
  %s78 = scalar_lea.smem %s0, 39
  %s79 = sld [smem:[%s78]]
  %s80 = scalar_lea.smem %s0, 40
  %s81 = sld [smem:[%s80]]
  %s82 = scalar_lea.smem %s0, 41
  %s83 = sld [smem:[%s82]]
  %s84 = scalar_lea.smem %s0, 42
  %s85 = sld [smem:[%s84]]
  %s86 = scalar_lea.smem %s0, 43
  %s87 = sld [smem:[%s86]]
  %s88 = sld [smem:[#allocation0]]
  $region338: #{_lambda_.1} parent=0
    _
  %s90 = ssub.s32 1, %s88
  %s91 = scalar_select 0, %s90, %s88
  $region1: #{_lambda_.1} parent=0
    #allocation2 [shape = 'u8[81920]{0}', space=vmem, size = 0x14000, scoped, tag = 'input window, operand 2, single buffered']
    #allocation3 [shape = 's32[1]{0}', space=sflag, size = 0x4, scoped, tag = 'scoped memory for _lambda_.1']
    #allocation4 [shape = 'u8[65536]{0}', space=vmem, size = 0x10000, scoped, tag = 'input window, operand 3, single buffered']
    #allocation5 [shape = 's32[1]{0}', space=sflag, size = 0x4, scoped, tag = 'scoped memory for _lambda_.1']
    #allocation6 [shape = 'u8[69632]{0}', space=vmem, size = 0x11000, scoped, tag = 'input window, operand 4, single buffered']
    #allocation7 [shape = 'u8[131072]{0}', space=vmem, size = 0x20000, scoped, tag = 'input window, operand 5, single buffered']
    #allocation8 [shape = 's32[1]{0}', space=sflag, size = 0x4, scoped, tag = 'scoped memory for _lambda_.1']
    #allocation9 [shape = 'u8[131072]{0}', space=vmem, size = 0x20000, scoped, tag = 'input window, operand 6, single buffered']
    #allocation10 [shape = 'u8[262144]{0}', space=vmem, size = 0x40000, scoped, tag = 'input window, operand 7, single buffered']
    #allocation11 [shape = 's32[1]{0}', space=sflag, size = 0x4, scoped, tag = 'scoped memory for _lambda_.1']
    #allocation12 [shape = 'u8[131072]{0}', space=vmem, size = 0x20000, scoped, tag = 'input window, operand 8, single buffered']
    #allocation13 [shape = 'u8[65536]{0}', space=vmem, size = 0x10000, scoped, tag = 'input window, operand 9, single buffered']
    #allocation14 [shape = 's32[1]{0}', space=sflag, size = 0x4, scoped, tag = 'scoped memory for _lambda_.1']
    #allocation15 [shape = 'u8[69632]{0}', space=vmem, size = 0x11000, scoped, tag = 'input window, operand 10, single buffered']
    #allocation16 [shape = 'u8[131072]{0}', space=vmem, size = 0x20000, scoped, tag = 'input window, operand 11, single buffered']
    #allocation17 [shape = 's32[1]{0}', space=sflag, size = 0x4, scoped, tag = 'scoped memory for _lambda_.1']
    #allocation18 [shape = 'u8[131072]{0}', space=vmem, size = 0x20000, scoped, tag = 'input window, operand 12, single buffered']
    #allocation19 [shape = 'u8[262144]{0}', space=vmem, size = 0x40000, scoped, tag = 'input window, operand 13, single buffered']
    #allocation20 [shape = 's32[1]{0}', space=sflag, size = 0x4, scoped, tag = 'scoped memory for _lambda_.1']
    #allocation21 [shape = 'u8[131072]{0}', space=vmem, size = 0x20000, scoped, tag = 'input window, operand 14, single buffered']
    #allocation22 [shape = 'u8[65536]{0}', space=vmem, size = 0x10000, scoped, tag = 'input window, operand 15, single buffered']
    #allocation23 [shape = 's32[1]{0}', space=sflag, size = 0x4, scoped, tag = 'scoped memory for _lambda_.1']
    #allocation24 [shape = 'u8[69632]{0}', space=vmem, size = 0x11000, scoped, tag = 'input window, operand 16, single buffered']
    #allocation25 [shape = 'u8[131072]{0}', space=vmem, size = 0x20000, scoped, tag = 'input window, operand 17, single buffered']
    #allocation26 [shape = 's32[1]{0}', space=sflag, size = 0x4, scoped, tag = 'scoped memory for _lambda_.1']
    #allocation27 [shape = 'u8[131072]{0}', space=vmem, size = 0x20000, scoped, tag = 'input window, operand 18, single buffered']
    #allocation28 [shape = 'u8[262144]{0}', space=vmem, size = 0x40000, scoped, tag = 'input window, operand 19, single buffered']
    #allocation29 [shape = 's32[1]{0}', space=sflag, size = 0x4, scoped, tag = 'scoped memory for _lambda_.1']
    #allocation30 [shape = 'u8[131072]{0}', space=vmem, size = 0x20000, scoped, tag = 'input window, operand 20, single buffered']
    #allocation31 [shape = 'u8[65536]{0}', space=vmem, size = 0x10000, scoped, tag = 'input window, operand 21, single buffered']
    #allocation32 [shape = 's32[1]{0}', space=sflag, size = 0x4, scoped, tag = 'scoped memory for _lambda_.1']
    #allocation33 [shape = 'u8[69632]{0}', space=vmem, size = 0x11000, scoped, tag = 'input window, operand 22, single buffered']
    #allocation34 [shape = 'u8[131072]{0}', space=vmem, size = 0x20000, scoped, tag = 'input window, operand 23, single buffered']
    #allocation35 [shape = 's32[1]{0}', space=sflag, size = 0x4, scoped, tag = 'scoped memory for _lambda_.1']
    #allocation36 [shape = 'u8[131072]{0}', space=vmem, size = 0x20000, scoped, tag = 'input window, operand 24, single buffered']
    #allocation37 [shape = 'u8[262144]{0}', space=vmem, size = 0x40000, scoped, tag = 'input window, operand 25, single buffered']
    #allocation38 [shape = 's32[1]{0}', space=sflag, size = 0x4, scoped, tag = 'scoped memory for _lambda_.1']
    #allocation39 [shape = 'u8[131072]{0}', space=vmem, size = 0x20000, scoped, tag = 'input window, operand 26, single buffered']
    #allocation40 [shape = 'u8[131072]{0}', space=vmem, size = 0x20000, scoped, tag = 'input window, operand 27, single buffered']
    #allocation41 [shape = 's32[1]{0}', space=sflag, size = 0x4, scoped, tag = 'scoped memory for _lambda_.1']
    #allocation42 [shape = 'u8[131072]{0}', space=vmem, size = 0x20000, scoped, tag = 'input window, operand 28, single buffered']
    #allocation43 [shape = 'u8[65536]{0}', space=vmem, size = 0x10000, scoped, tag = 'input window, operand 29, single buffered']
    #allocation44 [shape = 's32[1]{0}', space=sflag, size = 0x4, scoped, tag = 'scoped memory for _lambda_.1']
    #allocation45 [shape = 'u8[65536]{0}', space=vmem, size = 0x10000, scoped, tag = 'input window, operand 30, single buffered']
    #allocation46 [shape = 'u8[32768]{0}', space=vmem, size = 0x8000, scoped, tag = 'input window, operand 31, single buffered']
    #allocation47 [shape = 's32[1]{0}', space=sflag, size = 0x4, scoped, tag = 'scoped memory for _lambda_.1']
    #allocation48 [shape = 'u8[65536]{0}', space=vmem, size = 0x10000, scoped, tag = 'input window, operand 32, single buffered']
    #allocation49 [shape = 'u8[32768]{0}', space=vmem, size = 0x8000, scoped, tag = 'input window, operand 33, single buffered']
    #allocation50 [shape = 's32[1]{0}', space=sflag, size = 0x4, scoped, tag = 'scoped memory for _lambda_.1']
    #allocation51 [shape = 'u8[32768]{0}', space=vmem, size = 0x8000, scoped, tag = 'input window, operand 34, single buffered']
    #allocation52 [shape = 'u8[16384]{0}', space=vmem, size = 0x4000, scoped, tag = 'input window, operand 35, single buffered']
    #allocation53 [shape = 's32[1]{0}', space=sflag, size = 0x4, scoped, tag = 'scoped memory for _lambda_.1']
    #allocation54 [shape = 'u8[16384]{0}', space=vmem, size = 0x4000, scoped, tag = 'input window, operand 36, single buffered']
    #allocation55 [shape = 'u8[49152]{0}', space=vmem, size = 0xc000, scoped, tag = 'input window, operand 37, single buffered']
    #allocation56 [shape = 's32[1]{0}', space=sflag, size = 0x4, scoped, tag = 'scoped memory for _lambda_.1']
    #allocation57 [shape = 'u8[65536]{0}', space=vmem, size = 0x10000, scoped, tag = 'input window, operand 38, single buffered']
    #allocation58 [shape = 'u8[65536]{0}', space=vmem, size = 0x10000, scoped, tag = 'input window, operand 40, single buffered']
    #allocation59 [shape = 's32[1]{0}', space=sflag, size = 0x4, scoped, tag = 'scoped memory for _lambda_.1']
    #allocation60 [shape = 'u8[65536]{0}', space=vmem, size = 0x10000, scoped, tag = 'input window, operand 41, single buffered']
    %92 = vsyncpa [#allocation3], 0
    %93 = vsyncpa [#allocation5], 0
    %94 = vsyncpa [#allocation8], 0
    %95 = vsyncpa [#allocation11], 0
    %96 = vsyncpa [#allocation14], 0
    %97 = vsyncpa [#allocation17], 0
    %98 = vsyncpa [#allocation20], 0
    %99 = vsyncpa [#allocation23], 0
    %100 = vsyncpa [#allocation26], 0
    %101 = vsyncpa [#allocation29], 0
    %102 = vsyncpa [#allocation32], 0
    %103 = vsyncpa [#allocation35], 0
    %104 = vsyncpa [#allocation38], 0
    %105 = vsyncpa [#allocation41], 0
    %106 = vsyncpa [#allocation44], 0
    %107 = vsyncpa [#allocation47], 0
    %108 = vsyncpa [#allocation50], 0
    %109 = vsyncpa [#allocation53], 0
    %110 = vsyncpa [#allocation56], 0
    %111 = vsyncpa [#allocation59], 0
    // Predicated region
    $region2: #{_lambda_.1} parent=1 // pred_check
      _
    $region3: #{_lambda_.1} parent=1 // pred_check_branch
      %113 = sbr.rel (0) target = $region5
    $region4: #{_lambda_.1} parent=1 // pred_region
      _
    $region5: #{_lambda_.1} parent=1 // pred_fallthru
      _
    // Predicated region
    $region6: #{_lambda_.1} parent=1 // pred_check
      _
    $region7: #{_lambda_.1} parent=1 // pred_check_branch
      %115 = sbr.rel (0) target = $region9
    $region8: #{_lambda_.1} parent=1 // pred_region
      _
    $region9: #{_lambda_.1} parent=1 // pred_fallthru
      _
    // Predicated region
    $region10: #{_lambda_.1} parent=1 // pred_check
      _
    $region11: #{_lambda_.1} parent=1 // pred_check_branch
      %117 = sbr.rel (0) target = $region13
    $region12: #{_lambda_.1} parent=1 // pred_region
      %s119 = ssub.s32 2560, 2560
      %120 = vsyncadd [#allocation3], %s119
      %s121 = sshll.u32 [#allocation2], 4
      %s122 = int_to_ptr.vmem [resolvable:$true] %s121
      %127 = dma.hbm_to_vmem [thread:$0]  %s5, 2560, %s122, [#allocation3], 256, 256, 16
    $region13: #{_lambda_.1} parent=1 // pred_fallthru
      _
    // Predicated region
    $region14: #{_lambda_.1} parent=1 // pred_check
      _
    $region15: #{_lambda_.1} parent=1 // pred_check_branch
      %129 = sbr.rel (0) target = $region17
    $region16: #{_lambda_.1} parent=1 // pred_region
      %s131 = ssub.s32 2048, 2048
      %132 = vsyncadd [#allocation5], %s131
      %s133 = sshll.u32 [#allocation4], 4
      %s134 = int_to_ptr.vmem [resolvable:$true] %s133
      %139 = dma.hbm_to_vmem [thread:$0]  %s7, 2048, %s134, [#allocation5], 128, 128, 8
    $region17: #{_lambda_.1} parent=1 // pred_fallthru
      _
    // Predicated region
    $region18: #{_lambda_.1} parent=1 // pred_check
      _
    $region19: #{_lambda_.1} parent=1 // pred_check_branch
      %141 = sbr.rel (0) target = $region21
    $region20: #{_lambda_.1} parent=1 // pred_region
      %s143 = ssub.s32 2176, 2176
      %144 = vsyncadd [#allocation5], %s143
      %s145 = sshll.u32 [#allocation6], 4
      %s146 = int_to_ptr.vmem [resolvable:$true] %s145
      %151 = dma.hbm_to_vmem [thread:$0]  %s9, 2176, %s146, [#allocation5], 128, 128, 8
    $region21: #{_lambda_.1} parent=1 // pred_fallthru
      _
    // Predicated region
    $region22: #{_lambda_.1} parent=1 // pred_check
      _
    $region23: #{_lambda_.1} parent=1 // pred_check_branch
      %153 = sbr.rel (0) target = $region25
    $region24: #{_lambda_.1} parent=1 // pred_region
      %s155 = ssub.s32 4096, 4096
      %156 = vsyncadd [#allocation8], %s155
      %s157 = sshll.u32 [#allocation7], 4
      %s158 = int_to_ptr.vmem [resolvable:$true] %s157
      %163 = dma.hbm_to_vmem [thread:$0]  %s11, 4096, %s158, [#allocation8], 256, 256, 16
    $region25: #{_lambda_.1} parent=1 // pred_fallthru
      _
    // Predicated region
    $region26: #{_lambda_.1} parent=1 // pred_check
      _
    $region27: #{_lambda_.1} parent=1 // pred_check_branch
      %165 = sbr.rel (0) target = $region29
    $region28: #{_lambda_.1} parent=1 // pred_region
      %s167 = ssub.s32 4096, 4096
      %168 = vsyncadd [#allocation8], %s167
      %s169 = sshll.u32 [#allocation9], 4
      %s170 = int_to_ptr.vmem [resolvable:$true] %s169
      %175 = dma.hbm_to_vmem [thread:$0]  %s13, 4096, %s170, [#allocation8], 256, 256, 16
    $region29: #{_lambda_.1} parent=1 // pred_fallthru
      _
    // Predicated region
    $region30: #{_lambda_.1} parent=1 // pred_check
      _
    $region31: #{_lambda_.1} parent=1 // pred_check_branch
      %177 = sbr.rel (0) target = $region33
    $region32: #{_lambda_.1} parent=1 // pred_region
      %s179 = ssub.s32 8192, 8192
      %180 = vsyncadd [#allocation11], %s179
      %s181 = sshll.u32 [#allocation10], 4
      %s182 = int_to_ptr.vmem [resolvable:$true] %s181
      %187 = dma.hbm_to_vmem [thread:$0]  %s15, 8192, %s182, [#allocation11], 256, 256, 16
    $region33: #{_lambda_.1} parent=1 // pred_fallthru
      _
    // Predicated region
    $region34: #{_lambda_.1} parent=1 // pred_check
      _
    $region35: #{_lambda_.1} parent=1 // pred_check_branch
      %189 = sbr.rel (0) target = $region37
    $region36: #{_lambda_.1} parent=1 // pred_region
      %s191 = ssub.s32 4096, 4096
      %192 = vsyncadd [#allocation11], %s191
      %s193 = sshll.u32 [#allocation12], 4
      %s194 = int_to_ptr.vmem [resolvable:$true] %s193
      %199 = dma.hbm_to_vmem [thread:$0]  %s17, 4096, %s194, [#allocation11], 128, 128, 8
    $region37: #{_lambda_.1} parent=1 // pred_fallthru
      _
    // Predicated region
    $region38: #{_lambda_.1} parent=1 // pred_check
      _
    $region39: #{_lambda_.1} parent=1 // pred_check_branch
      %201 = sbr.rel (0) target = $region41
    $region40: #{_lambda_.1} parent=1 // pred_region
      %s203 = ssub.s32 2048, 2048
      %204 = vsyncadd [#allocation14], %s203
      %s205 = sshll.u32 [#allocation13], 4
      %s206 = int_to_ptr.vmem [resolvable:$true] %s205
      %211 = dma.hbm_to_vmem [thread:$0]  %s19, 2048, %s206, [#allocation14], 128, 128, 8
    $region41: #{_lambda_.1} parent=1 // pred_fallthru
      _
    // Predicated region
    $region42: #{_lambda_.1} parent=1 // pred_check
      _
    $region43: #{_lambda_.1} parent=1 // pred_check_branch
      %213 = sbr.rel (0) target = $region45
    $region44: #{_lambda_.1} parent=1 // pred_region
      %s215 = ssub.s32 2176, 2176
      %216 = vsyncadd [#allocation14], %s215
      %s217 = sshll.u32 [#allocation15], 4
      %s218 = int_to_ptr.vmem [resolvable:$true] %s217
      %223 = dma.hbm_to_vmem [thread:$0]  %s21, 2176, %s218, [#allocation14], 128, 128, 8
    $region45: #{_lambda_.1} parent=1 // pred_fallthru
      _
    // Predicated region
    $region46: #{_lambda_.1} parent=1 // pred_check
      _
    $region47: #{_lambda_.1} parent=1 // pred_check_branch
      %225 = sbr.rel (0) target = $region49
    $region48: #{_lambda_.1} parent=1 // pred_region
      %s227 = ssub.s32 4096, 4096
      %228 = vsyncadd [#allocation17], %s227
      %s229 = sshll.u32 [#allocation16], 4
      %s230 = int_to_ptr.vmem [resolvable:$true] %s229
      %235 = dma.hbm_to_vmem [thread:$0]  %s23, 4096, %s230, [#allocation17], 256, 256, 16
    $region49: #{_lambda_.1} parent=1 // pred_fallthru
      _
    // Predicated region
    $region50: #{_lambda_.1} parent=1 // pred_check
      _
    $region51: #{_lambda_.1} parent=1 // pred_check_branch
      %237 = sbr.rel (0) target = $region53
    $region52: #{_lambda_.1} parent=1 // pred_region
      %s239 = ssub.s32 4096, 4096
      %240 = vsyncadd [#allocation17], %s239
      %s241 = sshll.u32 [#allocation18], 4
      %s242 = int_to_ptr.vmem [resolvable:$true] %s241
      %247 = dma.hbm_to_vmem [thread:$0]  %s25, 4096, %s242, [#allocation17], 256, 256, 16
    $region53: #{_lambda_.1} parent=1 // pred_fallthru
      _
    // Predicated region
    $region54: #{_lambda_.1} parent=1 // pred_check
      _
    $region55: #{_lambda_.1} parent=1 // pred_check_branch
      %249 = sbr.rel (0) target = $region57
    $region56: #{_lambda_.1} parent=1 // pred_region
      %s251 = ssub.s32 8192, 8192
      %252 = vsyncadd [#allocation20], %s251
      %s253 = sshll.u32 [#allocation19], 4
      %s254 = int_to_ptr.vmem [resolvable:$true] %s253
      %259 = dma.hbm_to_vmem [thread:$0]  %s27, 8192, %s254, [#allocation20], 256, 256, 16
    $region57: #{_lambda_.1} parent=1 // pred_fallthru
      _
    // Predicated region
    $region58: #{_lambda_.1} parent=1 // pred_check
      _
    $region59: #{_lambda_.1} parent=1 // pred_check_branch
      %261 = sbr.rel (0) target = $region61
    $region60: #{_lambda_.1} parent=1 // pred_region
      %s263 = ssub.s32 4096, 4096
      %264 = vsyncadd [#allocation20], %s263
      %s265 = sshll.u32 [#allocation21], 4
      %s266 = int_to_ptr.vmem [resolvable:$true] %s265
      %271 = dma.hbm_to_vmem [thread:$0]  %s29, 4096, %s266, [#allocation20], 128, 128, 8
    $region61: #{_lambda_.1} parent=1 // pred_fallthru
      _
    // Predicated region
    $region62: #{_lambda_.1} parent=1 // pred_check
      _
    $region63: #{_lambda_.1} parent=1 // pred_check_branch
      %273 = sbr.rel (0) target = $region65
    $region64: #{_lambda_.1} parent=1 // pred_region
      %s275 = ssub.s32 2048, 2048
      %276 = vsyncadd [#allocation23], %s275
      %s277 = sshll.u32 [#allocation22], 4
      %s278 = int_to_ptr.vmem [resolvable:$true] %s277
      %283 = dma.hbm_to_vmem [thread:$0]  %s31, 2048, %s278, [#allocation23], 128, 128, 8
    $region65: #{_lambda_.1} parent=1 // pred_fallthru
      _
    // Predicated region
    $region66: #{_lambda_.1} parent=1 // pred_check
      _
    $region67: #{_lambda_.1} parent=1 // pred_check_branch
      %285 = sbr.rel (0) target = $region69
    $region68: #{_lambda_.1} parent=1 // pred_region
      %s287 = ssub.s32 2176, 2176
      %288 = vsyncadd [#allocation23], %s287
      %s289 = sshll.u32 [#allocation24], 4
      %s290 = int_to_ptr.vmem [resolvable:$true] %s289
      %295 = dma.hbm_to_vmem [thread:$0]  %s33, 2176, %s290, [#allocation23], 128, 128, 8
    $region69: #{_lambda_.1} parent=1 // pred_fallthru
      _
    // Predicated region
    $region70: #{_lambda_.1} parent=1 // pred_check
      _
    $region71: #{_lambda_.1} parent=1 // pred_check_branch
      %297 = sbr.rel (0) target = $region73
    $region72: #{_lambda_.1} parent=1 // pred_region
      %s299 = ssub.s32 4096, 4096
      %300 = vsyncadd [#allocation26], %s299
      %s301 = sshll.u32 [#allocation25], 4
      %s302 = int_to_ptr.vmem [resolvable:$true] %s301
      %307 = dma.hbm_to_vmem [thread:$0]  %s35, 4096, %s302, [#allocation26], 256, 256, 16
    $region73: #{_lambda_.1} parent=1 // pred_fallthru
      _
    // Predicated region
    $region74: #{_lambda_.1} parent=1 // pred_check
      _
    $region75: #{_lambda_.1} parent=1 // pred_check_branch
      %309 = sbr.rel (0) target = $region77
    $region76: #{_lambda_.1} parent=1 // pred_region
      %s311 = ssub.s32 4096, 4096
      %312 = vsyncadd [#allocation26], %s311
      %s313 = sshll.u32 [#allocation27], 4
      %s314 = int_to_ptr.vmem [resolvable:$true] %s313
      %319 = dma.hbm_to_vmem [thread:$0]  %s37, 4096, %s314, [#allocation26], 256, 256, 16
    $region77: #{_lambda_.1} parent=1 // pred_fallthru
      _
    // Predicated region
    $region78: #{_lambda_.1} parent=1 // pred_check
      _
    $region79: #{_lambda_.1} parent=1 // pred_check_branch
      %321 = sbr.rel (0) target = $region81
    $region80: #{_lambda_.1} parent=1 // pred_region
      %s323 = ssub.s32 8192, 8192
      %324 = vsyncadd [#allocation29], %s323
      %s325 = sshll.u32 [#allocation28], 4
      %s326 = int_to_ptr.vmem [resolvable:$true] %s325
      %331 = dma.hbm_to_vmem [thread:$0]  %s39, 8192, %s326, [#allocation29], 256, 256, 16
    $region81: #{_lambda_.1} parent=1 // pred_fallthru
      _
    // Predicated region
    $region82: #{_lambda_.1} parent=1 // pred_check
      _
    $region83: #{_lambda_.1} parent=1 // pred_check_branch
      %333 = sbr.rel (0) target = $region85
    $region84: #{_lambda_.1} parent=1 // pred_region
      %s335 = ssub.s32 4096, 4096
      %336 = vsyncadd [#allocation29], %s335
      %s337 = sshll.u32 [#allocation30], 4
      %s338 = int_to_ptr.vmem [resolvable:$true] %s337
      %343 = dma.hbm_to_vmem [thread:$0]  %s41, 4096, %s338, [#allocation29], 128, 128, 8
    $region85: #{_lambda_.1} parent=1 // pred_fallthru
      _
    // Predicated region
    $region86: #{_lambda_.1} parent=1 // pred_check
      _
    $region87: #{_lambda_.1} parent=1 // pred_check_branch
      %345 = sbr.rel (0) target = $region89
    $region88: #{_lambda_.1} parent=1 // pred_region
      %s347 = ssub.s32 2048, 2048
      %348 = vsyncadd [#allocation32], %s347
      %s349 = sshll.u32 [#allocation31], 4
      %s350 = int_to_ptr.vmem [resolvable:$true] %s349
      %355 = dma.hbm_to_vmem [thread:$0]  %s43, 2048, %s350, [#allocation32], 128, 128, 8
    $region89: #{_lambda_.1} parent=1 // pred_fallthru
      _
    // Predicated region
    $region90: #{_lambda_.1} parent=1 // pred_check
      _
    $region91: #{_lambda_.1} parent=1 // pred_check_branch
      %357 = sbr.rel (0) target = $region93
    $region92: #{_lambda_.1} parent=1 // pred_region
      %s359 = ssub.s32 2176, 2176
      %360 = vsyncadd [#allocation32], %s359
      %s361 = sshll.u32 [#allocation33], 4
      %s362 = int_to_ptr.vmem [resolvable:$true] %s361
      %367 = dma.hbm_to_vmem [thread:$0]  %s45, 2176, %s362, [#allocation32], 128, 128, 8
    $region93: #{_lambda_.1} parent=1 // pred_fallthru
      _
    // Predicated region
    $region94: #{_lambda_.1} parent=1 // pred_check
      _
    $region95: #{_lambda_.1} parent=1 // pred_check_branch
      %369 = sbr.rel (0) target = $region97
    $region96: #{_lambda_.1} parent=1 // pred_region
      %s371 = ssub.s32 4096, 4096
      %372 = vsyncadd [#allocation35], %s371
      %s373 = sshll.u32 [#allocation34], 4
      %s374 = int_to_ptr.vmem [resolvable:$true] %s373
      %379 = dma.hbm_to_vmem [thread:$0]  %s47, 4096, %s374, [#allocation35], 256, 256, 16
    $region97: #{_lambda_.1} parent=1 // pred_fallthru
      _
    // Predicated region
    $region98: #{_lambda_.1} parent=1 // pred_check
      _
    $region99: #{_lambda_.1} parent=1 // pred_check_branch
      %381 = sbr.rel (0) target = $region101
    $region100: #{_lambda_.1} parent=1 // pred_region
      %s383 = ssub.s32 4096, 4096
      %384 = vsyncadd [#allocation35], %s383
      %s385 = sshll.u32 [#allocation36], 4
      %s386 = int_to_ptr.vmem [resolvable:$true] %s385
      %391 = dma.hbm_to_vmem [thread:$0]  %s49, 4096, %s386, [#allocation35], 256, 256, 16
    $region101: #{_lambda_.1} parent=1 // pred_fallthru
      _
    // Predicated region
    $region102: #{_lambda_.1} parent=1 // pred_check
      _
    $region103: #{_lambda_.1} parent=1 // pred_check_branch
      %393 = sbr.rel (0) target = $region105
    $region104: #{_lambda_.1} parent=1 // pred_region
      %s395 = ssub.s32 8192, 8192
      %396 = vsyncadd [#allocation38], %s395
      %s397 = sshll.u32 [#allocation37], 4
      %s398 = int_to_ptr.vmem [resolvable:$true] %s397
      %403 = dma.hbm_to_vmem [thread:$0]  %s51, 8192, %s398, [#allocation38], 256, 256, 16
    $region105: #{_lambda_.1} parent=1 // pred_fallthru
      _
    // Predicated region
    $region106: #{_lambda_.1} parent=1 // pred_check
      _
    $region107: #{_lambda_.1} parent=1 // pred_check_branch
      %405 = sbr.rel (0) target = $region109
    $region108: #{_lambda_.1} parent=1 // pred_region
      %s407 = ssub.s32 4096, 4096
      %408 = vsyncadd [#allocation38], %s407
      %s409 = sshll.u32 [#allocation39], 4
      %s410 = int_to_ptr.vmem [resolvable:$true] %s409
      %415 = dma.hbm_to_vmem [thread:$0]  %s53, 4096, %s410, [#allocation38], 128, 128, 8
    $region109: #{_lambda_.1} parent=1 // pred_fallthru
      _
    // Predicated region
    $region110: #{_lambda_.1} parent=1 // pred_check
      _
    $region111: #{_lambda_.1} parent=1 // pred_check_branch
      %417 = sbr.rel (0) target = $region113
    $region112: #{_lambda_.1} parent=1 // pred_region
      %s419 = ssub.s32 4096, 4096
      %420 = vsyncadd [#allocation41], %s419
      %s421 = sshll.u32 [#allocation40], 4
      %s422 = int_to_ptr.vmem [resolvable:$true] %s421
      %427 = dma.hbm_to_vmem [thread:$0]  %s55, 4096, %s422, [#allocation41], 256, 256, 16
    $region113: #{_lambda_.1} parent=1 // pred_fallthru
      _
    // Predicated region
    $region114: #{_lambda_.1} parent=1 // pred_check
      _
    $region115: #{_lambda_.1} parent=1 // pred_check_branch
      %429 = sbr.rel (0) target = $region117
    $region116: #{_lambda_.1} parent=1 // pred_region
      %s431 = ssub.s32 4096, 4096
      %432 = vsyncadd [#allocation41], %s431
      %s433 = sshll.u32 [#allocation42], 4
      %s434 = int_to_ptr.vmem [resolvable:$true] %s433
      %439 = dma.hbm_to_vmem [thread:$0]  %s57, 4096, %s434, [#allocation41], 128, 128, 8
    $region117: #{_lambda_.1} parent=1 // pred_fallthru
      _
    // Predicated region
    $region118: #{_lambda_.1} parent=1 // pred_check
      _
    $region119: #{_lambda_.1} parent=1 // pred_check_branch
      %441 = sbr.rel (0) target = $region121
    $region120: #{_lambda_.1} parent=1 // pred_region
      %s443 = ssub.s32 2048, 2048
      %444 = vsyncadd [#allocation44], %s443
      %s445 = sshll.u32 [#allocation43], 4
      %s446 = int_to_ptr.vmem [resolvable:$true] %s445
      %451 = dma.hbm_to_vmem [thread:$0]  %s59, 2048, %s446, [#allocation44], 128, 128, 8
    $region121: #{_lambda_.1} parent=1 // pred_fallthru
      _
    // Predicated region
    $region122: #{_lambda_.1} parent=1 // pred_check
      _
    $region123: #{_lambda_.1} parent=1 // pred_check_branch
      %453 = sbr.rel (0) target = $region125
    $region124: #{_lambda_.1} parent=1 // pred_region
      %s455 = ssub.s32 2048, 2048
      %456 = vsyncadd [#allocation44], %s455
      %s457 = sshll.u32 [#allocation45], 4
      %s458 = int_to_ptr.vmem [resolvable:$true] %s457
      %463 = dma.hbm_to_vmem [thread:$0]  %s61, 2048, %s458, [#allocation44], 128, 128, 8
    $region125: #{_lambda_.1} parent=1 // pred_fallthru
      _
    // Predicated region
    $region126: #{_lambda_.1} parent=1 // pred_check
      _
    $region127: #{_lambda_.1} parent=1 // pred_check_branch
      %465 = sbr.rel (0) target = $region129
    $region128: #{_lambda_.1} parent=1 // pred_region
      %s467 = ssub.s32 1024, 1024
      %468 = vsyncadd [#allocation47], %s467
      %s469 = sshll.u32 [#allocation46], 4
      %s470 = int_to_ptr.vmem [resolvable:$true] %s469
      %475 = dma.hbm_to_vmem [thread:$0]  %s63, 1024, %s470, [#allocation47], 128, 128, 8
    $region129: #{_lambda_.1} parent=1 // pred_fallthru
      _
    // Predicated region
    $region130: #{_lambda_.1} parent=1 // pred_check
      _
    $region131: #{_lambda_.1} parent=1 // pred_check_branch
      %477 = sbr.rel (0) target = $region133
    $region132: #{_lambda_.1} parent=1 // pred_region
      %s479 = ssub.s32 2048, 2048
      %480 = vsyncadd [#allocation47], %s479
      %s481 = sshll.u32 [#allocation48], 4
      %s482 = int_to_ptr.vmem [resolvable:$true] %s481
      %487 = dma.hbm_to_vmem [thread:$0]  %s65, 2048, %s482, [#allocation47], 128, 128, 8
    $region133: #{_lambda_.1} parent=1 // pred_fallthru
      _
    // Predicated region
    $region134: #{_lambda_.1} parent=1 // pred_check
      _
    $region135: #{_lambda_.1} parent=1 // pred_check_branch
      %489 = sbr.rel (0) target = $region137
    $region136: #{_lambda_.1} parent=1 // pred_region
      %s491 = ssub.s32 1024, 1024
      %492 = vsyncadd [#allocation50], %s491
      %s493 = sshll.u32 [#allocation49], 4
      %s494 = int_to_ptr.vmem [resolvable:$true] %s493
      %499 = dma.hbm_to_vmem [thread:$0]  %s67, 1024, %s494, [#allocation50], 128, 128, 8
    $region137: #{_lambda_.1} parent=1 // pred_fallthru
      _
    // Predicated region
    $region138: #{_lambda_.1} parent=1 // pred_check
      _
    $region139: #{_lambda_.1} parent=1 // pred_check_branch
      %501 = sbr.rel (0) target = $region141
    $region140: #{_lambda_.1} parent=1 // pred_region
      %s503 = ssub.s32 1024, 1024
      %504 = vsyncadd [#allocation50], %s503
      %s505 = sshll.u32 [#allocation51], 4
      %s506 = int_to_ptr.vmem [resolvable:$true] %s505
      %511 = dma.hbm_to_vmem [thread:$0]  %s69, 1024, %s506, [#allocation50], 128, 128, 8
    $region141: #{_lambda_.1} parent=1 // pred_fallthru
      _
    // Predicated region
    $region142: #{_lambda_.1} parent=1 // pred_check
      _
    $region143: #{_lambda_.1} parent=1 // pred_check_branch
      %513 = sbr.rel (0) target = $region145
    $region144: #{_lambda_.1} parent=1 // pred_region
      %s515 = ssub.s32 512, 512
      %516 = vsyncadd [#allocation53], %s515
      %s517 = sshll.u32 [#allocation52], 4
      %s518 = int_to_ptr.vmem [resolvable:$true] %s517
      %523 = dma.hbm_to_vmem [thread:$0]  %s71, 512, %s518, [#allocation53], 128, 128, 8
    $region145: #{_lambda_.1} parent=1 // pred_fallthru
      _
    // Predicated region
    $region146: #{_lambda_.1} parent=1 // pred_check
      _
    $region147: #{_lambda_.1} parent=1 // pred_check_branch
      %525 = sbr.rel (0) target = $region149
    $region148: #{_lambda_.1} parent=1 // pred_region
      %s527 = ssub.s32 512, 512
      %528 = vsyncadd [#allocation53], %s527
      %s529 = sshll.u32 [#allocation54], 4
      %s530 = int_to_ptr.vmem [resolvable:$true] %s529
      %535 = dma.hbm_to_vmem [thread:$0]  %s73, 512, %s530, [#allocation53], 128, 128, 8
    $region149: #{_lambda_.1} parent=1 // pred_fallthru
      _
    // Predicated region
    $region150: #{_lambda_.1} parent=1 // pred_check
      _
    $region151: #{_lambda_.1} parent=1 // pred_check_branch
      %537 = sbr.rel (0) target = $region153
    $region152: #{_lambda_.1} parent=1 // pred_region
      %s539 = ssub.s32 1536, 1536
      %540 = vsyncadd [#allocation56], %s539
      %s541 = sshll.u32 [#allocation55], 4
      %s542 = int_to_ptr.vmem [resolvable:$true] %s541
      %547 = dma.hbm_to_vmem [thread:$0]  %s75, 1536, %s542, [#allocation56], 128, 128, 8
    $region153: #{_lambda_.1} parent=1 // pred_fallthru
      _
    // Predicated region
    $region154: #{_lambda_.1} parent=1 // pred_check
      _
    $region155: #{_lambda_.1} parent=1 // pred_check_branch
      %549 = sbr.rel (0) target = $region157
    $region156: #{_lambda_.1} parent=1 // pred_region
      %s551 = ssub.s32 2048, 2048
      %552 = vsyncadd [#allocation56], %s551
      %s553 = sshll.u32 [#allocation57], 4
      %s554 = int_to_ptr.vmem [resolvable:$true] %s553
      %559 = dma.hbm_to_vmem [thread:$0]  %s77, 2048, %s554, [#allocation56], 128, 128, 8
    $region157: #{_lambda_.1} parent=1 // pred_fallthru
      _
    // Predicated region
    $region158: #{_lambda_.1} parent=1 // pred_check
      _
    $region159: #{_lambda_.1} parent=1 // pred_check_branch
      %561 = sbr.rel (0) target = $region161
    $region160: #{_lambda_.1} parent=1 // pred_region
      _
    $region161: #{_lambda_.1} parent=1 // pred_fallthru
      _
    // Predicated region
    $region162: #{_lambda_.1} parent=1 // pred_check
      _
    $region163: #{_lambda_.1} parent=1 // pred_check_branch
      %563 = sbr.rel (0) target = $region165
    $region164: #{_lambda_.1} parent=1 // pred_region
      %s565 = ssub.s32 2048, 2048
      %566 = vsyncadd [#allocation59], %s565
      %s567 = sshll.u32 [#allocation58], 4
      %s568 = int_to_ptr.vmem [resolvable:$true] %s567
      %573 = dma.hbm_to_vmem [thread:$0]  %s81, 2048, %s568, [#allocation59], 128, 128, 8
    $region165: #{_lambda_.1} parent=1 // pred_fallthru
      _
    // Predicated region
    $region166: #{_lambda_.1} parent=1 // pred_check
      _
    $region167: #{_lambda_.1} parent=1 // pred_check_branch
      %575 = sbr.rel (0) target = $region169
    $region168: #{_lambda_.1} parent=1 // pred_region
      %s577 = ssub.s32 2048, 2048
      %578 = vsyncadd [#allocation59], %s577
      %s579 = sshll.u32 [#allocation60], 4
      %s580 = int_to_ptr.vmem [resolvable:$true] %s579
      %585 = dma.hbm_to_vmem [thread:$0]  %s83, 2048, %s580, [#allocation59], 128, 128, 8
    $region169: #{_lambda_.1} parent=1 // pred_fallthru
      _
    // Predicated region
    $region170: #{_lambda_.1} parent=1 // pred_check
      _
    $region171: #{_lambda_.1} parent=1 // pred_check_branch
      %587 = sbr.rel (0) target = $region173
    $region172: #{_lambda_.1} parent=1 // pred_region
      _
    $region173: #{_lambda_.1} parent=1 // pred_fallthru
      _
    // Predicated region
    $region174: #{_lambda_.1} parent=1 // pred_check
      _
    $region175: #{_lambda_.1} parent=1 // pred_check_branch
      %589 = sbr.rel (0) target = $region177
    $region176: #{_lambda_.1} parent=1 // pred_region
      %590 = dma.done [#allocation3], 2560
    $region177: #{_lambda_.1} parent=1 // pred_fallthru
      _
    // Predicated region
    $region178: #{_lambda_.1} parent=1 // pred_check
      _
    $region179: #{_lambda_.1} parent=1 // pred_check_branch
      %592 = sbr.rel (0) target = $region181
    $region180: #{_lambda_.1} parent=1 // pred_region
      %593 = dma.done [#allocation5], 2048
    $region181: #{_lambda_.1} parent=1 // pred_fallthru
      _
    // Predicated region
    $region182: #{_lambda_.1} parent=1 // pred_check
      _
    $region183: #{_lambda_.1} parent=1 // pred_check_branch
      %595 = sbr.rel (0) target = $region185
    $region184: #{_lambda_.1} parent=1 // pred_region
      %596 = dma.done [#allocation5], 2176
    $region185: #{_lambda_.1} parent=1 // pred_fallthru
      _
    // Predicated region
    $region186: #{_lambda_.1} parent=1 // pred_check
      _
    $region187: #{_lambda_.1} parent=1 // pred_check_branch
      %598 = sbr.rel (0) target = $region189
    $region188: #{_lambda_.1} parent=1 // pred_region
      %599 = dma.done [#allocation8], 4096
    $region189: #{_lambda_.1} parent=1 // pred_fallthru
      _
    // Predicated region
    $region190: #{_lambda_.1} parent=1 // pred_check
      _
    $region191: #{_lambda_.1} parent=1 // pred_check_branch
      %601 = sbr.rel (0) target = $region193
    $region192: #{_lambda_.1} parent=1 // pred_region
      %602 = dma.done [#allocation8], 4096
    $region193: #{_lambda_.1} parent=1 // pred_fallthru
      _
    // Predicated region
    $region194: #{_lambda_.1} parent=1 // pred_check
      _
    $region195: #{_lambda_.1} parent=1 // pred_check_branch
      %604 = sbr.rel (0) target = $region197
    $region196: #{_lambda_.1} parent=1 // pred_region
      %605 = dma.done [#allocation11], 8192
    $region197: #{_lambda_.1} parent=1 // pred_fallthru
      _
    // Predicated region
    $region198: #{_lambda_.1} parent=1 // pred_check
      _
    $region199: #{_lambda_.1} parent=1 // pred_check_branch
      %607 = sbr.rel (0) target = $region201
    $region200: #{_lambda_.1} parent=1 // pred_region
      %608 = dma.done [#allocation11], 4096
    $region201: #{_lambda_.1} parent=1 // pred_fallthru
      _
    // Predicated region
    $region202: #{_lambda_.1} parent=1 // pred_check
      _
    $region203: #{_lambda_.1} parent=1 // pred_check_branch
      %610 = sbr.rel (0) target = $region205
    $region204: #{_lambda_.1} parent=1 // pred_region
      %611 = dma.done [#allocation14], 2048
    $region205: #{_lambda_.1} parent=1 // pred_fallthru
      _
    // Predicated region
    $region206: #{_lambda_.1} parent=1 // pred_check
      _
    $region207: #{_lambda_.1} parent=1 // pred_check_branch
      %613 = sbr.rel (0) target = $region209
    $region208: #{_lambda_.1} parent=1 // pred_region
      %614 = dma.done [#allocation14], 2176
    $region209: #{_lambda_.1} parent=1 // pred_fallthru
      _
    // Predicated region
    $region210: #{_lambda_.1} parent=1 // pred_check
      _
    $region211: #{_lambda_.1} parent=1 // pred_check_branch
      %616 = sbr.rel (0) target = $region213
    $region212: #{_lambda_.1} parent=1 // pred_region
      %617 = dma.done [#allocation17], 4096
    $region213: #{_lambda_.1} parent=1 // pred_fallthru
      _
    // Predicated region
    $region214: #{_lambda_.1} parent=1 // pred_check
      _
    $region215: #{_lambda_.1} parent=1 // pred_check_branch
      %619 = sbr.rel (0) target = $region217
    $region216: #{_lambda_.1} parent=1 // pred_region
      %620 = dma.done [#allocation17], 4096
    $region217: #{_lambda_.1} parent=1 // pred_fallthru
      _
    // Predicated region
    $region218: #{_lambda_.1} parent=1 // pred_check
      _
    $region219: #{_lambda_.1} parent=1 // pred_check_branch
      %622 = sbr.rel (0) target = $region221
    $region220: #{_lambda_.1} parent=1 // pred_region
      %623 = dma.done [#allocation20], 8192
    $region221: #{_lambda_.1} parent=1 // pred_fallthru
      _
    // Predicated region
    $region222: #{_lambda_.1} parent=1 // pred_check
      _
    $region223: #{_lambda_.1} parent=1 // pred_check_branch
      %625 = sbr.rel (0) target = $region225
    $region224: #{_lambda_.1} parent=1 // pred_region
      %626 = dma.done [#allocation20], 4096
    $region225: #{_lambda_.1} parent=1 // pred_fallthru
      _
    // Predicated region
    $region226: #{_lambda_.1} parent=1 // pred_check
      _
    $region227: #{_lambda_.1} parent=1 // pred_check_branch
      %628 = sbr.rel (0) target = $region229
    $region228: #{_lambda_.1} parent=1 // pred_region
      %629 = dma.done [#allocation23], 2048
    $region229: #{_lambda_.1} parent=1 // pred_fallthru
      _
    // Predicated region
    $region230: #{_lambda_.1} parent=1 // pred_check
      _
    $region231: #{_lambda_.1} parent=1 // pred_check_branch
      %631 = sbr.rel (0) target = $region233
    $region232: #{_lambda_.1} parent=1 // pred_region
      %632 = dma.done [#allocation23], 2176
    $region233: #{_lambda_.1} parent=1 // pred_fallthru
      _
    // Predicated region
    $region234: #{_lambda_.1} parent=1 // pred_check
      _
    $region235: #{_lambda_.1} parent=1 // pred_check_branch
      %634 = sbr.rel (0) target = $region237
    $region236: #{_lambda_.1} parent=1 // pred_region
      %635 = dma.done [#allocation26], 4096
    $region237: #{_lambda_.1} parent=1 // pred_fallthru
      _
    // Predicated region
    $region238: #{_lambda_.1} parent=1 // pred_check
      _
    $region239: #{_lambda_.1} parent=1 // pred_check_branch
      %637 = sbr.rel (0) target = $region241
    $region240: #{_lambda_.1} parent=1 // pred_region
      %638 = dma.done [#allocation26], 4096
    $region241: #{_lambda_.1} parent=1 // pred_fallthru
      _
    // Predicated region
    $region242: #{_lambda_.1} parent=1 // pred_check
      _
    $region243: #{_lambda_.1} parent=1 // pred_check_branch
      %640 = sbr.rel (0) target = $region245
    $region244: #{_lambda_.1} parent=1 // pred_region
      %641 = dma.done [#allocation29], 8192
    $region245: #{_lambda_.1} parent=1 // pred_fallthru
      _
    // Predicated region
    $region246: #{_lambda_.1} parent=1 // pred_check
      _
    $region247: #{_lambda_.1} parent=1 // pred_check_branch
      %643 = sbr.rel (0) target = $region249
    $region248: #{_lambda_.1} parent=1 // pred_region
      %644 = dma.done [#allocation29], 4096
    $region249: #{_lambda_.1} parent=1 // pred_fallthru
      _
    // Predicated region
    $region250: #{_lambda_.1} parent=1 // pred_check
      _
    $region251: #{_lambda_.1} parent=1 // pred_check_branch
      %646 = sbr.rel (0) target = $region253
    $region252: #{_lambda_.1} parent=1 // pred_region
      %647 = dma.done [#allocation32], 2048
    $region253: #{_lambda_.1} parent=1 // pred_fallthru
      _
    // Predicated region
    $region254: #{_lambda_.1} parent=1 // pred_check
      _
    $region255: #{_lambda_.1} parent=1 // pred_check_branch
      %649 = sbr.rel (0) target = $region257
    $region256: #{_lambda_.1} parent=1 // pred_region
      %650 = dma.done [#allocation32], 2176
    $region257: #{_lambda_.1} parent=1 // pred_fallthru
      _
    // Predicated region
    $region258: #{_lambda_.1} parent=1 // pred_check
      _
    $region259: #{_lambda_.1} parent=1 // pred_check_branch
      %652 = sbr.rel (0) target = $region261
    $region260: #{_lambda_.1} parent=1 // pred_region
      %653 = dma.done [#allocation35], 4096
    $region261: #{_lambda_.1} parent=1 // pred_fallthru
      _
    // Predicated region
    $region262: #{_lambda_.1} parent=1 // pred_check
      _
    $region263: #{_lambda_.1} parent=1 // pred_check_branch
      %655 = sbr.rel (0) target = $region265
    $region264: #{_lambda_.1} parent=1 // pred_region
      %656 = dma.done [#allocation35], 4096
    $region265: #{_lambda_.1} parent=1 // pred_fallthru
      _
    // Predicated region
    $region266: #{_lambda_.1} parent=1 // pred_check
      _
    $region267: #{_lambda_.1} parent=1 // pred_check_branch
      %658 = sbr.rel (0) target = $region269
    $region268: #{_lambda_.1} parent=1 // pred_region
      %659 = dma.done [#allocation38], 8192
    $region269: #{_lambda_.1} parent=1 // pred_fallthru
      _
    // Predicated region
    $region270: #{_lambda_.1} parent=1 // pred_check
      _
    $region271: #{_lambda_.1} parent=1 // pred_check_branch
      %661 = sbr.rel (0) target = $region273
    $region272: #{_lambda_.1} parent=1 // pred_region
      %662 = dma.done [#allocation38], 4096
    $region273: #{_lambda_.1} parent=1 // pred_fallthru
      _
    // Predicated region
    $region274: #{_lambda_.1} parent=1 // pred_check
      _
    $region275: #{_lambda_.1} parent=1 // pred_check_branch
      %664 = sbr.rel (0) target = $region277
    $region276: #{_lambda_.1} parent=1 // pred_region
      %665 = dma.done [#allocation41], 4096
    $region277: #{_lambda_.1} parent=1 // pred_fallthru
      _
    // Predicated region
    $region278: #{_lambda_.1} parent=1 // pred_check
      _
    $region279: #{_lambda_.1} parent=1 // pred_check_branch
      %667 = sbr.rel (0) target = $region281
    $region280: #{_lambda_.1} parent=1 // pred_region
      %668 = dma.done [#allocation41], 4096
    $region281: #{_lambda_.1} parent=1 // pred_fallthru
      _
    // Predicated region
    $region282: #{_lambda_.1} parent=1 // pred_check
      _
    $region283: #{_lambda_.1} parent=1 // pred_check_branch
      %670 = sbr.rel (0) target = $region285
    $region284: #{_lambda_.1} parent=1 // pred_region
      %671 = dma.done [#allocation44], 2048
    $region285: #{_lambda_.1} parent=1 // pred_fallthru
      _
    // Predicated region
    $region286: #{_lambda_.1} parent=1 // pred_check
      _
    $region287: #{_lambda_.1} parent=1 // pred_check_branch
      %673 = sbr.rel (0) target = $region289
    $region288: #{_lambda_.1} parent=1 // pred_region
      %674 = dma.done [#allocation44], 2048
    $region289: #{_lambda_.1} parent=1 // pred_fallthru
      _
    // Predicated region
    $region290: #{_lambda_.1} parent=1 // pred_check
      _
    $region291: #{_lambda_.1} parent=1 // pred_check_branch
      %676 = sbr.rel (0) target = $region293
    $region292: #{_lambda_.1} parent=1 // pred_region
      %677 = dma.done [#allocation47], 1024
    $region293: #{_lambda_.1} parent=1 // pred_fallthru
      _
    // Predicated region
    $region294: #{_lambda_.1} parent=1 // pred_check
      _
    $region295: #{_lambda_.1} parent=1 // pred_check_branch
      %679 = sbr.rel (0) target = $region297
    $region296: #{_lambda_.1} parent=1 // pred_region
      %680 = dma.done [#allocation47], 2048
    $region297: #{_lambda_.1} parent=1 // pred_fallthru
      _
    // Predicated region
    $region298: #{_lambda_.1} parent=1 // pred_check
      _
    $region299: #{_lambda_.1} parent=1 // pred_check_branch
      %682 = sbr.rel (0) target = $region301
    $region300: #{_lambda_.1} parent=1 // pred_region
      %683 = dma.done [#allocation50], 1024
    $region301: #{_lambda_.1} parent=1 // pred_fallthru
      _
    // Predicated region
    $region302: #{_lambda_.1} parent=1 // pred_check
      _
    $region303: #{_lambda_.1} parent=1 // pred_check_branch
      %685 = sbr.rel (0) target = $region305
    $region304: #{_lambda_.1} parent=1 // pred_region
      %686 = dma.done [#allocation50], 1024
    $region305: #{_lambda_.1} parent=1 // pred_fallthru
      _
    // Predicated region
    $region306: #{_lambda_.1} parent=1 // pred_check
      _
    $region307: #{_lambda_.1} parent=1 // pred_check_branch
      %688 = sbr.rel (0) target = $region309
    $region308: #{_lambda_.1} parent=1 // pred_region
      %689 = dma.done [#allocation53], 512
    $region309: #{_lambda_.1} parent=1 // pred_fallthru
      _
    // Predicated region
    $region310: #{_lambda_.1} parent=1 // pred_check
      _
    $region311: #{_lambda_.1} parent=1 // pred_check_branch
      %691 = sbr.rel (0) target = $region313
    $region312: #{_lambda_.1} parent=1 // pred_region
      %692 = dma.done [#allocation53], 512
    $region313: #{_lambda_.1} parent=1 // pred_fallthru
      _
    // Predicated region
    $region314: #{_lambda_.1} parent=1 // pred_check
      _
    $region315: #{_lambda_.1} parent=1 // pred_check_branch
      %694 = sbr.rel (0) target = $region317
    $region316: #{_lambda_.1} parent=1 // pred_region
      %695 = dma.done [#allocation56], 1536
    $region317: #{_lambda_.1} parent=1 // pred_fallthru
      _
    // Predicated region
    $region318: #{_lambda_.1} parent=1 // pred_check
      _
    $region319: #{_lambda_.1} parent=1 // pred_check_branch
      %697 = sbr.rel (0) target = $region321
    $region320: #{_lambda_.1} parent=1 // pred_region
      %698 = dma.done [#allocation56], 2048
    $region321: #{_lambda_.1} parent=1 // pred_fallthru
      _
    // Predicated region
    $region322: #{_lambda_.1} parent=1 // pred_check
      _
    $region323: #{_lambda_.1} parent=1 // pred_check_branch
      %700 = sbr.rel (0) target = $region325
    $region324: #{_lambda_.1} parent=1 // pred_region
      %701 = dma.done [#allocation59], 2048
    $region325: #{_lambda_.1} parent=1 // pred_fallthru
      _
    // Predicated region
    $region326: #{_lambda_.1} parent=1 // pred_check
      _
    $region327: #{_lambda_.1} parent=1 // pred_check_branch
      %703 = sbr.rel (0) target = $region329
    $region328: #{_lambda_.1} parent=1 // pred_region
      %704 = dma.done [#allocation59], 2048
    $region329: #{_lambda_.1} parent=1 // pred_fallthru
      _
    %v705 = vld [vmem:[%s1] sm:$0xff]
    %v706 = vld [vmem:[%s3] sm:$0xff]
    %v707 = vld [vmem:[#allocation46] sm:$0xff]
    %v708 = vld [vmem:[#allocation46 + $0x8] sm:$0xff]
    %v709 = vld [vmem:[#allocation46 + $0x10] sm:$0xff]
    %v710 = vld [vmem:[#allocation46 + $0x18] sm:$0xff]
    %v711 = vld [vmem:[#allocation46 + $0x20] sm:$0xff]
    %v712 = vld [vmem:[#allocation46 + $0x28] sm:$0xff]
    %v713 = vld [vmem:[#allocation46 + $0x30] sm:$0xff]
    %v714 = vld [vmem:[#allocation46 + $0x38] sm:$0xff]
    %v715 = vld [vmem:[#allocation2 + $0x73] ss:$0 sm:$0xff]
    %vm716 = vcmask 523264
    %v718 = vsel %vm716, %v705, 0
    %720 = vmatprep.subr.mxu0 0.0
    %721 = vmatpush1.msra.mxu0 0.0
    %722 = vmatprep.subr.mxu0 0.0
    %723 = vmatpush1.msra.mxu0 0.0
    %724 = vmatprep.subr.mxu0 0.0
    %725 = vmatpush1.msra.mxu0 0.0
    %726 = vmatprep.subr.mxu0 0.0
    %727 = vmatpush1.msra.mxu0 0.0
    %728 = vmatprep.subr.mxu0 0.0
    %729 = vmatpush1.msra.mxu0 0.0
    %730 = vmatprep.subr.mxu0 0.0
    %731 = vmatpush1.msra.mxu0 0.0
    %732 = vmatprep.subr.mxu0 0.0
    %733 = vmatpush1.msra.mxu0 0.0
    %734 = vmatprep.subr.mxu0 0.0
    %735 = vmatpush1.msra.mxu0 0.0
    %736 = vmatprep.subr.mxu0 0.0
    %737 = vmatpush1.msra.mxu0 %v714
    %738 = vmatprep.subr.mxu0 0.0
    %739 = vmatpush1.msra.mxu0 %v713
    %740 = vmatprep.subr.mxu0 0.0
    %741 = vmatpush1.msra.mxu0 %v712
    %742 = vmatprep.subr.mxu0 0.0
    %743 = vmatpush1.msra.mxu0 %v711
    %744 = vmatprep.subr.mxu0 0.0
    %745 = vmatpush1.msra.mxu0 %v710
    %746 = vmatprep.subr.mxu0 0.0
    %747 = vmatpush1.msra.mxu0 %v709
    %748 = vmatprep.subr.mxu0 0.0
    %749 = vmatpush1.msra.mxu0 %v708
    %750 = vmatprep.subr.mxu0 0.0
    %751 = vmatpush1.msra.mxu0 %v707
    %752 = vmatprep.subr.mxu0 0.0
    %753 = vmatpush2.msra.mxu0 0.0
    %754 = vmatprep.subr.mxu0 0.0
    %755 = vmatpush2.msra.mxu0 0.0
    %756 = vmatprep.subr.mxu0 0.0
    %757 = vmatpush2.msra.mxu0 0.0
    %758 = vmatprep.subr.mxu0 0.0
    %759 = vmatpush2.msra.mxu0 0.0
    %760 = vmatprep.subr.mxu0 0.0
    %761 = vmatpush2.msra.mxu0 0.0
    %762 = vmatprep.subr.mxu0 0.0
    %763 = vmatpush2.msra.mxu0 0.0
    %764 = vmatprep.subr.mxu0 0.0
    %765 = vmatpush2.msra.mxu0 0.0
    %766 = vmatprep.subr.mxu0 0.0
    %767 = vmatpush2.msra.mxu0 0.0
    %768 = vmatprep.subr.mxu0 0.0
    %769 = vmatpush2.msra.mxu0 0.0
    %770 = vmatprep.subr.mxu0 0.0
    %771 = vmatpush2.msra.mxu0 0.0
    %772 = vmatprep.subr.mxu0 0.0
    %773 = vmatpush2.msra.mxu0 0.0
    %774 = vmatprep.subr.mxu0 0.0
    %775 = vmatpush2.msra.mxu0 0.0
    %776 = vmatprep.subr.mxu0 0.0
    %777 = vmatpush2.msra.mxu0 0.0
    %778 = vmatprep.subr.mxu0 0.0
    %779 = vmatpush2.msra.mxu0 0.0
    %780 = vmatprep.subr.mxu0 0.0
    %781 = vmatpush2.msra.mxu0 0.0
    %782 = vmatprep.subr.mxu0 0.0
    %783 = vmatpush2.msra.mxu0 0.0
    %784 = vmatprep.mubr.f32.mxu0 0.0
    %785 = vmatmul.mubr.f32.gmra.mxu0 %v718
    %v786 = vpop.f32.mrf.mxu0
    %v787 = vadd.f32 %v715, %v786
    %v788 = vpop.f32.mrf.mxu0
    %789 = vdwg.mxu0
    %790 = vadd.xlane.f32.xlu0 %v787
    %v791 = vpop.xlane.xlu0 %790
    %v792 = vrcp.pop 128.0
    %v793 = vmul.f32 %v791, %v792
    %v794 = vsub.f32 %v787, %v793
    %v795 = vmul.f32 %v794, %v794
    %796 = vadd.xlane.f32.xlu0 %v795
    %v797 = vpop.xlane.xlu0 %796
    %v798 = vmul.f32 %v797, %v792
    %v799 = vadd.f32 %v798, 1e-05
    %v800 = vrsqrt.pop %v799
    %v801 = vmul.f32 %v794, %v800
    %v802 = vld [vmem:[#allocation2 + $0x76] ss:$0 sm:$0xff]
    %v803 = vmul.f32 %v801, %v802
    %v804 = vld [vmem:[#allocation2 + $0x75] ss:$0 sm:$0xff]
    %v805 = vadd.f32 %v803, %v804
    %v806 = vmax.f32 %v805, 0.0
    %v807 = vld [vmem:[#allocation48] sm:$0xff]
    %v808 = vld [vmem:[#allocation48 + $0x8] sm:$0xff]
    %v809 = vld [vmem:[#allocation48 + $0x10] sm:$0xff]
    %v810 = vld [vmem:[#allocation48 + $0x18] sm:$0xff]
    %v811 = vld [vmem:[#allocation48 + $0x20] sm:$0xff]
    %v812 = vld [vmem:[#allocation48 + $0x28] sm:$0xff]
    %v813 = vld [vmem:[#allocation48 + $0x30] sm:$0xff]
    %v814 = vld [vmem:[#allocation48 + $0x38] sm:$0xff]
    %v815 = vld [vmem:[#allocation48 + $0x40] sm:$0xff]
    %v816 = vld [vmem:[#allocation48 + $0x48] sm:$0xff]
    %v817 = vld [vmem:[#allocation48 + $0x50] sm:$0xff]
    %v818 = vld [vmem:[#allocation48 + $0x58] sm:$0xff]
    %v819 = vld [vmem:[#allocation48 + $0x60] sm:$0xff]
    %v820 = vld [vmem:[#allocation48 + $0x68] sm:$0xff]
    %v821 = vld [vmem:[#allocation48 + $0x70] sm:$0xff]
    %v822 = vld [vmem:[#allocation48 + $0x78] sm:$0xff]
    %v823 = vld [vmem:[#allocation2 + $0x74] ss:$0 sm:$0xff]
    %824 = vmatprep.subr.mxu0 0.0
    %825 = vmatpush1.msra.mxu0 %v822
    %826 = vmatprep.subr.mxu0 0.0
    %827 = vmatpush1.msra.mxu0 %v821
    %828 = vmatprep.subr.mxu0 0.0
    %829 = vmatpush1.msra.mxu0 %v820
    %830 = vmatprep.subr.mxu0 0.0
    %831 = vmatpush1.msra.mxu0 %v819
    %832 = vmatprep.subr.mxu0 0.0
    %833 = vmatpush1.msra.mxu0 %v818
    %834 = vmatprep.subr.mxu0 0.0
    %835 = vmatpush1.msra.mxu0 %v817
    %836 = vmatprep.subr.mxu0 0.0
    %837 = vmatpush1.msra.mxu0 %v816
    %838 = vmatprep.subr.mxu0 0.0
    %839 = vmatpush1.msra.mxu0 %v815
    %840 = vmatprep.subr.mxu0 0.0
    %841 = vmatpush1.msra.mxu0 %v814
    %842 = vmatprep.subr.mxu0 0.0
    %843 = vmatpush1.msra.mxu0 %v813
    %844 = vmatprep.subr.mxu0 0.0
    %845 = vmatpush1.msra.mxu0 %v812
    %846 = vmatprep.subr.mxu0 0.0
    %847 = vmatpush1.msra.mxu0 %v811
    %848 = vmatprep.subr.mxu0 0.0
    %849 = vmatpush1.msra.mxu0 %v810
    %850 = vmatprep.subr.mxu0 0.0
    %851 = vmatpush1.msra.mxu0 %v809
    %852 = vmatprep.subr.mxu0 0.0
    %853 = vmatpush1.msra.mxu0 %v808
    %854 = vmatprep.subr.mxu0 0.0
    %855 = vmatpush1.msra.mxu0 %v807
    %856 = vmatprep.subr.mxu0 0.0
    %857 = vmatpush2.msra.mxu0 0.0
    %858 = vmatprep.subr.mxu0 0.0
    %859 = vmatpush2.msra.mxu0 0.0
    %860 = vmatprep.subr.mxu0 0.0
    %861 = vmatpush2.msra.mxu0 0.0
    %862 = vmatprep.subr.mxu0 0.0
    %863 = vmatpush2.msra.mxu0 0.0
    %864 = vmatprep.subr.mxu0 0.0
    %865 = vmatpush2.msra.mxu0 0.0
    %866 = vmatprep.subr.mxu0 0.0
    %867 = vmatpush2.msra.mxu0 0.0
    %868 = vmatprep.subr.mxu0 0.0
    %869 = vmatpush2.msra.mxu0 0.0
    %870 = vmatprep.subr.mxu0 0.0
    %871 = vmatpush2.msra.mxu0 0.0
    %872 = vmatprep.subr.mxu0 0.0
    %873 = vmatpush2.msra.mxu0 0.0
    %874 = vmatprep.subr.mxu0 0.0
    %875 = vmatpush2.msra.mxu0 0.0
    %876 = vmatprep.subr.mxu0 0.0
    %877 = vmatpush2.msra.mxu0 0.0
    %878 = vmatprep.subr.mxu0 0.0
    %879 = vmatpush2.msra.mxu0 0.0
    %880 = vmatprep.subr.mxu0 0.0
    %881 = vmatpush2.msra.mxu0 0.0
    %882 = vmatprep.subr.mxu0 0.0
    %883 = vmatpush2.msra.mxu0 0.0
    %884 = vmatprep.subr.mxu0 0.0
    %885 = vmatpush2.msra.mxu0 0.0
    %886 = vmatprep.subr.mxu0 0.0
    %887 = vmatpush2.msra.mxu0 0.0
    %888 = vmatprep.mubr.f32.mxu0 0.0
    %889 = vmatmul.mubr.f32.gmra.mxu0 %v806
    %v890 = vpop.f32.mrf.mxu0
    %v891 = vadd.f32 %v823, %v890
    %v892 = vpop.f32.mrf.mxu0
    %893 = vdwg.mxu0
    %v894 = vsel %vm716, %v891, 0.0
    %895 = vadd.xlane.f32.xlu0 %v894
    %v896 = vpop.xlane.xlu0 %895
    %v897 = vrcp.pop 64.0
    %v898 = vmul.f32 %v896, %v897
    %v899 = vsub.f32 %v891, %v898
    %v900 = vmul.f32 %v899, %v899
    %v901 = vsel %vm716, %v900, 0.0
    %902 = vadd.xlane.f32.xlu0 %v901
    %v903 = vpop.xlane.xlu0 %902
    %v904 = vmul.f32 %v903, %v897
    %v905 = vadd.f32 %v904, 1e-05
    %v906 = vrsqrt.pop %v905
    %v907 = vmul.f32 %v899, %v906
    %v908 = vld [vmem:[#allocation2 + $0x80] ss:$0 sm:$0xff]
    %v909 = vmul.f32 %v907, %v908
    %v910 = vld [vmem:[#allocation2 + $0x77] ss:$0 sm:$0xff]
    %v911 = vadd.f32 %v909, %v910
    %v912 = vadd.f32 %v911, %v705
    %v913 = vld [vmem:[#allocation54] sm:$0xff]
    %v914 = vld [vmem:[#allocation54 + $0x8] sm:$0xff]
    %v915 = vld [vmem:[#allocation54 + $0x10] sm:$0xff]
    %v916 = vld [vmem:[#allocation54 + $0x18] sm:$0xff]
    %v917 = vld [vmem:[#allocation2 + $0x82] ss:$0 sm:$0xff]
    %vm918 = vcmask 261120
    %v920 = vsel %vm918, %v706, 0
    %922 = vmatprep.subr.mxu0 0.0
    %923 = vmatpush1.msra.mxu0 0.0
    %924 = vmatprep.subr.mxu0 0.0
    %925 = vmatpush1.msra.mxu0 0.0
    %926 = vmatprep.subr.mxu0 0.0
    %927 = vmatpush1.msra.mxu0 0.0
    %928 = vmatprep.subr.mxu0 0.0
    %929 = vmatpush1.msra.mxu0 0.0
    %930 = vmatprep.subr.mxu0 0.0
    %931 = vmatpush1.msra.mxu0 0.0
    %932 = vmatprep.subr.mxu0 0.0
    %933 = vmatpush1.msra.mxu0 0.0
    %934 = vmatprep.subr.mxu0 0.0
    %935 = vmatpush1.msra.mxu0 0.0
    %936 = vmatprep.subr.mxu0 0.0
    %937 = vmatpush1.msra.mxu0 0.0
    %938 = vmatprep.subr.mxu0 0.0
    %939 = vmatpush1.msra.mxu0 0.0
    %940 = vmatprep.subr.mxu0 0.0
    %941 = vmatpush1.msra.mxu0 0.0
    %942 = vmatprep.subr.mxu0 0.0
    %943 = vmatpush1.msra.mxu0 0.0
    %944 = vmatprep.subr.mxu0 0.0
    %945 = vmatpush1.msra.mxu0 0.0
    %946 = vmatprep.subr.mxu0 0.0
    %947 = vmatpush1.msra.mxu0 %v916
    %948 = vmatprep.subr.mxu0 0.0
    %949 = vmatpush1.msra.mxu0 %v915
    %950 = vmatprep.subr.mxu0 0.0
    %951 = vmatpush1.msra.mxu0 %v914
    %952 = vmatprep.subr.mxu0 0.0
    %953 = vmatpush1.msra.mxu0 %v913
    %954 = vmatprep.subr.mxu0 0.0
    %955 = vmatpush2.msra.mxu0 0.0
    %956 = vmatprep.subr.mxu0 0.0
    %957 = vmatpush2.msra.mxu0 0.0
    %958 = vmatprep.subr.mxu0 0.0
    %959 = vmatpush2.msra.mxu0 0.0
    %960 = vmatprep.subr.mxu0 0.0
    %961 = vmatpush2.msra.mxu0 0.0
    %962 = vmatprep.subr.mxu0 0.0
    %963 = vmatpush2.msra.mxu0 0.0
    %964 = vmatprep.subr.mxu0 0.0
    %965 = vmatpush2.msra.mxu0 0.0
    %966 = vmatprep.subr.mxu0 0.0
    %967 = vmatpush2.msra.mxu0 0.0
    %968 = vmatprep.subr.mxu0 0.0
    %969 = vmatpush2.msra.mxu0 0.0
    %970 = vmatprep.subr.mxu0 0.0
    %971 = vmatpush2.msra.mxu0 0.0
    %972 = vmatprep.subr.mxu0 0.0
    %973 = vmatpush2.msra.mxu0 0.0
    %974 = vmatprep.subr.mxu0 0.0
    %975 = vmatpush2.msra.mxu0 0.0
    %976 = vmatprep.subr.mxu0 0.0
    %977 = vmatpush2.msra.mxu0 0.0
    %978 = vmatprep.subr.mxu0 0.0
    %979 = vmatpush2.msra.mxu0 0.0
    %980 = vmatprep.subr.mxu0 0.0
    %981 = vmatpush2.msra.mxu0 0.0
    %982 = vmatprep.subr.mxu0 0.0
    %983 = vmatpush2.msra.mxu0 0.0
    %984 = vmatprep.subr.mxu0 0.0
    %985 = vmatpush2.msra.mxu0 0.0
    %986 = vmatprep.mubr.f32.mxu0 0.0
    %987 = vmatmul.mubr.f32.gmra.mxu0 %v920
    %v988 = vpop.f32.mrf.mxu0
    %v989 = vadd.f32 %v917, %v988
    %v990 = vpop.f32.mrf.mxu0
    %991 = vdwg.mxu0
    %vm992 = vcmask 785408
    %v993 = vsel %vm992, %v989, 0.0
    %994 = vadd.xlane.f32.xlu0 %v993
    %v995 = vpop.xlane.xlu0 %994
    %v996 = vrcp.pop 96.0
    %v997 = vmul.f32 %v995, %v996
    %v998 = vsub.f32 %v989, %v997
    %v999 = vmul.f32 %v998, %v998
    %v1000 = vsel %vm992, %v999, 0.0
    %1001 = vadd.xlane.f32.xlu0 %v1000
    %v1002 = vpop.xlane.xlu0 %1001
    %v1003 = vmul.f32 %v1002, %v996
    %v1004 = vadd.f32 %v1003, 1e-05
    %v1005 = vrsqrt.pop %v1004
    %v1006 = vmul.f32 %v998, %v1005
    %v1007 = vld [vmem:[#allocation2 + $0x85] ss:$0 sm:$0xff]
    %v1008 = vmul.f32 %v1006, %v1007
    %v1009 = vld [vmem:[#allocation2 + $0x84] ss:$0 sm:$0xff]
    %v1010 = vadd.f32 %v1008, %v1009
    %v1011 = vmax.f32 %v1010, 0.0
    %v1012 = vld [vmem:[#allocation55] sm:$0xff]
    %v1013 = vld [vmem:[#allocation55 + $0x8] sm:$0xff]
    %v1014 = vld [vmem:[#allocation55 + $0x10] sm:$0xff]
    %v1015 = vld [vmem:[#allocation55 + $0x18] sm:$0xff]
    %v1016 = vld [vmem:[#allocation55 + $0x20] sm:$0xff]
    %v1017 = vld [vmem:[#allocation55 + $0x28] sm:$0xff]
    %v1018 = vld [vmem:[#allocation55 + $0x30] sm:$0xff]
    %v1019 = vld [vmem:[#allocation55 + $0x38] sm:$0xff]
    %v1020 = vld [vmem:[#allocation55 + $0x40] sm:$0xff]
    %v1021 = vld [vmem:[#allocation55 + $0x48] sm:$0xff]
    %v1022 = vld [vmem:[#allocation55 + $0x50] sm:$0xff]
    %v1023 = vld [vmem:[#allocation55 + $0x58] sm:$0xff]
    %v1024 = vld [vmem:[#allocation2 + $0x83] ss:$0 sm:$0xff]
    %v1026 = vsel %vm992, %v1011, 0
    %1028 = vmatprep.subr.mxu0 0.0
    %1029 = vmatpush1.msra.mxu0 0.0
    %1030 = vmatprep.subr.mxu0 0.0
    %1031 = vmatpush1.msra.mxu0 0.0
    %1032 = vmatprep.subr.mxu0 0.0
    %1033 = vmatpush1.msra.mxu0 0.0
    %1034 = vmatprep.subr.mxu0 0.0
    %1035 = vmatpush1.msra.mxu0 0.0
    %1036 = vmatprep.subr.mxu0 0.0
    %1037 = vmatpush1.msra.mxu0 %v1023
    %1038 = vmatprep.subr.mxu0 0.0
    %1039 = vmatpush1.msra.mxu0 %v1022
    %1040 = vmatprep.subr.mxu0 0.0
    %1041 = vmatpush1.msra.mxu0 %v1021
    %1042 = vmatprep.subr.mxu0 0.0
    %1043 = vmatpush1.msra.mxu0 %v1020
    %1044 = vmatprep.subr.mxu0 0.0
    %1045 = vmatpush1.msra.mxu0 %v1019
    %1046 = vmatprep.subr.mxu0 0.0
    %1047 = vmatpush1.msra.mxu0 %v1018
    %1048 = vmatprep.subr.mxu0 0.0
    %1049 = vmatpush1.msra.mxu0 %v1017
    %1050 = vmatprep.subr.mxu0 0.0
    %1051 = vmatpush1.msra.mxu0 %v1016
    %1052 = vmatprep.subr.mxu0 0.0
    %1053 = vmatpush1.msra.mxu0 %v1015
    %1054 = vmatprep.subr.mxu0 0.0
    %1055 = vmatpush1.msra.mxu0 %v1014
    %1056 = vmatprep.subr.mxu0 0.0
    %1057 = vmatpush1.msra.mxu0 %v1013
    %1058 = vmatprep.subr.mxu0 0.0
    %1059 = vmatpush1.msra.mxu0 %v1012
    %1060 = vmatprep.subr.mxu0 0.0
    %1061 = vmatpush2.msra.mxu0 0.0
    %1062 = vmatprep.subr.mxu0 0.0
    %1063 = vmatpush2.msra.mxu0 0.0
    %1064 = vmatprep.subr.mxu0 0.0
    %1065 = vmatpush2.msra.mxu0 0.0
    %1066 = vmatprep.subr.mxu0 0.0
    %1067 = vmatpush2.msra.mxu0 0.0
    %1068 = vmatprep.subr.mxu0 0.0
    %1069 = vmatpush2.msra.mxu0 0.0
    %1070 = vmatprep.subr.mxu0 0.0
    %1071 = vmatpush2.msra.mxu0 0.0
    %1072 = vmatprep.subr.mxu0 0.0
    %1073 = vmatpush2.msra.mxu0 0.0
    %1074 = vmatprep.subr.mxu0 0.0
    %1075 = vmatpush2.msra.mxu0 0.0
    %1076 = vmatprep.subr.mxu0 0.0
    %1077 = vmatpush2.msra.mxu0 0.0
    %1078 = vmatprep.subr.mxu0 0.0
    %1079 = vmatpush2.msra.mxu0 0.0
    %1080 = vmatprep.subr.mxu0 0.0
    %1081 = vmatpush2.msra.mxu0 0.0
    %1082 = vmatprep.subr.mxu0 0.0
    %1083 = vmatpush2.msra.mxu0 0.0
    %1084 = vmatprep.subr.mxu0 0.0
    %1085 = vmatpush2.msra.mxu0 0.0
    %1086 = vmatprep.subr.mxu0 0.0
    %1087 = vmatpush2.msra.mxu0 0.0
    %1088 = vmatprep.subr.mxu0 0.0
    %1089 = vmatpush2.msra.mxu0 0.0
    %1090 = vmatprep.subr.mxu0 0.0
    %1091 = vmatpush2.msra.mxu0 0.0
    %1092 = vmatprep.mubr.f32.mxu0 0.0
    %1093 = vmatmul.mubr.f32.gmra.mxu0 %v1026
    %v1094 = vpop.f32.mrf.mxu0
    %v1095 = vadd.f32 %v1024, %v1094
    %v1096 = vpop.f32.mrf.mxu0
    %1097 = vdwg.mxu0
    %v1098 = vsel %vm716, %v1095, 0.0
    %1099 = vadd.xlane.f32.xlu0 %v1098
    %v1100 = vpop.xlane.xlu0 %1099
    %v1101 = vmul.f32 %v1100, %v897
    %v1102 = vsub.f32 %v1095, %v1101
    %v1103 = vmul.f32 %v1102, %v1102
    %v1104 = vsel %vm716, %v1103, 0.0
    %1105 = vadd.xlane.f32.xlu0 %v1104
    %v1106 = vpop.xlane.xlu0 %1105
    %v1107 = vmul.f32 %v1106, %v897
    %v1108 = vadd.f32 %v1107, 1e-05
    %v1109 = vrsqrt.pop %v1108
    %v1110 = vmul.f32 %v1102, %v1109
    %v1111 = vld [vmem:[#allocation2 + $0x87] ss:$0 sm:$0xff]
    %v1112 = vmul.f32 %v1110, %v1111
    %v1113 = vld [vmem:[#allocation2 + $0x86] ss:$0 sm:$0xff]
    %v1114 = vadd.f32 %v1112, %v1113
    %v1115 = vld [vmem:[#allocation52] sm:$0xff]
    %v1116 = vld [vmem:[#allocation52 + $0x8] sm:$0xff]
    %v1117 = vld [vmem:[#allocation52 + $0x10] sm:$0xff]
    %v1118 = vld [vmem:[#allocation52 + $0x18] sm:$0xff]
    %v1119 = vld [vmem:[#allocation2 + $0x81] ss:$0 sm:$0xff]
    %1120 = vmatprep.subr.mxu0 0.0
    %1121 = vmatpush1.msra.mxu0 0.0
    %1122 = vmatprep.subr.mxu0 0.0
    %1123 = vmatpush1.msra.mxu0 0.0
    %1124 = vmatprep.subr.mxu0 0.0
    %1125 = vmatpush1.msra.mxu0 0.0
    %1126 = vmatprep.subr.mxu0 0.0
    %1127 = vmatpush1.msra.mxu0 0.0
    %1128 = vmatprep.subr.mxu0 0.0
    %1129 = vmatpush1.msra.mxu0 0.0
    %1130 = vmatprep.subr.mxu0 0.0
    %1131 = vmatpush1.msra.mxu0 0.0
    %1132 = vmatprep.subr.mxu0 0.0
    %1133 = vmatpush1.msra.mxu0 0.0
    %1134 = vmatprep.subr.mxu0 0.0
    %1135 = vmatpush1.msra.mxu0 0.0
    %1136 = vmatprep.subr.mxu0 0.0
    %1137 = vmatpush1.msra.mxu0 0.0
    %1138 = vmatprep.subr.mxu0 0.0
    %1139 = vmatpush1.msra.mxu0 0.0
    %1140 = vmatprep.subr.mxu0 0.0
    %1141 = vmatpush1.msra.mxu0 0.0
    %1142 = vmatprep.subr.mxu0 0.0
    %1143 = vmatpush1.msra.mxu0 0.0
    %1144 = vmatprep.subr.mxu0 0.0
    %1145 = vmatpush1.msra.mxu0 %v1118
    %1146 = vmatprep.subr.mxu0 0.0
    %1147 = vmatpush1.msra.mxu0 %v1117
    %1148 = vmatprep.subr.mxu0 0.0
    %1149 = vmatpush1.msra.mxu0 %v1116
    %1150 = vmatprep.subr.mxu0 0.0
    %1151 = vmatpush1.msra.mxu0 %v1115
    %1152 = vmatprep.subr.mxu0 0.0
    %1153 = vmatpush2.msra.mxu0 0.0
    %1154 = vmatprep.subr.mxu0 0.0
    %1155 = vmatpush2.msra.mxu0 0.0
    %1156 = vmatprep.subr.mxu0 0.0
    %1157 = vmatpush2.msra.mxu0 0.0
    %1158 = vmatprep.subr.mxu0 0.0
    %1159 = vmatpush2.msra.mxu0 0.0
    %1160 = vmatprep.subr.mxu0 0.0
    %1161 = vmatpush2.msra.mxu0 0.0
    %1162 = vmatprep.subr.mxu0 0.0
    %1163 = vmatpush2.msra.mxu0 0.0
    %1164 = vmatprep.subr.mxu0 0.0
    %1165 = vmatpush2.msra.mxu0 0.0
    %1166 = vmatprep.subr.mxu0 0.0
    %1167 = vmatpush2.msra.mxu0 0.0
    %1168 = vmatprep.subr.mxu0 0.0
    %1169 = vmatpush2.msra.mxu0 0.0
    %1170 = vmatprep.subr.mxu0 0.0
    %1171 = vmatpush2.msra.mxu0 0.0
    %1172 = vmatprep.subr.mxu0 0.0
    %1173 = vmatpush2.msra.mxu0 0.0
    %1174 = vmatprep.subr.mxu0 0.0
    %1175 = vmatpush2.msra.mxu0 0.0
    %1176 = vmatprep.subr.mxu0 0.0
    %1177 = vmatpush2.msra.mxu0 0.0
    %1178 = vmatprep.subr.mxu0 0.0
    %1179 = vmatpush2.msra.mxu0 0.0
    %1180 = vmatprep.subr.mxu0 0.0
    %1181 = vmatpush2.msra.mxu0 0.0
    %1182 = vmatprep.subr.mxu0 0.0
    %1183 = vmatpush2.msra.mxu0 0.0
    %1184 = vmatprep.mubr.f32.mxu0 0.0
    %1185 = vmatmul.mubr.f32.gmra.mxu0 %v920
    %v1186 = vpop.f32.mrf.mxu0
    %v1187 = vadd.f32 %v1119, %v1186
    %v1188 = vpop.f32.mrf.mxu0
    %1189 = vdwg.mxu0
    %v1190 = vadd.f32 %v1114, %v1187
    %v1191 = vld [vmem:[#allocation49] sm:$0xff]
    %v1192 = vld [vmem:[#allocation49 + $0x8] sm:$0xff]
    %v1193 = vld [vmem:[#allocation49 + $0x10] sm:$0xff]
    %v1194 = vld [vmem:[#allocation49 + $0x18] sm:$0xff]
    %v1195 = vld [vmem:[#allocation49 + $0x20] sm:$0xff]
    %v1196 = vld [vmem:[#allocation49 + $0x28] sm:$0xff]
    %v1197 = vld [vmem:[#allocation49 + $0x30] sm:$0xff]
    %v1198 = vld [vmem:[#allocation49 + $0x38] sm:$0xff]
    %v1199 = vld [vmem:[#allocation51] sm:$0xff]
    %v1200 = vld [vmem:[#allocation51 + $0x8] sm:$0xff]
    %v1201 = vld [vmem:[#allocation51 + $0x10] sm:$0xff]
    %v1202 = vld [vmem:[#allocation51 + $0x18] sm:$0xff]
    %v1203 = vld [vmem:[#allocation51 + $0x20] sm:$0xff]
    %v1204 = vld [vmem:[#allocation51 + $0x28] sm:$0xff]
    %v1205 = vld [vmem:[#allocation51 + $0x30] sm:$0xff]
    %v1206 = vld [vmem:[#allocation51 + $0x38] sm:$0xff]
    %v1208 = vsel %vm716, %v1190, 0
    %1210 = vmatprep.subr.mxu0 0.0
    %1211 = vmatpush1.msra.mxu0 0.0
    %1212 = vmatprep.subr.mxu0 0.0
    %1213 = vmatpush1.msra.mxu0 0.0
    %1214 = vmatprep.subr.mxu0 0.0
    %1215 = vmatpush1.msra.mxu0 0.0
    %1216 = vmatprep.subr.mxu0 0.0
    %1217 = vmatpush1.msra.mxu0 0.0
    %1218 = vmatprep.subr.mxu0 0.0
    %1219 = vmatpush1.msra.mxu0 0.0
    %1220 = vmatprep.subr.mxu0 0.0
    %1221 = vmatpush1.msra.mxu0 0.0
    %1222 = vmatprep.subr.mxu0 0.0
    %1223 = vmatpush1.msra.mxu0 0.0
    %1224 = vmatprep.subr.mxu0 0.0
    %1225 = vmatpush1.msra.mxu0 0.0
    %1226 = vmatprep.subr.mxu0 0.0
    %1227 = vmatpush1.msra.mxu0 %v1206
    %1228 = vmatprep.subr.mxu0 0.0
    %1229 = vmatpush1.msra.mxu0 %v1205
    %1230 = vmatprep.subr.mxu0 0.0
    %1231 = vmatpush1.msra.mxu0 %v1204
    %1232 = vmatprep.subr.mxu0 0.0
    %1233 = vmatpush1.msra.mxu0 %v1203
    %1234 = vmatprep.subr.mxu0 0.0
    %1235 = vmatpush1.msra.mxu0 %v1202
    %1236 = vmatprep.subr.mxu0 0.0
    %1237 = vmatpush1.msra.mxu0 %v1201
    %1238 = vmatprep.subr.mxu0 0.0
    %1239 = vmatpush1.msra.mxu0 %v1200
    %1240 = vmatprep.subr.mxu0 0.0
    %1241 = vmatpush1.msra.mxu0 %v1199
    %1242 = vmatprep.subr.mxu0 0.0
    %1243 = vmatpush2.msra.mxu0 0.0
    %1244 = vmatprep.subr.mxu0 0.0
    %1245 = vmatpush2.msra.mxu0 0.0
    %1246 = vmatprep.subr.mxu0 0.0
    %1247 = vmatpush2.msra.mxu0 0.0
    %1248 = vmatprep.subr.mxu0 0.0
    %1249 = vmatpush2.msra.mxu0 0.0
    %1250 = vmatprep.subr.mxu0 0.0
    %1251 = vmatpush2.msra.mxu0 0.0
    %1252 = vmatprep.subr.mxu0 0.0
    %1253 = vmatpush2.msra.mxu0 0.0
    %1254 = vmatprep.subr.mxu0 0.0
    %1255 = vmatpush2.msra.mxu0 0.0
    %1256 = vmatprep.subr.mxu0 0.0
    %1257 = vmatpush2.msra.mxu0 0.0
    %1258 = vmatprep.subr.mxu0 0.0
    %1259 = vmatpush2.msra.mxu0 0.0
    %1260 = vmatprep.subr.mxu0 0.0
    %1261 = vmatpush2.msra.mxu0 0.0
    %1262 = vmatprep.subr.mxu0 0.0
    %1263 = vmatpush2.msra.mxu0 0.0
    %1264 = vmatprep.subr.mxu0 0.0
    %1265 = vmatpush2.msra.mxu0 0.0
    %1266 = vmatprep.subr.mxu0 0.0
    %1267 = vmatpush2.msra.mxu0 0.0
    %1268 = vmatprep.subr.mxu0 0.0
    %1269 = vmatpush2.msra.mxu0 0.0
    %1270 = vmatprep.subr.mxu0 0.0
    %1271 = vmatpush2.msra.mxu0 0.0
    %1272 = vmatprep.subr.mxu0 0.0
    %1273 = vmatpush2.msra.mxu0 0.0
    %1274 = vmatprep.mubr.f32.mxu0 0.0
    %1275 = vmatmul.mubr.f32.gmra.mxu0 %v1208
    %v1276 = vpop.f32.mrf.mxu0
    %v1277 = vadd.f32 0.0, %v1276
    %v1278 = vpop.f32.mrf.mxu0
    %1279 = vdwg.mxu0
    %v1281 = vsel %vm716, %v912, 0
    %1283 = vmatprep.subr.mxu0 0.0
    %1284 = vmatpush1.msra.mxu0 0.0
    %1285 = vmatprep.subr.mxu0 0.0
    %1286 = vmatpush1.msra.mxu0 0.0
    %1287 = vmatprep.subr.mxu0 0.0
    %1288 = vmatpush1.msra.mxu0 0.0
    %1289 = vmatprep.subr.mxu0 0.0
    %1290 = vmatpush1.msra.mxu0 0.0
    %1291 = vmatprep.subr.mxu0 0.0
    %1292 = vmatpush1.msra.mxu0 0.0
    %1293 = vmatprep.subr.mxu0 0.0
    %1294 = vmatpush1.msra.mxu0 0.0
    %1295 = vmatprep.subr.mxu0 0.0
    %1296 = vmatpush1.msra.mxu0 0.0
    %1297 = vmatprep.subr.mxu0 0.0
    %1298 = vmatpush1.msra.mxu0 0.0
    %1299 = vmatprep.subr.mxu0 0.0
    %1300 = vmatpush1.msra.mxu0 %v1198
    %1301 = vmatprep.subr.mxu0 0.0
    %1302 = vmatpush1.msra.mxu0 %v1197
    %1303 = vmatprep.subr.mxu0 0.0
    %1304 = vmatpush1.msra.mxu0 %v1196
    %1305 = vmatprep.subr.mxu0 0.0
    %1306 = vmatpush1.msra.mxu0 %v1195
    %1307 = vmatprep.subr.mxu0 0.0
    %1308 = vmatpush1.msra.mxu0 %v1194
    %1309 = vmatprep.subr.mxu0 0.0
    %1310 = vmatpush1.msra.mxu0 %v1193
    %1311 = vmatprep.subr.mxu0 0.0
    %1312 = vmatpush1.msra.mxu0 %v1192
    %1313 = vmatprep.subr.mxu0 0.0
    %1314 = vmatpush1.msra.mxu0 %v1191
    %1315 = vmatprep.subr.mxu0 0.0
    %1316 = vmatpush2.msra.mxu0 0.0
    %1317 = vmatprep.subr.mxu0 0.0
    %1318 = vmatpush2.msra.mxu0 0.0
    %1319 = vmatprep.subr.mxu0 0.0
    %1320 = vmatpush2.msra.mxu0 0.0
    %1321 = vmatprep.subr.mxu0 0.0
    %1322 = vmatpush2.msra.mxu0 0.0
    %1323 = vmatprep.subr.mxu0 0.0
    %1324 = vmatpush2.msra.mxu0 0.0
    %1325 = vmatprep.subr.mxu0 0.0
    %1326 = vmatpush2.msra.mxu0 0.0
    %1327 = vmatprep.subr.mxu0 0.0
    %1328 = vmatpush2.msra.mxu0 0.0
    %1329 = vmatprep.subr.mxu0 0.0
    %1330 = vmatpush2.msra.mxu0 0.0
    %1331 = vmatprep.subr.mxu0 0.0
    %1332 = vmatpush2.msra.mxu0 0.0
    %1333 = vmatprep.subr.mxu0 0.0
    %1334 = vmatpush2.msra.mxu0 0.0
    %1335 = vmatprep.subr.mxu0 0.0
    %1336 = vmatpush2.msra.mxu0 0.0
    %1337 = vmatprep.subr.mxu0 0.0
    %1338 = vmatpush2.msra.mxu0 0.0
    %1339 = vmatprep.subr.mxu0 0.0
    %1340 = vmatpush2.msra.mxu0 0.0
    %1341 = vmatprep.subr.mxu0 0.0
    %1342 = vmatpush2.msra.mxu0 0.0
    %1343 = vmatprep.subr.mxu0 0.0
    %1344 = vmatpush2.msra.mxu0 0.0
    %1345 = vmatprep.subr.mxu0 0.0
    %1346 = vmatpush2.msra.mxu0 0.0
    %1347 = vmatprep.mubr.f32.mxu0 0.0
    %1348 = vmatmul.mubr.f32.gmra.mxu0 %v1281
    %v1349 = vpop.f32.mrf.mxu0
    %v1350 = vadd.f32 %v1277, %v1349
    %v1351 = vpop.f32.mrf.mxu0
    %1352 = vdwg.mxu0
    %v1353 = vld [vmem:[#allocation2 + $0x67] ss:$0 sm:$0xff]
    %v1354 = vadd.f32 %v1350, %v1353
    %v1355 = vld [vmem:[#allocation45] sm:$0xff]
    %v1356 = vld [vmem:[#allocation45 + $0x8] sm:$0xff]
    %v1357 = vld [vmem:[#allocation45 + $0x10] sm:$0xff]
    %v1358 = vld [vmem:[#allocation45 + $0x18] sm:$0xff]
    %v1359 = vld [vmem:[#allocation45 + $0x20] sm:$0xff]
    %v1360 = vld [vmem:[#allocation45 + $0x28] sm:$0xff]
    %v1361 = vld [vmem:[#allocation45 + $0x30] sm:$0xff]
    %v1362 = vld [vmem:[#allocation45 + $0x38] sm:$0xff]
    %v1363 = vld [vmem:[#allocation45 + $0x40] sm:$0xff]
    %v1364 = vld [vmem:[#allocation45 + $0x48] sm:$0xff]
    %v1365 = vld [vmem:[#allocation45 + $0x50] sm:$0xff]
    %v1366 = vld [vmem:[#allocation45 + $0x58] sm:$0xff]
    %v1367 = vld [vmem:[#allocation45 + $0x60] sm:$0xff]
    %v1368 = vld [vmem:[#allocation45 + $0x68] sm:$0xff]
    %v1369 = vld [vmem:[#allocation45 + $0x70] sm:$0xff]
    %v1370 = vld [vmem:[#allocation45 + $0x78] sm:$0xff]
    %v1371 = vld [vmem:[#allocation2 + $0x70] ss:$0 sm:$0xff]
    %1372 = vmatprep.subr.mxu0 0.0
    %1373 = vmatpush1.msra.mxu0 %v1370
    %1374 = vmatprep.subr.mxu0 0.0
    %1375 = vmatpush1.msra.mxu0 %v1369
    %1376 = vmatprep.subr.mxu0 0.0
    %1377 = vmatpush1.msra.mxu0 %v1368
    %1378 = vmatprep.subr.mxu0 0.0
    %1379 = vmatpush1.msra.mxu0 %v1367
    %1380 = vmatprep.subr.mxu0 0.0
    %1381 = vmatpush1.msra.mxu0 %v1366
    %1382 = vmatprep.subr.mxu0 0.0
    %1383 = vmatpush1.msra.mxu0 %v1365
    %1384 = vmatprep.subr.mxu0 0.0
    %1385 = vmatpush1.msra.mxu0 %v1364
    %1386 = vmatprep.subr.mxu0 0.0
    %1387 = vmatpush1.msra.mxu0 %v1363
    %1388 = vmatprep.subr.mxu0 0.0
    %1389 = vmatpush1.msra.mxu0 %v1362
    %1390 = vmatprep.subr.mxu0 0.0
    %1391 = vmatpush1.msra.mxu0 %v1361
    %1392 = vmatprep.subr.mxu0 0.0
    %1393 = vmatpush1.msra.mxu0 %v1360
    %1394 = vmatprep.subr.mxu0 0.0
    %1395 = vmatpush1.msra.mxu0 %v1359
    %1396 = vmatprep.subr.mxu0 0.0
    %1397 = vmatpush1.msra.mxu0 %v1358
    %1398 = vmatprep.subr.mxu0 0.0
    %1399 = vmatpush1.msra.mxu0 %v1357
    %1400 = vmatprep.subr.mxu0 0.0
    %1401 = vmatpush1.msra.mxu0 %v1356
    %1402 = vmatprep.subr.mxu0 0.0
    %1403 = vmatpush1.msra.mxu0 %v1355
    %1404 = vmatprep.subr.mxu0 0.0
    %1405 = vmatpush2.msra.mxu0 0.0
    %1406 = vmatprep.subr.mxu0 0.0
    %1407 = vmatpush2.msra.mxu0 0.0
    %1408 = vmatprep.subr.mxu0 0.0
    %1409 = vmatpush2.msra.mxu0 0.0
    %1410 = vmatprep.subr.mxu0 0.0
    %1411 = vmatpush2.msra.mxu0 0.0
    %1412 = vmatprep.subr.mxu0 0.0
    %1413 = vmatpush2.msra.mxu0 0.0
    %1414 = vmatprep.subr.mxu0 0.0
    %1415 = vmatpush2.msra.mxu0 0.0
    %1416 = vmatprep.subr.mxu0 0.0
    %1417 = vmatpush2.msra.mxu0 0.0
    %1418 = vmatprep.subr.mxu0 0.0
    %1419 = vmatpush2.msra.mxu0 0.0
    %1420 = vmatprep.subr.mxu0 0.0
    %1421 = vmatpush2.msra.mxu0 0.0
    %1422 = vmatprep.subr.mxu0 0.0
    %1423 = vmatpush2.msra.mxu0 0.0
    %1424 = vmatprep.subr.mxu0 0.0
    %1425 = vmatpush2.msra.mxu0 0.0
    %1426 = vmatprep.subr.mxu0 0.0
    %1427 = vmatpush2.msra.mxu0 0.0
    %1428 = vmatprep.subr.mxu0 0.0
    %1429 = vmatpush2.msra.mxu0 0.0
    %1430 = vmatprep.subr.mxu0 0.0
    %1431 = vmatpush2.msra.mxu0 0.0
    %1432 = vmatprep.subr.mxu0 0.0
    %1433 = vmatpush2.msra.mxu0 0.0
    %1434 = vmatprep.subr.mxu0 0.0
    %1435 = vmatpush2.msra.mxu0 0.0
    %1436 = vmatprep.mubr.f32.mxu0 0.0
    %1437 = vmatmul.mubr.f32.gmra.mxu0 %v1354
    %v1438 = vpop.f32.mrf.mxu0
    %v1439 = vadd.f32 %v1371, %v1438
    %v1440 = vpop.f32.mrf.mxu0
    %1441 = vdwg.mxu0
    %1442 = vadd.xlane.f32.xlu0 %v1439
    %v1443 = vpop.xlane.xlu0 %1442
    %v1444 = vmul.f32 %v1443, %v792
    %v1445 = vsub.f32 %v1439, %v1444
    %v1446 = vmul.f32 %v1445, %v1445
    %1447 = vadd.xlane.f32.xlu0 %v1446
    %v1448 = vpop.xlane.xlu0 %1447
    %v1449 = vmul.f32 %v1448, %v792
    %v1450 = vadd.f32 %v1449, 1e-05
    %v1451 = vrsqrt.pop %v1450
    %v1452 = vmul.f32 %v1445, %v1451
    %v1453 = vld [vmem:[#allocation2 + $0x72] ss:$0 sm:$0xff]
    %v1454 = vmul.f32 %v1452, %v1453
    %v1455 = vld [vmem:[#allocation2 + $0x71] ss:$0 sm:$0xff]
    %v1456 = vadd.f32 %v1454, %v1455
    %v1457 = vmax.f32 %v1456, 0.0
    %v1458 = vadd.f32 %v1457, %v1354
    %1459 = vadd.xlane.f32.xlu0 %v1458
    %v1460 = vpop.xlane.xlu0 %1459
    %v1461 = vmul.f32 %v1460, %v792
    %v1462 = vsub.f32 %v1458, %v1461
    %v1463 = vmul.f32 %v1462, %v1462
    %1464 = vadd.xlane.f32.xlu0 %v1463
    %v1465 = vpop.xlane.xlu0 %1464
    %v1466 = vmul.f32 %v1465, %v792
    %v1467 = vadd.f32 %v1466, 1e-05
    %v1468 = vrsqrt.pop %v1467
    %v1469 = vmul.f32 %v1462, %v1468
    %v1470 = vld [vmem:[#allocation2 + $0x2] ss:$0 sm:$0xff]
    %v1471 = vmul.f32 %v1469, %v1470
    %v1472 = vld [vmem:[#allocation2 + $0x1] ss:$0 sm:$0xff]
    %v1473 = vadd.f32 %v1471, %v1472
    %v1474 = vld [vmem:[#allocation7] sm:$0xff]
    %v1475 = vld [vmem:[#allocation7 + $0x8] sm:$0xff]
    %v1476 = vld [vmem:[#allocation7 + $0x10] sm:$0xff]
    %v1477 = vld [vmem:[#allocation7 + $0x18] sm:$0xff]
    %v1478 = vld [vmem:[#allocation7 + $0x20] sm:$0xff]
    %v1479 = vld [vmem:[#allocation7 + $0x28] sm:$0xff]
    %v1480 = vld [vmem:[#allocation7 + $0x30] sm:$0xff]
    %v1481 = vld [vmem:[#allocation7 + $0x38] sm:$0xff]
    %v1482 = vld [vmem:[#allocation7 + $0x40] sm:$0xff]
    %v1483 = vld [vmem:[#allocation7 + $0x48] sm:$0xff]
    %v1484 = vld [vmem:[#allocation7 + $0x50] sm:$0xff]
    %v1485 = vld [vmem:[#allocation7 + $0x58] sm:$0xff]
    %v1486 = vld [vmem:[#allocation7 + $0x60] sm:$0xff]
    %v1487 = vld [vmem:[#allocation7 + $0x68] sm:$0xff]
    %v1488 = vld [vmem:[#allocation7 + $0x70] sm:$0xff]
    %v1489 = vld [vmem:[#allocation7 + $0x78] sm:$0xff]
    %v1490 = vld [vmem:[#allocation7 + $0x80] sm:$0xff]
    %v1491 = vld [vmem:[#allocation7 + $0x88] sm:$0xff]
    %v1492 = vld [vmem:[#allocation7 + $0x90] sm:$0xff]
    %v1493 = vld [vmem:[#allocation7 + $0x98] sm:$0xff]
    %v1494 = vld [vmem:[#allocation7 + $0xa0] sm:$0xff]
    %v1495 = vld [vmem:[#allocation7 + $0xa8] sm:$0xff]
    %v1496 = vld [vmem:[#allocation7 + $0xb0] sm:$0xff]
    %v1497 = vld [vmem:[#allocation7 + $0xb8] sm:$0xff]
    %v1498 = vld [vmem:[#allocation7 + $0xc0] sm:$0xff]
    %v1499 = vld [vmem:[#allocation7 + $0xc8] sm:$0xff]
    %v1500 = vld [vmem:[#allocation7 + $0xd0] sm:$0xff]
    %v1501 = vld [vmem:[#allocation7 + $0xd8] sm:$0xff]
    %v1502 = vld [vmem:[#allocation7 + $0xe0] sm:$0xff]
    %v1503 = vld [vmem:[#allocation7 + $0xe8] sm:$0xff]
    %v1504 = vld [vmem:[#allocation7 + $0xf0] sm:$0xff]
    %v1505 = vld [vmem:[#allocation7 + $0xf8] sm:$0xff]
    %s1506 = scalar_lea.vmem [#allocation2], 4
    %v1507 = vld [vmem:[%s1506] ss:$8 sm:$0x3]
    %v1509 = vlaneseq
    %v1510 = vshrl.u32 %v1509, 7
    %v1511 = vsub.s32 0, %v1510
    %v1512 = vrot.slane %v1507, %v1511
    %v1513 = vlaneseq
    %v1514 = vshrl.u32 %v1513, 7
    %v1515 = vsub.s32 1, %v1514
    %v1516 = vrot.slane %v1507, %v1515
    %1519 = vmatprep.subr.mxu0 %v1505
    %1520 = vmatpush1.msra.mxu0 %v1504
    %1521 = vmatprep.subr.mxu0 %v1503
    %1522 = vmatpush1.msra.mxu0 %v1502
    %1523 = vmatprep.subr.mxu0 %v1501
    %1524 = vmatpush1.msra.mxu0 %v1500
    %1525 = vmatprep.subr.mxu0 %v1499
    %1526 = vmatpush1.msra.mxu0 %v1498
    %1527 = vmatprep.subr.mxu0 %v1497
    %1528 = vmatpush1.msra.mxu0 %v1496
    %1529 = vmatprep.subr.mxu0 %v1495
    %1530 = vmatpush1.msra.mxu0 %v1494
    %1531 = vmatprep.subr.mxu0 %v1493
    %1532 = vmatpush1.msra.mxu0 %v1492
    %1533 = vmatprep.subr.mxu0 %v1491
    %1534 = vmatpush1.msra.mxu0 %v1490
    %1535 = vmatprep.subr.mxu0 %v1489
    %1536 = vmatpush1.msra.mxu0 %v1488
    %1537 = vmatprep.subr.mxu0 %v1487
    %1538 = vmatpush1.msra.mxu0 %v1486
    %1539 = vmatprep.subr.mxu0 %v1485
    %1540 = vmatpush1.msra.mxu0 %v1484
    %1541 = vmatprep.subr.mxu0 %v1483
    %1542 = vmatpush1.msra.mxu0 %v1482
    %1543 = vmatprep.subr.mxu0 %v1481
    %1544 = vmatpush1.msra.mxu0 %v1480
    %1545 = vmatprep.subr.mxu0 %v1479
    %1546 = vmatpush1.msra.mxu0 %v1478
    %1547 = vmatprep.subr.mxu0 %v1477
    %1548 = vmatpush1.msra.mxu0 %v1476
    %1549 = vmatprep.subr.mxu0 %v1475
    %1550 = vmatpush1.msra.mxu0 %v1474
    %1551 = vmatprep.subr.mxu0 0.0
    %1552 = vmatpush2.msra.mxu0 0.0
    %1553 = vmatprep.subr.mxu0 0.0
    %1554 = vmatpush2.msra.mxu0 0.0
    %1555 = vmatprep.subr.mxu0 0.0
    %1556 = vmatpush2.msra.mxu0 0.0
    %1557 = vmatprep.subr.mxu0 0.0
    %1558 = vmatpush2.msra.mxu0 0.0
    %1559 = vmatprep.subr.mxu0 0.0
    %1560 = vmatpush2.msra.mxu0 0.0
    %1561 = vmatprep.subr.mxu0 0.0
    %1562 = vmatpush2.msra.mxu0 0.0
    %1563 = vmatprep.subr.mxu0 0.0
    %1564 = vmatpush2.msra.mxu0 0.0
    %1565 = vmatprep.subr.mxu0 0.0
    %1566 = vmatpush2.msra.mxu0 0.0
    %1567 = vmatprep.subr.mxu0 0.0
    %1568 = vmatpush2.msra.mxu0 0.0
    %1569 = vmatprep.subr.mxu0 0.0
    %1570 = vmatpush2.msra.mxu0 0.0
    %1571 = vmatprep.subr.mxu0 0.0
    %1572 = vmatpush2.msra.mxu0 0.0
    %1573 = vmatprep.subr.mxu0 0.0
    %1574 = vmatpush2.msra.mxu0 0.0
    %1575 = vmatprep.subr.mxu0 0.0
    %1576 = vmatpush2.msra.mxu0 0.0
    %1577 = vmatprep.subr.mxu0 0.0
    %1578 = vmatpush2.msra.mxu0 0.0
    %1579 = vmatprep.subr.mxu0 0.0
    %1580 = vmatpush2.msra.mxu0 0.0
    %1581 = vmatprep.subr.mxu0 0.0
    %1582 = vmatpush2.msra.mxu0 0.0
    %1583 = vmatprep.mubr.f32.mxu0 0.0
    %1584 = vmatmul.mubr.f32.gmra.mxu0 %v1473
    %v1585 = vpop.f32.mrf.mxu0
    %v1586 = vadd.f32 %v1512, %v1585
    %v1587 = vpop.f32.mrf.mxu0
    %v1588 = vadd.f32 %v1516, %v1587
    %1589 = vdwg.mxu0
    %v1590 = vld [vmem:[#allocation6] sm:$0xff]
    %v1591 = vld [vmem:[#allocation6 + $0x8] sm:$0xff]
    %v1592 = vld [vmem:[#allocation6 + $0x10] sm:$0xff]
    %v1593 = vld [vmem:[#allocation6 + $0x18] sm:$0xff]
    %v1594 = vld [vmem:[#allocation6 + $0x20] sm:$0xff]
    %v1595 = vld [vmem:[#allocation6 + $0x28] sm:$0xff]
    %v1596 = vld [vmem:[#allocation6 + $0x30] sm:$0xff]
    %v1597 = vld [vmem:[#allocation6 + $0x38] sm:$0xff]
    %v1598 = vld [vmem:[#allocation6 + $0x40] sm:$0xff]
    %v1599 = vld [vmem:[#allocation6 + $0x48] sm:$0xff]
    %v1600 = vld [vmem:[#allocation6 + $0x50] sm:$0xff]
    %v1601 = vld [vmem:[#allocation6 + $0x58] sm:$0xff]
    %v1602 = vld [vmem:[#allocation6 + $0x60] sm:$0xff]
    %v1603 = vld [vmem:[#allocation6 + $0x68] sm:$0xff]
    %v1604 = vld [vmem:[#allocation6 + $0x70] sm:$0xff]
    %v1605 = vld [vmem:[#allocation6 + $0x78] sm:$0xff]
    %v1606 = vld [vmem:[#allocation6 + $0x80] sm:$0xf]
    %v1607 = vld [vmem:[#allocation2 + $0x3] ss:$0 sm:$0xff]
    %vm1608 = vcmask 31744
    %v1610 = vsel %vm1608, %v1588, 0
    %vm1612 = vcmask 1043456
    %v1614 = vsel %vm1612, %v1606, 0
    %1616 = vmatprep.subr.mxu0 0.0
    %1617 = vmatpush1.msra.mxu0 %v1605
    %1618 = vmatprep.subr.mxu0 0.0
    %1619 = vmatpush1.msra.mxu0 %v1604
    %1620 = vmatprep.subr.mxu0 0.0
    %1621 = vmatpush1.msra.mxu0 %v1603
    %1622 = vmatprep.subr.mxu0 0.0
    %1623 = vmatpush1.msra.mxu0 %v1602
    %1624 = vmatprep.subr.mxu0 0.0
    %1625 = vmatpush1.msra.mxu0 %v1601
    %1626 = vmatprep.subr.mxu0 0.0
    %1627 = vmatpush1.msra.mxu0 %v1600
    %1628 = vmatprep.subr.mxu0 0.0
    %1629 = vmatpush1.msra.mxu0 %v1599
    %1630 = vmatprep.subr.mxu0 0.0
    %1631 = vmatpush1.msra.mxu0 %v1598
    %1632 = vmatprep.subr.mxu0 0.0
    %1633 = vmatpush1.msra.mxu0 %v1597
    %1634 = vmatprep.subr.mxu0 0.0
    %1635 = vmatpush1.msra.mxu0 %v1596
    %1636 = vmatprep.subr.mxu0 0.0
    %1637 = vmatpush1.msra.mxu0 %v1595
    %1638 = vmatprep.subr.mxu0 0.0
    %1639 = vmatpush1.msra.mxu0 %v1594
    %1640 = vmatprep.subr.mxu0 0.0
    %1641 = vmatpush1.msra.mxu0 %v1593
    %1642 = vmatprep.subr.mxu0 0.0
    %1643 = vmatpush1.msra.mxu0 %v1592
    %1644 = vmatprep.subr.mxu0 0.0
    %1645 = vmatpush1.msra.mxu0 %v1591
    %1646 = vmatprep.subr.mxu0 0.0
    %1647 = vmatpush1.msra.mxu0 %v1590
    %1648 = vmatprep.subr.mxu0 0.0
    %1649 = vmatpush2.msra.mxu0 0.0
    %1650 = vmatprep.subr.mxu0 0.0
    %1651 = vmatpush2.msra.mxu0 0.0
    %1652 = vmatprep.subr.mxu0 0.0
    %1653 = vmatpush2.msra.mxu0 0.0
    %1654 = vmatprep.subr.mxu0 0.0
    %1655 = vmatpush2.msra.mxu0 0.0
    %1656 = vmatprep.subr.mxu0 0.0
    %1657 = vmatpush2.msra.mxu0 0.0
    %1658 = vmatprep.subr.mxu0 0.0
    %1659 = vmatpush2.msra.mxu0 0.0
    %1660 = vmatprep.subr.mxu0 0.0
    %1661 = vmatpush2.msra.mxu0 0.0
    %1662 = vmatprep.subr.mxu0 0.0
    %1663 = vmatpush2.msra.mxu0 0.0
    %1664 = vmatprep.subr.mxu0 0.0
    %1665 = vmatpush2.msra.mxu0 0.0
    %1666 = vmatprep.subr.mxu0 0.0
    %1667 = vmatpush2.msra.mxu0 0.0
    %1668 = vmatprep.subr.mxu0 0.0
    %1669 = vmatpush2.msra.mxu0 0.0
    %1670 = vmatprep.subr.mxu0 0.0
    %1671 = vmatpush2.msra.mxu0 0.0
    %1672 = vmatprep.subr.mxu0 0.0
    %1673 = vmatpush2.msra.mxu0 0.0
    %1674 = vmatprep.subr.mxu0 0.0
    %1675 = vmatpush2.msra.mxu0 0.0
    %1676 = vmatprep.subr.mxu0 0.0
    %1677 = vmatpush2.msra.mxu0 0.0
    %1678 = vmatprep.subr.mxu0 0.0
    %1679 = vmatpush2.msra.mxu0 %v1614
    %1680 = vmatprep.mubr.f32.mxu0 %v1610
    %1681 = vmatmul.mubr.f32.gmra.mxu0 %v1586
    %v1682 = vpop.f32.mrf.mxu0
    %v1683 = vadd.f32 %v1607, %v1682
    %v1684 = vpop.f32.mrf.mxu0
    %1685 = vdwg.mxu0
    %v1686 = vld [vmem:[#allocation4] sm:$0xff]
    %v1687 = vld [vmem:[#allocation4 + $0x8] sm:$0xff]
    %v1688 = vld [vmem:[#allocation4 + $0x10] sm:$0xff]
    %v1689 = vld [vmem:[#allocation4 + $0x18] sm:$0xff]
    %v1690 = vld [vmem:[#allocation4 + $0x20] sm:$0xff]
    %v1691 = vld [vmem:[#allocation4 + $0x28] sm:$0xff]
    %v1692 = vld [vmem:[#allocation4 + $0x30] sm:$0xff]
    %v1693 = vld [vmem:[#allocation4 + $0x38] sm:$0xff]
    %v1694 = vld [vmem:[#allocation4 + $0x40] sm:$0xff]
    %v1695 = vld [vmem:[#allocation4 + $0x48] sm:$0xff]
    %v1696 = vld [vmem:[#allocation4 + $0x50] sm:$0xff]
    %v1697 = vld [vmem:[#allocation4 + $0x58] sm:$0xff]
    %v1698 = vld [vmem:[#allocation4 + $0x60] sm:$0xff]
    %v1699 = vld [vmem:[#allocation4 + $0x68] sm:$0xff]
    %v1700 = vld [vmem:[#allocation4 + $0x70] sm:$0xff]
    %v1701 = vld [vmem:[#allocation4 + $0x78] sm:$0xff]
    %v1702 = vld [vmem:[#allocation2] ss:$0 sm:$0xff]
    %1703 = vmatprep.subr.mxu0 0.0
    %1704 = vmatpush1.msra.mxu0 %v1701
    %1705 = vmatprep.subr.mxu0 0.0
    %1706 = vmatpush1.msra.mxu0 %v1700
    %1707 = vmatprep.subr.mxu0 0.0
    %1708 = vmatpush1.msra.mxu0 %v1699
    %1709 = vmatprep.subr.mxu0 0.0
    %1710 = vmatpush1.msra.mxu0 %v1698
    %1711 = vmatprep.subr.mxu0 0.0
    %1712 = vmatpush1.msra.mxu0 %v1697
    %1713 = vmatprep.subr.mxu0 0.0
    %1714 = vmatpush1.msra.mxu0 %v1696
    %1715 = vmatprep.subr.mxu0 0.0
    %1716 = vmatpush1.msra.mxu0 %v1695
    %1717 = vmatprep.subr.mxu0 0.0
    %1718 = vmatpush1.msra.mxu0 %v1694
    %1719 = vmatprep.subr.mxu0 0.0
    %1720 = vmatpush1.msra.mxu0 %v1693
    %1721 = vmatprep.subr.mxu0 0.0
    %1722 = vmatpush1.msra.mxu0 %v1692
    %1723 = vmatprep.subr.mxu0 0.0
    %1724 = vmatpush1.msra.mxu0 %v1691
    %1725 = vmatprep.subr.mxu0 0.0
    %1726 = vmatpush1.msra.mxu0 %v1690
    %1727 = vmatprep.subr.mxu0 0.0
    %1728 = vmatpush1.msra.mxu0 %v1689
    %1729 = vmatprep.subr.mxu0 0.0
    %1730 = vmatpush1.msra.mxu0 %v1688
    %1731 = vmatprep.subr.mxu0 0.0
    %1732 = vmatpush1.msra.mxu0 %v1687
    %1733 = vmatprep.subr.mxu0 0.0
    %1734 = vmatpush1.msra.mxu0 %v1686
    %1735 = vmatprep.subr.mxu0 0.0
    %1736 = vmatpush2.msra.mxu0 0.0
    %1737 = vmatprep.subr.mxu0 0.0
    %1738 = vmatpush2.msra.mxu0 0.0
    %1739 = vmatprep.subr.mxu0 0.0
    %1740 = vmatpush2.msra.mxu0 0.0
    %1741 = vmatprep.subr.mxu0 0.0
    %1742 = vmatpush2.msra.mxu0 0.0
    %1743 = vmatprep.subr.mxu0 0.0
    %1744 = vmatpush2.msra.mxu0 0.0
    %1745 = vmatprep.subr.mxu0 0.0
    %1746 = vmatpush2.msra.mxu0 0.0
    %1747 = vmatprep.subr.mxu0 0.0
    %1748 = vmatpush2.msra.mxu0 0.0
    %1749 = vmatprep.subr.mxu0 0.0
    %1750 = vmatpush2.msra.mxu0 0.0
    %1751 = vmatprep.subr.mxu0 0.0
    %1752 = vmatpush2.msra.mxu0 0.0
    %1753 = vmatprep.subr.mxu0 0.0
    %1754 = vmatpush2.msra.mxu0 0.0
    %1755 = vmatprep.subr.mxu0 0.0
    %1756 = vmatpush2.msra.mxu0 0.0
    %1757 = vmatprep.subr.mxu0 0.0
    %1758 = vmatpush2.msra.mxu0 0.0
    %1759 = vmatprep.subr.mxu0 0.0
    %1760 = vmatpush2.msra.mxu0 0.0
    %1761 = vmatprep.subr.mxu0 0.0
    %1762 = vmatpush2.msra.mxu0 0.0
    %1763 = vmatprep.subr.mxu0 0.0
    %1764 = vmatpush2.msra.mxu0 0.0
    %1765 = vmatprep.subr.mxu0 0.0
    %1766 = vmatpush2.msra.mxu0 0.0
    %1767 = vmatprep.mubr.f32.mxu0 0.0
    %1768 = vmatmul.mubr.f32.gmra.mxu0 %v1683
    %v1769 = vpop.f32.mrf.mxu0
    %v1770 = vadd.f32 %v1702, %v1769
    %v1771 = vpop.f32.mrf.mxu0
    %1772 = vdwg.mxu0
    %v1773 = vsub.f32 0.0, %v1770
    %v1774 = vmul.f32 %v1773, 1.442695
    %v1775 = vpow.pop %v1774
    %v1776 = vadd.f32 %v1775, 1.0
    %v1777 = vrcp.pop %v1776
    %v1778 = vmul.f32 1.0, %v1777
    %1780 = vset.pattern.permute.xlu0 0
    %1781 = vperm.xlu0 %1780, %v1778
    %v1782 = vpop.permute.xlu0 %1781
    %v1784 = vmul.f32 %v1782, %v1683
    %v1785 = vsub.f32 1.0, %v1778
    %1787 = vset.pattern.permute.xlu0 0
    %1788 = vperm.xlu0 %1787, %v1785
    %v1789 = vpop.permute.xlu0 %1788
    %v1791 = vmul.f32 %v1789, %v1458
    %v1792 = vadd.f32 %v1784, %v1791
    %v1793 = vld [vmem:[#allocation2 + $0x5] ss:$0 sm:$0xff]
    %1795 = vset.pattern.permute.xlu0 0
    %1796 = vperm.xlu0 %1795, %v1793
    %v1797 = vpop.permute.xlu0 %1796
    %v1799 = vmul.f32 %v1797, %v1792
    %v1800 = vadd.f32 %v1458, %v1799
    %1801 = vadd.xlane.f32.xlu0 %v1800
    %v1802 = vpop.xlane.xlu0 %1801
    %v1803 = vmul.f32 %v1802, %v792
    %v1804 = vsub.f32 %v1800, %v1803
    %v1805 = vmul.f32 %v1804, %v1804
    %1806 = vadd.xlane.f32.xlu0 %v1805
    %v1807 = vpop.xlane.xlu0 %1806
    %v1808 = vmul.f32 %v1807, %v792
    %v1809 = vadd.f32 %v1808, 1e-05
    %v1810 = vrsqrt.pop %v1809
    %v1811 = vmul.f32 %v1804, %v1810
    %v1812 = vld [vmem:[#allocation2 + $0x12] ss:$0 sm:$0xff]
    %v1813 = vmul.f32 %v1811, %v1812
    %v1814 = vld [vmem:[#allocation2 + $0x11] ss:$0 sm:$0xff]
    %v1815 = vadd.f32 %v1813, %v1814
    %v1816 = vld [vmem:[#allocation9] sm:$0xff]
    %v1817 = vld [vmem:[#allocation9 + $0x8] sm:$0xff]
    %v1818 = vld [vmem:[#allocation9 + $0x10] sm:$0xff]
    %v1819 = vld [vmem:[#allocation9 + $0x18] sm:$0xff]
    %v1820 = vld [vmem:[#allocation9 + $0x20] sm:$0xff]
    %v1821 = vld [vmem:[#allocation9 + $0x28] sm:$0xff]
    %v1822 = vld [vmem:[#allocation9 + $0x30] sm:$0xff]
    %v1823 = vld [vmem:[#allocation9 + $0x38] sm:$0xff]
    %v1824 = vld [vmem:[#allocation9 + $0x40] sm:$0xff]
    %v1825 = vld [vmem:[#allocation9 + $0x48] sm:$0xff]
    %v1826 = vld [vmem:[#allocation9 + $0x50] sm:$0xff]
    %v1827 = vld [vmem:[#allocation9 + $0x58] sm:$0xff]
    %v1828 = vld [vmem:[#allocation9 + $0x60] sm:$0xff]
    %v1829 = vld [vmem:[#allocation9 + $0x68] sm:$0xff]
    %v1830 = vld [vmem:[#allocation9 + $0x70] sm:$0xff]
    %v1831 = vld [vmem:[#allocation9 + $0x78] sm:$0xff]
    %v1832 = vld [vmem:[#allocation9 + $0x80] sm:$0xff]
    %v1833 = vld [vmem:[#allocation9 + $0x88] sm:$0xff]
    %v1834 = vld [vmem:[#allocation9 + $0x90] sm:$0xff]
    %v1835 = vld [vmem:[#allocation9 + $0x98] sm:$0xff]
    %v1836 = vld [vmem:[#allocation9 + $0xa0] sm:$0xff]
    %v1837 = vld [vmem:[#allocation9 + $0xa8] sm:$0xff]
    %v1838 = vld [vmem:[#allocation9 + $0xb0] sm:$0xff]
    %v1839 = vld [vmem:[#allocation9 + $0xb8] sm:$0xff]
    %v1840 = vld [vmem:[#allocation9 + $0xc0] sm:$0xff]
    %v1841 = vld [vmem:[#allocation9 + $0xc8] sm:$0xff]
    %v1842 = vld [vmem:[#allocation9 + $0xd0] sm:$0xff]
    %v1843 = vld [vmem:[#allocation9 + $0xd8] sm:$0xff]
    %v1844 = vld [vmem:[#allocation9 + $0xe0] sm:$0xff]
    %v1845 = vld [vmem:[#allocation9 + $0xe8] sm:$0xff]
    %v1846 = vld [vmem:[#allocation9 + $0xf0] sm:$0xff]
    %v1847 = vld [vmem:[#allocation9 + $0xf8] sm:$0xff]
    %s1848 = scalar_lea.vmem [#allocation2], 6
    %v1849 = vld [vmem:[%s1848] ss:$8 sm:$0x3]
    %v1851 = vlaneseq
    %v1852 = vshrl.u32 %v1851, 7
    %v1853 = vsub.s32 0, %v1852
    %v1854 = vrot.slane %v1849, %v1853
    %v1855 = vlaneseq
    %v1856 = vshrl.u32 %v1855, 7
    %v1857 = vsub.s32 1, %v1856
    %v1858 = vrot.slane %v1849, %v1857
    %1861 = vmatprep.subr.mxu0 %v1847
    %1862 = vmatpush1.msra.mxu0 %v1846
    %1863 = vmatprep.subr.mxu0 %v1845
    %1864 = vmatpush1.msra.mxu0 %v1844
    %1865 = vmatprep.subr.mxu0 %v1843
    %1866 = vmatpush1.msra.mxu0 %v1842
    %1867 = vmatprep.subr.mxu0 %v1841
    %1868 = vmatpush1.msra.mxu0 %v1840
    %1869 = vmatprep.subr.mxu0 %v1839
    %1870 = vmatpush1.msra.mxu0 %v1838
    %1871 = vmatprep.subr.mxu0 %v1837
    %1872 = vmatpush1.msra.mxu0 %v1836
    %1873 = vmatprep.subr.mxu0 %v1835
    %1874 = vmatpush1.msra.mxu0 %v1834
    %1875 = vmatprep.subr.mxu0 %v1833
    %1876 = vmatpush1.msra.mxu0 %v1832
    %1877 = vmatprep.subr.mxu0 %v1831
    %1878 = vmatpush1.msra.mxu0 %v1830
    %1879 = vmatprep.subr.mxu0 %v1829
    %1880 = vmatpush1.msra.mxu0 %v1828
    %1881 = vmatprep.subr.mxu0 %v1827
    %1882 = vmatpush1.msra.mxu0 %v1826
    %1883 = vmatprep.subr.mxu0 %v1825
    %1884 = vmatpush1.msra.mxu0 %v1824
    %1885 = vmatprep.subr.mxu0 %v1823
    %1886 = vmatpush1.msra.mxu0 %v1822
    %1887 = vmatprep.subr.mxu0 %v1821
    %1888 = vmatpush1.msra.mxu0 %v1820
    %1889 = vmatprep.subr.mxu0 %v1819
    %1890 = vmatpush1.msra.mxu0 %v1818
    %1891 = vmatprep.subr.mxu0 %v1817
    %1892 = vmatpush1.msra.mxu0 %v1816
    %1893 = vmatprep.subr.mxu0 0.0
    %1894 = vmatpush2.msra.mxu0 0.0
    %1895 = vmatprep.subr.mxu0 0.0
    %1896 = vmatpush2.msra.mxu0 0.0
    %1897 = vmatprep.subr.mxu0 0.0
    %1898 = vmatpush2.msra.mxu0 0.0
    %1899 = vmatprep.subr.mxu0 0.0
    %1900 = vmatpush2.msra.mxu0 0.0
    %1901 = vmatprep.subr.mxu0 0.0
    %1902 = vmatpush2.msra.mxu0 0.0
    %1903 = vmatprep.subr.mxu0 0.0
    %1904 = vmatpush2.msra.mxu0 0.0
    %1905 = vmatprep.subr.mxu0 0.0
    %1906 = vmatpush2.msra.mxu0 0.0
    %1907 = vmatprep.subr.mxu0 0.0
    %1908 = vmatpush2.msra.mxu0 0.0
    %1909 = vmatprep.subr.mxu0 0.0
    %1910 = vmatpush2.msra.mxu0 0.0
    %1911 = vmatprep.subr.mxu0 0.0
    %1912 = vmatpush2.msra.mxu0 0.0
    %1913 = vmatprep.subr.mxu0 0.0
    %1914 = vmatpush2.msra.mxu0 0.0
    %1915 = vmatprep.subr.mxu0 0.0
    %1916 = vmatpush2.msra.mxu0 0.0
    %1917 = vmatprep.subr.mxu0 0.0
    %1918 = vmatpush2.msra.mxu0 0.0
    %1919 = vmatprep.subr.mxu0 0.0
    %1920 = vmatpush2.msra.mxu0 0.0
    %1921 = vmatprep.subr.mxu0 0.0
    %1922 = vmatpush2.msra.mxu0 0.0
    %1923 = vmatprep.subr.mxu0 0.0
    %1924 = vmatpush2.msra.mxu0 0.0
    %1925 = vmatprep.mubr.f32.mxu0 0.0
    %1926 = vmatmul.mubr.f32.gmra.mxu0 %v1815
    %v1927 = vpop.f32.mrf.mxu0
    %v1928 = vadd.f32 %v1854, %v1927
    %v1929 = vpop.f32.mrf.mxu0
    %v1930 = vadd.f32 %v1858, %v1929
    %1931 = vdwg.mxu0
    %v1932 = vmul.f32 %v1928, 0.5
    %v1933 = vmul.f32 %v1930, 0.5
    %v1934 = vmul.f32 %v1928, 0.044715
    %v1935 = vmul.f32 %v1930, 0.044715
    %v1936 = vmul.f32 %v1934, %v1928
    %v1937 = vmul.f32 %v1935, %v1930
    %v1938 = vmul.f32 %v1936, %v1928
    %v1939 = vmul.f32 %v1937, %v1930
    %v1940 = vadd.f32 %v1928, %v1938
    %v1941 = vadd.f32 %v1930, %v1939
    %v1942 = vmul.f32 %v1940, 0.7978846
    %v1943 = vmul.f32 %v1941, 0.7978846
    %v1944 = vtanh.pop %v1942
    %v1945 = vtanh.pop %v1943
    %v1946 = vadd.f32 %v1944, 1.0
    %v1947 = vadd.f32 %v1945, 1.0
    %v1948 = vmul.f32 %v1932, %v1946
    %v1949 = vmul.f32 %v1933, %v1947
    %v1950 = vld [vmem:[#allocation10] sm:$0xff]
    %v1951 = vld [vmem:[#allocation10 + $0x8] sm:$0xff]
    %v1952 = vld [vmem:[#allocation10 + $0x10] sm:$0xff]
    %v1953 = vld [vmem:[#allocation10 + $0x18] sm:$0xff]
    %v1954 = vld [vmem:[#allocation10 + $0x20] sm:$0xff]
    %v1955 = vld [vmem:[#allocation10 + $0x28] sm:$0xff]
    %v1956 = vld [vmem:[#allocation10 + $0x30] sm:$0xff]
    %v1957 = vld [vmem:[#allocation10 + $0x38] sm:$0xff]
    %v1958 = vld [vmem:[#allocation10 + $0x40] sm:$0xff]
    %v1959 = vld [vmem:[#allocation10 + $0x48] sm:$0xff]
    %v1960 = vld [vmem:[#allocation10 + $0x50] sm:$0xff]
    %v1961 = vld [vmem:[#allocation10 + $0x58] sm:$0xff]
    %v1962 = vld [vmem:[#allocation10 + $0x60] sm:$0xff]
    %v1963 = vld [vmem:[#allocation10 + $0x68] sm:$0xff]
    %v1964 = vld [vmem:[#allocation10 + $0x70] sm:$0xff]
    %v1965 = vld [vmem:[#allocation10 + $0x78] sm:$0xff]
    %v1966 = vld [vmem:[#allocation10 + $0x80] sm:$0xff]
    %v1967 = vld [vmem:[#allocation10 + $0x88] sm:$0xff]
    %v1968 = vld [vmem:[#allocation10 + $0x90] sm:$0xff]
    %v1969 = vld [vmem:[#allocation10 + $0x98] sm:$0xff]
    %v1970 = vld [vmem:[#allocation10 + $0xa0] sm:$0xff]
    %v1971 = vld [vmem:[#allocation10 + $0xa8] sm:$0xff]
    %v1972 = vld [vmem:[#allocation10 + $0xb0] sm:$0xff]
    %v1973 = vld [vmem:[#allocation10 + $0xb8] sm:$0xff]
    %v1974 = vld [vmem:[#allocation10 + $0xc0] sm:$0xff]
    %v1975 = vld [vmem:[#allocation10 + $0xc8] sm:$0xff]
    %v1976 = vld [vmem:[#allocation10 + $0xd0] sm:$0xff]
    %v1977 = vld [vmem:[#allocation10 + $0xd8] sm:$0xff]
    %v1978 = vld [vmem:[#allocation10 + $0xe0] sm:$0xff]
    %v1979 = vld [vmem:[#allocation10 + $0xe8] sm:$0xff]
    %v1980 = vld [vmem:[#allocation10 + $0xf0] sm:$0xff]
    %v1981 = vld [vmem:[#allocation10 + $0xf8] sm:$0xff]
    %v1982 = vld [vmem:[#allocation10 + $0x100] sm:$0xff]
    %v1983 = vld [vmem:[#allocation10 + $0x108] sm:$0xff]
    %v1984 = vld [vmem:[#allocation10 + $0x110] sm:$0xff]
    %v1985 = vld [vmem:[#allocation10 + $0x118] sm:$0xff]
    %v1986 = vld [vmem:[#allocation10 + $0x120] sm:$0xff]
    %v1987 = vld [vmem:[#allocation10 + $0x128] sm:$0xff]
    %v1988 = vld [vmem:[#allocation10 + $0x130] sm:$0xff]
    %v1989 = vld [vmem:[#allocation10 + $0x138] sm:$0xff]
    %v1990 = vld [vmem:[#allocation10 + $0x140] sm:$0xff]
    %v1991 = vld [vmem:[#allocation10 + $0x148] sm:$0xff]
    %v1992 = vld [vmem:[#allocation10 + $0x150] sm:$0xff]
    %v1993 = vld [vmem:[#allocation10 + $0x158] sm:$0xff]
    %v1994 = vld [vmem:[#allocation10 + $0x160] sm:$0xff]
    %v1995 = vld [vmem:[#allocation10 + $0x168] sm:$0xff]
    %v1996 = vld [vmem:[#allocation10 + $0x170] sm:$0xff]
    %v1997 = vld [vmem:[#allocation10 + $0x178] sm:$0xff]
    %v1998 = vld [vmem:[#allocation10 + $0x180] sm:$0xff]
    %v1999 = vld [vmem:[#allocation10 + $0x188] sm:$0xff]
    %v2000 = vld [vmem:[#allocation10 + $0x190] sm:$0xff]
    %v2001 = vld [vmem:[#allocation10 + $0x198] sm:$0xff]
    %v2002 = vld [vmem:[#allocation10 + $0x1a0] sm:$0xff]
    %v2003 = vld [vmem:[#allocation10 + $0x1a8] sm:$0xff]
    %v2004 = vld [vmem:[#allocation10 + $0x1b0] sm:$0xff]
    %v2005 = vld [vmem:[#allocation10 + $0x1b8] sm:$0xff]
    %v2006 = vld [vmem:[#allocation10 + $0x1c0] sm:$0xff]
    %v2007 = vld [vmem:[#allocation10 + $0x1c8] sm:$0xff]
    %v2008 = vld [vmem:[#allocation10 + $0x1d0] sm:$0xff]
    %v2009 = vld [vmem:[#allocation10 + $0x1d8] sm:$0xff]
    %v2010 = vld [vmem:[#allocation10 + $0x1e0] sm:$0xff]
    %v2011 = vld [vmem:[#allocation10 + $0x1e8] sm:$0xff]
    %v2012 = vld [vmem:[#allocation10 + $0x1f0] sm:$0xff]
    %v2013 = vld [vmem:[#allocation10 + $0x1f8] sm:$0xff]
    %s2014 = scalar_lea.vmem [#allocation2], 7
    %v2015 = vld [vmem:[%s2014] ss:$8 sm:$0x3]
    %v2017 = vlaneseq
    %v2018 = vshrl.u32 %v2017, 7
    %v2019 = vsub.s32 0, %v2018
    %v2020 = vrot.slane %v2015, %v2019
    %v2021 = vlaneseq
    %v2022 = vshrl.u32 %v2021, 7
    %v2023 = vsub.s32 1, %v2022
    %v2024 = vrot.slane %v2015, %v2023
    %2027 = vmatprep.subr.mxu0 %v1981
    %2028 = vmatpush1.msra.mxu0 %v1980
    %2029 = vmatprep.subr.mxu0 %v1979
    %2030 = vmatpush1.msra.mxu0 %v1978
    %2031 = vmatprep.subr.mxu0 %v1977
    %2032 = vmatpush1.msra.mxu0 %v1976
    %2033 = vmatprep.subr.mxu0 %v1975
    %2034 = vmatpush1.msra.mxu0 %v1974
    %2035 = vmatprep.subr.mxu0 %v1973
    %2036 = vmatpush1.msra.mxu0 %v1972
    %2037 = vmatprep.subr.mxu0 %v1971
    %2038 = vmatpush1.msra.mxu0 %v1970
    %2039 = vmatprep.subr.mxu0 %v1969
    %2040 = vmatpush1.msra.mxu0 %v1968
    %2041 = vmatprep.subr.mxu0 %v1967
    %2042 = vmatpush1.msra.mxu0 %v1966
    %2043 = vmatprep.subr.mxu0 %v1965
    %2044 = vmatpush1.msra.mxu0 %v1964
    %2045 = vmatprep.subr.mxu0 %v1963
    %2046 = vmatpush1.msra.mxu0 %v1962
    %2047 = vmatprep.subr.mxu0 %v1961
    %2048 = vmatpush1.msra.mxu0 %v1960
    %2049 = vmatprep.subr.mxu0 %v1959
    %2050 = vmatpush1.msra.mxu0 %v1958
    %2051 = vmatprep.subr.mxu0 %v1957
    %2052 = vmatpush1.msra.mxu0 %v1956
    %2053 = vmatprep.subr.mxu0 %v1955
    %2054 = vmatpush1.msra.mxu0 %v1954
    %2055 = vmatprep.subr.mxu0 %v1953
    %2056 = vmatpush1.msra.mxu0 %v1952
    %2057 = vmatprep.subr.mxu0 %v1951
    %2058 = vmatpush1.msra.mxu0 %v1950
    %2059 = vmatprep.subr.mxu0 %v2013
    %2060 = vmatpush2.msra.mxu0 %v2012
    %2061 = vmatprep.subr.mxu0 %v2011
    %2062 = vmatpush2.msra.mxu0 %v2010
    %2063 = vmatprep.subr.mxu0 %v2009
    %2064 = vmatpush2.msra.mxu0 %v2008
    %2065 = vmatprep.subr.mxu0 %v2007
    %2066 = vmatpush2.msra.mxu0 %v2006
    %2067 = vmatprep.subr.mxu0 %v2005
    %2068 = vmatpush2.msra.mxu0 %v2004
    %2069 = vmatprep.subr.mxu0 %v2003
    %2070 = vmatpush2.msra.mxu0 %v2002
    %2071 = vmatprep.subr.mxu0 %v2001
    %2072 = vmatpush2.msra.mxu0 %v2000
    %2073 = vmatprep.subr.mxu0 %v1999
    %2074 = vmatpush2.msra.mxu0 %v1998
    %2075 = vmatprep.subr.mxu0 %v1997
    %2076 = vmatpush2.msra.mxu0 %v1996
    %2077 = vmatprep.subr.mxu0 %v1995
    %2078 = vmatpush2.msra.mxu0 %v1994
    %2079 = vmatprep.subr.mxu0 %v1993
    %2080 = vmatpush2.msra.mxu0 %v1992
    %2081 = vmatprep.subr.mxu0 %v1991
    %2082 = vmatpush2.msra.mxu0 %v1990
    %2083 = vmatprep.subr.mxu0 %v1989
    %2084 = vmatpush2.msra.mxu0 %v1988
    %2085 = vmatprep.subr.mxu0 %v1987
    %2086 = vmatpush2.msra.mxu0 %v1986
    %2087 = vmatprep.subr.mxu0 %v1985
    %2088 = vmatpush2.msra.mxu0 %v1984
    %2089 = vmatprep.subr.mxu0 %v1983
    %2090 = vmatpush2.msra.mxu0 %v1982
    %2091 = vmatprep.mubr.f32.mxu0 %v1949
    %2092 = vmatmul.mubr.f32.gmra.mxu0 %v1948
    %v2093 = vpop.f32.mrf.mxu0
    %v2094 = vadd.f32 %v2020, %v2093
    %v2095 = vpop.f32.mrf.mxu0
    %v2096 = vadd.f32 %v2024, %v2095
    %2097 = vdwg.mxu0
    %v2098 = vmul.f32 %v2094, 0.5
    %v2099 = vmul.f32 %v2096, 0.5
    %v2100 = vmul.f32 %v2094, 0.044715
    %v2101 = vmul.f32 %v2096, 0.044715
    %v2102 = vmul.f32 %v2100, %v2094
    %v2103 = vmul.f32 %v2101, %v2096
    %v2104 = vmul.f32 %v2102, %v2094
    %v2105 = vmul.f32 %v2103, %v2096
    %v2106 = vadd.f32 %v2094, %v2104
    %v2107 = vadd.f32 %v2096, %v2105
    %v2108 = vmul.f32 %v2106, 0.7978846
    %v2109 = vmul.f32 %v2107, 0.7978846
    %v2110 = vtanh.pop %v2108
    %v2111 = vtanh.pop %v2109
    %v2112 = vadd.f32 %v2110, 1.0
    %v2113 = vadd.f32 %v2111, 1.0
    %v2114 = vmul.f32 %v2098, %v2112
    %v2115 = vmul.f32 %v2099, %v2113
    %v2116 = vld [vmem:[#allocation12] sm:$0xff]
    %v2117 = vld [vmem:[#allocation12 + $0x8] sm:$0xff]
    %v2118 = vld [vmem:[#allocation12 + $0x10] sm:$0xff]
    %v2119 = vld [vmem:[#allocation12 + $0x18] sm:$0xff]
    %v2120 = vld [vmem:[#allocation12 + $0x20] sm:$0xff]
    %v2121 = vld [vmem:[#allocation12 + $0x28] sm:$0xff]
    %v2122 = vld [vmem:[#allocation12 + $0x30] sm:$0xff]
    %v2123 = vld [vmem:[#allocation12 + $0x38] sm:$0xff]
    %v2124 = vld [vmem:[#allocation12 + $0x40] sm:$0xff]
    %v2125 = vld [vmem:[#allocation12 + $0x48] sm:$0xff]
    %v2126 = vld [vmem:[#allocation12 + $0x50] sm:$0xff]
    %v2127 = vld [vmem:[#allocation12 + $0x58] sm:$0xff]
    %v2128 = vld [vmem:[#allocation12 + $0x60] sm:$0xff]
    %v2129 = vld [vmem:[#allocation12 + $0x68] sm:$0xff]
    %v2130 = vld [vmem:[#allocation12 + $0x70] sm:$0xff]
    %v2131 = vld [vmem:[#allocation12 + $0x78] sm:$0xff]
    %v2132 = vld [vmem:[#allocation12 + $0x80] sm:$0xff]
    %v2133 = vld [vmem:[#allocation12 + $0x88] sm:$0xff]
    %v2134 = vld [vmem:[#allocation12 + $0x90] sm:$0xff]
    %v2135 = vld [vmem:[#allocation12 + $0x98] sm:$0xff]
    %v2136 = vld [vmem:[#allocation12 + $0xa0] sm:$0xff]
    %v2137 = vld [vmem:[#allocation12 + $0xa8] sm:$0xff]
    %v2138 = vld [vmem:[#allocation12 + $0xb0] sm:$0xff]
    %v2139 = vld [vmem:[#allocation12 + $0xb8] sm:$0xff]
    %v2140 = vld [vmem:[#allocation12 + $0xc0] sm:$0xff]
    %v2141 = vld [vmem:[#allocation12 + $0xc8] sm:$0xff]
    %v2142 = vld [vmem:[#allocation12 + $0xd0] sm:$0xff]
    %v2143 = vld [vmem:[#allocation12 + $0xd8] sm:$0xff]
    %v2144 = vld [vmem:[#allocation12 + $0xe0] sm:$0xff]
    %v2145 = vld [vmem:[#allocation12 + $0xe8] sm:$0xff]
    %v2146 = vld [vmem:[#allocation12 + $0xf0] sm:$0xff]
    %v2147 = vld [vmem:[#allocation12 + $0xf8] sm:$0xff]
    %v2148 = vld [vmem:[#allocation2 + $0x10] ss:$0 sm:$0xff]
    %2149 = vmatprep.subr.mxu0 0.0
    %2150 = vmatpush1.msra.mxu0 %v2131
    %2151 = vmatprep.subr.mxu0 0.0
    %2152 = vmatpush1.msra.mxu0 %v2130
    %2153 = vmatprep.subr.mxu0 0.0
    %2154 = vmatpush1.msra.mxu0 %v2129
    %2155 = vmatprep.subr.mxu0 0.0
    %2156 = vmatpush1.msra.mxu0 %v2128
    %2157 = vmatprep.subr.mxu0 0.0
    %2158 = vmatpush1.msra.mxu0 %v2127
    %2159 = vmatprep.subr.mxu0 0.0
    %2160 = vmatpush1.msra.mxu0 %v2126
    %2161 = vmatprep.subr.mxu0 0.0
    %2162 = vmatpush1.msra.mxu0 %v2125
    %2163 = vmatprep.subr.mxu0 0.0
    %2164 = vmatpush1.msra.mxu0 %v2124
    %2165 = vmatprep.subr.mxu0 0.0
    %2166 = vmatpush1.msra.mxu0 %v2123
    %2167 = vmatprep.subr.mxu0 0.0
    %2168 = vmatpush1.msra.mxu0 %v2122
    %2169 = vmatprep.subr.mxu0 0.0
    %2170 = vmatpush1.msra.mxu0 %v2121
    %2171 = vmatprep.subr.mxu0 0.0
    %2172 = vmatpush1.msra.mxu0 %v2120
    %2173 = vmatprep.subr.mxu0 0.0
    %2174 = vmatpush1.msra.mxu0 %v2119
    %2175 = vmatprep.subr.mxu0 0.0
    %2176 = vmatpush1.msra.mxu0 %v2118
    %2177 = vmatprep.subr.mxu0 0.0
    %2178 = vmatpush1.msra.mxu0 %v2117
    %2179 = vmatprep.subr.mxu0 0.0
    %2180 = vmatpush1.msra.mxu0 %v2116
    %2181 = vmatprep.subr.mxu0 0.0
    %2182 = vmatpush2.msra.mxu0 %v2147
    %2183 = vmatprep.subr.mxu0 0.0
    %2184 = vmatpush2.msra.mxu0 %v2146
    %2185 = vmatprep.subr.mxu0 0.0
    %2186 = vmatpush2.msra.mxu0 %v2145
    %2187 = vmatprep.subr.mxu0 0.0
    %2188 = vmatpush2.msra.mxu0 %v2144
    %2189 = vmatprep.subr.mxu0 0.0
    %2190 = vmatpush2.msra.mxu0 %v2143
    %2191 = vmatprep.subr.mxu0 0.0
    %2192 = vmatpush2.msra.mxu0 %v2142
    %2193 = vmatprep.subr.mxu0 0.0
    %2194 = vmatpush2.msra.mxu0 %v2141
    %2195 = vmatprep.subr.mxu0 0.0
    %2196 = vmatpush2.msra.mxu0 %v2140
    %2197 = vmatprep.subr.mxu0 0.0
    %2198 = vmatpush2.msra.mxu0 %v2139
    %2199 = vmatprep.subr.mxu0 0.0
    %2200 = vmatpush2.msra.mxu0 %v2138
    %2201 = vmatprep.subr.mxu0 0.0
    %2202 = vmatpush2.msra.mxu0 %v2137
    %2203 = vmatprep.subr.mxu0 0.0
    %2204 = vmatpush2.msra.mxu0 %v2136
    %2205 = vmatprep.subr.mxu0 0.0
    %2206 = vmatpush2.msra.mxu0 %v2135
    %2207 = vmatprep.subr.mxu0 0.0
    %2208 = vmatpush2.msra.mxu0 %v2134
    %2209 = vmatprep.subr.mxu0 0.0
    %2210 = vmatpush2.msra.mxu0 %v2133
    %2211 = vmatprep.subr.mxu0 0.0
    %2212 = vmatpush2.msra.mxu0 %v2132
    %2213 = vmatprep.mubr.f32.mxu0 %v2115
    %2214 = vmatmul.mubr.f32.gmra.mxu0 %v2114
    %v2215 = vpop.f32.mrf.mxu0
    %v2216 = vadd.f32 %v2148, %v2215
    %v2217 = vpop.f32.mrf.mxu0
    %2218 = vdwg.mxu0
    %v2219 = vld [vmem:[#allocation2 + $0x13] ss:$0 sm:$0xff]
    %2221 = vset.pattern.permute.xlu0 0
    %2222 = vperm.xlu0 %2221, %v2219
    %v2223 = vpop.permute.xlu0 %2222
    %v2225 = vmul.f32 %v2223, %v1800
    %v2226 = vadd.f32 %v2216, %v2225
    %2227 = vadd.xlane.f32.xlu0 %v2226
    %v2228 = vpop.xlane.xlu0 %2227
    %v2229 = vmul.f32 %v2228, %v792
    %v2230 = vsub.f32 %v2226, %v2229
    %v2231 = vmul.f32 %v2230, %v2230
    %2232 = vadd.xlane.f32.xlu0 %v2231
    %v2233 = vpop.xlane.xlu0 %2232
    %v2234 = vmul.f32 %v2233, %v792
    %v2235 = vadd.f32 %v2234, 1e-05
    %v2236 = vrsqrt.pop %v2235
    %v2237 = vmul.f32 %v2230, %v2236
    %v2238 = vld [vmem:[#allocation2 + $0x16] ss:$0 sm:$0xff]
    %v2239 = vmul.f32 %v2237, %v2238
    %v2240 = vld [vmem:[#allocation2 + $0x15] ss:$0 sm:$0xff]
    %v2241 = vadd.f32 %v2239, %v2240
    %v2242 = vld [vmem:[#allocation16] sm:$0xff]
    %v2243 = vld [vmem:[#allocation16 + $0x8] sm:$0xff]
    %v2244 = vld [vmem:[#allocation16 + $0x10] sm:$0xff]
    %v2245 = vld [vmem:[#allocation16 + $0x18] sm:$0xff]
    %v2246 = vld [vmem:[#allocation16 + $0x20] sm:$0xff]
    %v2247 = vld [vmem:[#allocation16 + $0x28] sm:$0xff]
    %v2248 = vld [vmem:[#allocation16 + $0x30] sm:$0xff]
    %v2249 = vld [vmem:[#allocation16 + $0x38] sm:$0xff]
    %v2250 = vld [vmem:[#allocation16 + $0x40] sm:$0xff]
    %v2251 = vld [vmem:[#allocation16 + $0x48] sm:$0xff]
    %v2252 = vld [vmem:[#allocation16 + $0x50] sm:$0xff]
    %v2253 = vld [vmem:[#allocation16 + $0x58] sm:$0xff]
    %v2254 = vld [vmem:[#allocation16 + $0x60] sm:$0xff]
    %v2255 = vld [vmem:[#allocation16 + $0x68] sm:$0xff]
    %v2256 = vld [vmem:[#allocation16 + $0x70] sm:$0xff]
    %v2257 = vld [vmem:[#allocation16 + $0x78] sm:$0xff]
    %v2258 = vld [vmem:[#allocation16 + $0x80] sm:$0xff]
    %v2259 = vld [vmem:[#allocation16 + $0x88] sm:$0xff]
    %v2260 = vld [vmem:[#allocation16 + $0x90] sm:$0xff]
    %v2261 = vld [vmem:[#allocation16 + $0x98] sm:$0xff]
    %v2262 = vld [vmem:[#allocation16 + $0xa0] sm:$0xff]
    %v2263 = vld [vmem:[#allocation16 + $0xa8] sm:$0xff]
    %v2264 = vld [vmem:[#allocation16 + $0xb0] sm:$0xff]
    %v2265 = vld [vmem:[#allocation16 + $0xb8] sm:$0xff]
    %v2266 = vld [vmem:[#allocation16 + $0xc0] sm:$0xff]
    %v2267 = vld [vmem:[#allocation16 + $0xc8] sm:$0xff]
    %v2268 = vld [vmem:[#allocation16 + $0xd0] sm:$0xff]
    %v2269 = vld [vmem:[#allocation16 + $0xd8] sm:$0xff]
    %v2270 = vld [vmem:[#allocation16 + $0xe0] sm:$0xff]
    %v2271 = vld [vmem:[#allocation16 + $0xe8] sm:$0xff]
    %v2272 = vld [vmem:[#allocation16 + $0xf0] sm:$0xff]
    %v2273 = vld [vmem:[#allocation16 + $0xf8] sm:$0xff]
    %s2274 = scalar_lea.vmem [#allocation2], 32
    %v2275 = vld [vmem:[%s2274] ss:$8 sm:$0x3]
    %v2277 = vlaneseq
    %v2278 = vshrl.u32 %v2277, 7
    %v2279 = vsub.s32 0, %v2278
    %v2280 = vrot.slane %v2275, %v2279
    %v2281 = vlaneseq
    %v2282 = vshrl.u32 %v2281, 7
    %v2283 = vsub.s32 1, %v2282
    %v2284 = vrot.slane %v2275, %v2283
    %2287 = vmatprep.subr.mxu0 %v2273
    %2288 = vmatpush1.msra.mxu0 %v2272
    %2289 = vmatprep.subr.mxu0 %v2271
    %2290 = vmatpush1.msra.mxu0 %v2270
    %2291 = vmatprep.subr.mxu0 %v2269
    %2292 = vmatpush1.msra.mxu0 %v2268
    %2293 = vmatprep.subr.mxu0 %v2267
    %2294 = vmatpush1.msra.mxu0 %v2266
    %2295 = vmatprep.subr.mxu0 %v2265
    %2296 = vmatpush1.msra.mxu0 %v2264
    %2297 = vmatprep.subr.mxu0 %v2263
    %2298 = vmatpush1.msra.mxu0 %v2262
    %2299 = vmatprep.subr.mxu0 %v2261
    %2300 = vmatpush1.msra.mxu0 %v2260
    %2301 = vmatprep.subr.mxu0 %v2259
    %2302 = vmatpush1.msra.mxu0 %v2258
    %2303 = vmatprep.subr.mxu0 %v2257
    %2304 = vmatpush1.msra.mxu0 %v2256
    %2305 = vmatprep.subr.mxu0 %v2255
    %2306 = vmatpush1.msra.mxu0 %v2254
    %2307 = vmatprep.subr.mxu0 %v2253
    %2308 = vmatpush1.msra.mxu0 %v2252
    %2309 = vmatprep.subr.mxu0 %v2251
    %2310 = vmatpush1.msra.mxu0 %v2250
    %2311 = vmatprep.subr.mxu0 %v2249
    %2312 = vmatpush1.msra.mxu0 %v2248
    %2313 = vmatprep.subr.mxu0 %v2247
    %2314 = vmatpush1.msra.mxu0 %v2246
    %2315 = vmatprep.subr.mxu0 %v2245
    %2316 = vmatpush1.msra.mxu0 %v2244
    %2317 = vmatprep.subr.mxu0 %v2243
    %2318 = vmatpush1.msra.mxu0 %v2242
    %2319 = vmatprep.subr.mxu0 0.0
    %2320 = vmatpush2.msra.mxu0 0.0
    %2321 = vmatprep.subr.mxu0 0.0
    %2322 = vmatpush2.msra.mxu0 0.0
    %2323 = vmatprep.subr.mxu0 0.0
    %2324 = vmatpush2.msra.mxu0 0.0
    %2325 = vmatprep.subr.mxu0 0.0
    %2326 = vmatpush2.msra.mxu0 0.0
    %2327 = vmatprep.subr.mxu0 0.0
    %2328 = vmatpush2.msra.mxu0 0.0
    %2329 = vmatprep.subr.mxu0 0.0
    %2330 = vmatpush2.msra.mxu0 0.0
    %2331 = vmatprep.subr.mxu0 0.0
    %2332 = vmatpush2.msra.mxu0 0.0
    %2333 = vmatprep.subr.mxu0 0.0
    %2334 = vmatpush2.msra.mxu0 0.0
    %2335 = vmatprep.subr.mxu0 0.0
    %2336 = vmatpush2.msra.mxu0 0.0
    %2337 = vmatprep.subr.mxu0 0.0
    %2338 = vmatpush2.msra.mxu0 0.0
    %2339 = vmatprep.subr.mxu0 0.0
    %2340 = vmatpush2.msra.mxu0 0.0
    %2341 = vmatprep.subr.mxu0 0.0
    %2342 = vmatpush2.msra.mxu0 0.0
    %2343 = vmatprep.subr.mxu0 0.0
    %2344 = vmatpush2.msra.mxu0 0.0
    %2345 = vmatprep.subr.mxu0 0.0
    %2346 = vmatpush2.msra.mxu0 0.0
    %2347 = vmatprep.subr.mxu0 0.0
    %2348 = vmatpush2.msra.mxu0 0.0
    %2349 = vmatprep.subr.mxu0 0.0
    %2350 = vmatpush2.msra.mxu0 0.0
    %2351 = vmatprep.mubr.f32.mxu0 0.0
    %2352 = vmatmul.mubr.f32.gmra.mxu0 %v2241
    %v2353 = vpop.f32.mrf.mxu0
    %v2354 = vadd.f32 %v2280, %v2353
    %v2355 = vpop.f32.mrf.mxu0
    %v2356 = vadd.f32 %v2284, %v2355
    %2357 = vdwg.mxu0
    %v2358 = vld [vmem:[#allocation15] sm:$0xff]
    %v2359 = vld [vmem:[#allocation15 + $0x8] sm:$0xff]
    %v2360 = vld [vmem:[#allocation15 + $0x10] sm:$0xff]
    %v2361 = vld [vmem:[#allocation15 + $0x18] sm:$0xff]
    %v2362 = vld [vmem:[#allocation15 + $0x20] sm:$0xff]
    %v2363 = vld [vmem:[#allocation15 + $0x28] sm:$0xff]
    %v2364 = vld [vmem:[#allocation15 + $0x30] sm:$0xff]
    %v2365 = vld [vmem:[#allocation15 + $0x38] sm:$0xff]
    %v2366 = vld [vmem:[#allocation15 + $0x40] sm:$0xff]
    %v2367 = vld [vmem:[#allocation15 + $0x48] sm:$0xff]
    %v2368 = vld [vmem:[#allocation15 + $0x50] sm:$0xff]
    %v2369 = vld [vmem:[#allocation15 + $0x58] sm:$0xff]
    %v2370 = vld [vmem:[#allocation15 + $0x60] sm:$0xff]
    %v2371 = vld [vmem:[#allocation15 + $0x68] sm:$0xff]
    %v2372 = vld [vmem:[#allocation15 + $0x70] sm:$0xff]
    %v2373 = vld [vmem:[#allocation15 + $0x78] sm:$0xff]
    %v2374 = vld [vmem:[#allocation15 + $0x80] sm:$0xf]
    %v2375 = vld [vmem:[#allocation2 + $0x17] ss:$0 sm:$0xff]
    %v2377 = vsel %vm1608, %v2356, 0
    %v2380 = vsel %vm1612, %v2374, 0
    %2382 = vmatprep.subr.mxu0 0.0
    %2383 = vmatpush1.msra.mxu0 %v2373
    %2384 = vmatprep.subr.mxu0 0.0
    %2385 = vmatpush1.msra.mxu0 %v2372
    %2386 = vmatprep.subr.mxu0 0.0
    %2387 = vmatpush1.msra.mxu0 %v2371
    %2388 = vmatprep.subr.mxu0 0.0
    %2389 = vmatpush1.msra.mxu0 %v2370
    %2390 = vmatprep.subr.mxu0 0.0
    %2391 = vmatpush1.msra.mxu0 %v2369
    %2392 = vmatprep.subr.mxu0 0.0
    %2393 = vmatpush1.msra.mxu0 %v2368
    %2394 = vmatprep.subr.mxu0 0.0
    %2395 = vmatpush1.msra.mxu0 %v2367
    %2396 = vmatprep.subr.mxu0 0.0
    %2397 = vmatpush1.msra.mxu0 %v2366
    %2398 = vmatprep.subr.mxu0 0.0
    %2399 = vmatpush1.msra.mxu0 %v2365
    %2400 = vmatprep.subr.mxu0 0.0
    %2401 = vmatpush1.msra.mxu0 %v2364
    %2402 = vmatprep.subr.mxu0 0.0
    %2403 = vmatpush1.msra.mxu0 %v2363
    %2404 = vmatprep.subr.mxu0 0.0
    %2405 = vmatpush1.msra.mxu0 %v2362
    %2406 = vmatprep.subr.mxu0 0.0
    %2407 = vmatpush1.msra.mxu0 %v2361
    %2408 = vmatprep.subr.mxu0 0.0
    %2409 = vmatpush1.msra.mxu0 %v2360
    %2410 = vmatprep.subr.mxu0 0.0
    %2411 = vmatpush1.msra.mxu0 %v2359
    %2412 = vmatprep.subr.mxu0 0.0
    %2413 = vmatpush1.msra.mxu0 %v2358
    %2414 = vmatprep.subr.mxu0 0.0
    %2415 = vmatpush2.msra.mxu0 0.0
    %2416 = vmatprep.subr.mxu0 0.0
    %2417 = vmatpush2.msra.mxu0 0.0
    %2418 = vmatprep.subr.mxu0 0.0
    %2419 = vmatpush2.msra.mxu0 0.0
    %2420 = vmatprep.subr.mxu0 0.0
    %2421 = vmatpush2.msra.mxu0 0.0
    %2422 = vmatprep.subr.mxu0 0.0
    %2423 = vmatpush2.msra.mxu0 0.0
    %2424 = vmatprep.subr.mxu0 0.0
    %2425 = vmatpush2.msra.mxu0 0.0
    %2426 = vmatprep.subr.mxu0 0.0
    %2427 = vmatpush2.msra.mxu0 0.0
    %2428 = vmatprep.subr.mxu0 0.0
    %2429 = vmatpush2.msra.mxu0 0.0
    %2430 = vmatprep.subr.mxu0 0.0
    %2431 = vmatpush2.msra.mxu0 0.0
    %2432 = vmatprep.subr.mxu0 0.0
    %2433 = vmatpush2.msra.mxu0 0.0
    %2434 = vmatprep.subr.mxu0 0.0
    %2435 = vmatpush2.msra.mxu0 0.0
    %2436 = vmatprep.subr.mxu0 0.0
    %2437 = vmatpush2.msra.mxu0 0.0
    %2438 = vmatprep.subr.mxu0 0.0
    %2439 = vmatpush2.msra.mxu0 0.0
    %2440 = vmatprep.subr.mxu0 0.0
    %2441 = vmatpush2.msra.mxu0 0.0
    %2442 = vmatprep.subr.mxu0 0.0
    %2443 = vmatpush2.msra.mxu0 0.0
    %2444 = vmatprep.subr.mxu0 0.0
    %2445 = vmatpush2.msra.mxu0 %v2380
    %2446 = vmatprep.mubr.f32.mxu0 %v2377
    %2447 = vmatmul.mubr.f32.gmra.mxu0 %v2354
    %v2448 = vpop.f32.mrf.mxu0
    %v2449 = vadd.f32 %v2375, %v2448
    %v2450 = vpop.f32.mrf.mxu0
    %2451 = vdwg.mxu0
    %v2452 = vld [vmem:[#allocation13] sm:$0xff]
    %v2453 = vld [vmem:[#allocation13 + $0x8] sm:$0xff]
    %v2454 = vld [vmem:[#allocation13 + $0x10] sm:$0xff]
    %v2455 = vld [vmem:[#allocation13 + $0x18] sm:$0xff]
    %v2456 = vld [vmem:[#allocation13 + $0x20] sm:$0xff]
    %v2457 = vld [vmem:[#allocation13 + $0x28] sm:$0xff]
    %v2458 = vld [vmem:[#allocation13 + $0x30] sm:$0xff]
    %v2459 = vld [vmem:[#allocation13 + $0x38] sm:$0xff]
    %v2460 = vld [vmem:[#allocation13 + $0x40] sm:$0xff]
    %v2461 = vld [vmem:[#allocation13 + $0x48] sm:$0xff]
    %v2462 = vld [vmem:[#allocation13 + $0x50] sm:$0xff]
    %v2463 = vld [vmem:[#allocation13 + $0x58] sm:$0xff]
    %v2464 = vld [vmem:[#allocation13 + $0x60] sm:$0xff]
    %v2465 = vld [vmem:[#allocation13 + $0x68] sm:$0xff]
    %v2466 = vld [vmem:[#allocation13 + $0x70] sm:$0xff]
    %v2467 = vld [vmem:[#allocation13 + $0x78] sm:$0xff]
    %v2468 = vld [vmem:[#allocation2 + $0x14] ss:$0 sm:$0xff]
    %2469 = vmatprep.subr.mxu0 0.0
    %2470 = vmatpush1.msra.mxu0 %v2467
    %2471 = vmatprep.subr.mxu0 0.0
    %2472 = vmatpush1.msra.mxu0 %v2466
    %2473 = vmatprep.subr.mxu0 0.0
    %2474 = vmatpush1.msra.mxu0 %v2465
    %2475 = vmatprep.subr.mxu0 0.0
    %2476 = vmatpush1.msra.mxu0 %v2464
    %2477 = vmatprep.subr.mxu0 0.0
    %2478 = vmatpush1.msra.mxu0 %v2463
    %2479 = vmatprep.subr.mxu0 0.0
    %2480 = vmatpush1.msra.mxu0 %v2462
    %2481 = vmatprep.subr.mxu0 0.0
    %2482 = vmatpush1.msra.mxu0 %v2461
    %2483 = vmatprep.subr.mxu0 0.0
    %2484 = vmatpush1.msra.mxu0 %v2460
    %2485 = vmatprep.subr.mxu0 0.0
    %2486 = vmatpush1.msra.mxu0 %v2459
    %2487 = vmatprep.subr.mxu0 0.0
    %2488 = vmatpush1.msra.mxu0 %v2458
    %2489 = vmatprep.subr.mxu0 0.0
    %2490 = vmatpush1.msra.mxu0 %v2457
    %2491 = vmatprep.subr.mxu0 0.0
    %2492 = vmatpush1.msra.mxu0 %v2456
    %2493 = vmatprep.subr.mxu0 0.0
    %2494 = vmatpush1.msra.mxu0 %v2455
    %2495 = vmatprep.subr.mxu0 0.0
    %2496 = vmatpush1.msra.mxu0 %v2454
    %2497 = vmatprep.subr.mxu0 0.0
    %2498 = vmatpush1.msra.mxu0 %v2453
    %2499 = vmatprep.subr.mxu0 0.0
    %2500 = vmatpush1.msra.mxu0 %v2452
    %2501 = vmatprep.subr.mxu0 0.0
    %2502 = vmatpush2.msra.mxu0 0.0
    %2503 = vmatprep.subr.mxu0 0.0
    %2504 = vmatpush2.msra.mxu0 0.0
    %2505 = vmatprep.subr.mxu0 0.0
    %2506 = vmatpush2.msra.mxu0 0.0
    %2507 = vmatprep.subr.mxu0 0.0
    %2508 = vmatpush2.msra.mxu0 0.0
    %2509 = vmatprep.subr.mxu0 0.0
    %2510 = vmatpush2.msra.mxu0 0.0
    %2511 = vmatprep.subr.mxu0 0.0
    %2512 = vmatpush2.msra.mxu0 0.0
    %2513 = vmatprep.subr.mxu0 0.0
    %2514 = vmatpush2.msra.mxu0 0.0
    %2515 = vmatprep.subr.mxu0 0.0
    %2516 = vmatpush2.msra.mxu0 0.0
    %2517 = vmatprep.subr.mxu0 0.0
    %2518 = vmatpush2.msra.mxu0 0.0
    %2519 = vmatprep.subr.mxu0 0.0
    %2520 = vmatpush2.msra.mxu0 0.0
    %2521 = vmatprep.subr.mxu0 0.0
    %2522 = vmatpush2.msra.mxu0 0.0
    %2523 = vmatprep.subr.mxu0 0.0
    %2524 = vmatpush2.msra.mxu0 0.0
    %2525 = vmatprep.subr.mxu0 0.0
    %2526 = vmatpush2.msra.mxu0 0.0
    %2527 = vmatprep.subr.mxu0 0.0
    %2528 = vmatpush2.msra.mxu0 0.0
    %2529 = vmatprep.subr.mxu0 0.0
    %2530 = vmatpush2.msra.mxu0 0.0
    %2531 = vmatprep.subr.mxu0 0.0
    %2532 = vmatpush2.msra.mxu0 0.0
    %2533 = vmatprep.mubr.f32.mxu0 0.0
    %2534 = vmatmul.mubr.f32.gmra.mxu0 %v2449
    %v2535 = vpop.f32.mrf.mxu0
    %v2536 = vadd.f32 %v2468, %v2535
    %v2537 = vpop.f32.mrf.mxu0
    %2538 = vdwg.mxu0
    %v2539 = vsub.f32 0.0, %v2536
    %v2540 = vmul.f32 %v2539, 1.442695
    %v2541 = vpow.pop %v2540
    %v2542 = vadd.f32 %v2541, 1.0
    %v2543 = vrcp.pop %v2542
    %v2544 = vmul.f32 1.0, %v2543
    %2546 = vset.pattern.permute.xlu0 0
    %2547 = vperm.xlu0 %2546, %v2544
    %v2548 = vpop.permute.xlu0 %2547
    %v2550 = vmul.f32 %v2548, %v2449
    %v2551 = vsub.f32 1.0, %v2544
    %2553 = vset.pattern.permute.xlu0 0
    %2554 = vperm.xlu0 %2553, %v2551
    %v2555 = vpop.permute.xlu0 %2554
    %v2557 = vmul.f32 %v2555, %v2226
    %v2558 = vadd.f32 %v2550, %v2557
    %v2559 = vld [vmem:[#allocation2 + $0x21] ss:$0 sm:$0xff]
    %2561 = vset.pattern.permute.xlu0 0
    %2562 = vperm.xlu0 %2561, %v2559
    %v2563 = vpop.permute.xlu0 %2562
    %v2565 = vmul.f32 %v2563, %v2558
    %v2566 = vadd.f32 %v2226, %v2565
    %2567 = vadd.xlane.f32.xlu0 %v2566
    %v2568 = vpop.xlane.xlu0 %2567
    %v2569 = vmul.f32 %v2568, %v792
    %v2570 = vsub.f32 %v2566, %v2569
    %v2571 = vmul.f32 %v2570, %v2570
    %2572 = vadd.xlane.f32.xlu0 %v2571
    %v2573 = vpop.xlane.xlu0 %2572
    %v2574 = vmul.f32 %v2573, %v792
    %v2575 = vadd.f32 %v2574, 1e-05
    %v2576 = vrsqrt.pop %v2575
    %v2577 = vmul.f32 %v2570, %v2576
    %v2578 = vld [vmem:[#allocation2 + $0x26] ss:$0 sm:$0xff]
    %v2579 = vmul.f32 %v2577, %v2578
    %v2580 = vld [vmem:[#allocation2 + $0x25] ss:$0 sm:$0xff]
    %v2581 = vadd.f32 %v2579, %v2580
    %v2582 = vld [vmem:[#allocation18] sm:$0xff]
    %v2583 = vld [vmem:[#allocation18 + $0x8] sm:$0xff]
    %v2584 = vld [vmem:[#allocation18 + $0x10] sm:$0xff]
    %v2585 = vld [vmem:[#allocation18 + $0x18] sm:$0xff]
    %v2586 = vld [vmem:[#allocation18 + $0x20] sm:$0xff]
    %v2587 = vld [vmem:[#allocation18 + $0x28] sm:$0xff]
    %v2588 = vld [vmem:[#allocation18 + $0x30] sm:$0xff]
    %v2589 = vld [vmem:[#allocation18 + $0x38] sm:$0xff]
    %v2590 = vld [vmem:[#allocation18 + $0x40] sm:$0xff]
    %v2591 = vld [vmem:[#allocation18 + $0x48] sm:$0xff]
    %v2592 = vld [vmem:[#allocation18 + $0x50] sm:$0xff]
    %v2593 = vld [vmem:[#allocation18 + $0x58] sm:$0xff]
    %v2594 = vld [vmem:[#allocation18 + $0x60] sm:$0xff]
    %v2595 = vld [vmem:[#allocation18 + $0x68] sm:$0xff]
    %v2596 = vld [vmem:[#allocation18 + $0x70] sm:$0xff]
    %v2597 = vld [vmem:[#allocation18 + $0x78] sm:$0xff]
    %v2598 = vld [vmem:[#allocation18 + $0x80] sm:$0xff]
    %v2599 = vld [vmem:[#allocation18 + $0x88] sm:$0xff]
    %v2600 = vld [vmem:[#allocation18 + $0x90] sm:$0xff]
    %v2601 = vld [vmem:[#allocation18 + $0x98] sm:$0xff]
    %v2602 = vld [vmem:[#allocation18 + $0xa0] sm:$0xff]
    %v2603 = vld [vmem:[#allocation18 + $0xa8] sm:$0xff]
    %v2604 = vld [vmem:[#allocation18 + $0xb0] sm:$0xff]
    %v2605 = vld [vmem:[#allocation18 + $0xb8] sm:$0xff]
    %v2606 = vld [vmem:[#allocation18 + $0xc0] sm:$0xff]
    %v2607 = vld [vmem:[#allocation18 + $0xc8] sm:$0xff]
    %v2608 = vld [vmem:[#allocation18 + $0xd0] sm:$0xff]
    %v2609 = vld [vmem:[#allocation18 + $0xd8] sm:$0xff]
    %v2610 = vld [vmem:[#allocation18 + $0xe0] sm:$0xff]
    %v2611 = vld [vmem:[#allocation18 + $0xe8] sm:$0xff]
    %v2612 = vld [vmem:[#allocation18 + $0xf0] sm:$0xff]
    %v2613 = vld [vmem:[#allocation18 + $0xf8] sm:$0xff]
    %s2614 = scalar_lea.vmem [#allocation2], 34
    %v2615 = vld [vmem:[%s2614] ss:$8 sm:$0x3]
    %v2617 = vlaneseq
    %v2618 = vshrl.u32 %v2617, 7
    %v2619 = vsub.s32 0, %v2618
    %v2620 = vrot.slane %v2615, %v2619
    %v2621 = vlaneseq
    %v2622 = vshrl.u32 %v2621, 7
    %v2623 = vsub.s32 1, %v2622
    %v2624 = vrot.slane %v2615, %v2623
    %2627 = vmatprep.subr.mxu0 %v2613
    %2628 = vmatpush1.msra.mxu0 %v2612
    %2629 = vmatprep.subr.mxu0 %v2611
    %2630 = vmatpush1.msra.mxu0 %v2610
    %2631 = vmatprep.subr.mxu0 %v2609
    %2632 = vmatpush1.msra.mxu0 %v2608
    %2633 = vmatprep.subr.mxu0 %v2607
    %2634 = vmatpush1.msra.mxu0 %v2606
    %2635 = vmatprep.subr.mxu0 %v2605
    %2636 = vmatpush1.msra.mxu0 %v2604
    %2637 = vmatprep.subr.mxu0 %v2603
    %2638 = vmatpush1.msra.mxu0 %v2602
    %2639 = vmatprep.subr.mxu0 %v2601
    %2640 = vmatpush1.msra.mxu0 %v2600
    %2641 = vmatprep.subr.mxu0 %v2599
    %2642 = vmatpush1.msra.mxu0 %v2598
    %2643 = vmatprep.subr.mxu0 %v2597
    %2644 = vmatpush1.msra.mxu0 %v2596
    %2645 = vmatprep.subr.mxu0 %v2595
    %2646 = vmatpush1.msra.mxu0 %v2594
    %2647 = vmatprep.subr.mxu0 %v2593
    %2648 = vmatpush1.msra.mxu0 %v2592
    %2649 = vmatprep.subr.mxu0 %v2591
    %2650 = vmatpush1.msra.mxu0 %v2590
    %2651 = vmatprep.subr.mxu0 %v2589
    %2652 = vmatpush1.msra.mxu0 %v2588
    %2653 = vmatprep.subr.mxu0 %v2587
    %2654 = vmatpush1.msra.mxu0 %v2586
    %2655 = vmatprep.subr.mxu0 %v2585
    %2656 = vmatpush1.msra.mxu0 %v2584
    %2657 = vmatprep.subr.mxu0 %v2583
    %2658 = vmatpush1.msra.mxu0 %v2582
    %2659 = vmatprep.subr.mxu0 0.0
    %2660 = vmatpush2.msra.mxu0 0.0
    %2661 = vmatprep.subr.mxu0 0.0
    %2662 = vmatpush2.msra.mxu0 0.0
    %2663 = vmatprep.subr.mxu0 0.0
    %2664 = vmatpush2.msra.mxu0 0.0
    %2665 = vmatprep.subr.mxu0 0.0
    %2666 = vmatpush2.msra.mxu0 0.0
    %2667 = vmatprep.subr.mxu0 0.0
    %2668 = vmatpush2.msra.mxu0 0.0
    %2669 = vmatprep.subr.mxu0 0.0
    %2670 = vmatpush2.msra.mxu0 0.0
    %2671 = vmatprep.subr.mxu0 0.0
    %2672 = vmatpush2.msra.mxu0 0.0
    %2673 = vmatprep.subr.mxu0 0.0
    %2674 = vmatpush2.msra.mxu0 0.0
    %2675 = vmatprep.subr.mxu0 0.0
    %2676 = vmatpush2.msra.mxu0 0.0
    %2677 = vmatprep.subr.mxu0 0.0
    %2678 = vmatpush2.msra.mxu0 0.0
    %2679 = vmatprep.subr.mxu0 0.0
    %2680 = vmatpush2.msra.mxu0 0.0
    %2681 = vmatprep.subr.mxu0 0.0
    %2682 = vmatpush2.msra.mxu0 0.0
    %2683 = vmatprep.subr.mxu0 0.0
    %2684 = vmatpush2.msra.mxu0 0.0
    %2685 = vmatprep.subr.mxu0 0.0
    %2686 = vmatpush2.msra.mxu0 0.0
    %2687 = vmatprep.subr.mxu0 0.0
    %2688 = vmatpush2.msra.mxu0 0.0
    %2689 = vmatprep.subr.mxu0 0.0
    %2690 = vmatpush2.msra.mxu0 0.0
    %2691 = vmatprep.mubr.f32.mxu0 0.0
    %2692 = vmatmul.mubr.f32.gmra.mxu0 %v2581
    %v2693 = vpop.f32.mrf.mxu0
    %v2694 = vadd.f32 %v2620, %v2693
    %v2695 = vpop.f32.mrf.mxu0
    %v2696 = vadd.f32 %v2624, %v2695
    %2697 = vdwg.mxu0
    %v2698 = vmul.f32 %v2694, 0.5
    %v2699 = vmul.f32 %v2696, 0.5
    %v2700 = vmul.f32 %v2694, 0.044715
    %v2701 = vmul.f32 %v2696, 0.044715
    %v2702 = vmul.f32 %v2700, %v2694
    %v2703 = vmul.f32 %v2701, %v2696
    %v2704 = vmul.f32 %v2702, %v2694
    %v2705 = vmul.f32 %v2703, %v2696
    %v2706 = vadd.f32 %v2694, %v2704
    %v2707 = vadd.f32 %v2696, %v2705
    %v2708 = vmul.f32 %v2706, 0.7978846
    %v2709 = vmul.f32 %v2707, 0.7978846
    %v2710 = vtanh.pop %v2708
    %v2711 = vtanh.pop %v2709
    %v2712 = vadd.f32 %v2710, 1.0
    %v2713 = vadd.f32 %v2711, 1.0
    %v2714 = vmul.f32 %v2698, %v2712
    %v2715 = vmul.f32 %v2699, %v2713
    %v2716 = vld [vmem:[#allocation19] sm:$0xff]
    %v2717 = vld [vmem:[#allocation19 + $0x8] sm:$0xff]
    %v2718 = vld [vmem:[#allocation19 + $0x10] sm:$0xff]
    %v2719 = vld [vmem:[#allocation19 + $0x18] sm:$0xff]
    %v2720 = vld [vmem:[#allocation19 + $0x20] sm:$0xff]
    %v2721 = vld [vmem:[#allocation19 + $0x28] sm:$0xff]
    %v2722 = vld [vmem:[#allocation19 + $0x30] sm:$0xff]
    %v2723 = vld [vmem:[#allocation19 + $0x38] sm:$0xff]
    %v2724 = vld [vmem:[#allocation19 + $0x40] sm:$0xff]
    %v2725 = vld [vmem:[#allocation19 + $0x48] sm:$0xff]
    %v2726 = vld [vmem:[#allocation19 + $0x50] sm:$0xff]
    %v2727 = vld [vmem:[#allocation19 + $0x58] sm:$0xff]
    %v2728 = vld [vmem:[#allocation19 + $0x60] sm:$0xff]
    %v2729 = vld [vmem:[#allocation19 + $0x68] sm:$0xff]
    %v2730 = vld [vmem:[#allocation19 + $0x70] sm:$0xff]
    %v2731 = vld [vmem:[#allocation19 + $0x78] sm:$0xff]
    %v2732 = vld [vmem:[#allocation19 + $0x80] sm:$0xff]
    %v2733 = vld [vmem:[#allocation19 + $0x88] sm:$0xff]
    %v2734 = vld [vmem:[#allocation19 + $0x90] sm:$0xff]
    %v2735 = vld [vmem:[#allocation19 + $0x98] sm:$0xff]
    %v2736 = vld [vmem:[#allocation19 + $0xa0] sm:$0xff]
    %v2737 = vld [vmem:[#allocation19 + $0xa8] sm:$0xff]
    %v2738 = vld [vmem:[#allocation19 + $0xb0] sm:$0xff]
    %v2739 = vld [vmem:[#allocation19 + $0xb8] sm:$0xff]
    %v2740 = vld [vmem:[#allocation19 + $0xc0] sm:$0xff]
    %v2741 = vld [vmem:[#allocation19 + $0xc8] sm:$0xff]
    %v2742 = vld [vmem:[#allocation19 + $0xd0] sm:$0xff]
    %v2743 = vld [vmem:[#allocation19 + $0xd8] sm:$0xff]
    %v2744 = vld [vmem:[#allocation19 + $0xe0] sm:$0xff]
    %v2745 = vld [vmem:[#allocation19 + $0xe8] sm:$0xff]
    %v2746 = vld [vmem:[#allocation19 + $0xf0] sm:$0xff]
    %v2747 = vld [vmem:[#allocation19 + $0xf8] sm:$0xff]
    %v2748 = vld [vmem:[#allocation19 + $0x100] sm:$0xff]
    %v2749 = vld [vmem:[#allocation19 + $0x108] sm:$0xff]
    %v2750 = vld [vmem:[#allocation19 + $0x110] sm:$0xff]
    %v2751 = vld [vmem:[#allocation19 + $0x118] sm:$0xff]
    %v2752 = vld [vmem:[#allocation19 + $0x120] sm:$0xff]
    %v2753 = vld [vmem:[#allocation19 + $0x128] sm:$0xff]
    %v2754 = vld [vmem:[#allocation19 + $0x130] sm:$0xff]
    %v2755 = vld [vmem:[#allocation19 + $0x138] sm:$0xff]
    %v2756 = vld [vmem:[#allocation19 + $0x140] sm:$0xff]
    %v2757 = vld [vmem:[#allocation19 + $0x148] sm:$0xff]
    %v2758 = vld [vmem:[#allocation19 + $0x150] sm:$0xff]
    %v2759 = vld [vmem:[#allocation19 + $0x158] sm:$0xff]
    %v2760 = vld [vmem:[#allocation19 + $0x160] sm:$0xff]
    %v2761 = vld [vmem:[#allocation19 + $0x168] sm:$0xff]
    %v2762 = vld [vmem:[#allocation19 + $0x170] sm:$0xff]
    %v2763 = vld [vmem:[#allocation19 + $0x178] sm:$0xff]
    %v2764 = vld [vmem:[#allocation19 + $0x180] sm:$0xff]
    %v2765 = vld [vmem:[#allocation19 + $0x188] sm:$0xff]
    %v2766 = vld [vmem:[#allocation19 + $0x190] sm:$0xff]
    %v2767 = vld [vmem:[#allocation19 + $0x198] sm:$0xff]
    %v2768 = vld [vmem:[#allocation19 + $0x1a0] sm:$0xff]
    %v2769 = vld [vmem:[#allocation19 + $0x1a8] sm:$0xff]
    %v2770 = vld [vmem:[#allocation19 + $0x1b0] sm:$0xff]
    %v2771 = vld [vmem:[#allocation19 + $0x1b8] sm:$0xff]
    %v2772 = vld [vmem:[#allocation19 + $0x1c0] sm:$0xff]
    %v2773 = vld [vmem:[#allocation19 + $0x1c8] sm:$0xff]
    %v2774 = vld [vmem:[#allocation19 + $0x1d0] sm:$0xff]
    %v2775 = vld [vmem:[#allocation19 + $0x1d8] sm:$0xff]
    %v2776 = vld [vmem:[#allocation19 + $0x1e0] sm:$0xff]
    %v2777 = vld [vmem:[#allocation19 + $0x1e8] sm:$0xff]
    %v2778 = vld [vmem:[#allocation19 + $0x1f0] sm:$0xff]
    %v2779 = vld [vmem:[#allocation19 + $0x1f8] sm:$0xff]
    %s2780 = scalar_lea.vmem [#allocation2], 35
    %v2781 = vld [vmem:[%s2780] ss:$8 sm:$0x3]
    %v2783 = vlaneseq
    %v2784 = vshrl.u32 %v2783, 7
    %v2785 = vsub.s32 0, %v2784
    %v2786 = vrot.slane %v2781, %v2785
    %v2787 = vlaneseq
    %v2788 = vshrl.u32 %v2787, 7
    %v2789 = vsub.s32 1, %v2788
    %v2790 = vrot.slane %v2781, %v2789
    %2793 = vmatprep.subr.mxu0 %v2747
    %2794 = vmatpush1.msra.mxu0 %v2746
    %2795 = vmatprep.subr.mxu0 %v2745
    %2796 = vmatpush1.msra.mxu0 %v2744
    %2797 = vmatprep.subr.mxu0 %v2743
    %2798 = vmatpush1.msra.mxu0 %v2742
    %2799 = vmatprep.subr.mxu0 %v2741
    %2800 = vmatpush1.msra.mxu0 %v2740
    %2801 = vmatprep.subr.mxu0 %v2739
    %2802 = vmatpush1.msra.mxu0 %v2738
    %2803 = vmatprep.subr.mxu0 %v2737
    %2804 = vmatpush1.msra.mxu0 %v2736
    %2805 = vmatprep.subr.mxu0 %v2735
    %2806 = vmatpush1.msra.mxu0 %v2734
    %2807 = vmatprep.subr.mxu0 %v2733
    %2808 = vmatpush1.msra.mxu0 %v2732
    %2809 = vmatprep.subr.mxu0 %v2731
    %2810 = vmatpush1.msra.mxu0 %v2730
    %2811 = vmatprep.subr.mxu0 %v2729
    %2812 = vmatpush1.msra.mxu0 %v2728
    %2813 = vmatprep.subr.mxu0 %v2727
    %2814 = vmatpush1.msra.mxu0 %v2726
    %2815 = vmatprep.subr.mxu0 %v2725
    %2816 = vmatpush1.msra.mxu0 %v2724
    %2817 = vmatprep.subr.mxu0 %v2723
    %2818 = vmatpush1.msra.mxu0 %v2722
    %2819 = vmatprep.subr.mxu0 %v2721
    %2820 = vmatpush1.msra.mxu0 %v2720
    %2821 = vmatprep.subr.mxu0 %v2719
    %2822 = vmatpush1.msra.mxu0 %v2718
    %2823 = vmatprep.subr.mxu0 %v2717
    %2824 = vmatpush1.msra.mxu0 %v2716
    %2825 = vmatprep.subr.mxu0 %v2779
    %2826 = vmatpush2.msra.mxu0 %v2778
    %2827 = vmatprep.subr.mxu0 %v2777
    %2828 = vmatpush2.msra.mxu0 %v2776
    %2829 = vmatprep.subr.mxu0 %v2775
    %2830 = vmatpush2.msra.mxu0 %v2774
    %2831 = vmatprep.subr.mxu0 %v2773
    %2832 = vmatpush2.msra.mxu0 %v2772
    %2833 = vmatprep.subr.mxu0 %v2771
    %2834 = vmatpush2.msra.mxu0 %v2770
    %2835 = vmatprep.subr.mxu0 %v2769
    %2836 = vmatpush2.msra.mxu0 %v2768
    %2837 = vmatprep.subr.mxu0 %v2767
    %2838 = vmatpush2.msra.mxu0 %v2766
    %2839 = vmatprep.subr.mxu0 %v2765
    %2840 = vmatpush2.msra.mxu0 %v2764
    %2841 = vmatprep.subr.mxu0 %v2763
    %2842 = vmatpush2.msra.mxu0 %v2762
    %2843 = vmatprep.subr.mxu0 %v2761
    %2844 = vmatpush2.msra.mxu0 %v2760
    %2845 = vmatprep.subr.mxu0 %v2759
    %2846 = vmatpush2.msra.mxu0 %v2758
    %2847 = vmatprep.subr.mxu0 %v2757
    %2848 = vmatpush2.msra.mxu0 %v2756
    %2849 = vmatprep.subr.mxu0 %v2755
    %2850 = vmatpush2.msra.mxu0 %v2754
    %2851 = vmatprep.subr.mxu0 %v2753
    %2852 = vmatpush2.msra.mxu0 %v2752
    %2853 = vmatprep.subr.mxu0 %v2751
    %2854 = vmatpush2.msra.mxu0 %v2750
    %2855 = vmatprep.subr.mxu0 %v2749
    %2856 = vmatpush2.msra.mxu0 %v2748
    %2857 = vmatprep.mubr.f32.mxu0 %v2715
    %2858 = vmatmul.mubr.f32.gmra.mxu0 %v2714
    %v2859 = vpop.f32.mrf.mxu0
    %v2860 = vadd.f32 %v2786, %v2859
    %v2861 = vpop.f32.mrf.mxu0
    %v2862 = vadd.f32 %v2790, %v2861
    %2863 = vdwg.mxu0
    %v2864 = vmul.f32 %v2860, 0.5
    %v2865 = vmul.f32 %v2862, 0.5
    %v2866 = vmul.f32 %v2860, 0.044715
    %v2867 = vmul.f32 %v2862, 0.044715
    %v2868 = vmul.f32 %v2866, %v2860
    %v2869 = vmul.f32 %v2867, %v2862
    %v2870 = vmul.f32 %v2868, %v2860
    %v2871 = vmul.f32 %v2869, %v2862
    %v2872 = vadd.f32 %v2860, %v2870
    %v2873 = vadd.f32 %v2862, %v2871
    %v2874 = vmul.f32 %v2872, 0.7978846
    %v2875 = vmul.f32 %v2873, 0.7978846
    %v2876 = vtanh.pop %v2874
    %v2877 = vtanh.pop %v2875
    %v2878 = vadd.f32 %v2876, 1.0
    %v2879 = vadd.f32 %v2877, 1.0
    %v2880 = vmul.f32 %v2864, %v2878
    %v2881 = vmul.f32 %v2865, %v2879
    %v2882 = vld [vmem:[#allocation21] sm:$0xff]
    %v2883 = vld [vmem:[#allocation21 + $0x8] sm:$0xff]
    %v2884 = vld [vmem:[#allocation21 + $0x10] sm:$0xff]
    %v2885 = vld [vmem:[#allocation21 + $0x18] sm:$0xff]
    %v2886 = vld [vmem:[#allocation21 + $0x20] sm:$0xff]
    %v2887 = vld [vmem:[#allocation21 + $0x28] sm:$0xff]
    %v2888 = vld [vmem:[#allocation21 + $0x30] sm:$0xff]
    %v2889 = vld [vmem:[#allocation21 + $0x38] sm:$0xff]
    %v2890 = vld [vmem:[#allocation21 + $0x40] sm:$0xff]
    %v2891 = vld [vmem:[#allocation21 + $0x48] sm:$0xff]
    %v2892 = vld [vmem:[#allocation21 + $0x50] sm:$0xff]
    %v2893 = vld [vmem:[#allocation21 + $0x58] sm:$0xff]
    %v2894 = vld [vmem:[#allocation21 + $0x60] sm:$0xff]
    %v2895 = vld [vmem:[#allocation21 + $0x68] sm:$0xff]
    %v2896 = vld [vmem:[#allocation21 + $0x70] sm:$0xff]
    %v2897 = vld [vmem:[#allocation21 + $0x78] sm:$0xff]
    %v2898 = vld [vmem:[#allocation21 + $0x80] sm:$0xff]
    %v2899 = vld [vmem:[#allocation21 + $0x88] sm:$0xff]
    %v2900 = vld [vmem:[#allocation21 + $0x90] sm:$0xff]
    %v2901 = vld [vmem:[#allocation21 + $0x98] sm:$0xff]
    %v2902 = vld [vmem:[#allocation21 + $0xa0] sm:$0xff]
    %v2903 = vld [vmem:[#allocation21 + $0xa8] sm:$0xff]
    %v2904 = vld [vmem:[#allocation21 + $0xb0] sm:$0xff]
    %v2905 = vld [vmem:[#allocation21 + $0xb8] sm:$0xff]
    %v2906 = vld [vmem:[#allocation21 + $0xc0] sm:$0xff]
    %v2907 = vld [vmem:[#allocation21 + $0xc8] sm:$0xff]
    %v2908 = vld [vmem:[#allocation21 + $0xd0] sm:$0xff]
    %v2909 = vld [vmem:[#allocation21 + $0xd8] sm:$0xff]
    %v2910 = vld [vmem:[#allocation21 + $0xe0] sm:$0xff]
    %v2911 = vld [vmem:[#allocation21 + $0xe8] sm:$0xff]
    %v2912 = vld [vmem:[#allocation21 + $0xf0] sm:$0xff]
    %v2913 = vld [vmem:[#allocation21 + $0xf8] sm:$0xff]
    %v2914 = vld [vmem:[#allocation2 + $0x24] ss:$0 sm:$0xff]
    %2915 = vmatprep.subr.mxu0 0.0
    %2916 = vmatpush1.msra.mxu0 %v2897
    %2917 = vmatprep.subr.mxu0 0.0
    %2918 = vmatpush1.msra.mxu0 %v2896
    %2919 = vmatprep.subr.mxu0 0.0
    %2920 = vmatpush1.msra.mxu0 %v2895
    %2921 = vmatprep.subr.mxu0 0.0
    %2922 = vmatpush1.msra.mxu0 %v2894
    %2923 = vmatprep.subr.mxu0 0.0
    %2924 = vmatpush1.msra.mxu0 %v2893
    %2925 = vmatprep.subr.mxu0 0.0
    %2926 = vmatpush1.msra.mxu0 %v2892
    %2927 = vmatprep.subr.mxu0 0.0
    %2928 = vmatpush1.msra.mxu0 %v2891
    %2929 = vmatprep.subr.mxu0 0.0
    %2930 = vmatpush1.msra.mxu0 %v2890
    %2931 = vmatprep.subr.mxu0 0.0
    %2932 = vmatpush1.msra.mxu0 %v2889
    %2933 = vmatprep.subr.mxu0 0.0
    %2934 = vmatpush1.msra.mxu0 %v2888
    %2935 = vmatprep.subr.mxu0 0.0
    %2936 = vmatpush1.msra.mxu0 %v2887
    %2937 = vmatprep.subr.mxu0 0.0
    %2938 = vmatpush1.msra.mxu0 %v2886
    %2939 = vmatprep.subr.mxu0 0.0
    %2940 = vmatpush1.msra.mxu0 %v2885
    %2941 = vmatprep.subr.mxu0 0.0
    %2942 = vmatpush1.msra.mxu0 %v2884
    %2943 = vmatprep.subr.mxu0 0.0
    %2944 = vmatpush1.msra.mxu0 %v2883
    %2945 = vmatprep.subr.mxu0 0.0
    %2946 = vmatpush1.msra.mxu0 %v2882
    %2947 = vmatprep.subr.mxu0 0.0
    %2948 = vmatpush2.msra.mxu0 %v2913
    %2949 = vmatprep.subr.mxu0 0.0
    %2950 = vmatpush2.msra.mxu0 %v2912
    %2951 = vmatprep.subr.mxu0 0.0
    %2952 = vmatpush2.msra.mxu0 %v2911
    %2953 = vmatprep.subr.mxu0 0.0
    %2954 = vmatpush2.msra.mxu0 %v2910
    %2955 = vmatprep.subr.mxu0 0.0
    %2956 = vmatpush2.msra.mxu0 %v2909
    %2957 = vmatprep.subr.mxu0 0.0
    %2958 = vmatpush2.msra.mxu0 %v2908
    %2959 = vmatprep.subr.mxu0 0.0
    %2960 = vmatpush2.msra.mxu0 %v2907
    %2961 = vmatprep.subr.mxu0 0.0
    %2962 = vmatpush2.msra.mxu0 %v2906
    %2963 = vmatprep.subr.mxu0 0.0
    %2964 = vmatpush2.msra.mxu0 %v2905
    %2965 = vmatprep.subr.mxu0 0.0
    %2966 = vmatpush2.msra.mxu0 %v2904
    %2967 = vmatprep.subr.mxu0 0.0
    %2968 = vmatpush2.msra.mxu0 %v2903
    %2969 = vmatprep.subr.mxu0 0.0
    %2970 = vmatpush2.msra.mxu0 %v2902
    %2971 = vmatprep.subr.mxu0 0.0
    %2972 = vmatpush2.msra.mxu0 %v2901
    %2973 = vmatprep.subr.mxu0 0.0
    %2974 = vmatpush2.msra.mxu0 %v2900
    %2975 = vmatprep.subr.mxu0 0.0
    %2976 = vmatpush2.msra.mxu0 %v2899
    %2977 = vmatprep.subr.mxu0 0.0
    %2978 = vmatpush2.msra.mxu0 %v2898
    %2979 = vmatprep.mubr.f32.mxu0 %v2881
    %2980 = vmatmul.mubr.f32.gmra.mxu0 %v2880
    %v2981 = vpop.f32.mrf.mxu0
    %v2982 = vadd.f32 %v2914, %v2981
    %v2983 = vpop.f32.mrf.mxu0
    %2984 = vdwg.mxu0
    %v2985 = vld [vmem:[#allocation2 + $0x27] ss:$0 sm:$0xff]
    %2987 = vset.pattern.permute.xlu0 0
    %2988 = vperm.xlu0 %2987, %v2985
    %v2989 = vpop.permute.xlu0 %2988
    %v2991 = vmul.f32 %v2989, %v2566
    %v2992 = vadd.f32 %v2982, %v2991
    %2993 = vadd.xlane.f32.xlu0 %v2992
    %v2994 = vpop.xlane.xlu0 %2993
    %v2995 = vmul.f32 %v2994, %v792
    %v2996 = vsub.f32 %v2992, %v2995
    %v2997 = vmul.f32 %v2996, %v2996
    %2998 = vadd.xlane.f32.xlu0 %v2997
    %v2999 = vpop.xlane.xlu0 %2998
    %v3000 = vmul.f32 %v2999, %v792
    %v3001 = vadd.f32 %v3000, 1e-05
    %v3002 = vrsqrt.pop %v3001
    %v3003 = vmul.f32 %v2996, %v3002
    %v3004 = vld [vmem:[#allocation2 + $0x32] ss:$0 sm:$0xff]
    %v3005 = vmul.f32 %v3003, %v3004
    %v3006 = vld [vmem:[#allocation2 + $0x31] ss:$0 sm:$0xff]
    %v3007 = vadd.f32 %v3005, %v3006
    %v3008 = vld [vmem:[#allocation25] sm:$0xff]
    %v3009 = vld [vmem:[#allocation25 + $0x8] sm:$0xff]
    %v3010 = vld [vmem:[#allocation25 + $0x10] sm:$0xff]
    %v3011 = vld [vmem:[#allocation25 + $0x18] sm:$0xff]
    %v3012 = vld [vmem:[#allocation25 + $0x20] sm:$0xff]
    %v3013 = vld [vmem:[#allocation25 + $0x28] sm:$0xff]
    %v3014 = vld [vmem:[#allocation25 + $0x30] sm:$0xff]
    %v3015 = vld [vmem:[#allocation25 + $0x38] sm:$0xff]
    %v3016 = vld [vmem:[#allocation25 + $0x40] sm:$0xff]
    %v3017 = vld [vmem:[#allocation25 + $0x48] sm:$0xff]
    %v3018 = vld [vmem:[#allocation25 + $0x50] sm:$0xff]
    %v3019 = vld [vmem:[#allocation25 + $0x58] sm:$0xff]
    %v3020 = vld [vmem:[#allocation25 + $0x60] sm:$0xff]
    %v3021 = vld [vmem:[#allocation25 + $0x68] sm:$0xff]
    %v3022 = vld [vmem:[#allocation25 + $0x70] sm:$0xff]
    %v3023 = vld [vmem:[#allocation25 + $0x78] sm:$0xff]
    %v3024 = vld [vmem:[#allocation25 + $0x80] sm:$0xff]
    %v3025 = vld [vmem:[#allocation25 + $0x88] sm:$0xff]
    %v3026 = vld [vmem:[#allocation25 + $0x90] sm:$0xff]
    %v3027 = vld [vmem:[#allocation25 + $0x98] sm:$0xff]
    %v3028 = vld [vmem:[#allocation25 + $0xa0] sm:$0xff]
    %v3029 = vld [vmem:[#allocation25 + $0xa8] sm:$0xff]
    %v3030 = vld [vmem:[#allocation25 + $0xb0] sm:$0xff]
    %v3031 = vld [vmem:[#allocation25 + $0xb8] sm:$0xff]
    %v3032 = vld [vmem:[#allocation25 + $0xc0] sm:$0xff]
    %v3033 = vld [vmem:[#allocation25 + $0xc8] sm:$0xff]
    %v3034 = vld [vmem:[#allocation25 + $0xd0] sm:$0xff]
    %v3035 = vld [vmem:[#allocation25 + $0xd8] sm:$0xff]
    %v3036 = vld [vmem:[#allocation25 + $0xe0] sm:$0xff]
    %v3037 = vld [vmem:[#allocation25 + $0xe8] sm:$0xff]
    %v3038 = vld [vmem:[#allocation25 + $0xf0] sm:$0xff]
    %v3039 = vld [vmem:[#allocation25 + $0xf8] sm:$0xff]
    %s3040 = scalar_lea.vmem [#allocation2], 52
    %v3041 = vld [vmem:[%s3040] ss:$8 sm:$0x3]
    %v3043 = vlaneseq
    %v3044 = vshrl.u32 %v3043, 7
    %v3045 = vsub.s32 0, %v3044
    %v3046 = vrot.slane %v3041, %v3045
    %v3047 = vlaneseq
    %v3048 = vshrl.u32 %v3047, 7
    %v3049 = vsub.s32 1, %v3048
    %v3050 = vrot.slane %v3041, %v3049
    %3053 = vmatprep.subr.mxu0 %v3039
    %3054 = vmatpush1.msra.mxu0 %v3038
    %3055 = vmatprep.subr.mxu0 %v3037
    %3056 = vmatpush1.msra.mxu0 %v3036
    %3057 = vmatprep.subr.mxu0 %v3035
    %3058 = vmatpush1.msra.mxu0 %v3034
    %3059 = vmatprep.subr.mxu0 %v3033
    %3060 = vmatpush1.msra.mxu0 %v3032
    %3061 = vmatprep.subr.mxu0 %v3031
    %3062 = vmatpush1.msra.mxu0 %v3030
    %3063 = vmatprep.subr.mxu0 %v3029
    %3064 = vmatpush1.msra.mxu0 %v3028
    %3065 = vmatprep.subr.mxu0 %v3027
    %3066 = vmatpush1.msra.mxu0 %v3026
    %3067 = vmatprep.subr.mxu0 %v3025
    %3068 = vmatpush1.msra.mxu0 %v3024
    %3069 = vmatprep.subr.mxu0 %v3023
    %3070 = vmatpush1.msra.mxu0 %v3022
    %3071 = vmatprep.subr.mxu0 %v3021
    %3072 = vmatpush1.msra.mxu0 %v3020
    %3073 = vmatprep.subr.mxu0 %v3019
    %3074 = vmatpush1.msra.mxu0 %v3018
    %3075 = vmatprep.subr.mxu0 %v3017
    %3076 = vmatpush1.msra.mxu0 %v3016
    %3077 = vmatprep.subr.mxu0 %v3015
    %3078 = vmatpush1.msra.mxu0 %v3014
    %3079 = vmatprep.subr.mxu0 %v3013
    %3080 = vmatpush1.msra.mxu0 %v3012
    %3081 = vmatprep.subr.mxu0 %v3011
    %3082 = vmatpush1.msra.mxu0 %v3010
    %3083 = vmatprep.subr.mxu0 %v3009
    %3084 = vmatpush1.msra.mxu0 %v3008
    %3085 = vmatprep.subr.mxu0 0.0
    %3086 = vmatpush2.msra.mxu0 0.0
    %3087 = vmatprep.subr.mxu0 0.0
    %3088 = vmatpush2.msra.mxu0 0.0
    %3089 = vmatprep.subr.mxu0 0.0
    %3090 = vmatpush2.msra.mxu0 0.0
    %3091 = vmatprep.subr.mxu0 0.0
    %3092 = vmatpush2.msra.mxu0 0.0
    %3093 = vmatprep.subr.mxu0 0.0
    %3094 = vmatpush2.msra.mxu0 0.0
    %3095 = vmatprep.subr.mxu0 0.0
    %3096 = vmatpush2.msra.mxu0 0.0
    %3097 = vmatprep.subr.mxu0 0.0
    %3098 = vmatpush2.msra.mxu0 0.0
    %3099 = vmatprep.subr.mxu0 0.0
    %3100 = vmatpush2.msra.mxu0 0.0
    %3101 = vmatprep.subr.mxu0 0.0
    %3102 = vmatpush2.msra.mxu0 0.0
    %3103 = vmatprep.subr.mxu0 0.0
    %3104 = vmatpush2.msra.mxu0 0.0
    %3105 = vmatprep.subr.mxu0 0.0
    %3106 = vmatpush2.msra.mxu0 0.0
    %3107 = vmatprep.subr.mxu0 0.0
    %3108 = vmatpush2.msra.mxu0 0.0
    %3109 = vmatprep.subr.mxu0 0.0
    %3110 = vmatpush2.msra.mxu0 0.0
    %3111 = vmatprep.subr.mxu0 0.0
    %3112 = vmatpush2.msra.mxu0 0.0
    %3113 = vmatprep.subr.mxu0 0.0
    %3114 = vmatpush2.msra.mxu0 0.0
    %3115 = vmatprep.subr.mxu0 0.0
    %3116 = vmatpush2.msra.mxu0 0.0
    %3117 = vmatprep.mubr.f32.mxu0 0.0
    %3118 = vmatmul.mubr.f32.gmra.mxu0 %v3007
    %v3119 = vpop.f32.mrf.mxu0
    %v3120 = vadd.f32 %v3046, %v3119
    %v3121 = vpop.f32.mrf.mxu0
    %v3122 = vadd.f32 %v3050, %v3121
    %3123 = vdwg.mxu0
    %v3124 = vld [vmem:[#allocation24] sm:$0xff]
    %v3125 = vld [vmem:[#allocation24 + $0x8] sm:$0xff]
    %v3126 = vld [vmem:[#allocation24 + $0x10] sm:$0xff]
    %v3127 = vld [vmem:[#allocation24 + $0x18] sm:$0xff]
    %v3128 = vld [vmem:[#allocation24 + $0x20] sm:$0xff]
    %v3129 = vld [vmem:[#allocation24 + $0x28] sm:$0xff]
    %v3130 = vld [vmem:[#allocation24 + $0x30] sm:$0xff]
    %v3131 = vld [vmem:[#allocation24 + $0x38] sm:$0xff]
    %v3132 = vld [vmem:[#allocation24 + $0x40] sm:$0xff]
    %v3133 = vld [vmem:[#allocation24 + $0x48] sm:$0xff]
    %v3134 = vld [vmem:[#allocation24 + $0x50] sm:$0xff]
    %v3135 = vld [vmem:[#allocation24 + $0x58] sm:$0xff]
    %v3136 = vld [vmem:[#allocation24 + $0x60] sm:$0xff]
    %v3137 = vld [vmem:[#allocation24 + $0x68] sm:$0xff]
    %v3138 = vld [vmem:[#allocation24 + $0x70] sm:$0xff]
    %v3139 = vld [vmem:[#allocation24 + $0x78] sm:$0xff]
    %v3140 = vld [vmem:[#allocation24 + $0x80] sm:$0xf]
    %v3141 = vld [vmem:[#allocation2 + $0x33] ss:$0 sm:$0xff]
    %v3143 = vsel %vm1608, %v3122, 0
    %v3146 = vsel %vm1612, %v3140, 0
    %3148 = vmatprep.subr.mxu0 0.0
    %3149 = vmatpush1.msra.mxu0 %v3139
    %3150 = vmatprep.subr.mxu0 0.0
    %3151 = vmatpush1.msra.mxu0 %v3138
    %3152 = vmatprep.subr.mxu0 0.0
    %3153 = vmatpush1.msra.mxu0 %v3137
    %3154 = vmatprep.subr.mxu0 0.0
    %3155 = vmatpush1.msra.mxu0 %v3136
    %3156 = vmatprep.subr.mxu0 0.0
    %3157 = vmatpush1.msra.mxu0 %v3135
    %3158 = vmatprep.subr.mxu0 0.0
    %3159 = vmatpush1.msra.mxu0 %v3134
    %3160 = vmatprep.subr.mxu0 0.0
    %3161 = vmatpush1.msra.mxu0 %v3133
    %3162 = vmatprep.subr.mxu0 0.0
    %3163 = vmatpush1.msra.mxu0 %v3132
    %3164 = vmatprep.subr.mxu0 0.0
    %3165 = vmatpush1.msra.mxu0 %v3131
    %3166 = vmatprep.subr.mxu0 0.0
    %3167 = vmatpush1.msra.mxu0 %v3130
    %3168 = vmatprep.subr.mxu0 0.0
    %3169 = vmatpush1.msra.mxu0 %v3129
    %3170 = vmatprep.subr.mxu0 0.0
    %3171 = vmatpush1.msra.mxu0 %v3128
    %3172 = vmatprep.subr.mxu0 0.0
    %3173 = vmatpush1.msra.mxu0 %v3127
    %3174 = vmatprep.subr.mxu0 0.0
    %3175 = vmatpush1.msra.mxu0 %v3126
    %3176 = vmatprep.subr.mxu0 0.0
    %3177 = vmatpush1.msra.mxu0 %v3125
    %3178 = vmatprep.subr.mxu0 0.0
    %3179 = vmatpush1.msra.mxu0 %v3124
    %3180 = vmatprep.subr.mxu0 0.0
    %3181 = vmatpush2.msra.mxu0 0.0
    %3182 = vmatprep.subr.mxu0 0.0
    %3183 = vmatpush2.msra.mxu0 0.0
    %3184 = vmatprep.subr.mxu0 0.0
    %3185 = vmatpush2.msra.mxu0 0.0
    %3186 = vmatprep.subr.mxu0 0.0
    %3187 = vmatpush2.msra.mxu0 0.0
    %3188 = vmatprep.subr.mxu0 0.0
    %3189 = vmatpush2.msra.mxu0 0.0
    %3190 = vmatprep.subr.mxu0 0.0
    %3191 = vmatpush2.msra.mxu0 0.0
    %3192 = vmatprep.subr.mxu0 0.0
    %3193 = vmatpush2.msra.mxu0 0.0
    %3194 = vmatprep.subr.mxu0 0.0
    %3195 = vmatpush2.msra.mxu0 0.0
    %3196 = vmatprep.subr.mxu0 0.0
    %3197 = vmatpush2.msra.mxu0 0.0
    %3198 = vmatprep.subr.mxu0 0.0
    %3199 = vmatpush2.msra.mxu0 0.0
    %3200 = vmatprep.subr.mxu0 0.0
    %3201 = vmatpush2.msra.mxu0 0.0
    %3202 = vmatprep.subr.mxu0 0.0
    %3203 = vmatpush2.msra.mxu0 0.0
    %3204 = vmatprep.subr.mxu0 0.0
    %3205 = vmatpush2.msra.mxu0 0.0
    %3206 = vmatprep.subr.mxu0 0.0
    %3207 = vmatpush2.msra.mxu0 0.0
    %3208 = vmatprep.subr.mxu0 0.0
    %3209 = vmatpush2.msra.mxu0 0.0
    %3210 = vmatprep.subr.mxu0 0.0
    %3211 = vmatpush2.msra.mxu0 %v3146
    %3212 = vmatprep.mubr.f32.mxu0 %v3143
    %3213 = vmatmul.mubr.f32.gmra.mxu0 %v3120
    %v3214 = vpop.f32.mrf.mxu0
    %v3215 = vadd.f32 %v3141, %v3214
    %v3216 = vpop.f32.mrf.mxu0
    %3217 = vdwg.mxu0
    %v3218 = vld [vmem:[#allocation22] sm:$0xff]
    %v3219 = vld [vmem:[#allocation22 + $0x8] sm:$0xff]
    %v3220 = vld [vmem:[#allocation22 + $0x10] sm:$0xff]
    %v3221 = vld [vmem:[#allocation22 + $0x18] sm:$0xff]
    %v3222 = vld [vmem:[#allocation22 + $0x20] sm:$0xff]
    %v3223 = vld [vmem:[#allocation22 + $0x28] sm:$0xff]
    %v3224 = vld [vmem:[#allocation22 + $0x30] sm:$0xff]
    %v3225 = vld [vmem:[#allocation22 + $0x38] sm:$0xff]
    %v3226 = vld [vmem:[#allocation22 + $0x40] sm:$0xff]
    %v3227 = vld [vmem:[#allocation22 + $0x48] sm:$0xff]
    %v3228 = vld [vmem:[#allocation22 + $0x50] sm:$0xff]
    %v3229 = vld [vmem:[#allocation22 + $0x58] sm:$0xff]
    %v3230 = vld [vmem:[#allocation22 + $0x60] sm:$0xff]
    %v3231 = vld [vmem:[#allocation22 + $0x68] sm:$0xff]
    %v3232 = vld [vmem:[#allocation22 + $0x70] sm:$0xff]
    %v3233 = vld [vmem:[#allocation22 + $0x78] sm:$0xff]
    %v3234 = vld [vmem:[#allocation2 + $0x30] ss:$0 sm:$0xff]
    %3235 = vmatprep.subr.mxu0 0.0
    %3236 = vmatpush1.msra.mxu0 %v3233
    %3237 = vmatprep.subr.mxu0 0.0
    %3238 = vmatpush1.msra.mxu0 %v3232
    %3239 = vmatprep.subr.mxu0 0.0
    %3240 = vmatpush1.msra.mxu0 %v3231
    %3241 = vmatprep.subr.mxu0 0.0
    %3242 = vmatpush1.msra.mxu0 %v3230
    %3243 = vmatprep.subr.mxu0 0.0
    %3244 = vmatpush1.msra.mxu0 %v3229
    %3245 = vmatprep.subr.mxu0 0.0
    %3246 = vmatpush1.msra.mxu0 %v3228
    %3247 = vmatprep.subr.mxu0 0.0
    %3248 = vmatpush1.msra.mxu0 %v3227
    %3249 = vmatprep.subr.mxu0 0.0
    %3250 = vmatpush1.msra.mxu0 %v3226
    %3251 = vmatprep.subr.mxu0 0.0
    %3252 = vmatpush1.msra.mxu0 %v3225
    %3253 = vmatprep.subr.mxu0 0.0
    %3254 = vmatpush1.msra.mxu0 %v3224
    %3255 = vmatprep.subr.mxu0 0.0
    %3256 = vmatpush1.msra.mxu0 %v3223
    %3257 = vmatprep.subr.mxu0 0.0
    %3258 = vmatpush1.msra.mxu0 %v3222
    %3259 = vmatprep.subr.mxu0 0.0
    %3260 = vmatpush1.msra.mxu0 %v3221
    %3261 = vmatprep.subr.mxu0 0.0
    %3262 = vmatpush1.msra.mxu0 %v3220
    %3263 = vmatprep.subr.mxu0 0.0
    %3264 = vmatpush1.msra.mxu0 %v3219
    %3265 = vmatprep.subr.mxu0 0.0
    %3266 = vmatpush1.msra.mxu0 %v3218
    %3267 = vmatprep.subr.mxu0 0.0
    %3268 = vmatpush2.msra.mxu0 0.0
    %3269 = vmatprep.subr.mxu0 0.0
    %3270 = vmatpush2.msra.mxu0 0.0
    %3271 = vmatprep.subr.mxu0 0.0
    %3272 = vmatpush2.msra.mxu0 0.0
    %3273 = vmatprep.subr.mxu0 0.0
    %3274 = vmatpush2.msra.mxu0 0.0
    %3275 = vmatprep.subr.mxu0 0.0
    %3276 = vmatpush2.msra.mxu0 0.0
    %3277 = vmatprep.subr.mxu0 0.0
    %3278 = vmatpush2.msra.mxu0 0.0
    %3279 = vmatprep.subr.mxu0 0.0
    %3280 = vmatpush2.msra.mxu0 0.0
    %3281 = vmatprep.subr.mxu0 0.0
    %3282 = vmatpush2.msra.mxu0 0.0
    %3283 = vmatprep.subr.mxu0 0.0
    %3284 = vmatpush2.msra.mxu0 0.0
    %3285 = vmatprep.subr.mxu0 0.0
    %3286 = vmatpush2.msra.mxu0 0.0
    %3287 = vmatprep.subr.mxu0 0.0
    %3288 = vmatpush2.msra.mxu0 0.0
    %3289 = vmatprep.subr.mxu0 0.0
    %3290 = vmatpush2.msra.mxu0 0.0
    %3291 = vmatprep.subr.mxu0 0.0
    %3292 = vmatpush2.msra.mxu0 0.0
    %3293 = vmatprep.subr.mxu0 0.0
    %3294 = vmatpush2.msra.mxu0 0.0
    %3295 = vmatprep.subr.mxu0 0.0
    %3296 = vmatpush2.msra.mxu0 0.0
    %3297 = vmatprep.subr.mxu0 0.0
    %3298 = vmatpush2.msra.mxu0 0.0
    %3299 = vmatprep.mubr.f32.mxu0 0.0
    %3300 = vmatmul.mubr.f32.gmra.mxu0 %v3215
    %v3301 = vpop.f32.mrf.mxu0
    %v3302 = vadd.f32 %v3234, %v3301
    %v3303 = vpop.f32.mrf.mxu0
    %3304 = vdwg.mxu0
    %v3305 = vsub.f32 0.0, %v3302
    %v3306 = vmul.f32 %v3305, 1.442695
    %v3307 = vpow.pop %v3306
    %v3308 = vadd.f32 %v3307, 1.0
    %v3309 = vrcp.pop %v3308
    %v3310 = vmul.f32 1.0, %v3309
    %3312 = vset.pattern.permute.xlu0 0
    %3313 = vperm.xlu0 %3312, %v3310
    %v3314 = vpop.permute.xlu0 %3313
    %v3316 = vmul.f32 %v3314, %v3215
    %v3317 = vsub.f32 1.0, %v3310
    %3319 = vset.pattern.permute.xlu0 0
    %3320 = vperm.xlu0 %3319, %v3317
    %v3321 = vpop.permute.xlu0 %3320
    %v3323 = vmul.f32 %v3321, %v2992
    %v3324 = vadd.f32 %v3316, %v3323
    %v3325 = vld [vmem:[#allocation2 + $0x35] ss:$0 sm:$0xff]
    %3327 = vset.pattern.permute.xlu0 0
    %3328 = vperm.xlu0 %3327, %v3325
    %v3329 = vpop.permute.xlu0 %3328
    %v3331 = vmul.f32 %v3329, %v3324
    %v3332 = vadd.f32 %v2992, %v3331
    %3333 = vadd.xlane.f32.xlu0 %v3332
    %v3334 = vpop.xlane.xlu0 %3333
    %v3335 = vmul.f32 %v3334, %v792
    %v3336 = vsub.f32 %v3332, %v3335
    %v3337 = vmul.f32 %v3336, %v3336
    %3338 = vadd.xlane.f32.xlu0 %v3337
    %v3339 = vpop.xlane.xlu0 %3338
    %v3340 = vmul.f32 %v3339, %v792
    %v3341 = vadd.f32 %v3340, 1e-05
    %v3342 = vrsqrt.pop %v3341
    %v3343 = vmul.f32 %v3336, %v3342
    %v3344 = vld [vmem:[#allocation2 + $0x42] ss:$0 sm:$0xff]
    %v3345 = vmul.f32 %v3343, %v3344
    %v3346 = vld [vmem:[#allocation2 + $0x41] ss:$0 sm:$0xff]
    %v3347 = vadd.f32 %v3345, %v3346
    %v3348 = vld [vmem:[#allocation27] sm:$0xff]
    %v3349 = vld [vmem:[#allocation27 + $0x8] sm:$0xff]
    %v3350 = vld [vmem:[#allocation27 + $0x10] sm:$0xff]
    %v3351 = vld [vmem:[#allocation27 + $0x18] sm:$0xff]
    %v3352 = vld [vmem:[#allocation27 + $0x20] sm:$0xff]
    %v3353 = vld [vmem:[#allocation27 + $0x28] sm:$0xff]
    %v3354 = vld [vmem:[#allocation27 + $0x30] sm:$0xff]
    %v3355 = vld [vmem:[#allocation27 + $0x38] sm:$0xff]
    %v3356 = vld [vmem:[#allocation27 + $0x40] sm:$0xff]
    %v3357 = vld [vmem:[#allocation27 + $0x48] sm:$0xff]
    %v3358 = vld [vmem:[#allocation27 + $0x50] sm:$0xff]
    %v3359 = vld [vmem:[#allocation27 + $0x58] sm:$0xff]
    %v3360 = vld [vmem:[#allocation27 + $0x60] sm:$0xff]
    %v3361 = vld [vmem:[#allocation27 + $0x68] sm:$0xff]
    %v3362 = vld [vmem:[#allocation27 + $0x70] sm:$0xff]
    %v3363 = vld [vmem:[#allocation27 + $0x78] sm:$0xff]
    %v3364 = vld [vmem:[#allocation27 + $0x80] sm:$0xff]
    %v3365 = vld [vmem:[#allocation27 + $0x88] sm:$0xff]
    %v3366 = vld [vmem:[#allocation27 + $0x90] sm:$0xff]
    %v3367 = vld [vmem:[#allocation27 + $0x98] sm:$0xff]
    %v3368 = vld [vmem:[#allocation27 + $0xa0] sm:$0xff]
    %v3369 = vld [vmem:[#allocation27 + $0xa8] sm:$0xff]
    %v3370 = vld [vmem:[#allocation27 + $0xb0] sm:$0xff]
    %v3371 = vld [vmem:[#allocation27 + $0xb8] sm:$0xff]
    %v3372 = vld [vmem:[#allocation27 + $0xc0] sm:$0xff]
    %v3373 = vld [vmem:[#allocation27 + $0xc8] sm:$0xff]
    %v3374 = vld [vmem:[#allocation27 + $0xd0] sm:$0xff]
    %v3375 = vld [vmem:[#allocation27 + $0xd8] sm:$0xff]
    %v3376 = vld [vmem:[#allocation27 + $0xe0] sm:$0xff]
    %v3377 = vld [vmem:[#allocation27 + $0xe8] sm:$0xff]
    %v3378 = vld [vmem:[#allocation27 + $0xf0] sm:$0xff]
    %v3379 = vld [vmem:[#allocation27 + $0xf8] sm:$0xff]
    %s3380 = scalar_lea.vmem [#allocation2], 54
    %v3381 = vld [vmem:[%s3380] ss:$8 sm:$0x3]
    %v3383 = vlaneseq
    %v3384 = vshrl.u32 %v3383, 7
    %v3385 = vsub.s32 0, %v3384
    %v3386 = vrot.slane %v3381, %v3385
    %v3387 = vlaneseq
    %v3388 = vshrl.u32 %v3387, 7
    %v3389 = vsub.s32 1, %v3388
    %v3390 = vrot.slane %v3381, %v3389
    %3393 = vmatprep.subr.mxu0 %v3379
    %3394 = vmatpush1.msra.mxu0 %v3378
    %3395 = vmatprep.subr.mxu0 %v3377
    %3396 = vmatpush1.msra.mxu0 %v3376
    %3397 = vmatprep.subr.mxu0 %v3375
    %3398 = vmatpush1.msra.mxu0 %v3374
    %3399 = vmatprep.subr.mxu0 %v3373
    %3400 = vmatpush1.msra.mxu0 %v3372
    %3401 = vmatprep.subr.mxu0 %v3371
    %3402 = vmatpush1.msra.mxu0 %v3370
    %3403 = vmatprep.subr.mxu0 %v3369
    %3404 = vmatpush1.msra.mxu0 %v3368
    %3405 = vmatprep.subr.mxu0 %v3367
    %3406 = vmatpush1.msra.mxu0 %v3366
    %3407 = vmatprep.subr.mxu0 %v3365
    %3408 = vmatpush1.msra.mxu0 %v3364
    %3409 = vmatprep.subr.mxu0 %v3363
    %3410 = vmatpush1.msra.mxu0 %v3362
    %3411 = vmatprep.subr.mxu0 %v3361
    %3412 = vmatpush1.msra.mxu0 %v3360
    %3413 = vmatprep.subr.mxu0 %v3359
    %3414 = vmatpush1.msra.mxu0 %v3358
    %3415 = vmatprep.subr.mxu0 %v3357
    %3416 = vmatpush1.msra.mxu0 %v3356
    %3417 = vmatprep.subr.mxu0 %v3355
    %3418 = vmatpush1.msra.mxu0 %v3354
    %3419 = vmatprep.subr.mxu0 %v3353
    %3420 = vmatpush1.msra.mxu0 %v3352
    %3421 = vmatprep.subr.mxu0 %v3351
    %3422 = vmatpush1.msra.mxu0 %v3350
    %3423 = vmatprep.subr.mxu0 %v3349
    %3424 = vmatpush1.msra.mxu0 %v3348
    %3425 = vmatprep.subr.mxu0 0.0
    %3426 = vmatpush2.msra.mxu0 0.0
    %3427 = vmatprep.subr.mxu0 0.0
    %3428 = vmatpush2.msra.mxu0 0.0
    %3429 = vmatprep.subr.mxu0 0.0
    %3430 = vmatpush2.msra.mxu0 0.0
    %3431 = vmatprep.subr.mxu0 0.0
    %3432 = vmatpush2.msra.mxu0 0.0
    %3433 = vmatprep.subr.mxu0 0.0
    %3434 = vmatpush2.msra.mxu0 0.0
    %3435 = vmatprep.subr.mxu0 0.0
    %3436 = vmatpush2.msra.mxu0 0.0
    %3437 = vmatprep.subr.mxu0 0.0
    %3438 = vmatpush2.msra.mxu0 0.0
    %3439 = vmatprep.subr.mxu0 0.0
    %3440 = vmatpush2.msra.mxu0 0.0
    %3441 = vmatprep.subr.mxu0 0.0
    %3442 = vmatpush2.msra.mxu0 0.0
    %3443 = vmatprep.subr.mxu0 0.0
    %3444 = vmatpush2.msra.mxu0 0.0
    %3445 = vmatprep.subr.mxu0 0.0
    %3446 = vmatpush2.msra.mxu0 0.0
    %3447 = vmatprep.subr.mxu0 0.0
    %3448 = vmatpush2.msra.mxu0 0.0
    %3449 = vmatprep.subr.mxu0 0.0
    %3450 = vmatpush2.msra.mxu0 0.0
    %3451 = vmatprep.subr.mxu0 0.0
    %3452 = vmatpush2.msra.mxu0 0.0
    %3453 = vmatprep.subr.mxu0 0.0
    %3454 = vmatpush2.msra.mxu0 0.0
    %3455 = vmatprep.subr.mxu0 0.0
    %3456 = vmatpush2.msra.mxu0 0.0
    %3457 = vmatprep.mubr.f32.mxu0 0.0
    %3458 = vmatmul.mubr.f32.gmra.mxu0 %v3347
    %v3459 = vpop.f32.mrf.mxu0
    %v3460 = vadd.f32 %v3386, %v3459
    %v3461 = vpop.f32.mrf.mxu0
    %v3462 = vadd.f32 %v3390, %v3461
    %3463 = vdwg.mxu0
    %v3464 = vmul.f32 %v3460, 0.5
    %v3465 = vmul.f32 %v3462, 0.5
    %v3466 = vmul.f32 %v3460, 0.044715
    %v3467 = vmul.f32 %v3462, 0.044715
    %v3468 = vmul.f32 %v3466, %v3460
    %v3469 = vmul.f32 %v3467, %v3462
    %v3470 = vmul.f32 %v3468, %v3460
    %v3471 = vmul.f32 %v3469, %v3462
    %v3472 = vadd.f32 %v3460, %v3470
    %v3473 = vadd.f32 %v3462, %v3471
    %v3474 = vmul.f32 %v3472, 0.7978846
    %v3475 = vmul.f32 %v3473, 0.7978846
    %v3476 = vtanh.pop %v3474
    %v3477 = vtanh.pop %v3475
    %v3478 = vadd.f32 %v3476, 1.0
    %v3479 = vadd.f32 %v3477, 1.0
    %v3480 = vmul.f32 %v3464, %v3478
    %v3481 = vmul.f32 %v3465, %v3479
    %v3482 = vld [vmem:[#allocation28] sm:$0xff]
    %v3483 = vld [vmem:[#allocation28 + $0x8] sm:$0xff]
    %v3484 = vld [vmem:[#allocation28 + $0x10] sm:$0xff]
    %v3485 = vld [vmem:[#allocation28 + $0x18] sm:$0xff]
    %v3486 = vld [vmem:[#allocation28 + $0x20] sm:$0xff]
    %v3487 = vld [vmem:[#allocation28 + $0x28] sm:$0xff]
    %v3488 = vld [vmem:[#allocation28 + $0x30] sm:$0xff]
    %v3489 = vld [vmem:[#allocation28 + $0x38] sm:$0xff]
    %v3490 = vld [vmem:[#allocation28 + $0x40] sm:$0xff]
    %v3491 = vld [vmem:[#allocation28 + $0x48] sm:$0xff]
    %v3492 = vld [vmem:[#allocation28 + $0x50] sm:$0xff]
    %v3493 = vld [vmem:[#allocation28 + $0x58] sm:$0xff]
    %v3494 = vld [vmem:[#allocation28 + $0x60] sm:$0xff]
    %v3495 = vld [vmem:[#allocation28 + $0x68] sm:$0xff]
    %v3496 = vld [vmem:[#allocation28 + $0x70] sm:$0xff]
    %v3497 = vld [vmem:[#allocation28 + $0x78] sm:$0xff]
    %v3498 = vld [vmem:[#allocation28 + $0x80] sm:$0xff]
    %v3499 = vld [vmem:[#allocation28 + $0x88] sm:$0xff]
    %v3500 = vld [vmem:[#allocation28 + $0x90] sm:$0xff]
    %v3501 = vld [vmem:[#allocation28 + $0x98] sm:$0xff]
    %v3502 = vld [vmem:[#allocation28 + $0xa0] sm:$0xff]
    %v3503 = vld [vmem:[#allocation28 + $0xa8] sm:$0xff]
    %v3504 = vld [vmem:[#allocation28 + $0xb0] sm:$0xff]
    %v3505 = vld [vmem:[#allocation28 + $0xb8] sm:$0xff]
    %v3506 = vld [vmem:[#allocation28 + $0xc0] sm:$0xff]
    %v3507 = vld [vmem:[#allocation28 + $0xc8] sm:$0xff]
    %v3508 = vld [vmem:[#allocation28 + $0xd0] sm:$0xff]
    %v3509 = vld [vmem:[#allocation28 + $0xd8] sm:$0xff]
    %v3510 = vld [vmem:[#allocation28 + $0xe0] sm:$0xff]
    %v3511 = vld [vmem:[#allocation28 + $0xe8] sm:$0xff]
    %v3512 = vld [vmem:[#allocation28 + $0xf0] sm:$0xff]
    %v3513 = vld [vmem:[#allocation28 + $0xf8] sm:$0xff]
    %v3514 = vld [vmem:[#allocation28 + $0x100] sm:$0xff]
    %v3515 = vld [vmem:[#allocation28 + $0x108] sm:$0xff]
    %v3516 = vld [vmem:[#allocation28 + $0x110] sm:$0xff]
    %v3517 = vld [vmem:[#allocation28 + $0x118] sm:$0xff]
    %v3518 = vld [vmem:[#allocation28 + $0x120] sm:$0xff]
    %v3519 = vld [vmem:[#allocation28 + $0x128] sm:$0xff]
    %v3520 = vld [vmem:[#allocation28 + $0x130] sm:$0xff]
    %v3521 = vld [vmem:[#allocation28 + $0x138] sm:$0xff]
    %v3522 = vld [vmem:[#allocation28 + $0x140] sm:$0xff]
    %v3523 = vld [vmem:[#allocation28 + $0x148] sm:$0xff]
    %v3524 = vld [vmem:[#allocation28 + $0x150] sm:$0xff]
    %v3525 = vld [vmem:[#allocation28 + $0x158] sm:$0xff]
    %v3526 = vld [vmem:[#allocation28 + $0x160] sm:$0xff]
    %v3527 = vld [vmem:[#allocation28 + $0x168] sm:$0xff]
    %v3528 = vld [vmem:[#allocation28 + $0x170] sm:$0xff]
    %v3529 = vld [vmem:[#allocation28 + $0x178] sm:$0xff]
    %v3530 = vld [vmem:[#allocation28 + $0x180] sm:$0xff]
    %v3531 = vld [vmem:[#allocation28 + $0x188] sm:$0xff]
    %v3532 = vld [vmem:[#allocation28 + $0x190] sm:$0xff]
    %v3533 = vld [vmem:[#allocation28 + $0x198] sm:$0xff]
    %v3534 = vld [vmem:[#allocation28 + $0x1a0] sm:$0xff]
    %v3535 = vld [vmem:[#allocation28 + $0x1a8] sm:$0xff]
    %v3536 = vld [vmem:[#allocation28 + $0x1b0] sm:$0xff]
    %v3537 = vld [vmem:[#allocation28 + $0x1b8] sm:$0xff]
    %v3538 = vld [vmem:[#allocation28 + $0x1c0] sm:$0xff]
    %v3539 = vld [vmem:[#allocation28 + $0x1c8] sm:$0xff]
    %v3540 = vld [vmem:[#allocation28 + $0x1d0] sm:$0xff]
    %v3541 = vld [vmem:[#allocation28 + $0x1d8] sm:$0xff]
    %v3542 = vld [vmem:[#allocation28 + $0x1e0] sm:$0xff]
    %v3543 = vld [vmem:[#allocation28 + $0x1e8] sm:$0xff]
    %v3544 = vld [vmem:[#allocation28 + $0x1f0] sm:$0xff]
    %v3545 = vld [vmem:[#allocation28 + $0x1f8] sm:$0xff]
    %s3546 = scalar_lea.vmem [#allocation2], 55
    %v3547 = vld [vmem:[%s3546] ss:$8 sm:$0x3]
    %v3549 = vlaneseq
    %v3550 = vshrl.u32 %v3549, 7
    %v3551 = vsub.s32 0, %v3550
    %v3552 = vrot.slane %v3547, %v3551
    %v3553 = vlaneseq
    %v3554 = vshrl.u32 %v3553, 7
    %v3555 = vsub.s32 1, %v3554
    %v3556 = vrot.slane %v3547, %v3555
    %3559 = vmatprep.subr.mxu0 %v3513
    %3560 = vmatpush1.msra.mxu0 %v3512
    %3561 = vmatprep.subr.mxu0 %v3511
    %3562 = vmatpush1.msra.mxu0 %v3510
    %3563 = vmatprep.subr.mxu0 %v3509
    %3564 = vmatpush1.msra.mxu0 %v3508
    %3565 = vmatprep.subr.mxu0 %v3507
    %3566 = vmatpush1.msra.mxu0 %v3506
    %3567 = vmatprep.subr.mxu0 %v3505
    %3568 = vmatpush1.msra.mxu0 %v3504
    %3569 = vmatprep.subr.mxu0 %v3503
    %3570 = vmatpush1.msra.mxu0 %v3502
    %3571 = vmatprep.subr.mxu0 %v3501
    %3572 = vmatpush1.msra.mxu0 %v3500
    %3573 = vmatprep.subr.mxu0 %v3499
    %3574 = vmatpush1.msra.mxu0 %v3498
    %3575 = vmatprep.subr.mxu0 %v3497
    %3576 = vmatpush1.msra.mxu0 %v3496
    %3577 = vmatprep.subr.mxu0 %v3495
    %3578 = vmatpush1.msra.mxu0 %v3494
    %3579 = vmatprep.subr.mxu0 %v3493
    %3580 = vmatpush1.msra.mxu0 %v3492
    %3581 = vmatprep.subr.mxu0 %v3491
    %3582 = vmatpush1.msra.mxu0 %v3490
    %3583 = vmatprep.subr.mxu0 %v3489
    %3584 = vmatpush1.msra.mxu0 %v3488
    %3585 = vmatprep.subr.mxu0 %v3487
    %3586 = vmatpush1.msra.mxu0 %v3486
    %3587 = vmatprep.subr.mxu0 %v3485
    %3588 = vmatpush1.msra.mxu0 %v3484
    %3589 = vmatprep.subr.mxu0 %v3483
    %3590 = vmatpush1.msra.mxu0 %v3482
    %3591 = vmatprep.subr.mxu0 %v3545
    %3592 = vmatpush2.msra.mxu0 %v3544
    %3593 = vmatprep.subr.mxu0 %v3543
    %3594 = vmatpush2.msra.mxu0 %v3542
    %3595 = vmatprep.subr.mxu0 %v3541
    %3596 = vmatpush2.msra.mxu0 %v3540
    %3597 = vmatprep.subr.mxu0 %v3539
    %3598 = vmatpush2.msra.mxu0 %v3538
    %3599 = vmatprep.subr.mxu0 %v3537
    %3600 = vmatpush2.msra.mxu0 %v3536
    %3601 = vmatprep.subr.mxu0 %v3535
    %3602 = vmatpush2.msra.mxu0 %v3534
    %3603 = vmatprep.subr.mxu0 %v3533
    %3604 = vmatpush2.msra.mxu0 %v3532
    %3605 = vmatprep.subr.mxu0 %v3531
    %3606 = vmatpush2.msra.mxu0 %v3530
    %3607 = vmatprep.subr.mxu0 %v3529
    %3608 = vmatpush2.msra.mxu0 %v3528
    %3609 = vmatprep.subr.mxu0 %v3527
    %3610 = vmatpush2.msra.mxu0 %v3526
    %3611 = vmatprep.subr.mxu0 %v3525
    %3612 = vmatpush2.msra.mxu0 %v3524
    %3613 = vmatprep.subr.mxu0 %v3523
    %3614 = vmatpush2.msra.mxu0 %v3522
    %3615 = vmatprep.subr.mxu0 %v3521
    %3616 = vmatpush2.msra.mxu0 %v3520
    %3617 = vmatprep.subr.mxu0 %v3519
    %3618 = vmatpush2.msra.mxu0 %v3518
    %3619 = vmatprep.subr.mxu0 %v3517
    %3620 = vmatpush2.msra.mxu0 %v3516
    %3621 = vmatprep.subr.mxu0 %v3515
    %3622 = vmatpush2.msra.mxu0 %v3514
    %3623 = vmatprep.mubr.f32.mxu0 %v3481
    %3624 = vmatmul.mubr.f32.gmra.mxu0 %v3480
    %v3625 = vpop.f32.mrf.mxu0
    %v3626 = vadd.f32 %v3552, %v3625
    %v3627 = vpop.f32.mrf.mxu0
    %v3628 = vadd.f32 %v3556, %v3627
    %3629 = vdwg.mxu0
    %v3630 = vmul.f32 %v3626, 0.5
    %v3631 = vmul.f32 %v3628, 0.5
    %v3632 = vmul.f32 %v3626, 0.044715
    %v3633 = vmul.f32 %v3628, 0.044715
    %v3634 = vmul.f32 %v3632, %v3626
    %v3635 = vmul.f32 %v3633, %v3628
    %v3636 = vmul.f32 %v3634, %v3626
    %v3637 = vmul.f32 %v3635, %v3628
    %v3638 = vadd.f32 %v3626, %v3636
    %v3639 = vadd.f32 %v3628, %v3637
    %v3640 = vmul.f32 %v3638, 0.7978846
    %v3641 = vmul.f32 %v3639, 0.7978846
    %v3642 = vtanh.pop %v3640
    %v3643 = vtanh.pop %v3641
    %v3644 = vadd.f32 %v3642, 1.0
    %v3645 = vadd.f32 %v3643, 1.0
    %v3646 = vmul.f32 %v3630, %v3644
    %v3647 = vmul.f32 %v3631, %v3645
    %v3648 = vld [vmem:[#allocation30] sm:$0xff]
    %v3649 = vld [vmem:[#allocation30 + $0x8] sm:$0xff]
    %v3650 = vld [vmem:[#allocation30 + $0x10] sm:$0xff]
    %v3651 = vld [vmem:[#allocation30 + $0x18] sm:$0xff]
    %v3652 = vld [vmem:[#allocation30 + $0x20] sm:$0xff]
    %v3653 = vld [vmem:[#allocation30 + $0x28] sm:$0xff]
    %v3654 = vld [vmem:[#allocation30 + $0x30] sm:$0xff]
    %v3655 = vld [vmem:[#allocation30 + $0x38] sm:$0xff]
    %v3656 = vld [vmem:[#allocation30 + $0x40] sm:$0xff]
    %v3657 = vld [vmem:[#allocation30 + $0x48] sm:$0xff]
    %v3658 = vld [vmem:[#allocation30 + $0x50] sm:$0xff]
    %v3659 = vld [vmem:[#allocation30 + $0x58] sm:$0xff]
    %v3660 = vld [vmem:[#allocation30 + $0x60] sm:$0xff]
    %v3661 = vld [vmem:[#allocation30 + $0x68] sm:$0xff]
    %v3662 = vld [vmem:[#allocation30 + $0x70] sm:$0xff]
    %v3663 = vld [vmem:[#allocation30 + $0x78] sm:$0xff]
    %v3664 = vld [vmem:[#allocation30 + $0x80] sm:$0xff]
    %v3665 = vld [vmem:[#allocation30 + $0x88] sm:$0xff]
    %v3666 = vld [vmem:[#allocation30 + $0x90] sm:$0xff]
    %v3667 = vld [vmem:[#allocation30 + $0x98] sm:$0xff]
    %v3668 = vld [vmem:[#allocation30 + $0xa0] sm:$0xff]
    %v3669 = vld [vmem:[#allocation30 + $0xa8] sm:$0xff]
    %v3670 = vld [vmem:[#allocation30 + $0xb0] sm:$0xff]
    %v3671 = vld [vmem:[#allocation30 + $0xb8] sm:$0xff]
    %v3672 = vld [vmem:[#allocation30 + $0xc0] sm:$0xff]
    %v3673 = vld [vmem:[#allocation30 + $0xc8] sm:$0xff]
    %v3674 = vld [vmem:[#allocation30 + $0xd0] sm:$0xff]
    %v3675 = vld [vmem:[#allocation30 + $0xd8] sm:$0xff]
    %v3676 = vld [vmem:[#allocation30 + $0xe0] sm:$0xff]
    %v3677 = vld [vmem:[#allocation30 + $0xe8] sm:$0xff]
    %v3678 = vld [vmem:[#allocation30 + $0xf0] sm:$0xff]
    %v3679 = vld [vmem:[#allocation30 + $0xf8] sm:$0xff]
    %v3680 = vld [vmem:[#allocation2 + $0x40] ss:$0 sm:$0xff]
    %3681 = vmatprep.subr.mxu0 0.0
    %3682 = vmatpush1.msra.mxu0 %v3663
    %3683 = vmatprep.subr.mxu0 0.0
    %3684 = vmatpush1.msra.mxu0 %v3662
    %3685 = vmatprep.subr.mxu0 0.0
    %3686 = vmatpush1.msra.mxu0 %v3661
    %3687 = vmatprep.subr.mxu0 0.0
    %3688 = vmatpush1.msra.mxu0 %v3660
    %3689 = vmatprep.subr.mxu0 0.0
    %3690 = vmatpush1.msra.mxu0 %v3659
    %3691 = vmatprep.subr.mxu0 0.0
    %3692 = vmatpush1.msra.mxu0 %v3658
    %3693 = vmatprep.subr.mxu0 0.0
    %3694 = vmatpush1.msra.mxu0 %v3657
    %3695 = vmatprep.subr.mxu0 0.0
    %3696 = vmatpush1.msra.mxu0 %v3656
    %3697 = vmatprep.subr.mxu0 0.0
    %3698 = vmatpush1.msra.mxu0 %v3655
    %3699 = vmatprep.subr.mxu0 0.0
    %3700 = vmatpush1.msra.mxu0 %v3654
    %3701 = vmatprep.subr.mxu0 0.0
    %3702 = vmatpush1.msra.mxu0 %v3653
    %3703 = vmatprep.subr.mxu0 0.0
    %3704 = vmatpush1.msra.mxu0 %v3652
    %3705 = vmatprep.subr.mxu0 0.0
    %3706 = vmatpush1.msra.mxu0 %v3651
    %3707 = vmatprep.subr.mxu0 0.0
    %3708 = vmatpush1.msra.mxu0 %v3650
    %3709 = vmatprep.subr.mxu0 0.0
    %3710 = vmatpush1.msra.mxu0 %v3649
    %3711 = vmatprep.subr.mxu0 0.0
    %3712 = vmatpush1.msra.mxu0 %v3648
    %3713 = vmatprep.subr.mxu0 0.0
    %3714 = vmatpush2.msra.mxu0 %v3679
    %3715 = vmatprep.subr.mxu0 0.0
    %3716 = vmatpush2.msra.mxu0 %v3678
    %3717 = vmatprep.subr.mxu0 0.0
    %3718 = vmatpush2.msra.mxu0 %v3677
    %3719 = vmatprep.subr.mxu0 0.0
    %3720 = vmatpush2.msra.mxu0 %v3676
    %3721 = vmatprep.subr.mxu0 0.0
    %3722 = vmatpush2.msra.mxu0 %v3675
    %3723 = vmatprep.subr.mxu0 0.0
    %3724 = vmatpush2.msra.mxu0 %v3674
    %3725 = vmatprep.subr.mxu0 0.0
    %3726 = vmatpush2.msra.mxu0 %v3673
    %3727 = vmatprep.subr.mxu0 0.0
    %3728 = vmatpush2.msra.mxu0 %v3672
    %3729 = vmatprep.subr.mxu0 0.0
    %3730 = vmatpush2.msra.mxu0 %v3671
    %3731 = vmatprep.subr.mxu0 0.0
    %3732 = vmatpush2.msra.mxu0 %v3670
    %3733 = vmatprep.subr.mxu0 0.0
    %3734 = vmatpush2.msra.mxu0 %v3669
    %3735 = vmatprep.subr.mxu0 0.0
    %3736 = vmatpush2.msra.mxu0 %v3668
    %3737 = vmatprep.subr.mxu0 0.0
    %3738 = vmatpush2.msra.mxu0 %v3667
    %3739 = vmatprep.subr.mxu0 0.0
    %3740 = vmatpush2.msra.mxu0 %v3666
    %3741 = vmatprep.subr.mxu0 0.0
    %3742 = vmatpush2.msra.mxu0 %v3665
    %3743 = vmatprep.subr.mxu0 0.0
    %3744 = vmatpush2.msra.mxu0 %v3664
    %3745 = vmatprep.mubr.f32.mxu0 %v3647
    %3746 = vmatmul.mubr.f32.gmra.mxu0 %v3646
    %v3747 = vpop.f32.mrf.mxu0
    %v3748 = vadd.f32 %v3680, %v3747
    %v3749 = vpop.f32.mrf.mxu0
    %3750 = vdwg.mxu0
    %v3751 = vld [vmem:[#allocation2 + $0x43] ss:$0 sm:$0xff]
    %3753 = vset.pattern.permute.xlu0 0
    %3754 = vperm.xlu0 %3753, %v3751
    %v3755 = vpop.permute.xlu0 %3754
    %v3757 = vmul.f32 %v3755, %v3332
    %v3758 = vadd.f32 %v3748, %v3757
    %3759 = vadd.xlane.f32.xlu0 %v3758
    %v3760 = vpop.xlane.xlu0 %3759
    %v3761 = vmul.f32 %v3760, %v792
    %v3762 = vsub.f32 %v3758, %v3761
    %v3763 = vmul.f32 %v3762, %v3762
    %3764 = vadd.xlane.f32.xlu0 %v3763
    %v3765 = vpop.xlane.xlu0 %3764
    %v3766 = vmul.f32 %v3765, %v792
    %v3767 = vadd.f32 %v3766, 1e-05
    %v3768 = vrsqrt.pop %v3767
    %v3769 = vmul.f32 %v3762, %v3768
    %v3770 = vld [vmem:[#allocation2 + $0x46] ss:$0 sm:$0xff]
    %v3771 = vmul.f32 %v3769, %v3770
    %v3772 = vld [vmem:[#allocation2 + $0x45] ss:$0 sm:$0xff]
    %v3773 = vadd.f32 %v3771, %v3772
    %v3774 = vld [vmem:[#allocation34] sm:$0xff]
    %v3775 = vld [vmem:[#allocation34 + $0x8] sm:$0xff]
    %v3776 = vld [vmem:[#allocation34 + $0x10] sm:$0xff]
    %v3777 = vld [vmem:[#allocation34 + $0x18] sm:$0xff]
    %v3778 = vld [vmem:[#allocation34 + $0x20] sm:$0xff]
    %v3779 = vld [vmem:[#allocation34 + $0x28] sm:$0xff]
    %v3780 = vld [vmem:[#allocation34 + $0x30] sm:$0xff]
    %v3781 = vld [vmem:[#allocation34 + $0x38] sm:$0xff]
    %v3782 = vld [vmem:[#allocation34 + $0x40] sm:$0xff]
    %v3783 = vld [vmem:[#allocation34 + $0x48] sm:$0xff]
    %v3784 = vld [vmem:[#allocation34 + $0x50] sm:$0xff]
    %v3785 = vld [vmem:[#allocation34 + $0x58] sm:$0xff]
    %v3786 = vld [vmem:[#allocation34 + $0x60] sm:$0xff]
    %v3787 = vld [vmem:[#allocation34 + $0x68] sm:$0xff]
    %v3788 = vld [vmem:[#allocation34 + $0x70] sm:$0xff]
    %v3789 = vld [vmem:[#allocation34 + $0x78] sm:$0xff]
    %v3790 = vld [vmem:[#allocation34 + $0x80] sm:$0xff]
    %v3791 = vld [vmem:[#allocation34 + $0x88] sm:$0xff]
    %v3792 = vld [vmem:[#allocation34 + $0x90] sm:$0xff]
    %v3793 = vld [vmem:[#allocation34 + $0x98] sm:$0xff]
    %v3794 = vld [vmem:[#allocation34 + $0xa0] sm:$0xff]
    %v3795 = vld [vmem:[#allocation34 + $0xa8] sm:$0xff]
    %v3796 = vld [vmem:[#allocation34 + $0xb0] sm:$0xff]
    %v3797 = vld [vmem:[#allocation34 + $0xb8] sm:$0xff]
    %v3798 = vld [vmem:[#allocation34 + $0xc0] sm:$0xff]
    %v3799 = vld [vmem:[#allocation34 + $0xc8] sm:$0xff]
    %v3800 = vld [vmem:[#allocation34 + $0xd0] sm:$0xff]
    %v3801 = vld [vmem:[#allocation34 + $0xd8] sm:$0xff]
    %v3802 = vld [vmem:[#allocation34 + $0xe0] sm:$0xff]
    %v3803 = vld [vmem:[#allocation34 + $0xe8] sm:$0xff]
    %v3804 = vld [vmem:[#allocation34 + $0xf0] sm:$0xff]
    %v3805 = vld [vmem:[#allocation34 + $0xf8] sm:$0xff]
    %s3806 = scalar_lea.vmem [#allocation2], 80
    %v3807 = vld [vmem:[%s3806] ss:$8 sm:$0x3]
    %v3809 = vlaneseq
    %v3810 = vshrl.u32 %v3809, 7
    %v3811 = vsub.s32 0, %v3810
    %v3812 = vrot.slane %v3807, %v3811
    %v3813 = vlaneseq
    %v3814 = vshrl.u32 %v3813, 7
    %v3815 = vsub.s32 1, %v3814
    %v3816 = vrot.slane %v3807, %v3815
    %3819 = vmatprep.subr.mxu0 %v3805
    %3820 = vmatpush1.msra.mxu0 %v3804
    %3821 = vmatprep.subr.mxu0 %v3803
    %3822 = vmatpush1.msra.mxu0 %v3802
    %3823 = vmatprep.subr.mxu0 %v3801
    %3824 = vmatpush1.msra.mxu0 %v3800
    %3825 = vmatprep.subr.mxu0 %v3799
    %3826 = vmatpush1.msra.mxu0 %v3798
    %3827 = vmatprep.subr.mxu0 %v3797
    %3828 = vmatpush1.msra.mxu0 %v3796
    %3829 = vmatprep.subr.mxu0 %v3795
    %3830 = vmatpush1.msra.mxu0 %v3794
    %3831 = vmatprep.subr.mxu0 %v3793
    %3832 = vmatpush1.msra.mxu0 %v3792
    %3833 = vmatprep.subr.mxu0 %v3791
    %3834 = vmatpush1.msra.mxu0 %v3790
    %3835 = vmatprep.subr.mxu0 %v3789
    %3836 = vmatpush1.msra.mxu0 %v3788
    %3837 = vmatprep.subr.mxu0 %v3787
    %3838 = vmatpush1.msra.mxu0 %v3786
    %3839 = vmatprep.subr.mxu0 %v3785
    %3840 = vmatpush1.msra.mxu0 %v3784
    %3841 = vmatprep.subr.mxu0 %v3783
    %3842 = vmatpush1.msra.mxu0 %v3782
    %3843 = vmatprep.subr.mxu0 %v3781
    %3844 = vmatpush1.msra.mxu0 %v3780
    %3845 = vmatprep.subr.mxu0 %v3779
    %3846 = vmatpush1.msra.mxu0 %v3778
    %3847 = vmatprep.subr.mxu0 %v3777
    %3848 = vmatpush1.msra.mxu0 %v3776
    %3849 = vmatprep.subr.mxu0 %v3775
    %3850 = vmatpush1.msra.mxu0 %v3774
    %3851 = vmatprep.subr.mxu0 0.0
    %3852 = vmatpush2.msra.mxu0 0.0
    %3853 = vmatprep.subr.mxu0 0.0
    %3854 = vmatpush2.msra.mxu0 0.0
    %3855 = vmatprep.subr.mxu0 0.0
    %3856 = vmatpush2.msra.mxu0 0.0
    %3857 = vmatprep.subr.mxu0 0.0
    %3858 = vmatpush2.msra.mxu0 0.0
    %3859 = vmatprep.subr.mxu0 0.0
    %3860 = vmatpush2.msra.mxu0 0.0
    %3861 = vmatprep.subr.mxu0 0.0
    %3862 = vmatpush2.msra.mxu0 0.0
    %3863 = vmatprep.subr.mxu0 0.0
    %3864 = vmatpush2.msra.mxu0 0.0
    %3865 = vmatprep.subr.mxu0 0.0
    %3866 = vmatpush2.msra.mxu0 0.0
    %3867 = vmatprep.subr.mxu0 0.0
    %3868 = vmatpush2.msra.mxu0 0.0
    %3869 = vmatprep.subr.mxu0 0.0
    %3870 = vmatpush2.msra.mxu0 0.0
    %3871 = vmatprep.subr.mxu0 0.0
    %3872 = vmatpush2.msra.mxu0 0.0
    %3873 = vmatprep.subr.mxu0 0.0
    %3874 = vmatpush2.msra.mxu0 0.0
    %3875 = vmatprep.subr.mxu0 0.0
    %3876 = vmatpush2.msra.mxu0 0.0
    %3877 = vmatprep.subr.mxu0 0.0
    %3878 = vmatpush2.msra.mxu0 0.0
    %3879 = vmatprep.subr.mxu0 0.0
    %3880 = vmatpush2.msra.mxu0 0.0
    %3881 = vmatprep.subr.mxu0 0.0
    %3882 = vmatpush2.msra.mxu0 0.0
    %3883 = vmatprep.mubr.f32.mxu0 0.0
    %3884 = vmatmul.mubr.f32.gmra.mxu0 %v3773
    %v3885 = vpop.f32.mrf.mxu0
    %v3886 = vadd.f32 %v3812, %v3885
    %v3887 = vpop.f32.mrf.mxu0
    %v3888 = vadd.f32 %v3816, %v3887
    %3889 = vdwg.mxu0
    %v3890 = vld [vmem:[#allocation33] sm:$0xff]
    %v3891 = vld [vmem:[#allocation33 + $0x8] sm:$0xff]
    %v3892 = vld [vmem:[#allocation33 + $0x10] sm:$0xff]
    %v3893 = vld [vmem:[#allocation33 + $0x18] sm:$0xff]
    %v3894 = vld [vmem:[#allocation33 + $0x20] sm:$0xff]
    %v3895 = vld [vmem:[#allocation33 + $0x28] sm:$0xff]
    %v3896 = vld [vmem:[#allocation33 + $0x30] sm:$0xff]
    %v3897 = vld [vmem:[#allocation33 + $0x38] sm:$0xff]
    %v3898 = vld [vmem:[#allocation33 + $0x40] sm:$0xff]
    %v3899 = vld [vmem:[#allocation33 + $0x48] sm:$0xff]
    %v3900 = vld [vmem:[#allocation33 + $0x50] sm:$0xff]
    %v3901 = vld [vmem:[#allocation33 + $0x58] sm:$0xff]
    %v3902 = vld [vmem:[#allocation33 + $0x60] sm:$0xff]
    %v3903 = vld [vmem:[#allocation33 + $0x68] sm:$0xff]
    %v3904 = vld [vmem:[#allocation33 + $0x70] sm:$0xff]
    %v3905 = vld [vmem:[#allocation33 + $0x78] sm:$0xff]
    %v3906 = vld [vmem:[#allocation33 + $0x80] sm:$0xf]
    %v3907 = vld [vmem:[#allocation2 + $0x47] ss:$0 sm:$0xff]
    %v3909 = vsel %vm1608, %v3888, 0
    %v3912 = vsel %vm1612, %v3906, 0
    %3914 = vmatprep.subr.mxu0 0.0
    %3915 = vmatpush1.msra.mxu0 %v3905
    %3916 = vmatprep.subr.mxu0 0.0
    %3917 = vmatpush1.msra.mxu0 %v3904
    %3918 = vmatprep.subr.mxu0 0.0
    %3919 = vmatpush1.msra.mxu0 %v3903
    %3920 = vmatprep.subr.mxu0 0.0
    %3921 = vmatpush1.msra.mxu0 %v3902
    %3922 = vmatprep.subr.mxu0 0.0
    %3923 = vmatpush1.msra.mxu0 %v3901
    %3924 = vmatprep.subr.mxu0 0.0
    %3925 = vmatpush1.msra.mxu0 %v3900
    %3926 = vmatprep.subr.mxu0 0.0
    %3927 = vmatpush1.msra.mxu0 %v3899
    %3928 = vmatprep.subr.mxu0 0.0
    %3929 = vmatpush1.msra.mxu0 %v3898
    %3930 = vmatprep.subr.mxu0 0.0
    %3931 = vmatpush1.msra.mxu0 %v3897
    %3932 = vmatprep.subr.mxu0 0.0
    %3933 = vmatpush1.msra.mxu0 %v3896
    %3934 = vmatprep.subr.mxu0 0.0
    %3935 = vmatpush1.msra.mxu0 %v3895
    %3936 = vmatprep.subr.mxu0 0.0
    %3937 = vmatpush1.msra.mxu0 %v3894
    %3938 = vmatprep.subr.mxu0 0.0
    %3939 = vmatpush1.msra.mxu0 %v3893
    %3940 = vmatprep.subr.mxu0 0.0
    %3941 = vmatpush1.msra.mxu0 %v3892
    %3942 = vmatprep.subr.mxu0 0.0
    %3943 = vmatpush1.msra.mxu0 %v3891
    %3944 = vmatprep.subr.mxu0 0.0
    %3945 = vmatpush1.msra.mxu0 %v3890
    %3946 = vmatprep.subr.mxu0 0.0
    %3947 = vmatpush2.msra.mxu0 0.0
    %3948 = vmatprep.subr.mxu0 0.0
    %3949 = vmatpush2.msra.mxu0 0.0
    %3950 = vmatprep.subr.mxu0 0.0
    %3951 = vmatpush2.msra.mxu0 0.0
    %3952 = vmatprep.subr.mxu0 0.0
    %3953 = vmatpush2.msra.mxu0 0.0
    %3954 = vmatprep.subr.mxu0 0.0
    %3955 = vmatpush2.msra.mxu0 0.0
    %3956 = vmatprep.subr.mxu0 0.0
    %3957 = vmatpush2.msra.mxu0 0.0
    %3958 = vmatprep.subr.mxu0 0.0
    %3959 = vmatpush2.msra.mxu0 0.0
    %3960 = vmatprep.subr.mxu0 0.0
    %3961 = vmatpush2.msra.mxu0 0.0
    %3962 = vmatprep.subr.mxu0 0.0
    %3963 = vmatpush2.msra.mxu0 0.0
    %3964 = vmatprep.subr.mxu0 0.0
    %3965 = vmatpush2.msra.mxu0 0.0
    %3966 = vmatprep.subr.mxu0 0.0
    %3967 = vmatpush2.msra.mxu0 0.0
    %3968 = vmatprep.subr.mxu0 0.0
    %3969 = vmatpush2.msra.mxu0 0.0
    %3970 = vmatprep.subr.mxu0 0.0
    %3971 = vmatpush2.msra.mxu0 0.0
    %3972 = vmatprep.subr.mxu0 0.0
    %3973 = vmatpush2.msra.mxu0 0.0
    %3974 = vmatprep.subr.mxu0 0.0
    %3975 = vmatpush2.msra.mxu0 0.0
    %3976 = vmatprep.subr.mxu0 0.0
    %3977 = vmatpush2.msra.mxu0 %v3912
    %3978 = vmatprep.mubr.f32.mxu0 %v3909
    %3979 = vmatmul.mubr.f32.gmra.mxu0 %v3886
    %v3980 = vpop.f32.mrf.mxu0
    %v3981 = vadd.f32 %v3907, %v3980
    %v3982 = vpop.f32.mrf.mxu0
    %3983 = vdwg.mxu0
    %v3984 = vld [vmem:[#allocation31] sm:$0xff]
    %v3985 = vld [vmem:[#allocation31 + $0x8] sm:$0xff]
    %v3986 = vld [vmem:[#allocation31 + $0x10] sm:$0xff]
    %v3987 = vld [vmem:[#allocation31 + $0x18] sm:$0xff]
    %v3988 = vld [vmem:[#allocation31 + $0x20] sm:$0xff]
    %v3989 = vld [vmem:[#allocation31 + $0x28] sm:$0xff]
    %v3990 = vld [vmem:[#allocation31 + $0x30] sm:$0xff]
    %v3991 = vld [vmem:[#allocation31 + $0x38] sm:$0xff]
    %v3992 = vld [vmem:[#allocation31 + $0x40] sm:$0xff]
    %v3993 = vld [vmem:[#allocation31 + $0x48] sm:$0xff]
    %v3994 = vld [vmem:[#allocation31 + $0x50] sm:$0xff]
    %v3995 = vld [vmem:[#allocation31 + $0x58] sm:$0xff]
    %v3996 = vld [vmem:[#allocation31 + $0x60] sm:$0xff]
    %v3997 = vld [vmem:[#allocation31 + $0x68] sm:$0xff]
    %v3998 = vld [vmem:[#allocation31 + $0x70] sm:$0xff]
    %v3999 = vld [vmem:[#allocation31 + $0x78] sm:$0xff]
    %v4000 = vld [vmem:[#allocation2 + $0x44] ss:$0 sm:$0xff]
    %4001 = vmatprep.subr.mxu0 0.0
    %4002 = vmatpush1.msra.mxu0 %v3999
    %4003 = vmatprep.subr.mxu0 0.0
    %4004 = vmatpush1.msra.mxu0 %v3998
    %4005 = vmatprep.subr.mxu0 0.0
    %4006 = vmatpush1.msra.mxu0 %v3997
    %4007 = vmatprep.subr.mxu0 0.0
    %4008 = vmatpush1.msra.mxu0 %v3996
    %4009 = vmatprep.subr.mxu0 0.0
    %4010 = vmatpush1.msra.mxu0 %v3995
    %4011 = vmatprep.subr.mxu0 0.0
    %4012 = vmatpush1.msra.mxu0 %v3994
    %4013 = vmatprep.subr.mxu0 0.0
    %4014 = vmatpush1.msra.mxu0 %v3993
    %4015 = vmatprep.subr.mxu0 0.0
    %4016 = vmatpush1.msra.mxu0 %v3992
    %4017 = vmatprep.subr.mxu0 0.0
    %4018 = vmatpush1.msra.mxu0 %v3991
    %4019 = vmatprep.subr.mxu0 0.0
    %4020 = vmatpush1.msra.mxu0 %v3990
    %4021 = vmatprep.subr.mxu0 0.0
    %4022 = vmatpush1.msra.mxu0 %v3989
    %4023 = vmatprep.subr.mxu0 0.0
    %4024 = vmatpush1.msra.mxu0 %v3988
    %4025 = vmatprep.subr.mxu0 0.0
    %4026 = vmatpush1.msra.mxu0 %v3987
    %4027 = vmatprep.subr.mxu0 0.0
    %4028 = vmatpush1.msra.mxu0 %v3986
    %4029 = vmatprep.subr.mxu0 0.0
    %4030 = vmatpush1.msra.mxu0 %v3985
    %4031 = vmatprep.subr.mxu0 0.0
    %4032 = vmatpush1.msra.mxu0 %v3984
    %4033 = vmatprep.subr.mxu0 0.0
    %4034 = vmatpush2.msra.mxu0 0.0
    %4035 = vmatprep.subr.mxu0 0.0
    %4036 = vmatpush2.msra.mxu0 0.0
    %4037 = vmatprep.subr.mxu0 0.0
    %4038 = vmatpush2.msra.mxu0 0.0
    %4039 = vmatprep.subr.mxu0 0.0
    %4040 = vmatpush2.msra.mxu0 0.0
    %4041 = vmatprep.subr.mxu0 0.0
    %4042 = vmatpush2.msra.mxu0 0.0
    %4043 = vmatprep.subr.mxu0 0.0
    %4044 = vmatpush2.msra.mxu0 0.0
    %4045 = vmatprep.subr.mxu0 0.0
    %4046 = vmatpush2.msra.mxu0 0.0
    %4047 = vmatprep.subr.mxu0 0.0
    %4048 = vmatpush2.msra.mxu0 0.0
    %4049 = vmatprep.subr.mxu0 0.0
    %4050 = vmatpush2.msra.mxu0 0.0
    %4051 = vmatprep.subr.mxu0 0.0
    %4052 = vmatpush2.msra.mxu0 0.0
    %4053 = vmatprep.subr.mxu0 0.0
    %4054 = vmatpush2.msra.mxu0 0.0
    %4055 = vmatprep.subr.mxu0 0.0
    %4056 = vmatpush2.msra.mxu0 0.0
    %4057 = vmatprep.subr.mxu0 0.0
    %4058 = vmatpush2.msra.mxu0 0.0
    %4059 = vmatprep.subr.mxu0 0.0
    %4060 = vmatpush2.msra.mxu0 0.0
    %4061 = vmatprep.subr.mxu0 0.0
    %4062 = vmatpush2.msra.mxu0 0.0
    %4063 = vmatprep.subr.mxu0 0.0
    %4064 = vmatpush2.msra.mxu0 0.0
    %4065 = vmatprep.mubr.f32.mxu0 0.0
    %4066 = vmatmul.mubr.f32.gmra.mxu0 %v3981
    %v4067 = vpop.f32.mrf.mxu0
    %v4068 = vadd.f32 %v4000, %v4067
    %v4069 = vpop.f32.mrf.mxu0
    %4070 = vdwg.mxu0
    %v4071 = vsub.f32 0.0, %v4068
    %v4072 = vmul.f32 %v4071, 1.442695
    %v4073 = vpow.pop %v4072
    %v4074 = vadd.f32 %v4073, 1.0
    %v4075 = vrcp.pop %v4074
    %v4076 = vmul.f32 1.0, %v4075
    %4078 = vset.pattern.permute.xlu0 0
    %4079 = vperm.xlu0 %4078, %v4076
    %v4080 = vpop.permute.xlu0 %4079
    %v4082 = vmul.f32 %v4080, %v3981
    %v4083 = vsub.f32 1.0, %v4076
    %4085 = vset.pattern.permute.xlu0 0
    %4086 = vperm.xlu0 %4085, %v4083
    %v4087 = vpop.permute.xlu0 %4086
    %v4089 = vmul.f32 %v4087, %v3758
    %v4090 = vadd.f32 %v4082, %v4089
    %v4091 = vld [vmem:[#allocation2 + $0x51] ss:$0 sm:$0xff]
    %4093 = vset.pattern.permute.xlu0 0
    %4094 = vperm.xlu0 %4093, %v4091
    %v4095 = vpop.permute.xlu0 %4094
    %v4097 = vmul.f32 %v4095, %v4090
    %v4098 = vadd.f32 %v3758, %v4097
    %4099 = vadd.xlane.f32.xlu0 %v4098
    %v4100 = vpop.xlane.xlu0 %4099
    %v4101 = vmul.f32 %v4100, %v792
    %v4102 = vsub.f32 %v4098, %v4101
    %v4103 = vmul.f32 %v4102, %v4102
    %4104 = vadd.xlane.f32.xlu0 %v4103
    %v4105 = vpop.xlane.xlu0 %4104
    %v4106 = vmul.f32 %v4105, %v792
    %v4107 = vadd.f32 %v4106, 1e-05
    %v4108 = vrsqrt.pop %v4107
    %v4109 = vmul.f32 %v4102, %v4108
    %v4110 = vld [vmem:[#allocation2 + $0x56] ss:$0 sm:$0xff]
    %v4111 = vmul.f32 %v4109, %v4110
    %v4112 = vld [vmem:[#allocation2 + $0x55] ss:$0 sm:$0xff]
    %v4113 = vadd.f32 %v4111, %v4112
    %v4114 = vld [vmem:[#allocation36] sm:$0xff]
    %v4115 = vld [vmem:[#allocation36 + $0x8] sm:$0xff]
    %v4116 = vld [vmem:[#allocation36 + $0x10] sm:$0xff]
    %v4117 = vld [vmem:[#allocation36 + $0x18] sm:$0xff]
    %v4118 = vld [vmem:[#allocation36 + $0x20] sm:$0xff]
    %v4119 = vld [vmem:[#allocation36 + $0x28] sm:$0xff]
    %v4120 = vld [vmem:[#allocation36 + $0x30] sm:$0xff]
    %v4121 = vld [vmem:[#allocation36 + $0x38] sm:$0xff]
    %v4122 = vld [vmem:[#allocation36 + $0x40] sm:$0xff]
    %v4123 = vld [vmem:[#allocation36 + $0x48] sm:$0xff]
    %v4124 = vld [vmem:[#allocation36 + $0x50] sm:$0xff]
    %v4125 = vld [vmem:[#allocation36 + $0x58] sm:$0xff]
    %v4126 = vld [vmem:[#allocation36 + $0x60] sm:$0xff]
    %v4127 = vld [vmem:[#allocation36 + $0x68] sm:$0xff]
    %v4128 = vld [vmem:[#allocation36 + $0x70] sm:$0xff]
    %v4129 = vld [vmem:[#allocation36 + $0x78] sm:$0xff]
    %v4130 = vld [vmem:[#allocation36 + $0x80] sm:$0xff]
    %v4131 = vld [vmem:[#allocation36 + $0x88] sm:$0xff]
    %v4132 = vld [vmem:[#allocation36 + $0x90] sm:$0xff]
    %v4133 = vld [vmem:[#allocation36 + $0x98] sm:$0xff]
    %v4134 = vld [vmem:[#allocation36 + $0xa0] sm:$0xff]
    %v4135 = vld [vmem:[#allocation36 + $0xa8] sm:$0xff]
    %v4136 = vld [vmem:[#allocation36 + $0xb0] sm:$0xff]
    %v4137 = vld [vmem:[#allocation36 + $0xb8] sm:$0xff]
    %v4138 = vld [vmem:[#allocation36 + $0xc0] sm:$0xff]
    %v4139 = vld [vmem:[#allocation36 + $0xc8] sm:$0xff]
    %v4140 = vld [vmem:[#allocation36 + $0xd0] sm:$0xff]
    %v4141 = vld [vmem:[#allocation36 + $0xd8] sm:$0xff]
    %v4142 = vld [vmem:[#allocation36 + $0xe0] sm:$0xff]
    %v4143 = vld [vmem:[#allocation36 + $0xe8] sm:$0xff]
    %v4144 = vld [vmem:[#allocation36 + $0xf0] sm:$0xff]
    %v4145 = vld [vmem:[#allocation36 + $0xf8] sm:$0xff]
    %s4146 = scalar_lea.vmem [#allocation2], 82
    %v4147 = vld [vmem:[%s4146] ss:$8 sm:$0x3]
    %v4149 = vlaneseq
    %v4150 = vshrl.u32 %v4149, 7
    %v4151 = vsub.s32 0, %v4150
    %v4152 = vrot.slane %v4147, %v4151
    %v4153 = vlaneseq
    %v4154 = vshrl.u32 %v4153, 7
    %v4155 = vsub.s32 1, %v4154
    %v4156 = vrot.slane %v4147, %v4155
    %4159 = vmatprep.subr.mxu0 %v4145
    %4160 = vmatpush1.msra.mxu0 %v4144
    %4161 = vmatprep.subr.mxu0 %v4143
    %4162 = vmatpush1.msra.mxu0 %v4142
    %4163 = vmatprep.subr.mxu0 %v4141
    %4164 = vmatpush1.msra.mxu0 %v4140
    %4165 = vmatprep.subr.mxu0 %v4139
    %4166 = vmatpush1.msra.mxu0 %v4138
    %4167 = vmatprep.subr.mxu0 %v4137
    %4168 = vmatpush1.msra.mxu0 %v4136
    %4169 = vmatprep.subr.mxu0 %v4135
    %4170 = vmatpush1.msra.mxu0 %v4134
    %4171 = vmatprep.subr.mxu0 %v4133
    %4172 = vmatpush1.msra.mxu0 %v4132
    %4173 = vmatprep.subr.mxu0 %v4131
    %4174 = vmatpush1.msra.mxu0 %v4130
    %4175 = vmatprep.subr.mxu0 %v4129
    %4176 = vmatpush1.msra.mxu0 %v4128
    %4177 = vmatprep.subr.mxu0 %v4127
    %4178 = vmatpush1.msra.mxu0 %v4126
    %4179 = vmatprep.subr.mxu0 %v4125
    %4180 = vmatpush1.msra.mxu0 %v4124
    %4181 = vmatprep.subr.mxu0 %v4123
    %4182 = vmatpush1.msra.mxu0 %v4122
    %4183 = vmatprep.subr.mxu0 %v4121
    %4184 = vmatpush1.msra.mxu0 %v4120
    %4185 = vmatprep.subr.mxu0 %v4119
    %4186 = vmatpush1.msra.mxu0 %v4118
    %4187 = vmatprep.subr.mxu0 %v4117
    %4188 = vmatpush1.msra.mxu0 %v4116
    %4189 = vmatprep.subr.mxu0 %v4115
    %4190 = vmatpush1.msra.mxu0 %v4114
    %4191 = vmatprep.subr.mxu0 0.0
    %4192 = vmatpush2.msra.mxu0 0.0
    %4193 = vmatprep.subr.mxu0 0.0
    %4194 = vmatpush2.msra.mxu0 0.0
    %4195 = vmatprep.subr.mxu0 0.0
    %4196 = vmatpush2.msra.mxu0 0.0
    %4197 = vmatprep.subr.mxu0 0.0
    %4198 = vmatpush2.msra.mxu0 0.0
    %4199 = vmatprep.subr.mxu0 0.0
    %4200 = vmatpush2.msra.mxu0 0.0
    %4201 = vmatprep.subr.mxu0 0.0
    %4202 = vmatpush2.msra.mxu0 0.0
    %4203 = vmatprep.subr.mxu0 0.0
    %4204 = vmatpush2.msra.mxu0 0.0
    %4205 = vmatprep.subr.mxu0 0.0
    %4206 = vmatpush2.msra.mxu0 0.0
    %4207 = vmatprep.subr.mxu0 0.0
    %4208 = vmatpush2.msra.mxu0 0.0
    %4209 = vmatprep.subr.mxu0 0.0
    %4210 = vmatpush2.msra.mxu0 0.0
    %4211 = vmatprep.subr.mxu0 0.0
    %4212 = vmatpush2.msra.mxu0 0.0
    %4213 = vmatprep.subr.mxu0 0.0
    %4214 = vmatpush2.msra.mxu0 0.0
    %4215 = vmatprep.subr.mxu0 0.0
    %4216 = vmatpush2.msra.mxu0 0.0
    %4217 = vmatprep.subr.mxu0 0.0
    %4218 = vmatpush2.msra.mxu0 0.0
    %4219 = vmatprep.subr.mxu0 0.0
    %4220 = vmatpush2.msra.mxu0 0.0
    %4221 = vmatprep.subr.mxu0 0.0
    %4222 = vmatpush2.msra.mxu0 0.0
    %4223 = vmatprep.mubr.f32.mxu0 0.0
    %4224 = vmatmul.mubr.f32.gmra.mxu0 %v4113
    %v4225 = vpop.f32.mrf.mxu0
    %v4226 = vadd.f32 %v4152, %v4225
    %v4227 = vpop.f32.mrf.mxu0
    %v4228 = vadd.f32 %v4156, %v4227
    %4229 = vdwg.mxu0
    %v4230 = vmul.f32 %v4226, 0.5
    %v4231 = vmul.f32 %v4228, 0.5
    %v4232 = vmul.f32 %v4226, 0.044715
    %v4233 = vmul.f32 %v4228, 0.044715
    %v4234 = vmul.f32 %v4232, %v4226
    %v4235 = vmul.f32 %v4233, %v4228
    %v4236 = vmul.f32 %v4234, %v4226
    %v4237 = vmul.f32 %v4235, %v4228
    %v4238 = vadd.f32 %v4226, %v4236
    %v4239 = vadd.f32 %v4228, %v4237
    %v4240 = vmul.f32 %v4238, 0.7978846
    %v4241 = vmul.f32 %v4239, 0.7978846
    %v4242 = vtanh.pop %v4240
    %v4243 = vtanh.pop %v4241
    %v4244 = vadd.f32 %v4242, 1.0
    %v4245 = vadd.f32 %v4243, 1.0
    %v4246 = vmul.f32 %v4230, %v4244
    %v4247 = vmul.f32 %v4231, %v4245
    %v4248 = vld [vmem:[#allocation37] sm:$0xff]
    %v4249 = vld [vmem:[#allocation37 + $0x8] sm:$0xff]
    %v4250 = vld [vmem:[#allocation37 + $0x10] sm:$0xff]
    %v4251 = vld [vmem:[#allocation37 + $0x18] sm:$0xff]
    %v4252 = vld [vmem:[#allocation37 + $0x20] sm:$0xff]
    %v4253 = vld [vmem:[#allocation37 + $0x28] sm:$0xff]
    %v4254 = vld [vmem:[#allocation37 + $0x30] sm:$0xff]
    %v4255 = vld [vmem:[#allocation37 + $0x38] sm:$0xff]
    %v4256 = vld [vmem:[#allocation37 + $0x40] sm:$0xff]
    %v4257 = vld [vmem:[#allocation37 + $0x48] sm:$0xff]
    %v4258 = vld [vmem:[#allocation37 + $0x50] sm:$0xff]
    %v4259 = vld [vmem:[#allocation37 + $0x58] sm:$0xff]
    %v4260 = vld [vmem:[#allocation37 + $0x60] sm:$0xff]
    %v4261 = vld [vmem:[#allocation37 + $0x68] sm:$0xff]
    %v4262 = vld [vmem:[#allocation37 + $0x70] sm:$0xff]
    %v4263 = vld [vmem:[#allocation37 + $0x78] sm:$0xff]
    %v4264 = vld [vmem:[#allocation37 + $0x80] sm:$0xff]
    %v4265 = vld [vmem:[#allocation37 + $0x88] sm:$0xff]
    %v4266 = vld [vmem:[#allocation37 + $0x90] sm:$0xff]
    %v4267 = vld [vmem:[#allocation37 + $0x98] sm:$0xff]
    %v4268 = vld [vmem:[#allocation37 + $0xa0] sm:$0xff]
    %v4269 = vld [vmem:[#allocation37 + $0xa8] sm:$0xff]
    %v4270 = vld [vmem:[#allocation37 + $0xb0] sm:$0xff]
    %v4271 = vld [vmem:[#allocation37 + $0xb8] sm:$0xff]
    %v4272 = vld [vmem:[#allocation37 + $0xc0] sm:$0xff]
    %v4273 = vld [vmem:[#allocation37 + $0xc8] sm:$0xff]
    %v4274 = vld [vmem:[#allocation37 + $0xd0] sm:$0xff]
    %v4275 = vld [vmem:[#allocation37 + $0xd8] sm:$0xff]
    %v4276 = vld [vmem:[#allocation37 + $0xe0] sm:$0xff]
    %v4277 = vld [vmem:[#allocation37 + $0xe8] sm:$0xff]
    %v4278 = vld [vmem:[#allocation37 + $0xf0] sm:$0xff]
    %v4279 = vld [vmem:[#allocation37 + $0xf8] sm:$0xff]
    %v4280 = vld [vmem:[#allocation37 + $0x100] sm:$0xff]
    %v4281 = vld [vmem:[#allocation37 + $0x108] sm:$0xff]
    %v4282 = vld [vmem:[#allocation37 + $0x110] sm:$0xff]
    %v4283 = vld [vmem:[#allocation37 + $0x118] sm:$0xff]
    %v4284 = vld [vmem:[#allocation37 + $0x120] sm:$0xff]
    %v4285 = vld [vmem:[#allocation37 + $0x128] sm:$0xff]
    %v4286 = vld [vmem:[#allocation37 + $0x130] sm:$0xff]
    %v4287 = vld [vmem:[#allocation37 + $0x138] sm:$0xff]
    %v4288 = vld [vmem:[#allocation37 + $0x140] sm:$0xff]
    %v4289 = vld [vmem:[#allocation37 + $0x148] sm:$0xff]
    %v4290 = vld [vmem:[#allocation37 + $0x150] sm:$0xff]
    %v4291 = vld [vmem:[#allocation37 + $0x158] sm:$0xff]
    %v4292 = vld [vmem:[#allocation37 + $0x160] sm:$0xff]
    %v4293 = vld [vmem:[#allocation37 + $0x168] sm:$0xff]
    %v4294 = vld [vmem:[#allocation37 + $0x170] sm:$0xff]
    %v4295 = vld [vmem:[#allocation37 + $0x178] sm:$0xff]
    %v4296 = vld [vmem:[#allocation37 + $0x180] sm:$0xff]
    %v4297 = vld [vmem:[#allocation37 + $0x188] sm:$0xff]
    %v4298 = vld [vmem:[#allocation37 + $0x190] sm:$0xff]
    %v4299 = vld [vmem:[#allocation37 + $0x198] sm:$0xff]
    %v4300 = vld [vmem:[#allocation37 + $0x1a0] sm:$0xff]
    %v4301 = vld [vmem:[#allocation37 + $0x1a8] sm:$0xff]
    %v4302 = vld [vmem:[#allocation37 + $0x1b0] sm:$0xff]
    %v4303 = vld [vmem:[#allocation37 + $0x1b8] sm:$0xff]
    %v4304 = vld [vmem:[#allocation37 + $0x1c0] sm:$0xff]
    %v4305 = vld [vmem:[#allocation37 + $0x1c8] sm:$0xff]
    %v4306 = vld [vmem:[#allocation37 + $0x1d0] sm:$0xff]
    %v4307 = vld [vmem:[#allocation37 + $0x1d8] sm:$0xff]
    %v4308 = vld [vmem:[#allocation37 + $0x1e0] sm:$0xff]
    %v4309 = vld [vmem:[#allocation37 + $0x1e8] sm:$0xff]
    %v4310 = vld [vmem:[#allocation37 + $0x1f0] sm:$0xff]
    %v4311 = vld [vmem:[#allocation37 + $0x1f8] sm:$0xff]
    %s4312 = scalar_lea.vmem [#allocation2], 83
    %v4313 = vld [vmem:[%s4312] ss:$8 sm:$0x3]
    %v4315 = vlaneseq
    %v4316 = vshrl.u32 %v4315, 7
    %v4317 = vsub.s32 0, %v4316
    %v4318 = vrot.slane %v4313, %v4317
    %v4319 = vlaneseq
    %v4320 = vshrl.u32 %v4319, 7
    %v4321 = vsub.s32 1, %v4320
    %v4322 = vrot.slane %v4313, %v4321
    %4325 = vmatprep.subr.mxu0 %v4279
    %4326 = vmatpush1.msra.mxu0 %v4278
    %4327 = vmatprep.subr.mxu0 %v4277
    %4328 = vmatpush1.msra.mxu0 %v4276
    %4329 = vmatprep.subr.mxu0 %v4275
    %4330 = vmatpush1.msra.mxu0 %v4274
    %4331 = vmatprep.subr.mxu0 %v4273
    %4332 = vmatpush1.msra.mxu0 %v4272
    %4333 = vmatprep.subr.mxu0 %v4271
    %4334 = vmatpush1.msra.mxu0 %v4270
    %4335 = vmatprep.subr.mxu0 %v4269
    %4336 = vmatpush1.msra.mxu0 %v4268
    %4337 = vmatprep.subr.mxu0 %v4267
    %4338 = vmatpush1.msra.mxu0 %v4266
    %4339 = vmatprep.subr.mxu0 %v4265
    %4340 = vmatpush1.msra.mxu0 %v4264
    %4341 = vmatprep.subr.mxu0 %v4263
    %4342 = vmatpush1.msra.mxu0 %v4262
    %4343 = vmatprep.subr.mxu0 %v4261
    %4344 = vmatpush1.msra.mxu0 %v4260
    %4345 = vmatprep.subr.mxu0 %v4259
    %4346 = vmatpush1.msra.mxu0 %v4258
    %4347 = vmatprep.subr.mxu0 %v4257
    %4348 = vmatpush1.msra.mxu0 %v4256
    %4349 = vmatprep.subr.mxu0 %v4255
    %4350 = vmatpush1.msra.mxu0 %v4254
    %4351 = vmatprep.subr.mxu0 %v4253
    %4352 = vmatpush1.msra.mxu0 %v4252
    %4353 = vmatprep.subr.mxu0 %v4251
    %4354 = vmatpush1.msra.mxu0 %v4250
    %4355 = vmatprep.subr.mxu0 %v4249
    %4356 = vmatpush1.msra.mxu0 %v4248
    %4357 = vmatprep.subr.mxu0 %v4311
    %4358 = vmatpush2.msra.mxu0 %v4310
    %4359 = vmatprep.subr.mxu0 %v4309
    %4360 = vmatpush2.msra.mxu0 %v4308
    %4361 = vmatprep.subr.mxu0 %v4307
    %4362 = vmatpush2.msra.mxu0 %v4306
    %4363 = vmatprep.subr.mxu0 %v4305
    %4364 = vmatpush2.msra.mxu0 %v4304
    %4365 = vmatprep.subr.mxu0 %v4303
    %4366 = vmatpush2.msra.mxu0 %v4302
    %4367 = vmatprep.subr.mxu0 %v4301
    %4368 = vmatpush2.msra.mxu0 %v4300
    %4369 = vmatprep.subr.mxu0 %v4299
    %4370 = vmatpush2.msra.mxu0 %v4298
    %4371 = vmatprep.subr.mxu0 %v4297
    %4372 = vmatpush2.msra.mxu0 %v4296
    %4373 = vmatprep.subr.mxu0 %v4295
    %4374 = vmatpush2.msra.mxu0 %v4294
    %4375 = vmatprep.subr.mxu0 %v4293
    %4376 = vmatpush2.msra.mxu0 %v4292
    %4377 = vmatprep.subr.mxu0 %v4291
    %4378 = vmatpush2.msra.mxu0 %v4290
    %4379 = vmatprep.subr.mxu0 %v4289
    %4380 = vmatpush2.msra.mxu0 %v4288
    %4381 = vmatprep.subr.mxu0 %v4287
    %4382 = vmatpush2.msra.mxu0 %v4286
    %4383 = vmatprep.subr.mxu0 %v4285
    %4384 = vmatpush2.msra.mxu0 %v4284
    %4385 = vmatprep.subr.mxu0 %v4283
    %4386 = vmatpush2.msra.mxu0 %v4282
    %4387 = vmatprep.subr.mxu0 %v4281
    %4388 = vmatpush2.msra.mxu0 %v4280
    %4389 = vmatprep.mubr.f32.mxu0 %v4247
    %4390 = vmatmul.mubr.f32.gmra.mxu0 %v4246
    %v4391 = vpop.f32.mrf.mxu0
    %v4392 = vadd.f32 %v4318, %v4391
    %v4393 = vpop.f32.mrf.mxu0
    %v4394 = vadd.f32 %v4322, %v4393
    %4395 = vdwg.mxu0
    %v4396 = vmul.f32 %v4392, 0.5
    %v4397 = vmul.f32 %v4394, 0.5
    %v4398 = vmul.f32 %v4392, 0.044715
    %v4399 = vmul.f32 %v4394, 0.044715
    %v4400 = vmul.f32 %v4398, %v4392
    %v4401 = vmul.f32 %v4399, %v4394
    %v4402 = vmul.f32 %v4400, %v4392
    %v4403 = vmul.f32 %v4401, %v4394
    %v4404 = vadd.f32 %v4392, %v4402
    %v4405 = vadd.f32 %v4394, %v4403
    %v4406 = vmul.f32 %v4404, 0.7978846
    %v4407 = vmul.f32 %v4405, 0.7978846
    %v4408 = vtanh.pop %v4406
    %v4409 = vtanh.pop %v4407
    %v4410 = vadd.f32 %v4408, 1.0
    %v4411 = vadd.f32 %v4409, 1.0
    %v4412 = vmul.f32 %v4396, %v4410
    %v4413 = vmul.f32 %v4397, %v4411
    %v4414 = vld [vmem:[#allocation39] sm:$0xff]
    %v4415 = vld [vmem:[#allocation39 + $0x8] sm:$0xff]
    %v4416 = vld [vmem:[#allocation39 + $0x10] sm:$0xff]
    %v4417 = vld [vmem:[#allocation39 + $0x18] sm:$0xff]
    %v4418 = vld [vmem:[#allocation39 + $0x20] sm:$0xff]
    %v4419 = vld [vmem:[#allocation39 + $0x28] sm:$0xff]
    %v4420 = vld [vmem:[#allocation39 + $0x30] sm:$0xff]
    %v4421 = vld [vmem:[#allocation39 + $0x38] sm:$0xff]
    %v4422 = vld [vmem:[#allocation39 + $0x40] sm:$0xff]
    %v4423 = vld [vmem:[#allocation39 + $0x48] sm:$0xff]
    %v4424 = vld [vmem:[#allocation39 + $0x50] sm:$0xff]
    %v4425 = vld [vmem:[#allocation39 + $0x58] sm:$0xff]
    %v4426 = vld [vmem:[#allocation39 + $0x60] sm:$0xff]
    %v4427 = vld [vmem:[#allocation39 + $0x68] sm:$0xff]
    %v4428 = vld [vmem:[#allocation39 + $0x70] sm:$0xff]
    %v4429 = vld [vmem:[#allocation39 + $0x78] sm:$0xff]
    %v4430 = vld [vmem:[#allocation39 + $0x80] sm:$0xff]
    %v4431 = vld [vmem:[#allocation39 + $0x88] sm:$0xff]
    %v4432 = vld [vmem:[#allocation39 + $0x90] sm:$0xff]
    %v4433 = vld [vmem:[#allocation39 + $0x98] sm:$0xff]
    %v4434 = vld [vmem:[#allocation39 + $0xa0] sm:$0xff]
    %v4435 = vld [vmem:[#allocation39 + $0xa8] sm:$0xff]
    %v4436 = vld [vmem:[#allocation39 + $0xb0] sm:$0xff]
    %v4437 = vld [vmem:[#allocation39 + $0xb8] sm:$0xff]
    %v4438 = vld [vmem:[#allocation39 + $0xc0] sm:$0xff]
    %v4439 = vld [vmem:[#allocation39 + $0xc8] sm:$0xff]
    %v4440 = vld [vmem:[#allocation39 + $0xd0] sm:$0xff]
    %v4441 = vld [vmem:[#allocation39 + $0xd8] sm:$0xff]
    %v4442 = vld [vmem:[#allocation39 + $0xe0] sm:$0xff]
    %v4443 = vld [vmem:[#allocation39 + $0xe8] sm:$0xff]
    %v4444 = vld [vmem:[#allocation39 + $0xf0] sm:$0xff]
    %v4445 = vld [vmem:[#allocation39 + $0xf8] sm:$0xff]
    %v4446 = vld [vmem:[#allocation2 + $0x54] ss:$0 sm:$0xff]
    %4447 = vmatprep.subr.mxu0 0.0
    %4448 = vmatpush1.msra.mxu0 %v4429
    %4449 = vmatprep.subr.mxu0 0.0
    %4450 = vmatpush1.msra.mxu0 %v4428
    %4451 = vmatprep.subr.mxu0 0.0
    %4452 = vmatpush1.msra.mxu0 %v4427
    %4453 = vmatprep.subr.mxu0 0.0
    %4454 = vmatpush1.msra.mxu0 %v4426
    %4455 = vmatprep.subr.mxu0 0.0
    %4456 = vmatpush1.msra.mxu0 %v4425
    %4457 = vmatprep.subr.mxu0 0.0
    %4458 = vmatpush1.msra.mxu0 %v4424
    %4459 = vmatprep.subr.mxu0 0.0
    %4460 = vmatpush1.msra.mxu0 %v4423
    %4461 = vmatprep.subr.mxu0 0.0
    %4462 = vmatpush1.msra.mxu0 %v4422
    %4463 = vmatprep.subr.mxu0 0.0
    %4464 = vmatpush1.msra.mxu0 %v4421
    %4465 = vmatprep.subr.mxu0 0.0
    %4466 = vmatpush1.msra.mxu0 %v4420
    %4467 = vmatprep.subr.mxu0 0.0
    %4468 = vmatpush1.msra.mxu0 %v4419
    %4469 = vmatprep.subr.mxu0 0.0
    %4470 = vmatpush1.msra.mxu0 %v4418
    %4471 = vmatprep.subr.mxu0 0.0
    %4472 = vmatpush1.msra.mxu0 %v4417
    %4473 = vmatprep.subr.mxu0 0.0
    %4474 = vmatpush1.msra.mxu0 %v4416
    %4475 = vmatprep.subr.mxu0 0.0
    %4476 = vmatpush1.msra.mxu0 %v4415
    %4477 = vmatprep.subr.mxu0 0.0
    %4478 = vmatpush1.msra.mxu0 %v4414
    %4479 = vmatprep.subr.mxu0 0.0
    %4480 = vmatpush2.msra.mxu0 %v4445
    %4481 = vmatprep.subr.mxu0 0.0
    %4482 = vmatpush2.msra.mxu0 %v4444
    %4483 = vmatprep.subr.mxu0 0.0
    %4484 = vmatpush2.msra.mxu0 %v4443
    %4485 = vmatprep.subr.mxu0 0.0
    %4486 = vmatpush2.msra.mxu0 %v4442
    %4487 = vmatprep.subr.mxu0 0.0
    %4488 = vmatpush2.msra.mxu0 %v4441
    %4489 = vmatprep.subr.mxu0 0.0
    %4490 = vmatpush2.msra.mxu0 %v4440
    %4491 = vmatprep.subr.mxu0 0.0
    %4492 = vmatpush2.msra.mxu0 %v4439
    %4493 = vmatprep.subr.mxu0 0.0
    %4494 = vmatpush2.msra.mxu0 %v4438
    %4495 = vmatprep.subr.mxu0 0.0
    %4496 = vmatpush2.msra.mxu0 %v4437
    %4497 = vmatprep.subr.mxu0 0.0
    %4498 = vmatpush2.msra.mxu0 %v4436
    %4499 = vmatprep.subr.mxu0 0.0
    %4500 = vmatpush2.msra.mxu0 %v4435
    %4501 = vmatprep.subr.mxu0 0.0
    %4502 = vmatpush2.msra.mxu0 %v4434
    %4503 = vmatprep.subr.mxu0 0.0
    %4504 = vmatpush2.msra.mxu0 %v4433
    %4505 = vmatprep.subr.mxu0 0.0
    %4506 = vmatpush2.msra.mxu0 %v4432
    %4507 = vmatprep.subr.mxu0 0.0
    %4508 = vmatpush2.msra.mxu0 %v4431
    %4509 = vmatprep.subr.mxu0 0.0
    %4510 = vmatpush2.msra.mxu0 %v4430
    %4511 = vmatprep.mubr.f32.mxu0 %v4413
    %4512 = vmatmul.mubr.f32.gmra.mxu0 %v4412
    %v4513 = vpop.f32.mrf.mxu0
    %v4514 = vadd.f32 %v4446, %v4513
    %v4515 = vpop.f32.mrf.mxu0
    %4516 = vdwg.mxu0
    %v4517 = vld [vmem:[#allocation2 + $0x57] ss:$0 sm:$0xff]
    %4519 = vset.pattern.permute.xlu0 0
    %4520 = vperm.xlu0 %4519, %v4517
    %v4521 = vpop.permute.xlu0 %4520
    %v4523 = vmul.f32 %v4521, %v4098
    %v4524 = vadd.f32 %v4514, %v4523
    %v4525 = vld [vmem:[#allocation40] sm:$0xff]
    %v4526 = vld [vmem:[#allocation40 + $0x8] sm:$0xff]
    %v4527 = vld [vmem:[#allocation40 + $0x10] sm:$0xff]
    %v4528 = vld [vmem:[#allocation40 + $0x18] sm:$0xff]
    %v4529 = vld [vmem:[#allocation40 + $0x20] sm:$0xff]
    %v4530 = vld [vmem:[#allocation40 + $0x28] sm:$0xff]
    %v4531 = vld [vmem:[#allocation40 + $0x30] sm:$0xff]
    %v4532 = vld [vmem:[#allocation40 + $0x38] sm:$0xff]
    %v4533 = vld [vmem:[#allocation40 + $0x40] sm:$0xff]
    %v4534 = vld [vmem:[#allocation40 + $0x48] sm:$0xff]
    %v4535 = vld [vmem:[#allocation40 + $0x50] sm:$0xff]
    %v4536 = vld [vmem:[#allocation40 + $0x58] sm:$0xff]
    %v4537 = vld [vmem:[#allocation40 + $0x60] sm:$0xff]
    %v4538 = vld [vmem:[#allocation40 + $0x68] sm:$0xff]
    %v4539 = vld [vmem:[#allocation40 + $0x70] sm:$0xff]
    %v4540 = vld [vmem:[#allocation40 + $0x78] sm:$0xff]
    %v4541 = vld [vmem:[#allocation40 + $0x80] sm:$0xff]
    %v4542 = vld [vmem:[#allocation40 + $0x88] sm:$0xff]
    %v4543 = vld [vmem:[#allocation40 + $0x90] sm:$0xff]
    %v4544 = vld [vmem:[#allocation40 + $0x98] sm:$0xff]
    %v4545 = vld [vmem:[#allocation40 + $0xa0] sm:$0xff]
    %v4546 = vld [vmem:[#allocation40 + $0xa8] sm:$0xff]
    %v4547 = vld [vmem:[#allocation40 + $0xb0] sm:$0xff]
    %v4548 = vld [vmem:[#allocation40 + $0xb8] sm:$0xff]
    %v4549 = vld [vmem:[#allocation40 + $0xc0] sm:$0xff]
    %v4550 = vld [vmem:[#allocation40 + $0xc8] sm:$0xff]
    %v4551 = vld [vmem:[#allocation40 + $0xd0] sm:$0xff]
    %v4552 = vld [vmem:[#allocation40 + $0xd8] sm:$0xff]
    %v4553 = vld [vmem:[#allocation40 + $0xe0] sm:$0xff]
    %v4554 = vld [vmem:[#allocation40 + $0xe8] sm:$0xff]
    %v4555 = vld [vmem:[#allocation40 + $0xf0] sm:$0xff]
    %v4556 = vld [vmem:[#allocation40 + $0xf8] sm:$0xff]
    %s4557 = scalar_lea.vmem [#allocation2], 96
    %v4558 = vld [vmem:[%s4557] ss:$8 sm:$0x3]
    %v4560 = vlaneseq
    %v4561 = vshrl.u32 %v4560, 7
    %v4562 = vsub.s32 0, %v4561
    %v4563 = vrot.slane %v4558, %v4562
    %v4564 = vlaneseq
    %v4565 = vshrl.u32 %v4564, 7
    %v4566 = vsub.s32 1, %v4565
    %v4567 = vrot.slane %v4558, %v4566
    %4570 = vmatprep.subr.mxu0 %v4556
    %4571 = vmatpush1.msra.mxu0 %v4555
    %4572 = vmatprep.subr.mxu0 %v4554
    %4573 = vmatpush1.msra.mxu0 %v4553
    %4574 = vmatprep.subr.mxu0 %v4552
    %4575 = vmatpush1.msra.mxu0 %v4551
    %4576 = vmatprep.subr.mxu0 %v4550
    %4577 = vmatpush1.msra.mxu0 %v4549
    %4578 = vmatprep.subr.mxu0 %v4548
    %4579 = vmatpush1.msra.mxu0 %v4547
    %4580 = vmatprep.subr.mxu0 %v4546
    %4581 = vmatpush1.msra.mxu0 %v4545
    %4582 = vmatprep.subr.mxu0 %v4544
    %4583 = vmatpush1.msra.mxu0 %v4543
    %4584 = vmatprep.subr.mxu0 %v4542
    %4585 = vmatpush1.msra.mxu0 %v4541
    %4586 = vmatprep.subr.mxu0 %v4540
    %4587 = vmatpush1.msra.mxu0 %v4539
    %4588 = vmatprep.subr.mxu0 %v4538
    %4589 = vmatpush1.msra.mxu0 %v4537
    %4590 = vmatprep.subr.mxu0 %v4536
    %4591 = vmatpush1.msra.mxu0 %v4535
    %4592 = vmatprep.subr.mxu0 %v4534
    %4593 = vmatpush1.msra.mxu0 %v4533
    %4594 = vmatprep.subr.mxu0 %v4532
    %4595 = vmatpush1.msra.mxu0 %v4531
    %4596 = vmatprep.subr.mxu0 %v4530
    %4597 = vmatpush1.msra.mxu0 %v4529
    %4598 = vmatprep.subr.mxu0 %v4528
    %4599 = vmatpush1.msra.mxu0 %v4527
    %4600 = vmatprep.subr.mxu0 %v4526
    %4601 = vmatpush1.msra.mxu0 %v4525
    %4602 = vmatprep.subr.mxu0 0.0
    %4603 = vmatpush2.msra.mxu0 0.0
    %4604 = vmatprep.subr.mxu0 0.0
    %4605 = vmatpush2.msra.mxu0 0.0
    %4606 = vmatprep.subr.mxu0 0.0
    %4607 = vmatpush2.msra.mxu0 0.0
    %4608 = vmatprep.subr.mxu0 0.0
    %4609 = vmatpush2.msra.mxu0 0.0
    %4610 = vmatprep.subr.mxu0 0.0
    %4611 = vmatpush2.msra.mxu0 0.0
    %4612 = vmatprep.subr.mxu0 0.0
    %4613 = vmatpush2.msra.mxu0 0.0
    %4614 = vmatprep.subr.mxu0 0.0
    %4615 = vmatpush2.msra.mxu0 0.0
    %4616 = vmatprep.subr.mxu0 0.0
    %4617 = vmatpush2.msra.mxu0 0.0
    %4618 = vmatprep.subr.mxu0 0.0
    %4619 = vmatpush2.msra.mxu0 0.0
    %4620 = vmatprep.subr.mxu0 0.0
    %4621 = vmatpush2.msra.mxu0 0.0
    %4622 = vmatprep.subr.mxu0 0.0
    %4623 = vmatpush2.msra.mxu0 0.0
    %4624 = vmatprep.subr.mxu0 0.0
    %4625 = vmatpush2.msra.mxu0 0.0
    %4626 = vmatprep.subr.mxu0 0.0
    %4627 = vmatpush2.msra.mxu0 0.0
    %4628 = vmatprep.subr.mxu0 0.0
    %4629 = vmatpush2.msra.mxu0 0.0
    %4630 = vmatprep.subr.mxu0 0.0
    %4631 = vmatpush2.msra.mxu0 0.0
    %4632 = vmatprep.subr.mxu0 0.0
    %4633 = vmatpush2.msra.mxu0 0.0
    %4634 = vmatprep.mubr.f32.mxu0 0.0
    %4635 = vmatmul.mubr.f32.gmra.mxu0 %v4524
    %v4636 = vpop.f32.mrf.mxu0
    %v4637 = vadd.f32 %v4563, %v4636
    %v4638 = vpop.f32.mrf.mxu0
    %v4639 = vadd.f32 %v4567, %v4638
    %4640 = vdwg.mxu0
    %v4641 = vadd.f32 %v4637, %v4639
    %4642 = vadd.xlane.f32.xlu0 %v4641
    %v4643 = vpop.xlane.xlu0 %4642
    %v4644 = vrcp.pop 256.0
    %v4645 = vmul.f32 %v4643, %v4644
    %v4646 = vsub.f32 %v4637, %v4645
    %v4647 = vsub.f32 %v4639, %v4645
    %v4648 = vmul.f32 %v4646, %v4646
    %v4649 = vmul.f32 %v4647, %v4647
    %v4650 = vadd.f32 %v4648, %v4649
    %4651 = vadd.xlane.f32.xlu0 %v4650
    %v4652 = vpop.xlane.xlu0 %4651
    %v4653 = vmul.f32 %v4652, %v4644
    %v4654 = vadd.f32 %v4653, 1e-05
    %v4655 = vrsqrt.pop %v4654
    %v4656 = vmul.f32 %v4646, %v4655
    %v4657 = vmul.f32 %v4647, %v4655
    %s4658 = scalar_lea.vmem [#allocation2], 100
    %v4659 = vld [vmem:[%s4658] ss:$8 sm:$0x3]
    %v4661 = vlaneseq
    %v4662 = vshrl.u32 %v4661, 7
    %v4663 = vsub.s32 0, %v4662
    %v4664 = vrot.slane %v4659, %v4663
    %v4665 = vlaneseq
    %v4666 = vshrl.u32 %v4665, 7
    %v4667 = vsub.s32 1, %v4666
    %v4668 = vrot.slane %v4659, %v4667
    %v4671 = vmul.f32 %v4656, %v4664
    %v4672 = vmul.f32 %v4657, %v4668
    %s4673 = scalar_lea.vmem [#allocation2], 99
    %v4674 = vld [vmem:[%s4673] ss:$8 sm:$0x3]
    %v4676 = vlaneseq
    %v4677 = vshrl.u32 %v4676, 7
    %v4678 = vsub.s32 0, %v4677
    %v4679 = vrot.slane %v4674, %v4678
    %v4680 = vlaneseq
    %v4681 = vshrl.u32 %v4680, 7
    %v4682 = vsub.s32 1, %v4681
    %v4683 = vrot.slane %v4674, %v4682
    %v4686 = vadd.f32 %v4671, %v4679
    %v4687 = vadd.f32 %v4672, %v4683
    %v4688 = vmax.f32 %v4686, 0.0
    %v4689 = vmax.f32 %v4687, 0.0
    %v4690 = vld [vmem:[#allocation42] sm:$0xff]
    %v4691 = vld [vmem:[#allocation42 + $0x8] sm:$0xff]
    %v4692 = vld [vmem:[#allocation42 + $0x10] sm:$0xff]
    %v4693 = vld [vmem:[#allocation42 + $0x18] sm:$0xff]
    %v4694 = vld [vmem:[#allocation42 + $0x20] sm:$0xff]
    %v4695 = vld [vmem:[#allocation42 + $0x28] sm:$0xff]
    %v4696 = vld [vmem:[#allocation42 + $0x30] sm:$0xff]
    %v4697 = vld [vmem:[#allocation42 + $0x38] sm:$0xff]
    %v4698 = vld [vmem:[#allocation42 + $0x40] sm:$0xff]
    %v4699 = vld [vmem:[#allocation42 + $0x48] sm:$0xff]
    %v4700 = vld [vmem:[#allocation42 + $0x50] sm:$0xff]
    %v4701 = vld [vmem:[#allocation42 + $0x58] sm:$0xff]
    %v4702 = vld [vmem:[#allocation42 + $0x60] sm:$0xff]
    %v4703 = vld [vmem:[#allocation42 + $0x68] sm:$0xff]
    %v4704 = vld [vmem:[#allocation42 + $0x70] sm:$0xff]
    %v4705 = vld [vmem:[#allocation42 + $0x78] sm:$0xff]
    %v4706 = vld [vmem:[#allocation42 + $0x80] sm:$0xff]
    %v4707 = vld [vmem:[#allocation42 + $0x88] sm:$0xff]
    %v4708 = vld [vmem:[#allocation42 + $0x90] sm:$0xff]
    %v4709 = vld [vmem:[#allocation42 + $0x98] sm:$0xff]
    %v4710 = vld [vmem:[#allocation42 + $0xa0] sm:$0xff]
    %v4711 = vld [vmem:[#allocation42 + $0xa8] sm:$0xff]
    %v4712 = vld [vmem:[#allocation42 + $0xb0] sm:$0xff]
    %v4713 = vld [vmem:[#allocation42 + $0xb8] sm:$0xff]
    %v4714 = vld [vmem:[#allocation42 + $0xc0] sm:$0xff]
    %v4715 = vld [vmem:[#allocation42 + $0xc8] sm:$0xff]
    %v4716 = vld [vmem:[#allocation42 + $0xd0] sm:$0xff]
    %v4717 = vld [vmem:[#allocation42 + $0xd8] sm:$0xff]
    %v4718 = vld [vmem:[#allocation42 + $0xe0] sm:$0xff]
    %v4719 = vld [vmem:[#allocation42 + $0xe8] sm:$0xff]
    %v4720 = vld [vmem:[#allocation42 + $0xf0] sm:$0xff]
    %v4721 = vld [vmem:[#allocation42 + $0xf8] sm:$0xff]
    %v4722 = vld [vmem:[#allocation2 + $0x61] ss:$0 sm:$0xff]
    %4723 = vmatprep.subr.mxu0 0.0
    %4724 = vmatpush1.msra.mxu0 %v4705
    %4725 = vmatprep.subr.mxu0 0.0
    %4726 = vmatpush1.msra.mxu0 %v4704
    %4727 = vmatprep.subr.mxu0 0.0
    %4728 = vmatpush1.msra.mxu0 %v4703
    %4729 = vmatprep.subr.mxu0 0.0
    %4730 = vmatpush1.msra.mxu0 %v4702
    %4731 = vmatprep.subr.mxu0 0.0
    %4732 = vmatpush1.msra.mxu0 %v4701
    %4733 = vmatprep.subr.mxu0 0.0
    %4734 = vmatpush1.msra.mxu0 %v4700
    %4735 = vmatprep.subr.mxu0 0.0
    %4736 = vmatpush1.msra.mxu0 %v4699
    %4737 = vmatprep.subr.mxu0 0.0
    %4738 = vmatpush1.msra.mxu0 %v4698
    %4739 = vmatprep.subr.mxu0 0.0
    %4740 = vmatpush1.msra.mxu0 %v4697
    %4741 = vmatprep.subr.mxu0 0.0
    %4742 = vmatpush1.msra.mxu0 %v4696
    %4743 = vmatprep.subr.mxu0 0.0
    %4744 = vmatpush1.msra.mxu0 %v4695
    %4745 = vmatprep.subr.mxu0 0.0
    %4746 = vmatpush1.msra.mxu0 %v4694
    %4747 = vmatprep.subr.mxu0 0.0
    %4748 = vmatpush1.msra.mxu0 %v4693
    %4749 = vmatprep.subr.mxu0 0.0
    %4750 = vmatpush1.msra.mxu0 %v4692
    %4751 = vmatprep.subr.mxu0 0.0
    %4752 = vmatpush1.msra.mxu0 %v4691
    %4753 = vmatprep.subr.mxu0 0.0
    %4754 = vmatpush1.msra.mxu0 %v4690
    %4755 = vmatprep.subr.mxu0 0.0
    %4756 = vmatpush2.msra.mxu0 %v4721
    %4757 = vmatprep.subr.mxu0 0.0
    %4758 = vmatpush2.msra.mxu0 %v4720
    %4759 = vmatprep.subr.mxu0 0.0
    %4760 = vmatpush2.msra.mxu0 %v4719
    %4761 = vmatprep.subr.mxu0 0.0
    %4762 = vmatpush2.msra.mxu0 %v4718
    %4763 = vmatprep.subr.mxu0 0.0
    %4764 = vmatpush2.msra.mxu0 %v4717
    %4765 = vmatprep.subr.mxu0 0.0
    %4766 = vmatpush2.msra.mxu0 %v4716
    %4767 = vmatprep.subr.mxu0 0.0
    %4768 = vmatpush2.msra.mxu0 %v4715
    %4769 = vmatprep.subr.mxu0 0.0
    %4770 = vmatpush2.msra.mxu0 %v4714
    %4771 = vmatprep.subr.mxu0 0.0
    %4772 = vmatpush2.msra.mxu0 %v4713
    %4773 = vmatprep.subr.mxu0 0.0
    %4774 = vmatpush2.msra.mxu0 %v4712
    %4775 = vmatprep.subr.mxu0 0.0
    %4776 = vmatpush2.msra.mxu0 %v4711
    %4777 = vmatprep.subr.mxu0 0.0
    %4778 = vmatpush2.msra.mxu0 %v4710
    %4779 = vmatprep.subr.mxu0 0.0
    %4780 = vmatpush2.msra.mxu0 %v4709
    %4781 = vmatprep.subr.mxu0 0.0
    %4782 = vmatpush2.msra.mxu0 %v4708
    %4783 = vmatprep.subr.mxu0 0.0
    %4784 = vmatpush2.msra.mxu0 %v4707
    %4785 = vmatprep.subr.mxu0 0.0
    %4786 = vmatpush2.msra.mxu0 %v4706
    %4787 = vmatprep.mubr.f32.mxu0 %v4689
    %4788 = vmatmul.mubr.f32.gmra.mxu0 %v4688
    %v4789 = vpop.f32.mrf.mxu0
    %v4790 = vadd.f32 %v4722, %v4789
    %v4791 = vpop.f32.mrf.mxu0
    %4792 = vdwg.mxu0
    %4793 = vadd.xlane.f32.xlu0 %v4790
    %v4794 = vpop.xlane.xlu0 %4793
    %v4795 = vmul.f32 %v4794, %v792
    %v4796 = vsub.f32 %v4790, %v4795
    %v4797 = vmul.f32 %v4796, %v4796
    %4798 = vadd.xlane.f32.xlu0 %v4797
    %v4799 = vpop.xlane.xlu0 %4798
    %v4800 = vmul.f32 %v4799, %v792
    %v4801 = vadd.f32 %v4800, 1e-05
    %v4802 = vrsqrt.pop %v4801
    %v4803 = vmul.f32 %v4796, %v4802
    %v4804 = vld [vmem:[#allocation2 + $0x66] ss:$0 sm:$0xff]
    %v4805 = vmul.f32 %v4803, %v4804
    %v4806 = vld [vmem:[#allocation2 + $0x65] ss:$0 sm:$0xff]
    %v4807 = vadd.f32 %v4805, %v4806
    %v4808 = vmax.f32 %v4807, 0.0
    %v4809 = vld [vmem:[#allocation43] sm:$0xff]
    %v4810 = vld [vmem:[#allocation43 + $0x8] sm:$0xff]
    %v4811 = vld [vmem:[#allocation43 + $0x10] sm:$0xff]
    %v4812 = vld [vmem:[#allocation43 + $0x18] sm:$0xff]
    %v4813 = vld [vmem:[#allocation43 + $0x20] sm:$0xff]
    %v4814 = vld [vmem:[#allocation43 + $0x28] sm:$0xff]
    %v4815 = vld [vmem:[#allocation43 + $0x30] sm:$0xff]
    %v4816 = vld [vmem:[#allocation43 + $0x38] sm:$0xff]
    %v4817 = vld [vmem:[#allocation43 + $0x40] sm:$0xff]
    %v4818 = vld [vmem:[#allocation43 + $0x48] sm:$0xff]
    %v4819 = vld [vmem:[#allocation43 + $0x50] sm:$0xff]
    %v4820 = vld [vmem:[#allocation43 + $0x58] sm:$0xff]
    %v4821 = vld [vmem:[#allocation43 + $0x60] sm:$0xff]
    %v4822 = vld [vmem:[#allocation43 + $0x68] sm:$0xff]
    %v4823 = vld [vmem:[#allocation43 + $0x70] sm:$0xff]
    %v4824 = vld [vmem:[#allocation43 + $0x78] sm:$0xff]
    %v4825 = vld [vmem:[#allocation2 + $0x62] ss:$0 sm:$0xff]
    %4826 = vmatprep.subr.mxu0 0.0
    %4827 = vmatpush1.msra.mxu0 %v4824
    %4828 = vmatprep.subr.mxu0 0.0
    %4829 = vmatpush1.msra.mxu0 %v4823
    %4830 = vmatprep.subr.mxu0 0.0
    %4831 = vmatpush1.msra.mxu0 %v4822
    %4832 = vmatprep.subr.mxu0 0.0
    %4833 = vmatpush1.msra.mxu0 %v4821
    %4834 = vmatprep.subr.mxu0 0.0
    %4835 = vmatpush1.msra.mxu0 %v4820
    %4836 = vmatprep.subr.mxu0 0.0
    %4837 = vmatpush1.msra.mxu0 %v4819
    %4838 = vmatprep.subr.mxu0 0.0
    %4839 = vmatpush1.msra.mxu0 %v4818
    %4840 = vmatprep.subr.mxu0 0.0
    %4841 = vmatpush1.msra.mxu0 %v4817
    %4842 = vmatprep.subr.mxu0 0.0
    %4843 = vmatpush1.msra.mxu0 %v4816
    %4844 = vmatprep.subr.mxu0 0.0
    %4845 = vmatpush1.msra.mxu0 %v4815
    %4846 = vmatprep.subr.mxu0 0.0
    %4847 = vmatpush1.msra.mxu0 %v4814
    %4848 = vmatprep.subr.mxu0 0.0
    %4849 = vmatpush1.msra.mxu0 %v4813
    %4850 = vmatprep.subr.mxu0 0.0
    %4851 = vmatpush1.msra.mxu0 %v4812
    %4852 = vmatprep.subr.mxu0 0.0
    %4853 = vmatpush1.msra.mxu0 %v4811
    %4854 = vmatprep.subr.mxu0 0.0
    %4855 = vmatpush1.msra.mxu0 %v4810
    %4856 = vmatprep.subr.mxu0 0.0
    %4857 = vmatpush1.msra.mxu0 %v4809
    %4858 = vmatprep.subr.mxu0 0.0
    %4859 = vmatpush2.msra.mxu0 0.0
    %4860 = vmatprep.subr.mxu0 0.0
    %4861 = vmatpush2.msra.mxu0 0.0
    %4862 = vmatprep.subr.mxu0 0.0
    %4863 = vmatpush2.msra.mxu0 0.0
    %4864 = vmatprep.subr.mxu0 0.0
    %4865 = vmatpush2.msra.mxu0 0.0
    %4866 = vmatprep.subr.mxu0 0.0
    %4867 = vmatpush2.msra.mxu0 0.0
    %4868 = vmatprep.subr.mxu0 0.0
    %4869 = vmatpush2.msra.mxu0 0.0
    %4870 = vmatprep.subr.mxu0 0.0
    %4871 = vmatpush2.msra.mxu0 0.0
    %4872 = vmatprep.subr.mxu0 0.0
    %4873 = vmatpush2.msra.mxu0 0.0
    %4874 = vmatprep.subr.mxu0 0.0
    %4875 = vmatpush2.msra.mxu0 0.0
    %4876 = vmatprep.subr.mxu0 0.0
    %4877 = vmatpush2.msra.mxu0 0.0
    %4878 = vmatprep.subr.mxu0 0.0
    %4879 = vmatpush2.msra.mxu0 0.0
    %4880 = vmatprep.subr.mxu0 0.0
    %4881 = vmatpush2.msra.mxu0 0.0
    %4882 = vmatprep.subr.mxu0 0.0
    %4883 = vmatpush2.msra.mxu0 0.0
    %4884 = vmatprep.subr.mxu0 0.0
    %4885 = vmatpush2.msra.mxu0 0.0
    %4886 = vmatprep.subr.mxu0 0.0
    %4887 = vmatpush2.msra.mxu0 0.0
    %4888 = vmatprep.subr.mxu0 0.0
    %4889 = vmatpush2.msra.mxu0 0.0
    %4890 = vmatprep.mubr.f32.mxu0 0.0
    %4891 = vmatmul.mubr.f32.gmra.mxu0 %v4808
    %v4892 = vpop.f32.mrf.mxu0
    %v4893 = vadd.f32 %v4825, %v4892
    %v4894 = vpop.f32.mrf.mxu0
    %4895 = vdwg.mxu0
    %v4896 = vld [vmem:[#allocation58] sm:$0xff]
    %v4897 = vld [vmem:[#allocation58 + $0x8] sm:$0xff]
    %v4898 = vld [vmem:[#allocation58 + $0x10] sm:$0xff]
    %v4899 = vld [vmem:[#allocation58 + $0x18] sm:$0xff]
    %v4900 = vld [vmem:[#allocation58 + $0x20] sm:$0xff]
    %v4901 = vld [vmem:[#allocation58 + $0x28] sm:$0xff]
    %v4902 = vld [vmem:[#allocation58 + $0x30] sm:$0xff]
    %v4903 = vld [vmem:[#allocation58 + $0x38] sm:$0xff]
    %v4904 = vld [vmem:[#allocation58 + $0x40] sm:$0xff]
    %v4905 = vld [vmem:[#allocation58 + $0x48] sm:$0xff]
    %v4906 = vld [vmem:[#allocation58 + $0x50] sm:$0xff]
    %v4907 = vld [vmem:[#allocation58 + $0x58] sm:$0xff]
    %v4908 = vld [vmem:[#allocation58 + $0x60] sm:$0xff]
    %v4909 = vld [vmem:[#allocation58 + $0x68] sm:$0xff]
    %v4910 = vld [vmem:[#allocation58 + $0x70] sm:$0xff]
    %v4911 = vld [vmem:[#allocation58 + $0x78] sm:$0xff]
    %v4912 = vld [vmem:[#allocation2 + $0x92] ss:$0 sm:$0xff]
    %4913 = vmatprep.subr.mxu0 0.0
    %4914 = vmatpush1.msra.mxu0 %v4911
    %4915 = vmatprep.subr.mxu0 0.0
    %4916 = vmatpush1.msra.mxu0 %v4910
    %4917 = vmatprep.subr.mxu0 0.0
    %4918 = vmatpush1.msra.mxu0 %v4909
    %4919 = vmatprep.subr.mxu0 0.0
    %4920 = vmatpush1.msra.mxu0 %v4908
    %4921 = vmatprep.subr.mxu0 0.0
    %4922 = vmatpush1.msra.mxu0 %v4907
    %4923 = vmatprep.subr.mxu0 0.0
    %4924 = vmatpush1.msra.mxu0 %v4906
    %4925 = vmatprep.subr.mxu0 0.0
    %4926 = vmatpush1.msra.mxu0 %v4905
    %4927 = vmatprep.subr.mxu0 0.0
    %4928 = vmatpush1.msra.mxu0 %v4904
    %4929 = vmatprep.subr.mxu0 0.0
    %4930 = vmatpush1.msra.mxu0 %v4903
    %4931 = vmatprep.subr.mxu0 0.0
    %4932 = vmatpush1.msra.mxu0 %v4902
    %4933 = vmatprep.subr.mxu0 0.0
    %4934 = vmatpush1.msra.mxu0 %v4901
    %4935 = vmatprep.subr.mxu0 0.0
    %4936 = vmatpush1.msra.mxu0 %v4900
    %4937 = vmatprep.subr.mxu0 0.0
    %4938 = vmatpush1.msra.mxu0 %v4899
    %4939 = vmatprep.subr.mxu0 0.0
    %4940 = vmatpush1.msra.mxu0 %v4898
    %4941 = vmatprep.subr.mxu0 0.0
    %4942 = vmatpush1.msra.mxu0 %v4897
    %4943 = vmatprep.subr.mxu0 0.0
    %4944 = vmatpush1.msra.mxu0 %v4896
    %4945 = vmatprep.subr.mxu0 0.0
    %4946 = vmatpush2.msra.mxu0 0.0
    %4947 = vmatprep.subr.mxu0 0.0
    %4948 = vmatpush2.msra.mxu0 0.0
    %4949 = vmatprep.subr.mxu0 0.0
    %4950 = vmatpush2.msra.mxu0 0.0
    %4951 = vmatprep.subr.mxu0 0.0
    %4952 = vmatpush2.msra.mxu0 0.0
    %4953 = vmatprep.subr.mxu0 0.0
    %4954 = vmatpush2.msra.mxu0 0.0
    %4955 = vmatprep.subr.mxu0 0.0
    %4956 = vmatpush2.msra.mxu0 0.0
    %4957 = vmatprep.subr.mxu0 0.0
    %4958 = vmatpush2.msra.mxu0 0.0
    %4959 = vmatprep.subr.mxu0 0.0
    %4960 = vmatpush2.msra.mxu0 0.0
    %4961 = vmatprep.subr.mxu0 0.0
    %4962 = vmatpush2.msra.mxu0 0.0
    %4963 = vmatprep.subr.mxu0 0.0
    %4964 = vmatpush2.msra.mxu0 0.0
    %4965 = vmatprep.subr.mxu0 0.0
    %4966 = vmatpush2.msra.mxu0 0.0
    %4967 = vmatprep.subr.mxu0 0.0
    %4968 = vmatpush2.msra.mxu0 0.0
    %4969 = vmatprep.subr.mxu0 0.0
    %4970 = vmatpush2.msra.mxu0 0.0
    %4971 = vmatprep.subr.mxu0 0.0
    %4972 = vmatpush2.msra.mxu0 0.0
    %4973 = vmatprep.subr.mxu0 0.0
    %4974 = vmatpush2.msra.mxu0 0.0
    %4975 = vmatprep.subr.mxu0 0.0
    %4976 = vmatpush2.msra.mxu0 0.0
    %4977 = vmatprep.mubr.f32.mxu0 0.0
    %4978 = vmatmul.mubr.f32.gmra.mxu0 %v4524
    %v4979 = vpop.f32.mrf.mxu0
    %v4980 = vadd.f32 %v4912, %v4979
    %v4981 = vpop.f32.mrf.mxu0
    %4982 = vdwg.mxu0
    %v4983 = vmax.f32 %v4980, 0.0
    %v4984 = vld [vmem:[#allocation60] sm:$0xff]
    %v4985 = vld [vmem:[#allocation60 + $0x8] sm:$0xff]
    %v4986 = vld [vmem:[#allocation60 + $0x10] sm:$0xff]
    %v4987 = vld [vmem:[#allocation60 + $0x18] sm:$0xff]
    %v4988 = vld [vmem:[#allocation60 + $0x20] sm:$0xff]
    %v4989 = vld [vmem:[#allocation60 + $0x28] sm:$0xff]
    %v4990 = vld [vmem:[#allocation60 + $0x30] sm:$0xff]
    %v4991 = vld [vmem:[#allocation60 + $0x38] sm:$0xff]
    %v4992 = vld [vmem:[#allocation60 + $0x40] sm:$0xff]
    %v4993 = vld [vmem:[#allocation60 + $0x48] sm:$0xff]
    %v4994 = vld [vmem:[#allocation60 + $0x50] sm:$0xff]
    %v4995 = vld [vmem:[#allocation60 + $0x58] sm:$0xff]
    %v4996 = vld [vmem:[#allocation60 + $0x60] sm:$0xff]
    %v4997 = vld [vmem:[#allocation60 + $0x68] sm:$0xff]
    %v4998 = vld [vmem:[#allocation60 + $0x70] sm:$0xff]
    %v4999 = vld [vmem:[#allocation60 + $0x78] sm:$0xff]
    %v5000 = vld [vmem:[#allocation2 + $0x93] ss:$0 sm:$0xff]
    %5001 = vmatprep.subr.mxu0 0.0
    %5002 = vmatpush1.msra.mxu0 %v4999
    %5003 = vmatprep.subr.mxu0 0.0
    %5004 = vmatpush1.msra.mxu0 %v4998
    %5005 = vmatprep.subr.mxu0 0.0
    %5006 = vmatpush1.msra.mxu0 %v4997
    %5007 = vmatprep.subr.mxu0 0.0
    %5008 = vmatpush1.msra.mxu0 %v4996
    %5009 = vmatprep.subr.mxu0 0.0
    %5010 = vmatpush1.msra.mxu0 %v4995
    %5011 = vmatprep.subr.mxu0 0.0
    %5012 = vmatpush1.msra.mxu0 %v4994
    %5013 = vmatprep.subr.mxu0 0.0
    %5014 = vmatpush1.msra.mxu0 %v4993
    %5015 = vmatprep.subr.mxu0 0.0
    %5016 = vmatpush1.msra.mxu0 %v4992
    %5017 = vmatprep.subr.mxu0 0.0
    %5018 = vmatpush1.msra.mxu0 %v4991
    %5019 = vmatprep.subr.mxu0 0.0
    %5020 = vmatpush1.msra.mxu0 %v4990
    %5021 = vmatprep.subr.mxu0 0.0
    %5022 = vmatpush1.msra.mxu0 %v4989
    %5023 = vmatprep.subr.mxu0 0.0
    %5024 = vmatpush1.msra.mxu0 %v4988
    %5025 = vmatprep.subr.mxu0 0.0
    %5026 = vmatpush1.msra.mxu0 %v4987
    %5027 = vmatprep.subr.mxu0 0.0
    %5028 = vmatpush1.msra.mxu0 %v4986
    %5029 = vmatprep.subr.mxu0 0.0
    %5030 = vmatpush1.msra.mxu0 %v4985
    %5031 = vmatprep.subr.mxu0 0.0
    %5032 = vmatpush1.msra.mxu0 %v4984
    %5033 = vmatprep.subr.mxu0 0.0
    %5034 = vmatpush2.msra.mxu0 0.0
    %5035 = vmatprep.subr.mxu0 0.0
    %5036 = vmatpush2.msra.mxu0 0.0
    %5037 = vmatprep.subr.mxu0 0.0
    %5038 = vmatpush2.msra.mxu0 0.0
    %5039 = vmatprep.subr.mxu0 0.0
    %5040 = vmatpush2.msra.mxu0 0.0
    %5041 = vmatprep.subr.mxu0 0.0
    %5042 = vmatpush2.msra.mxu0 0.0
    %5043 = vmatprep.subr.mxu0 0.0
    %5044 = vmatpush2.msra.mxu0 0.0
    %5045 = vmatprep.subr.mxu0 0.0
    %5046 = vmatpush2.msra.mxu0 0.0
    %5047 = vmatprep.subr.mxu0 0.0
    %5048 = vmatpush2.msra.mxu0 0.0
    %5049 = vmatprep.subr.mxu0 0.0
    %5050 = vmatpush2.msra.mxu0 0.0
    %5051 = vmatprep.subr.mxu0 0.0
    %5052 = vmatpush2.msra.mxu0 0.0
    %5053 = vmatprep.subr.mxu0 0.0
    %5054 = vmatpush2.msra.mxu0 0.0
    %5055 = vmatprep.subr.mxu0 0.0
    %5056 = vmatpush2.msra.mxu0 0.0
    %5057 = vmatprep.subr.mxu0 0.0
    %5058 = vmatpush2.msra.mxu0 0.0
    %5059 = vmatprep.subr.mxu0 0.0
    %5060 = vmatpush2.msra.mxu0 0.0
    %5061 = vmatprep.subr.mxu0 0.0
    %5062 = vmatpush2.msra.mxu0 0.0
    %5063 = vmatprep.subr.mxu0 0.0
    %5064 = vmatpush2.msra.mxu0 0.0
    %5065 = vmatprep.mubr.f32.mxu0 0.0
    %5066 = vmatmul.mubr.f32.gmra.mxu0 %v4983
    %v5067 = vpop.f32.mrf.mxu0
    %v5068 = vadd.f32 %v5000, %v5067
    %v5069 = vpop.f32.mrf.mxu0
    %5070 = vdwg.mxu0
    %v5071 = vmax.f32 %v5068, 0.0
    %v5072 = vld [vmem:[%s85] sm:$0xff]
    %v5073 = vld [vmem:[%s85 + $0x8] sm:$0xff]
    %v5074 = vld [vmem:[%s85 + $0x10] sm:$0xff]
    %v5075 = vld [vmem:[%s85 + $0x18] sm:$0xff]
    %v5076 = vld [vmem:[%s85 + $0x20] sm:$0xff]
    %v5077 = vld [vmem:[%s85 + $0x28] sm:$0xff]
    %v5078 = vld [vmem:[%s85 + $0x30] sm:$0xff]
    %v5079 = vld [vmem:[%s85 + $0x38] sm:$0xff]
    %v5080 = vld [vmem:[#allocation2 + $0x94] ss:$0 sm:$0xff]
    %v5082 = vsel %vm716, %v5071, 0
    %5084 = vmatprep.subr.mxu0 0.0
    %5085 = vmatpush1.msra.mxu0 0.0
    %5086 = vmatprep.subr.mxu0 0.0
    %5087 = vmatpush1.msra.mxu0 0.0
    %5088 = vmatprep.subr.mxu0 0.0
    %5089 = vmatpush1.msra.mxu0 0.0
    %5090 = vmatprep.subr.mxu0 0.0
    %5091 = vmatpush1.msra.mxu0 0.0
    %5092 = vmatprep.subr.mxu0 0.0
    %5093 = vmatpush1.msra.mxu0 0.0
    %5094 = vmatprep.subr.mxu0 0.0
    %5095 = vmatpush1.msra.mxu0 0.0
    %5096 = vmatprep.subr.mxu0 0.0
    %5097 = vmatpush1.msra.mxu0 0.0
    %5098 = vmatprep.subr.mxu0 0.0
    %5099 = vmatpush1.msra.mxu0 0.0
    %5100 = vmatprep.subr.mxu0 0.0
    %5101 = vmatpush1.msra.mxu0 %v5079
    %5102 = vmatprep.subr.mxu0 0.0
    %5103 = vmatpush1.msra.mxu0 %v5078
    %5104 = vmatprep.subr.mxu0 0.0
    %5105 = vmatpush1.msra.mxu0 %v5077
    %5106 = vmatprep.subr.mxu0 0.0
    %5107 = vmatpush1.msra.mxu0 %v5076
    %5108 = vmatprep.subr.mxu0 0.0
    %5109 = vmatpush1.msra.mxu0 %v5075
    %5110 = vmatprep.subr.mxu0 0.0
    %5111 = vmatpush1.msra.mxu0 %v5074
    %5112 = vmatprep.subr.mxu0 0.0
    %5113 = vmatpush1.msra.mxu0 %v5073
    %5114 = vmatprep.subr.mxu0 0.0
    %5115 = vmatpush1.msra.mxu0 %v5072
    %5116 = vmatprep.subr.mxu0 0.0
    %5117 = vmatpush2.msra.mxu0 0.0
    %5118 = vmatprep.subr.mxu0 0.0
    %5119 = vmatpush2.msra.mxu0 0.0
    %5120 = vmatprep.subr.mxu0 0.0
    %5121 = vmatpush2.msra.mxu0 0.0
    %5122 = vmatprep.subr.mxu0 0.0
    %5123 = vmatpush2.msra.mxu0 0.0
    %5124 = vmatprep.subr.mxu0 0.0
    %5125 = vmatpush2.msra.mxu0 0.0
    %5126 = vmatprep.subr.mxu0 0.0
    %5127 = vmatpush2.msra.mxu0 0.0
    %5128 = vmatprep.subr.mxu0 0.0
    %5129 = vmatpush2.msra.mxu0 0.0
    %5130 = vmatprep.subr.mxu0 0.0
    %5131 = vmatpush2.msra.mxu0 0.0
    %5132 = vmatprep.subr.mxu0 0.0
    %5133 = vmatpush2.msra.mxu0 0.0
    %5134 = vmatprep.subr.mxu0 0.0
    %5135 = vmatpush2.msra.mxu0 0.0
    %5136 = vmatprep.subr.mxu0 0.0
    %5137 = vmatpush2.msra.mxu0 0.0
    %5138 = vmatprep.subr.mxu0 0.0
    %5139 = vmatpush2.msra.mxu0 0.0
    %5140 = vmatprep.subr.mxu0 0.0
    %5141 = vmatpush2.msra.mxu0 0.0
    %5142 = vmatprep.subr.mxu0 0.0
    %5143 = vmatpush2.msra.mxu0 0.0
    %5144 = vmatprep.subr.mxu0 0.0
    %5145 = vmatpush2.msra.mxu0 0.0
    %5146 = vmatprep.subr.mxu0 0.0
    %5147 = vmatpush2.msra.mxu0 0.0
    %5148 = vmatprep.mubr.f32.mxu0 0.0
    %5149 = vmatmul.mubr.f32.gmra.mxu0 %v5082
    %v5150 = vpop.f32.mrf.mxu0
    %v5151 = vadd.f32 %v5080, %v5150
    %v5152 = vpop.f32.mrf.mxu0
    %5153 = vdwg.mxu0
    %v5154 = vmul.f32 %v5151, 1.442695
    %v5155 = vpow.pop %v5154
    %v5156 = vadd.f32 %v5155, 1.0
    %v5157 = vsel %vm1608, %v5156, 0.0
    %5158 = vadd.xlane.f32.xlu0 %v5157
    %v5159 = vpop.xlane.xlu0 %5158
    %v5160 = vrcp.pop %v5159
    %v5161 = vmul.f32 %v5156, %v5160
    %v5162 = vmul.f32 2.0, %v5160
    %v5163 = vld [vmem:[#allocation57] sm:$0xff]
    %v5164 = vld [vmem:[#allocation57 + $0x8] sm:$0xff]
    %v5165 = vld [vmem:[#allocation57 + $0x10] sm:$0xff]
    %v5166 = vld [vmem:[#allocation57 + $0x18] sm:$0xff]
    %v5167 = vld [vmem:[#allocation57 + $0x20] sm:$0xff]
    %v5168 = vld [vmem:[#allocation57 + $0x28] sm:$0xff]
    %v5169 = vld [vmem:[#allocation57 + $0x30] sm:$0xff]
    %v5170 = vld [vmem:[#allocation57 + $0x38] sm:$0xff]
    %v5171 = vld [vmem:[#allocation57 + $0x40] sm:$0xff]
    %v5172 = vld [vmem:[#allocation57 + $0x48] sm:$0xff]
    %v5173 = vld [vmem:[#allocation57 + $0x50] sm:$0xff]
    %v5174 = vld [vmem:[#allocation57 + $0x58] sm:$0xff]
    %v5175 = vld [vmem:[#allocation57 + $0x60] sm:$0xff]
    %v5176 = vld [vmem:[#allocation57 + $0x68] sm:$0xff]
    %v5177 = vld [vmem:[#allocation57 + $0x70] sm:$0xff]
    %v5178 = vld [vmem:[#allocation57 + $0x78] sm:$0xff]
    %v5179 = vld [vmem:[#allocation2 + $0x90] ss:$0 sm:$0xff]
    %5180 = vmatprep.subr.mxu0 0.0
    %5181 = vmatpush1.msra.mxu0 %v5178
    %5182 = vmatprep.subr.mxu0 0.0
    %5183 = vmatpush1.msra.mxu0 %v5177
    %5184 = vmatprep.subr.mxu0 0.0
    %5185 = vmatpush1.msra.mxu0 %v5176
    %5186 = vmatprep.subr.mxu0 0.0
    %5187 = vmatpush1.msra.mxu0 %v5175
    %5188 = vmatprep.subr.mxu0 0.0
    %5189 = vmatpush1.msra.mxu0 %v5174
    %5190 = vmatprep.subr.mxu0 0.0
    %5191 = vmatpush1.msra.mxu0 %v5173
    %5192 = vmatprep.subr.mxu0 0.0
    %5193 = vmatpush1.msra.mxu0 %v5172
    %5194 = vmatprep.subr.mxu0 0.0
    %5195 = vmatpush1.msra.mxu0 %v5171
    %5196 = vmatprep.subr.mxu0 0.0
    %5197 = vmatpush1.msra.mxu0 %v5170
    %5198 = vmatprep.subr.mxu0 0.0
    %5199 = vmatpush1.msra.mxu0 %v5169
    %5200 = vmatprep.subr.mxu0 0.0
    %5201 = vmatpush1.msra.mxu0 %v5168
    %5202 = vmatprep.subr.mxu0 0.0
    %5203 = vmatpush1.msra.mxu0 %v5167
    %5204 = vmatprep.subr.mxu0 0.0
    %5205 = vmatpush1.msra.mxu0 %v5166
    %5206 = vmatprep.subr.mxu0 0.0
    %5207 = vmatpush1.msra.mxu0 %v5165
    %5208 = vmatprep.subr.mxu0 0.0
    %5209 = vmatpush1.msra.mxu0 %v5164
    %5210 = vmatprep.subr.mxu0 0.0
    %5211 = vmatpush1.msra.mxu0 %v5163
    %5212 = vmatprep.subr.mxu0 0.0
    %5213 = vmatpush2.msra.mxu0 0.0
    %5214 = vmatprep.subr.mxu0 0.0
    %5215 = vmatpush2.msra.mxu0 0.0
    %5216 = vmatprep.subr.mxu0 0.0
    %5217 = vmatpush2.msra.mxu0 0.0
    %5218 = vmatprep.subr.mxu0 0.0
    %5219 = vmatpush2.msra.mxu0 0.0
    %5220 = vmatprep.subr.mxu0 0.0
    %5221 = vmatpush2.msra.mxu0 0.0
    %5222 = vmatprep.subr.mxu0 0.0
    %5223 = vmatpush2.msra.mxu0 0.0
    %5224 = vmatprep.subr.mxu0 0.0
    %5225 = vmatpush2.msra.mxu0 0.0
    %5226 = vmatprep.subr.mxu0 0.0
    %5227 = vmatpush2.msra.mxu0 0.0
    %5228 = vmatprep.subr.mxu0 0.0
    %5229 = vmatpush2.msra.mxu0 0.0
    %5230 = vmatprep.subr.mxu0 0.0
    %5231 = vmatpush2.msra.mxu0 0.0
    %5232 = vmatprep.subr.mxu0 0.0
    %5233 = vmatpush2.msra.mxu0 0.0
    %5234 = vmatprep.subr.mxu0 0.0
    %5235 = vmatpush2.msra.mxu0 0.0
    %5236 = vmatprep.subr.mxu0 0.0
    %5237 = vmatpush2.msra.mxu0 0.0
    %5238 = vmatprep.subr.mxu0 0.0
    %5239 = vmatpush2.msra.mxu0 0.0
    %5240 = vmatprep.subr.mxu0 0.0
    %5241 = vmatpush2.msra.mxu0 0.0
    %5242 = vmatprep.subr.mxu0 0.0
    %5243 = vmatpush2.msra.mxu0 0.0
    %5244 = vmatprep.mubr.f32.mxu0 0.0
    %5245 = vmatmul.mubr.f32.gmra.mxu0 %v4524
    %v5246 = vpop.f32.mrf.mxu0
    %v5247 = vadd.f32 %v5179, %v5246
    %v5248 = vpop.f32.mrf.mxu0
    %5249 = vdwg.mxu0
    %v5250 = vmax.f32 %v5247, 0.0
    %v5251 = vld [vmem:[%s79] sm:$0xff]
    %v5252 = vld [vmem:[%s79 + $0x8] sm:$0xff]
    %v5253 = vld [vmem:[%s79 + $0x10] sm:$0xff]
    %v5254 = vld [vmem:[%s79 + $0x18] sm:$0xff]
    %v5255 = vld [vmem:[#allocation2 + $0x91] ss:$0 sm:$0xff]
    %v5257 = vsel %vm918, %v5250, 0
    %5259 = vmatprep.subr.mxu0 0.0
    %5260 = vmatpush1.msra.mxu0 0.0
    %5261 = vmatprep.subr.mxu0 0.0
    %5262 = vmatpush1.msra.mxu0 0.0
    %5263 = vmatprep.subr.mxu0 0.0
    %5264 = vmatpush1.msra.mxu0 0.0
    %5265 = vmatprep.subr.mxu0 0.0
    %5266 = vmatpush1.msra.mxu0 0.0
    %5267 = vmatprep.subr.mxu0 0.0
    %5268 = vmatpush1.msra.mxu0 0.0
    %5269 = vmatprep.subr.mxu0 0.0
    %5270 = vmatpush1.msra.mxu0 0.0
    %5271 = vmatprep.subr.mxu0 0.0
    %5272 = vmatpush1.msra.mxu0 0.0
    %5273 = vmatprep.subr.mxu0 0.0
    %5274 = vmatpush1.msra.mxu0 0.0
    %5275 = vmatprep.subr.mxu0 0.0
    %5276 = vmatpush1.msra.mxu0 0.0
    %5277 = vmatprep.subr.mxu0 0.0
    %5278 = vmatpush1.msra.mxu0 0.0
    %5279 = vmatprep.subr.mxu0 0.0
    %5280 = vmatpush1.msra.mxu0 0.0
    %5281 = vmatprep.subr.mxu0 0.0
    %5282 = vmatpush1.msra.mxu0 0.0
    %5283 = vmatprep.subr.mxu0 0.0
    %5284 = vmatpush1.msra.mxu0 %v5254
    %5285 = vmatprep.subr.mxu0 0.0
    %5286 = vmatpush1.msra.mxu0 %v5253
    %5287 = vmatprep.subr.mxu0 0.0
    %5288 = vmatpush1.msra.mxu0 %v5252
    %5289 = vmatprep.subr.mxu0 0.0
    %5290 = vmatpush1.msra.mxu0 %v5251
    %5291 = vmatprep.subr.mxu0 0.0
    %5292 = vmatpush2.msra.mxu0 0.0
    %5293 = vmatprep.subr.mxu0 0.0
    %5294 = vmatpush2.msra.mxu0 0.0
    %5295 = vmatprep.subr.mxu0 0.0
    %5296 = vmatpush2.msra.mxu0 0.0
    %5297 = vmatprep.subr.mxu0 0.0
    %5298 = vmatpush2.msra.mxu0 0.0
    %5299 = vmatprep.subr.mxu0 0.0
    %5300 = vmatpush2.msra.mxu0 0.0
    %5301 = vmatprep.subr.mxu0 0.0
    %5302 = vmatpush2.msra.mxu0 0.0
    %5303 = vmatprep.subr.mxu0 0.0
    %5304 = vmatpush2.msra.mxu0 0.0
    %5305 = vmatprep.subr.mxu0 0.0
    %5306 = vmatpush2.msra.mxu0 0.0
    %5307 = vmatprep.subr.mxu0 0.0
    %5308 = vmatpush2.msra.mxu0 0.0
    %5309 = vmatprep.subr.mxu0 0.0
    %5310 = vmatpush2.msra.mxu0 0.0
    %5311 = vmatprep.subr.mxu0 0.0
    %5312 = vmatpush2.msra.mxu0 0.0
    %5313 = vmatprep.subr.mxu0 0.0
    %5314 = vmatpush2.msra.mxu0 0.0
    %5315 = vmatprep.subr.mxu0 0.0
    %5316 = vmatpush2.msra.mxu0 0.0
    %5317 = vmatprep.subr.mxu0 0.0
    %5318 = vmatpush2.msra.mxu0 0.0
    %5319 = vmatprep.subr.mxu0 0.0
    %5320 = vmatpush2.msra.mxu0 0.0
    %5321 = vmatprep.subr.mxu0 0.0
    %5322 = vmatpush2.msra.mxu0 0.0
    %5323 = vmatprep.mubr.f32.mxu0 0.0
    %5324 = vmatmul.mubr.f32.gmra.mxu0 %v5257
    %v5325 = vpop.f32.mrf.mxu0
    %v5326 = vadd.f32 %v5255, %v5325
    %v5327 = vpop.f32.mrf.mxu0
    %5328 = vdwg.mxu0
    %v5329 = vsub.f32 0.0, %v5326
    %v5330 = vmul.f32 %v5329, 1.442695
    %v5331 = vpow.pop %v5330
    %v5332 = vadd.f32 %v5331, 1.0
    %v5333 = vrcp.pop %v5332
    %v5334 = vmul.f32 1.0, %v5333
    %v5335 = vsub.f32 1.0, %v5334
    %v5336 = vmul.f32 %v5162, %v5335
    %vm5337 = vcmask 15360
    %5338 = vst.msk [vmem:[%s87] sm:$0xff] %vm5337, %v4893
    %5340 = vrot.lane.b32.xlu0 %v5161, 2
    %v5341 = vpop.permute.xlu0 %5340
    %vm5343 = vcmask 48144
    %5344 = vst.msk [vmem:[%s87] sm:$0xff] %vm5343, %v5341
    %5346 = vrot.lane.b32.xlu0 %v5336, 6
    %v5347 = vpop.permute.xlu0 %5346
    %vm5349 = vcmask 56368
    %5350 = vst.msk [vmem:[%s87] sm:$0xff] %vm5349, %v5347
    %vm5351 = vcmask 64568
    %5352 = vst.msk [vmem:[%s87] sm:$0xff] %vm5351, 0.0
    // Predicated region
    $region330: #{_lambda_.1} parent=1 // pred_check
      _
    $region331: #{_lambda_.1} parent=1 // pred_check_branch
      %5354 = sbr.rel (0) target = $region333
    $region332: #{_lambda_.1} parent=1 // pred_region
      _
    $region333: #{_lambda_.1} parent=1 // pred_fallthru
      _
    // Predicated region
    $region334: #{_lambda_.1} parent=1 // pred_check
      _
    $region335: #{_lambda_.1} parent=1 // pred_check_branch
      %5356 = sbr.rel (0) target = $region337
    $region336: #{_lambda_.1} parent=1 // pred_region
      _
    $region337: #{_lambda_.1} parent=1 // pred_fallthru
      _
    %5357 = vsyncpa [#allocation3], 1
    %5358 = vsyncpa [#allocation5], 1
    %5359 = vsyncpa [#allocation8], 1
    %5360 = vsyncpa [#allocation11], 1
    %5361 = vsyncpa [#allocation14], 1
    %5362 = vsyncpa [#allocation17], 1
    %5363 = vsyncpa [#allocation20], 1
    %5364 = vsyncpa [#allocation23], 1
    %5365 = vsyncpa [#allocation26], 1
    %5366 = vsyncpa [#allocation29], 1
    %5367 = vsyncpa [#allocation32], 1
    %5368 = vsyncpa [#allocation35], 1
    %5369 = vsyncpa [#allocation38], 1
    %5370 = vsyncpa [#allocation41], 1
    %5371 = vsyncpa [#allocation44], 1
    %5372 = vsyncpa [#allocation47], 1
    %5373 = vsyncpa [#allocation50], 1
    %5374 = vsyncpa [#allocation53], 1
    %5375 = vsyncpa [#allocation56], 1
    %5376 = vsyncpa [#allocation59], 1

</llo_original>
